<compile_context>
chip_gen: v7x
topology: tpu7x:2x2x1
jax: 0.10.0
libtpu: 0.0.40
codegen_flags: <defaults>
</compile_context>

<pallas_src>
import functools
import math

import jax
import jax.numpy as jnp
from jax import lax
from jax.experimental import pallas as pl
from jax.experimental.pallas import tpu as pltpu

LN_EPS = 1e-5


# ----------------------------------------------------------------------------
# hardware-derived VMEM budget / tile caps
# ----------------------------------------------------------------------------
def _vmem_capacity_bytes():
    try:
        return int(pltpu.get_tpu_info().vmem_capacity_bytes)
    except Exception:
        return 64 * 1024 * 1024            # conservative (v7x-sized) fallback


_VMEM_CAP = _vmem_capacity_bytes()
VMEM_LIMIT_BYTES = min(max(_VMEM_CAP // 2, 32 * 1024 * 1024), 96 * 1024 * 1024)
TILE_VMEM_BUDGET = VMEM_LIMIT_BYTES // 4

if _VMEM_CAP >= 96 * 1024 * 1024:          # v5e / v6e: 128 MiB VMEM
    TM_CAP, TN_CAP, TK_CAP = 1024, 512, 2048
else:                                      # v7x: 64 MiB VMEM per TensorCore
    TM_CAP, TN_CAP, TK_CAP = 512, 512, 1024


def _choose_tile(dim, unit, cap):
    """Full dim if it fits under cap (full-extent blocks are always legal),
    else the largest multiple of `unit` dividing `dim` that is <= cap.
    NOTE: falls back to the full dim if no divisor exists (may exceed cap)."""
    if dim <= cap:
        return dim
    t = (cap // unit) * unit
    while t >= unit:
        if dim % t == 0:
            return t
        t -= unit
    return dim


# ----------------------------------------------------------------------------
# sinusoidal positional table (buffer setup = glue; odd emb_size safe)
# ----------------------------------------------------------------------------
def make_pos_embedding(emb_size: int, maxlen: int = 5000) -> jnp.ndarray:
    den = jnp.exp(-jnp.arange(0, emb_size, 2, dtype=jnp.float32)
                  * (math.log(10000.0) / emb_size))
    pos = jnp.arange(0, maxlen, dtype=jnp.float32)[:, None]
    angles = pos * den[None, :]
    pe = jnp.zeros((maxlen, emb_size), dtype=jnp.float32)
    pe = pe.at[:, 0::2].set(jnp.sin(angles))
    pe = pe.at[:, 1::2].set(jnp.cos(angles)[:, : emb_size // 2])
    return pe


# ----------------------------------------------------------------------------
# kernel 1: positional-encoding add  (one batch per grid step, full sublanes)
# ----------------------------------------------------------------------------
def _pos_add_kernel(x_ref, pos_ref, o_ref):
    o_ref[...] = x_ref[...] + pos_ref[...]


def add_positional_encoding(x, pos_table):
    """x: (B, S, E); pos_table: (maxlen, E).  Returns x + pos (dropout=identity)."""
    B, S, E = x.shape
    pos = pos_table[:S]
    return pl.pallas_call(
        _pos_add_kernel,
        out_shape=jax.ShapeDtypeStruct((B, S, E), x.dtype),
        grid_spec=pltpu.PrefetchScalarGridSpec(
            num_scalar_prefetch=0,
            grid=(B,),
            in_specs=[
                pl.BlockSpec((pl.Squeezed(), S, E), lambda b: (b, 0, 0)),
                pl.BlockSpec((S, E), lambda b: (0, 0)),
            ],
            out_specs=pl.BlockSpec((pl.Squeezed(), S, E), lambda b: (b, 0, 0)),
        ),
        compiler_params=pltpu.CompilerParams(
            dimension_semantics=("parallel",),
            vmem_limit_bytes=VMEM_LIMIT_BYTES,
        ),
        input_output_aliases={0: 0},        # update the embedding in place
    )(x, pos)


# ----------------------------------------------------------------------------
# kernel 2: matmul + bias (+ optional ReLU); single-K-block fast path
# ----------------------------------------------------------------------------
def _matmul_bias_kernel(x_ref, w_ref, b_ref, o_ref, *, activation):
    r = jnp.dot(x_ref[...], w_ref[...], preferred_element_type=jnp.float32)
    r = r + b_ref[...]
    if activation == "relu":
        r = jnp.maximum(r, 0.0)
    o_ref[...] = r.astype(o_ref.dtype)


def _matmul_bias_acc_kernel(x_ref, w_ref, b_ref, o_ref, acc_ref, *, activation):
    @pl.when(pl.program_id(2) == 0)
    def _():
        acc_ref[...] = jnp.zeros_like(acc_ref)

    acc_ref[...] += jnp.dot(x_ref[...], w_ref[...],
                            preferred_element_type=jnp.float32)

    @pl.when(pl.program_id(2) == pl.num_programs(2) - 1)
    def _():
        r = acc_ref[...] + b_ref[...]
        if activation == "relu":
            r = jnp.maximum(r, 0.0)
        o_ref[...] = r.astype(o_ref.dtype)


def linear(x, w, b, activation=None):
    """x: (M, K), w: (K, N), b: (N,) -> (M, N)."""
    M, K = x.shape
    K2, N = w.shape
    assert K == K2
    tm = _choose_tile(M, 8, TM_CAP)
    tn = _choose_tile(N, 128, TN_CAP)
    tk = _choose_tile(K, 128, TK_CAP)
    # v7x has 2 TensorCores: split big single-block matmuls across a parallel axis.
    if M // tm == 1 and N // tn == 1 and M >= 256 and M % 16 == 0:
        tm = _choose_tile(M, 8, max(8, M // 2))
    b2 = b.reshape(1, N)

    if tk == K:
        # single K block: no accumulator scratch, no predicated regions
        kernel = functools.partial(_matmul_bias_kernel, activation=activation)
        return pl.pallas_call(
            kernel,
            out_shape=jax.ShapeDtypeStruct((M, N), x.dtype),
            grid_spec=pltpu.PrefetchScalarGridSpec(
                num_scalar_prefetch=0,
                grid=(M // tm, N // tn),
                in_specs=[
                    pl.BlockSpec((tm, K), lambda i, j: (i, 0)),
                    pl.BlockSpec((K, tn), lambda i, j: (0, j)),
                    pl.BlockSpec((1, tn), lambda i, j: (0, j)),
                ],
                out_specs=pl.BlockSpec((tm, tn), lambda i, j: (i, j)),
            ),
            compiler_params=pltpu.CompilerParams(
                dimension_semantics=("parallel", "parallel"),
                vmem_limit_bytes=VMEM_LIMIT_BYTES,
            ),
        )(x, w, b2)

    kernel = functools.partial(_matmul_bias_acc_kernel, activation=activation)
    return pl.pallas_call(
        kernel,
        out_shape=jax.ShapeDtypeStruct((M, N), x.dtype),
        grid_spec=pltpu.PrefetchScalarGridSpec(
            num_scalar_prefetch=0,
            grid=(M // tm, N // tn, K // tk),
            in_specs=[
                pl.BlockSpec((tm, tk), lambda i, j, k: (i, k)),
                pl.BlockSpec((tk, tn), lambda i, j, k: (k, j)),
                pl.BlockSpec((1, tn), lambda i, j, k: (0, j)),
            ],
            out_specs=pl.BlockSpec((tm, tn), lambda i, j, k: (i, j)),
            scratch_shapes=[pltpu.VMEM((tm, tn), jnp.float32)],
        ),
        compiler_params=pltpu.CompilerParams(
            dimension_semantics=("parallel", "parallel", "arbitrary"),
            vmem_limit_bytes=VMEM_LIMIT_BYTES,
        ),
    )(x, w, b2)


# ----------------------------------------------------------------------------
# kernel 3: matmul + bias + residual + LayerNorm (attention output projection)
# ----------------------------------------------------------------------------
def _layernorm(y, g, b, eps):
    mean = jnp.mean(y, axis=-1, keepdims=True)
    yc = y - mean
    var = jnp.mean(yc * yc, axis=-1, keepdims=True)
    return (yc * lax.rsqrt(var + eps)) * g + b


def _matmul_ln_kernel(x_ref, w_ref, b_ref, r_ref, g_ref, bt_ref, o_ref, *, eps):
    y = jnp.dot(x_ref[...], w_ref[...], preferred_element_type=jnp.float32)
    y = y + b_ref[...] + r_ref[...]
    o_ref[...] = _layernorm(y, g_ref[...], bt_ref[...], eps).astype(o_ref.dtype)


def linear_residual_layernorm(x, w, b, residual, gamma, beta, eps=LN_EPS):
    """LayerNorm(residual + x @ w + b); requires full-K and full-N blocks."""
    M, K = x.shape
    _, N = w.shape
    row_bytes = (K + 2 * N) * 4 * 2
    cap = max(8, min(1024, TILE_VMEM_BUDGET // max(row_bytes, 1)))
    tm = _choose_tile(M, 8, cap)
    kernel = functools.partial(_matmul_ln_kernel, eps=eps)
    return pl.pallas_call(
        kernel,
        out_shape=jax.ShapeDtypeStruct((M, N), x.dtype),
        grid_spec=pltpu.PrefetchScalarGridSpec(
            num_scalar_prefetch=0,
            grid=(M // tm,),
            in_specs=[
                pl.BlockSpec((tm, K), lambda i: (i, 0)),
                pl.BlockSpec((K, N), lambda i: (0, 0)),
                pl.BlockSpec((1, N), lambda i: (0, 0)),
                pl.BlockSpec((tm, N), lambda i: (i, 0)),
                pl.BlockSpec((1, N), lambda i: (0, 0)),
                pl.BlockSpec((1, N), lambda i: (0, 0)),
            ],
            out_specs=pl.BlockSpec((tm, N), lambda i: (i, 0)),
        ),
        compiler_params=pltpu.CompilerParams(
            dimension_semantics=("parallel",),
            vmem_limit_bytes=VMEM_LIMIT_BYTES,
        ),
    )(x, w, b.reshape(1, N), residual, gamma.reshape(1, N), beta.reshape(1, N))


# ----------------------------------------------------------------------------
# kernel 4: fused FFN  LN(x + relu(x@w1+b1)@w2 + b2); hidden stays in VMEM
# ----------------------------------------------------------------------------
def _ffn_ln_kernel(x_ref, w1_ref, b1_ref, w2_ref, b2_ref, g_ref, bt_ref, o_ref, *, eps):
    x = x_ref[...]
    h = jnp.dot(x, w1_ref[...], preferred_element_type=jnp.float32) + b1_ref[...]
    h = jnp.maximum(h, 0.0)
    y = jnp.dot(h, w2_ref[...], preferred_element_type=jnp.float32) + b2_ref[...]
    y = y + x
    o_ref[...] = _layernorm(y, g_ref[...], bt_ref[...], eps).astype(o_ref.dtype)


def ffn_residual_layernorm(x, w1, b1, w2, b2, gamma, beta, eps=LN_EPS):
    M, E = x.shape
    F = w1.shape[1]
    row_bytes = (2 * E + F) * 4 * 2 + F * 4
    cap = max(8, min(1024, TILE_VMEM_BUDGET // max(row_bytes, 1)))
    tm = _choose_tile(M, 8, cap)
    kernel = functools.partial(_ffn_ln_kernel, eps=eps)
    return pl.pallas_call(
        kernel,
        out_shape=jax.ShapeDtypeStruct((M, E), x.dtype),
        grid_spec=pltpu.PrefetchScalarGridSpec(
            num_scalar_prefetch=0,
            grid=(M // tm,),
            in_specs=[
                pl.BlockSpec((tm, E), lambda i: (i, 0)),
                pl.BlockSpec((E, F), lambda i: (0, 0)),
                pl.BlockSpec((1, F), lambda i: (0, 0)),
                pl.BlockSpec((F, E), lambda i: (0, 0)),
                pl.BlockSpec((1, E), lambda i: (0, 0)),
                pl.BlockSpec((1, E), lambda i: (0, 0)),
                pl.BlockSpec((1, E), lambda i: (0, 0)),
            ],
            out_specs=pl.BlockSpec((tm, E), lambda i: (i, 0)),
        ),
        compiler_params=pltpu.CompilerParams(
            dimension_semantics=("parallel",),
            vmem_limit_bytes=VMEM_LIMIT_BYTES,
        ),
    )(x, w1, b1.reshape(1, F), w2, b2.reshape(1, E),
      gamma.reshape(1, E), beta.reshape(1, E))


# ----------------------------------------------------------------------------
# kernel 5: attention — all heads of one batch per grid step, no transposes
# ----------------------------------------------------------------------------
def _attention_kernel(*refs, scale, has_mask):
    if has_mask:
        q_ref, k_ref, v_ref, mask_ref, o_ref = refs
    else:
        q_ref, k_ref, v_ref, o_ref = refs
        mask_ref = None
    q = q_ref[...]                              # (Sq, H, Dh)
    k = k_ref[...]                              # (Sk, H, Dh)
    v = v_ref[...]                              # (Sk, H, Dh)
    # contract head_dim (last axis of both) with heads batched: no in-kernel k.T
    s = jnp.einsum("qhd,khd->hqk", q, k,
                   preferred_element_type=jnp.float32) * scale
    if mask_ref is not None:
        s = s + mask_ref[...][None, :, :]       # additive mask (0 / -inf)
    m = jnp.max(s, axis=-1, keepdims=True)
    p = jnp.exp(s - m)
    l = jnp.sum(p, axis=-1, keepdims=True)
    p = p * pl.reciprocal(l, approx=True)       # EUP divide
    o = jnp.einsum("hqk,khd->qhd", p, v, preferred_element_type=jnp.float32)
    o_ref[...] = o.astype(o_ref.dtype)


def fused_attention(q, k, v, mask, nhead):
    """q: (B, Sq, E), k/v: (B, Sk, E) already projected; mask (Sq, Sk) or None."""
    B, Sq, E = q.shape
    Sk = k.shape[1]
    Dh = E // nhead
    q4 = q.reshape(B, Sq, nhead, Dh)            # free reshapes (contiguous)
    k4 = k.reshape(B, Sk, nhead, Dh)
    v4 = v.reshape(B, Sk, nhead, Dh)

    has_mask = mask is not None
    kernel = functools.partial(_attention_kernel,
                               scale=1.0 / math.sqrt(Dh), has_mask=has_mask)
    in_specs = [
        pl.BlockSpec((pl.Squeezed(), Sq, nhead, Dh), lambda b: (b, 0, 0, 0)),
        pl.BlockSpec((pl.Squeezed(), Sk, nhead, Dh), lambda b: (b, 0, 0, 0)),
        pl.BlockSpec((pl.Squeezed(), Sk, nhead, Dh), lambda b: (b, 0, 0, 0)),
    ]
    inputs = [q4, k4, v4]
    if has_mask:
        in_specs.append(pl.BlockSpec((Sq, Sk), lambda b: (0, 0)))
        inputs.append(mask.astype(jnp.float32))

    out = pl.pallas_call(
        kernel,
        out_shape=jax.ShapeDtypeStruct((B, Sq, nhead, Dh), q.dtype),
        grid_spec=pltpu.PrefetchScalarGridSpec(
            num_scalar_prefetch=0,
            grid=(B,),
            in_specs=in_specs,
            out_specs=pl.BlockSpec((pl.Squeezed(), Sq, nhead, Dh),
                                   lambda b: (b, 0, 0, 0)),
        ),
        compiler_params=pltpu.CompilerParams(
            dimension_semantics=("parallel",),
            vmem_limit_bytes=VMEM_LIMIT_BYTES,
        ),
    )(*inputs)
    return out.reshape(B, Sq, E)                # free reshape back to (B, Sq, E)


# ----------------------------------------------------------------------------
# transformer blocks
# ----------------------------------------------------------------------------
def self_attention_block(x, mask, p, nhead, gamma, beta):
    B, S, E = x.shape
    M = B * S
    xf = x.reshape(M, E)
    qkv = linear(xf, p["w_qkv"], p["b_qkv"]).reshape(B, S, 3 * E)   # fused QKV
    q, k, v = qkv[..., :E], qkv[..., E:2 * E], qkv[..., 2 * E:]
    attn = fused_attention(q, k, v, mask, nhead)
    out = linear_residual_layernorm(attn.reshape(M, E), p["wo"], p["bo"],
                                    xf, gamma, beta)
    return out.reshape(B, S, E)


def cross_attention_block(x, memory, p, nhead, gamma, beta):
    B, S, E = x.shape
    Sk = memory.shape[1]
    M = B * S
    xf = x.reshape(M, E)
    q = linear(xf, p["wq"], p["bq"]).reshape(B, S, E)
    kv = linear(memory.reshape(B * Sk, E), p["w_kv"], p["b_kv"]).reshape(B, Sk, 2 * E)
    k, v = kv[..., :E], kv[..., E:]
    attn = fused_attention(q, k, v, None, nhead)
    out = linear_residual_layernorm(attn.reshape(M, E), p["wo"], p["bo"],
                                    xf, gamma, beta)
    return out.reshape(B, S, E)


def ffn_block(x, layer):
    B, S, E = x.shape
    out = ffn_residual_layernorm(x.reshape(B * S, E),
                                 layer["w1"], layer["b1"],
                                 layer["w2"], layer["b2"],
                                 layer["ln3_g"], layer["ln3_b"])
    return out.reshape(B, S, E)


# ----------------------------------------------------------------------------
# model: parameters + forward pass
# ----------------------------------------------------------------------------
def init_params(key, num_tokens, emb_size, nhead, ffn_hid_dim, num_layers, max_seq_len):
    def dense(k, shape, scale=0.02):
        return (scale * jax.random.normal(k, shape)).astype(jnp.float32)

    n_per_layer = 7
    keys = jax.random.split(key, 2 + num_layers * n_per_layer)
    emb_key, out_key, layer_keys = keys[0], keys[1], keys[2:]

    layers = []
    for l in range(num_layers):
        ks = layer_keys[l * n_per_layer:(l + 1) * n_per_layer]
        layers.append({
            "self_attn": {
                "w_qkv": dense(ks[0], (emb_size, 3 * emb_size)),
                "b_qkv": jnp.zeros((3 * emb_size,), jnp.float32),
                "wo": dense(ks[1], (emb_size, emb_size)),
                "bo": jnp.zeros((emb_size,), jnp.float32),
            },
            "cross_attn": {
                "wq": dense(ks[2], (emb_size, emb_size)),
                "bq": jnp.zeros((emb_size,), jnp.float32),
                "w_kv": dense(ks[3], (emb_size, 2 * emb_size)),
                "b_kv": jnp.zeros((2 * emb_size,), jnp.float32),
                "wo": dense(ks[4], (emb_size, emb_size)),
                "bo": jnp.zeros((emb_size,), jnp.float32),
            },
            "ln1_g": jnp.ones((emb_size,), jnp.float32), "ln1_b": jnp.zeros((emb_size,), jnp.float32),
            "ln2_g": jnp.ones((emb_size,), jnp.float32), "ln2_b": jnp.zeros((emb_size,), jnp.float32),
            "ln3_g": jnp.ones((emb_size,), jnp.float32), "ln3_b": jnp.zeros((emb_size,), jnp.float32),
            "w1": dense(ks[5], (emb_size, ffn_hid_dim)), "b1": jnp.zeros((ffn_hid_dim,), jnp.float32),
            "w2": dense(ks[6], (ffn_hid_dim, emb_size)), "b2": jnp.zeros((emb_size,), jnp.float32),
        })

    return {
        "embedding": dense(emb_key, (num_tokens, emb_size), scale=1.0),
        "pos_table": make_pos_embedding(emb_size, max_seq_len),
        "layers": layers,
        "w_out": dense(out_key, (emb_size, num_tokens)),
        "b_out": jnp.zeros((num_tokens,), jnp.float32),
    }


def generate_square_subsequent_mask(sz):
    # 0.0 on/below diagonal, -inf strictly above (matches the PyTorch helper).
    return jnp.triu(jnp.full((sz, sz), float("-inf"), dtype=jnp.float32), k=1)


@functools.partial(jax.jit, static_argnames=("nhead",))
def music_transformer_forward(params, src, tgt_mask, *, nhead):
    B, S = src.shape
    E = params["embedding"].shape[1]
    tok = jnp.take(params["embedding"], src, axis=0)          # gather (XLA)
    x = add_positional_encoding(tok, params["pos_table"])     # Pallas
    memory = x
    for layer in params["layers"]:
        x = self_attention_block(x, tgt_mask, layer["self_attn"], nhead,
                                 layer["ln1_g"], layer["ln1_b"])
        x = cross_attention_block(x, memory, layer["cross_attn"], nhead,
                                  layer["ln2_g"], layer["ln2_b"])
        x = ffn_block(x, layer)
    logits = linear(x.reshape(B * S, E), params["w_out"], params["b_out"])
    return logits.reshape(B, S, -1)


# ----------------------------------------------------------------------------
# pure-JAX reference (same params, eval-mode semantics)
# ----------------------------------------------------------------------------
def _reference_forward(params, src, tgt_mask, nhead):
    E = params["embedding"].shape[1]
    x = params["embedding"][src] + params["pos_table"][: src.shape[1]][None]
    memory = x

    def mha(q, k, v, mask, wq, bq, wk, bk, wv, bv, wo, bo):
        B, Sq, _ = q.shape
        Sk = k.shape[1]
        Dh = E // nhead
        qh = (q @ wq + bq).reshape(B, Sq, nhead, Dh).transpose(0, 2, 1, 3)
        kh = (k @ wk + bk).reshape(B, Sk, nhead, Dh).transpose(0, 2, 1, 3)
        vh = (v @ wv + bv).reshape(B, Sk, nhead, Dh).transpose(0, 2, 1, 3)
        s = jnp.einsum("bhqd,bhkd->bhqk", qh, kh) / math.sqrt(Dh)
        if mask is not None:
            s = s + mask
        a = jax.nn.softmax(s, axis=-1)
        o = jnp.einsum("bhqk,bhkd->bhqd", a, vh).transpose(0, 2, 1, 3).reshape(B, Sq, E)
        return o @ wo + bo

    def ln(y, g, b):
        m = y.mean(-1, keepdims=True)
        v = ((y - m) ** 2).mean(-1, keepdims=True)
        return (y - m) * lax.rsqrt(v + LN_EPS) * g + b

    for layer in params["layers"]:
        sp = layer["self_attn"]
        sa = mha(x, x, x, tgt_mask,
                 sp["w_qkv"][:, :E], sp["b_qkv"][:E],
                 sp["w_qkv"][:, E:2 * E], sp["b_qkv"][E:2 * E],
                 sp["w_qkv"][:, 2 * E:], sp["b_qkv"][2 * E:],
                 sp["wo"], sp["bo"])
        x = ln(x + sa, layer["ln1_g"], layer["ln1_b"])
        cp = layer["cross_attn"]
        ca = mha(x, memory, memory, None,
                 cp["wq"], cp["bq"],
                 cp["w_kv"][:, :E], cp["b_kv"][:E],
                 cp["w_kv"][:, E:], cp["b_kv"][E:],
                 cp["wo"], cp["bo"])
        x = ln(x + ca, layer["ln2_g"], layer["ln2_b"])
        h = jnp.maximum(x @ layer["w1"] + layer["b1"], 0.0)
        x = ln(x + h @ layer["w2"] + layer["b2"], layer["ln3_g"], layer["ln3_b"])
    return x @ params["w_out"] + params["b_out"]


# ----------------------------------------------------------------------------
if __name__ == "__main__":
    NUM_TOKENS = 128
    EMB_SIZE = 32
    NHEAD = 4
    FFN_HID_DIM = 64
    NUM_LAYERS = 2
    MAX_SEQ_LEN = 64
    B, S = 2, 8

    key = jax.random.PRNGKey(0)
    k_params, k_src = jax.random.split(key)
    params = init_params(k_params, NUM_TOKENS, EMB_SIZE, NHEAD, FFN_HID_DIM,
                         NUM_LAYERS, MAX_SEQ_LEN)
    src = jax.random.randint(k_src, (B, S), 0, NUM_TOKENS, dtype=jnp.int32)
    tgt_mask = generate_square_subsequent_mask(S)

    logits = music_transformer_forward(params, src, tgt_mask, nhead=NHEAD)
    logits = jax.block_until_ready(logits)
    assert logits.shape == (B, S, NUM_TOKENS), logits.shape
    assert bool(jnp.all(jnp.isfinite(logits))), "non-finite logits"

    ref = _reference_forward(params, src, tgt_mask, NHEAD)
    max_diff = float(jnp.max(jnp.abs(logits - ref)))
    assert max_diff < 3e-2, f"mismatch vs pure-JAX reference: max_abs_diff={max_diff}"

    print("KERNEL_OK")
</pallas_src>

<mosaic_0001>
module attributes {stable_mosaic.version = 11 : i64} {
  func.func @_matmul_bias_kernel(%arg0: i32, %arg1: i32, %arg2: memref<16x32xf32, #tpu.memory_space<vmem>>, %arg3: memref<32x96xf32, #tpu.memory_space<vmem>>, %arg4: memref<1x96xf32, #tpu.memory_space<vmem>>, %arg5: memref<16x96xf32, #tpu.memory_space<vmem>>) attributes {dimension_semantics = [#tpu.dimension_semantics<parallel>, #tpu.dimension_semantics<parallel>], iteration_bounds = array<i64: 1, 1>, scalar_prefetch = 0 : i64, scratch_operands = 0 : i64, tpu.core_type = #tpu.core_type<tc>, window_params = [{transform_indices = @transform_0, window_bounds = array<i64: 16, 32>}, {transform_indices = @transform_1, window_bounds = array<i64: 32, 96>}, {transform_indices = @transform_2, window_bounds = array<i64: 1, 96>}, {transform_indices = @transform_3, window_bounds = array<i64: 16, 96>}]} {
    %c0 = arith.constant 0 : index
    %c0_0 = arith.constant 0 : index
    %0 = vector.load %arg2[%c0, %c0_0] : memref<16x32xf32, #tpu.memory_space<vmem>>, vector<16x32xf32>
    %c0_1 = arith.constant 0 : index
    %c0_2 = arith.constant 0 : index
    %1 = vector.load %arg3[%c0_1, %c0_2] : memref<32x96xf32, #tpu.memory_space<vmem>>, vector<32x96xf32>
    %cst = arith.constant dense<0.000000e+00> : vector<16x96xf32>
    %2 = tpu.matmul %0, %1, %cst {dimension_numbers = #tpu.dot_dimension_numbers<[1], [0], [0], [1], [0, 0, 1, 1], [], []>} : vector<16x32xf32>, vector<32x96xf32>, vector<16x96xf32> -> vector<16x96xf32>
    %c0_3 = arith.constant 0 : index
    %c0_4 = arith.constant 0 : index
    %3 = vector.load %arg4[%c0_3, %c0_4] : memref<1x96xf32, #tpu.memory_space<vmem>>, vector<1x96xf32>
    %4 = vector.broadcast %3 : vector<1x96xf32> to vector<16x96xf32>
    %5 = arith.addf %2, %4 : vector<16x96xf32>
    %c0_5 = arith.constant 0 : index
    %c0_6 = arith.constant 0 : index
    %6 = vector.load %arg5[%c0_5, %c0_6] : memref<16x96xf32, #tpu.memory_space<vmem>>, vector<16x96xf32>
    tpu.vector_store %arg5[%c0_5, %c0_6], %5 {strides = array<i32>} : memref<16x96xf32, #tpu.memory_space<vmem>>, vector<16x96xf32>,
    return
  }
  func.func @transform_0(%arg0: i32, %arg1: i32) -> (i32, i32) {
    %c0_i32 = arith.constant 0 : i32
    %c0_i32_0 = arith.constant 0 : i32
    return %arg0, %c0_i32 : i32, i32
  }
  func.func @transform_1(%arg0: i32, %arg1: i32) -> (i32, i32) {
    %c0_i32 = arith.constant 0 : i32
    %c0_i32_0 = arith.constant 0 : i32
    return %c0_i32, %arg1 : i32, i32
  }
  func.func @transform_2(%arg0: i32, %arg1: i32) -> (i32, i32) {
    %c0_i32 = arith.constant 0 : i32
    %c0_i32_0 = arith.constant 0 : i32
    return %c0_i32, %arg1 : i32, i32
  }
  func.func @transform_3(%arg0: i32, %arg1: i32) -> (i32, i32) {
    %c0_i32 = arith.constant 0 : i32
    return %arg0, %arg1 : i32, i32
  }
}

module attributes {stable_mosaic.version = 11 : i64} {
  func.func @_attention_kernel(%arg0: i32, %arg1: memref<1x8x4x8xf32, #tpu.memory_space<vmem>>, %arg2: memref<1x8x4x8xf32, #tpu.memory_space<vmem>>, %arg3: memref<1x8x4x8xf32, #tpu.memory_space<vmem>>, %arg4: memref<8x8xf32, #tpu.memory_space<vmem>>, %arg5: memref<1x8x4x8xf32, #tpu.memory_space<vmem>>) attributes {dimension_semantics = [#tpu.dimension_semantics<parallel>], iteration_bounds = array<i64: 2>, scalar_prefetch = 0 : i64, scratch_operands = 0 : i64, tpu.core_type = #tpu.core_type<tc>, window_params = [{transform_indices = @transform_0, window_bounds = array<i64: 1, 8, 4, 8>}, {transform_indices = @transform_1, window_bounds = array<i64: 1, 8, 4, 8>}, {transform_indices = @transform_2, window_bounds = array<i64: 1, 8, 4, 8>}, {pipeline_mode = #tpu.pipeline_mode<synchronous>, transform_indices = @transform_3, window_bounds = array<i64: 8, 8>}, {transform_indices = @transform_4, window_bounds = array<i64: 1, 8, 4, 8>}]} {
    %c0 = arith.constant 0 : index
    %c0_0 = arith.constant 0 : index
    %c0_1 = arith.constant 0 : index
    %c0_2 = arith.constant 0 : index
    %0 = vector.load %arg1[%c0, %c0_0, %c0_1, %c0_2] : memref<1x8x4x8xf32, #tpu.memory_space<vmem>>, vector<1x8x4x8xf32>
    %1 = vector.shape_cast %0 : vector<1x8x4x8xf32> to vector<8x4x8xf32>
    %c0_3 = arith.constant 0 : index
    %c0_4 = arith.constant 0 : index
    %c0_5 = arith.constant 0 : index
    %c0_6 = arith.constant 0 : index
    %2 = vector.load %arg2[%c0_3, %c0_4, %c0_5, %c0_6] : memref<1x8x4x8xf32, #tpu.memory_space<vmem>>, vector<1x8x4x8xf32>
    %3 = vector.shape_cast %2 : vector<1x8x4x8xf32> to vector<8x4x8xf32>
    %c0_7 = arith.constant 0 : index
    %c0_8 = arith.constant 0 : index
    %c0_9 = arith.constant 0 : index
    %c0_10 = arith.constant 0 : index
    %4 = vector.load %arg3[%c0_7, %c0_8, %c0_9, %c0_10] : memref<1x8x4x8xf32, #tpu.memory_space<vmem>>, vector<1x8x4x8xf32>
    %5 = vector.shape_cast %4 : vector<1x8x4x8xf32> to vector<8x4x8xf32>
    "tpu.trace_start"() <{level = 10 : i32, message = "qhd,khd->hqk"}> : () -> ()
    %cst = arith.constant dense<0.000000e+00> : vector<4x8x8xf32>
    %6 = tpu.matmul %1, %3, %cst {dimension_numbers = #tpu.dot_dimension_numbers<[2], [2], [0], [0], [0, 1, 0, 0, 1, 0], [1], [1]>} : vector<8x4x8xf32>, vector<8x4x8xf32>, vector<4x8x8xf32> -> vector<4x8x8xf32>
    "tpu.trace_stop"() : () -> ()
    %cst_11 = arith.constant 0.353553385 : f32
    %7 = vector.broadcast %cst_11 : f32 to vector<4x8x8xf32>
    %8 = arith.mulf %6, %7 : vector<4x8x8xf32>
    %c0_12 = arith.constant 0 : index
    %c0_13 = arith.constant 0 : index
    %9 = vector.load %arg4[%c0_12, %c0_13] : memref<8x8xf32, #tpu.memory_space<vmem>>, vector<8x8xf32>
    %10 = vector.shape_cast %9 : vector<8x8xf32> to vector<1x8x8xf32>
    %11 = vector.broadcast %10 : vector<1x8x8xf32> to vector<4x8x8xf32>
    %12 = arith.addf %8, %11 : vector<4x8x8xf32>
    %cst_14 = arith.constant dense<0xFF800000> : vector<4x8xf32>
    %13 = vector.multi_reduction <maximumf>, %12, %cst_14 [2] : vector<4x8x8xf32> to vector<4x8xf32>
    %14 = vector.shape_cast %13 : vector<4x8xf32> to vector<4x8x1xf32>
    %15 = vector.broadcast %14 : vector<4x8x1xf32> to vector<4x8x8xf32>
    %16 = arith.subf %12, %15 : vector<4x8x8xf32>
    %17 = math.exp %16 : vector<4x8x8xf32>
    %cst_15 = arith.constant dense<0.000000e+00> : vector<4x8xf32>
    %18 = vector.multi_reduction <add>, %17, %cst_15 [2] : vector<4x8x8xf32> to vector<4x8xf32>
    %19 = vector.shape_cast %18 : vector<4x8xf32> to vector<4x8x1xf32>
    %20 = tpu.reciprocal %19 {approx = true} : vector<4x8x1xf32> -> vector<4x8x1xf32>
    %21 = vector.broadcast %20 : vector<4x8x1xf32> to vector<4x8x8xf32>
    %22 = arith.mulf %17, %21 : vector<4x8x8xf32>
    "tpu.trace_start"() <{level = 10 : i32, message = "hqk,khd->qhd"}> : () -> ()
    %cst_16 = arith.constant dense<0.000000e+00> : vector<4x8x8xf32>
    %23 = tpu.matmul %5, %22, %cst_16 {dimension_numbers = #tpu.dot_dimension_numbers<[0], [2], [2], [1], [0, 1, 0, 2, 1, 1], [1], [0]>} : vector<8x4x8xf32>, vector<4x8x8xf32>, vector<4x8x8xf32> -> vector<4x8x8xf32>
    %24 = tpu.transpose %23, [2, 0, 1] : vector<4x8x8xf32> -> vector<8x4x8xf32>
    "tpu.trace_stop"() : () -> ()
    %c0_17 = arith.constant 0 : index
    %c0_18 = arith.constant 0 : index
    %c0_19 = arith.constant 0 : index
    %c0_20 = arith.constant 0 : index
    %25 = vector.load %arg5[%c0_17, %c0_18, %c0_19, %c0_20] : memref<1x8x4x8xf32, #tpu.memory_space<vmem>>, vector<1x8x4x8xf32>
    %26 = vector.shape_cast %25 : vector<1x8x4x8xf32> to vector<8x4x8xf32>
    %27 = vector.shape_cast %24 : vector<8x4x8xf32> to vector<1x8x4x8xf32>
    tpu.vector_store %arg5[%c0_17, %c0_18, %c0_19, %c0_20], %27 {strides = array<i32>} : memref<1x8x4x8xf32, #tpu.memory_space<vmem>>, vector<1x8x4x8xf32>,
    return
  }
  func.func @transform_0(%arg0: i32) -> (i32, i32, i32, i32) {
    %c0_i32 = arith.constant 0 : i32
    %c0_i32_0 = arith.constant 0 : i32
    %c0_i32_1 = arith.constant 0 : i32
    %c0_i32_2 = arith.constant 0 : i32
    return %arg0, %c0_i32, %c0_i32_0, %c0_i32_1 : i32, i32, i32, i32
  }
  func.func @transform_1(%arg0: i32) -> (i32, i32, i32, i32) {
    %c0_i32 = arith.constant 0 : i32
    %c0_i32_0 = arith.constant 0 : i32
    %c0_i32_1 = arith.constant 0 : i32
    %c0_i32_2 = arith.constant 0 : i32
    return %arg0, %c0_i32, %c0_i32_0, %c0_i32_1 : i32, i32, i32, i32
  }
  func.func @transform_2(%arg0: i32) -> (i32, i32, i32, i32) {
    %c0_i32 = arith.constant 0 : i32
    %c0_i32_0 = arith.constant 0 : i32
    %c0_i32_1 = arith.constant 0 : i32
    %c0_i32_2 = arith.constant 0 : i32
    return %arg0, %c0_i32, %c0_i32_0, %c0_i32_1 : i32, i32, i32, i32
  }
  func.func @transform_3(%arg0: i32) -> (i32, i32) {
    %c0_i32 = arith.constant 0 : i32
    %c0_i32_0 = arith.constant 0 : i32
    %c0_i32_1 = arith.constant 0 : i32
    return %c0_i32, %c0_i32_0 : i32, i32
  }
  func.func @transform_4(%arg0: i32) -> (i32, i32, i32, i32) {
    %c0_i32 = arith.constant 0 : i32
    %c0_i32_0 = arith.constant 0 : i32
    %c0_i32_1 = arith.constant 0 : i32
    %c0_i32_2 = arith.constant 0 : i32
    return %arg0, %c0_i32, %c0_i32_0, %c0_i32_1 : i32, i32, i32, i32
  }
}

module attributes {stable_mosaic.version = 11 : i64} {
  func.func @_pos_add_kernel(%arg0: i32, %arg1: memref<1x8x32xf32, #tpu.memory_space<vmem>>, %arg2: memref<8x32xf32, #tpu.memory_space<vmem>>, %arg3: memref<1x8x32xf32, #tpu.memory_space<vmem>>) attributes {dimension_semantics = [#tpu.dimension_semantics<parallel>], iteration_bounds = array<i64: 2>, scalar_prefetch = 0 : i64, scratch_operands = 0 : i64, tpu.core_type = #tpu.core_type<tc>, window_params = [{transform_indices = @transform_0, window_bounds = array<i64: 1, 8, 32>}, {pipeline_mode = #tpu.pipeline_mode<synchronous>, transform_indices = @transform_1, window_bounds = array<i64: 8, 32>}, {transform_indices = @transform_2, window_bounds = array<i64: 1, 8, 32>}]} {
    %c0 = arith.constant 0 : index
    %c0_0 = arith.constant 0 : index
    %c0_1 = arith.constant 0 : index
    %0 = vector.load %arg1[%c0, %c0_0, %c0_1] : memref<1x8x32xf32, #tpu.memory_space<vmem>>, vector<1x8x32xf32>
    %1 = vector.shape_cast %0 : vector<1x8x32xf32> to vector<8x32xf32>
    %c0_2 = arith.constant 0 : index
    %c0_3 = arith.constant 0 : index
    %2 = vector.load %arg2[%c0_2, %c0_3] : memref<8x32xf32, #tpu.memory_space<vmem>>, vector<8x32xf32>
    %3 = arith.addf %1, %2 : vector<8x32xf32>
    %c0_4 = arith.constant 0 : index
    %c0_5 = arith.constant 0 : index
    %c0_6 = arith.constant 0 : index
    %4 = vector.load %arg3[%c0_4, %c0_5, %c0_6] : memref<1x8x32xf32, #tpu.memory_space<vmem>>, vector<1x8x32xf32>
    %5 = vector.shape_cast %4 : vector<1x8x32xf32> to vector<8x32xf32>
    %6 = vector.shape_cast %3 : vector<8x32xf32> to vector<1x8x32xf32>
    tpu.vector_store %arg3[%c0_4, %c0_5, %c0_6], %6 {strides = array<i32>} : memref<1x8x32xf32, #tpu.memory_space<vmem>>, vector<1x8x32xf32>,
    return
  }
  func.func @transform_0(%arg0: i32) -> (i32, i32, i32) {
    %c0_i32 = arith.constant 0 : i32
    %c0_i32_0 = arith.constant 0 : i32
    %c0_i32_1 = arith.constant 0 : i32
    return %arg0, %c0_i32, %c0_i32_0 : i32, i32, i32
  }
  func.func @transform_1(%arg0: i32) -> (i32, i32) {
    %c0_i32 = arith.constant 0 : i32
    %c0_i32_0 = arith.constant 0 : i32
    %c0_i32_1 = arith.constant 0 : i32
    return %c0_i32, %c0_i32_0 : i32, i32
  }
  func.func @transform_2(%arg0: i32) -> (i32, i32, i32) {
    %c0_i32 = arith.constant 0 : i32
    %c0_i32_0 = arith.constant 0 : i32
    %c0_i32_1 = arith.constant 0 : i32
    return %arg0, %c0_i32, %c0_i32_0 : i32, i32, i32
  }
}

module attributes {stable_mosaic.version = 11 : i64} {
  func.func @_matmul_ln_kernel(%arg0: i32, %arg1: memref<16x32xf32, #tpu.memory_space<vmem>>, %arg2: memref<32x32xf32, #tpu.memory_space<vmem>>, %arg3: memref<1x32xf32, #tpu.memory_space<vmem>>, %arg4: memref<16x32xf32, #tpu.memory_space<vmem>>, %arg5: memref<1x32xf32, #tpu.memory_space<vmem>>, %arg6: memref<1x32xf32, #tpu.memory_space<vmem>>, %arg7: memref<16x32xf32, #tpu.memory_space<vmem>>) attributes {dimension_semantics = [#tpu.dimension_semantics<parallel>], iteration_bounds = array<i64: 1>, scalar_prefetch = 0 : i64, scratch_operands = 0 : i64, tpu.core_type = #tpu.core_type<tc>, window_params = [{transform_indices = @transform_0, window_bounds = array<i64: 16, 32>}, {pipeline_mode = #tpu.pipeline_mode<synchronous>, transform_indices = @transform_1, window_bounds = array<i64: 32, 32>}, {pipeline_mode = #tpu.pipeline_mode<synchronous>, transform_indices = @transform_2, window_bounds = array<i64: 1, 32>}, {transform_indices = @transform_3, window_bounds = array<i64: 16, 32>}, {pipeline_mode = #tpu.pipeline_mode<synchronous>, transform_indices = @transform_4, window_bounds = array<i64: 1, 32>}, {pipeline_mode = #tpu.pipeline_mode<synchronous>, transform_indices = @transform_5, window_bounds = array<i64: 1, 32>}, {transform_indices = @transform_6, window_bounds = array<i64: 16, 32>}]} {
    %c0 = arith.constant 0 : index
    %c0_0 = arith.constant 0 : index
    %0 = vector.load %arg1[%c0, %c0_0] : memref<16x32xf32, #tpu.memory_space<vmem>>, vector<16x32xf32>
    %c0_1 = arith.constant 0 : index
    %c0_2 = arith.constant 0 : index
    %1 = vector.load %arg2[%c0_1, %c0_2] : memref<32x32xf32, #tpu.memory_space<vmem>>, vector<32x32xf32>
    %cst = arith.constant dense<0.000000e+00> : vector<16x32xf32>
    %2 = tpu.matmul %0, %1, %cst {dimension_numbers = #tpu.dot_dimension_numbers<[1], [0], [0], [1], [0, 0, 1, 1], [], []>} : vector<16x32xf32>, vector<32x32xf32>, vector<16x32xf32> -> vector<16x32xf32>
    %c0_3 = arith.constant 0 : index
    %c0_4 = arith.constant 0 : index
    %3 = vector.load %arg3[%c0_3, %c0_4] : memref<1x32xf32, #tpu.memory_space<vmem>>, vector<1x32xf32>
    %4 = vector.broadcast %3 : vector<1x32xf32> to vector<16x32xf32>
    %5 = arith.addf %2, %4 : vector<16x32xf32>
    %c0_5 = arith.constant 0 : index
    %c0_6 = arith.constant 0 : index
    %6 = vector.load %arg4[%c0_5, %c0_6] : memref<16x32xf32, #tpu.memory_space<vmem>>, vector<16x32xf32>
    %7 = arith.addf %5, %6 : vector<16x32xf32>
    %c0_7 = arith.constant 0 : index
    %c0_8 = arith.constant 0 : index
    %8 = vector.load %arg5[%c0_7, %c0_8] : memref<1x32xf32, #tpu.memory_space<vmem>>, vector<1x32xf32>
    %c0_9 = arith.constant 0 : index
    %c0_10 = arith.constant 0 : index
    %9 = vector.load %arg6[%c0_9, %c0_10] : memref<1x32xf32, #tpu.memory_space<vmem>>, vector<1x32xf32>
    %cst_11 = arith.constant dense<0.000000e+00> : vector<16xf32>
    %10 = vector.multi_reduction <add>, %7, %cst_11 [1] : vector<16x32xf32> to vector<16xf32>
    %11 = vector.shape_cast %10 : vector<16xf32> to vector<16x1xf32>
    %cst_12 = arith.constant 3.200000e+01 : f32
    %12 = vector.broadcast %cst_12 : f32 to vector<16x1xf32>
    %13 = arith.divf %11, %12 : vector<16x1xf32>
    %14 = vector.broadcast %13 : vector<16x1xf32> to vector<16x32xf32>
    %15 = arith.subf %7, %14 : vector<16x32xf32>
    %16 = arith.mulf %15, %15 : vector<16x32xf32>
    %cst_13 = arith.constant dense<0.000000e+00> : vector<16xf32>
    %17 = vector.multi_reduction <add>, %16, %cst_13 [1] : vector<16x32xf32> to vector<16xf32>
    %18 = vector.shape_cast %17 : vector<16xf32> to vector<16x1xf32>
    %cst_14 = arith.constant 3.200000e+01 : f32
    %19 = vector.broadcast %cst_14 : f32 to vector<16x1xf32>
    %20 = arith.divf %18, %19 : vector<16x1xf32>
    %cst_15 = arith.constant 9.99999974E-6 : f32
    %21 = vector.broadcast %cst_15 : f32 to vector<16x1xf32>
    %22 = arith.addf %20, %21 : vector<16x1xf32>
    %23 = math.rsqrt %22 : vector<16x1xf32>
    %24 = vector.broadcast %23 : vector<16x1xf32> to vector<16x32xf32>
    %25 = arith.mulf %15, %24 : vector<16x32xf32>
    %26 = vector.broadcast %8 : vector<1x32xf32> to vector<16x32xf32>
    %27 = arith.mulf %25, %26 : vector<16x32xf32>
    %28 = vector.broadcast %9 : vector<1x32xf32> to vector<16x32xf32>
    %29 = arith.addf %27, %28 : vector<16x32xf32>
    %c0_16 = arith.constant 0 : index
    %c0_17 = arith.constant 0 : index
    %30 = vector.load %arg7[%c0_16, %c0_17] : memref<16x32xf32, #tpu.memory_space<vmem>>, vector<16x32xf32>
    tpu.vector_store %arg7[%c0_16, %c0_17], %29 {strides = array<i32>} : memref<16x32xf32, #tpu.memory_space<vmem>>, vector<16x32xf32>,
    return
  }
  func.func @transform_0(%arg0: i32) -> (i32, i32) {
    %c0_i32 = arith.constant 0 : i32
    %c0_i32_0 = arith.constant 0 : i32
    return %arg0, %c0_i32 : i32, i32
  }
  func.func @transform_1(%arg0: i32) -> (i32, i32) {
    %c0_i32 = arith.constant 0 : i32
    %c0_i32_0 = arith.constant 0 : i32
    %c0_i32_1 = arith.constant 0 : i32
    return %c0_i32, %c0_i32_0 : i32, i32
  }
  func.func @transform_2(%arg0: i32) -> (i32, i32) {
    %c0_i32 = arith.constant 0 : i32
    %c0_i32_0 = arith.constant 0 : i32
    %c0_i32_1 = arith.constant 0 : i32
    return %c0_i32, %c0_i32_0 : i32, i32
  }
  func.func @transform_3(%arg0: i32) -> (i32, i32) {
    %c0_i32 = arith.constant 0 : i32
    %c0_i32_0 = arith.constant 0 : i32
    return %arg0, %c0_i32 : i32, i32
  }
  func.func @transform_4(%arg0: i32) -> (i32, i32) {
    %c0_i32 = arith.constant 0 : i32
    %c0_i32_0 = arith.constant 0 : i32
    %c0_i32_1 = arith.constant 0 : i32
    return %c0_i32, %c0_i32_0 : i32, i32
  }
  func.func @transform_5(%arg0: i32) -> (i32, i32) {
    %c0_i32 = arith.constant 0 : i32
    %c0_i32_0 = arith.constant 0 : i32
    %c0_i32_1 = arith.constant 0 : i32
    return %c0_i32, %c0_i32_0 : i32, i32
  }
  func.func @transform_6(%arg0: i32) -> (i32, i32) {
    %c0_i32 = arith.constant 0 : i32
    %c0_i32_0 = arith.constant 0 : i32
    return %arg0, %c0_i32 : i32, i32
  }
}

module attributes {stable_mosaic.version = 11 : i64} {
  func.func @_matmul_bias_kernel(%arg0: i32, %arg1: i32, %arg2: memref<16x32xf32, #tpu.memory_space<vmem>>, %arg3: memref<32x32xf32, #tpu.memory_space<vmem>>, %arg4: memref<1x32xf32, #tpu.memory_space<vmem>>, %arg5: memref<16x32xf32, #tpu.memory_space<vmem>>) attributes {dimension_semantics = [#tpu.dimension_semantics<parallel>, #tpu.dimension_semantics<parallel>], iteration_bounds = array<i64: 1, 1>, scalar_prefetch = 0 : i64, scratch_operands = 0 : i64, tpu.core_type = #tpu.core_type<tc>, window_params = [{transform_indices = @transform_0, window_bounds = array<i64: 16, 32>}, {transform_indices = @transform_1, window_bounds = array<i64: 32, 32>}, {transform_indices = @transform_2, window_bounds = array<i64: 1, 32>}, {transform_indices = @transform_3, window_bounds = array<i64: 16, 32>}]} {
    %c0 = arith.constant 0 : index
    %c0_0 = arith.constant 0 : index
    %0 = vector.load %arg2[%c0, %c0_0] : memref<16x32xf32, #tpu.memory_space<vmem>>, vector<16x32xf32>
    %c0_1 = arith.constant 0 : index
    %c0_2 = arith.constant 0 : index
    %1 = vector.load %arg3[%c0_1, %c0_2] : memref<32x32xf32, #tpu.memory_space<vmem>>, vector<32x32xf32>
    %cst = arith.constant dense<0.000000e+00> : vector<16x32xf32>
    %2 = tpu.matmul %0, %1, %cst {dimension_numbers = #tpu.dot_dimension_numbers<[1], [0], [0], [1], [0, 0, 1, 1], [], []>} : vector<16x32xf32>, vector<32x32xf32>, vector<16x32xf32> -> vector<16x32xf32>
    %c0_3 = arith.constant 0 : index
    %c0_4 = arith.constant 0 : index
    %3 = vector.load %arg4[%c0_3, %c0_4] : memref<1x32xf32, #tpu.memory_space<vmem>>, vector<1x32xf32>
    %4 = vector.broadcast %3 : vector<1x32xf32> to vector<16x32xf32>
    %5 = arith.addf %2, %4 : vector<16x32xf32>
    %c0_5 = arith.constant 0 : index
    %c0_6 = arith.constant 0 : index
    %6 = vector.load %arg5[%c0_5, %c0_6] : memref<16x32xf32, #tpu.memory_space<vmem>>, vector<16x32xf32>
    tpu.vector_store %arg5[%c0_5, %c0_6], %5 {strides = array<i32>} : memref<16x32xf32, #tpu.memory_space<vmem>>, vector<16x32xf32>,
    return
  }
  func.func @transform_0(%arg0: i32, %arg1: i32) -> (i32, i32) {
    %c0_i32 = arith.constant 0 : i32
    %c0_i32_0 = arith.constant 0 : i32
    return %arg0, %c0_i32 : i32, i32
  }
  func.func @transform_1(%arg0: i32, %arg1: i32) -> (i32, i32) {
    %c0_i32 = arith.constant 0 : i32
    %c0_i32_0 = arith.constant 0 : i32
    return %c0_i32, %arg1 : i32, i32
  }
  func.func @transform_2(%arg0: i32, %arg1: i32) -> (i32, i32) {
    %c0_i32 = arith.constant 0 : i32
    %c0_i32_0 = arith.constant 0 : i32
    return %c0_i32, %arg1 : i32, i32
  }
  func.func @transform_3(%arg0: i32, %arg1: i32) -> (i32, i32) {
    %c0_i32 = arith.constant 0 : i32
    return %arg0, %arg1 : i32, i32
  }
}

module attributes {stable_mosaic.version = 11 : i64} {
  func.func @_matmul_bias_kernel(%arg0: i32, %arg1: i32, %arg2: memref<16x32xf32, #tpu.memory_space<vmem>>, %arg3: memref<32x64xf32, #tpu.memory_space<vmem>>, %arg4: memref<1x64xf32, #tpu.memory_space<vmem>>, %arg5: memref<16x64xf32, #tpu.memory_space<vmem>>) attributes {dimension_semantics = [#tpu.dimension_semantics<parallel>, #tpu.dimension_semantics<parallel>], iteration_bounds = array<i64: 1, 1>, scalar_prefetch = 0 : i64, scratch_operands = 0 : i64, tpu.core_type = #tpu.core_type<tc>, window_params = [{transform_indices = @transform_0, window_bounds = array<i64: 16, 32>}, {transform_indices = @transform_1, window_bounds = array<i64: 32, 64>}, {transform_indices = @transform_2, window_bounds = array<i64: 1, 64>}, {transform_indices = @transform_3, window_bounds = array<i64: 16, 64>}]} {
    %c0 = arith.constant 0 : index
    %c0_0 = arith.constant 0 : index
    %0 = vector.load %arg2[%c0, %c0_0] : memref<16x32xf32, #tpu.memory_space<vmem>>, vector<16x32xf32>
    %c0_1 = arith.constant 0 : index
    %c0_2 = arith.constant 0 : index
    %1 = vector.load %arg3[%c0_1, %c0_2] : memref<32x64xf32, #tpu.memory_space<vmem>>, vector<32x64xf32>
    %cst = arith.constant dense<0.000000e+00> : vector<16x64xf32>
    %2 = tpu.matmul %0, %1, %cst {dimension_numbers = #tpu.dot_dimension_numbers<[1], [0], [0], [1], [0, 0, 1, 1], [], []>} : vector<16x32xf32>, vector<32x64xf32>, vector<16x64xf32> -> vector<16x64xf32>
    %c0_3 = arith.constant 0 : index
    %c0_4 = arith.constant 0 : index
    %3 = vector.load %arg4[%c0_3, %c0_4] : memref<1x64xf32, #tpu.memory_space<vmem>>, vector<1x64xf32>
    %4 = vector.broadcast %3 : vector<1x64xf32> to vector<16x64xf32>
    %5 = arith.addf %2, %4 : vector<16x64xf32>
    %c0_5 = arith.constant 0 : index
    %c0_6 = arith.constant 0 : index
    %6 = vector.load %arg5[%c0_5, %c0_6] : memref<16x64xf32, #tpu.memory_space<vmem>>, vector<16x64xf32>
    tpu.vector_store %arg5[%c0_5, %c0_6], %5 {strides = array<i32>} : memref<16x64xf32, #tpu.memory_space<vmem>>, vector<16x64xf32>,
    return
  }
  func.func @transform_0(%arg0: i32, %arg1: i32) -> (i32, i32) {
    %c0_i32 = arith.constant 0 : i32
    %c0_i32_0 = arith.constant 0 : i32
    return %arg0, %c0_i32 : i32, i32
  }
  func.func @transform_1(%arg0: i32, %arg1: i32) -> (i32, i32) {
    %c0_i32 = arith.constant 0 : i32
    %c0_i32_0 = arith.constant 0 : i32
    return %c0_i32, %arg1 : i32, i32
  }
  func.func @transform_2(%arg0: i32, %arg1: i32) -> (i32, i32) {
    %c0_i32 = arith.constant 0 : i32
    %c0_i32_0 = arith.constant 0 : i32
    return %c0_i32, %arg1 : i32, i32
  }
  func.func @transform_3(%arg0: i32, %arg1: i32) -> (i32, i32) {
    %c0_i32 = arith.constant 0 : i32
    return %arg0, %arg1 : i32, i32
  }
}

module attributes {stable_mosaic.version = 11 : i64} {
  func.func @_attention_kernel(%arg0: i32, %arg1: memref<1x8x4x8xf32, #tpu.memory_space<vmem>>, %arg2: memref<1x8x4x8xf32, #tpu.memory_space<vmem>>, %arg3: memref<1x8x4x8xf32, #tpu.memory_space<vmem>>, %arg4: memref<1x8x4x8xf32, #tpu.memory_space<vmem>>) attributes {dimension_semantics = [#tpu.dimension_semantics<parallel>], iteration_bounds = array<i64: 2>, scalar_prefetch = 0 : i64, scratch_operands = 0 : i64, tpu.core_type = #tpu.core_type<tc>, window_params = [{transform_indices = @transform_0, window_bounds = array<i64: 1, 8, 4, 8>}, {transform_indices = @transform_1, window_bounds = array<i64: 1, 8, 4, 8>}, {transform_indices = @transform_2, window_bounds = array<i64: 1, 8, 4, 8>}, {transform_indices = @transform_3, window_bounds = array<i64: 1, 8, 4, 8>}]} {
    %c0 = arith.constant 0 : index
    %c0_0 = arith.constant 0 : index
    %c0_1 = arith.constant 0 : index
    %c0_2 = arith.constant 0 : index
    %0 = vector.load %arg1[%c0, %c0_0, %c0_1, %c0_2] : memref<1x8x4x8xf32, #tpu.memory_space<vmem>>, vector<1x8x4x8xf32>
    %1 = vector.shape_cast %0 : vector<1x8x4x8xf32> to vector<8x4x8xf32>
    %c0_3 = arith.constant 0 : index
    %c0_4 = arith.constant 0 : index
    %c0_5 = arith.constant 0 : index
    %c0_6 = arith.constant 0 : index
    %2 = vector.load %arg2[%c0_3, %c0_4, %c0_5, %c0_6] : memref<1x8x4x8xf32, #tpu.memory_space<vmem>>, vector<1x8x4x8xf32>
    %3 = vector.shape_cast %2 : vector<1x8x4x8xf32> to vector<8x4x8xf32>
    %c0_7 = arith.constant 0 : index
    %c0_8 = arith.constant 0 : index
    %c0_9 = arith.constant 0 : index
    %c0_10 = arith.constant 0 : index
    %4 = vector.load %arg3[%c0_7, %c0_8, %c0_9, %c0_10] : memref<1x8x4x8xf32, #tpu.memory_space<vmem>>, vector<1x8x4x8xf32>
    %5 = vector.shape_cast %4 : vector<1x8x4x8xf32> to vector<8x4x8xf32>
    "tpu.trace_start"() <{level = 10 : i32, message = "qhd,khd->hqk"}> : () -> ()
    %cst = arith.constant dense<0.000000e+00> : vector<4x8x8xf32>
    %6 = tpu.matmul %1, %3, %cst {dimension_numbers = #tpu.dot_dimension_numbers<[2], [2], [0], [0], [0, 1, 0, 0, 1, 0], [1], [1]>} : vector<8x4x8xf32>, vector<8x4x8xf32>, vector<4x8x8xf32> -> vector<4x8x8xf32>
    "tpu.trace_stop"() : () -> ()
    %cst_11 = arith.constant 0.353553385 : f32
    %7 = vector.broadcast %cst_11 : f32 to vector<4x8x8xf32>
    %8 = arith.mulf %6, %7 : vector<4x8x8xf32>
    %cst_12 = arith.constant dense<0xFF800000> : vector<4x8xf32>
    %9 = vector.multi_reduction <maximumf>, %8, %cst_12 [2] : vector<4x8x8xf32> to vector<4x8xf32>
    %10 = vector.shape_cast %9 : vector<4x8xf32> to vector<4x8x1xf32>
    %11 = vector.broadcast %10 : vector<4x8x1xf32> to vector<4x8x8xf32>
    %12 = arith.subf %8, %11 : vector<4x8x8xf32>
    %13 = math.exp %12 : vector<4x8x8xf32>
    %cst_13 = arith.constant dense<0.000000e+00> : vector<4x8xf32>
    %14 = vector.multi_reduction <add>, %13, %cst_13 [2] : vector<4x8x8xf32> to vector<4x8xf32>
    %15 = vector.shape_cast %14 : vector<4x8xf32> to vector<4x8x1xf32>
    %16 = tpu.reciprocal %15 {approx = true} : vector<4x8x1xf32> -> vector<4x8x1xf32>
    %17 = vector.broadcast %16 : vector<4x8x1xf32> to vector<4x8x8xf32>
    %18 = arith.mulf %13, %17 : vector<4x8x8xf32>
    "tpu.trace_start"() <{level = 10 : i32, message = "hqk,khd->qhd"}> : () -> ()
    %cst_14 = arith.constant dense<0.000000e+00> : vector<4x8x8xf32>
    %19 = tpu.matmul %5, %18, %cst_14 {dimension_numbers = #tpu.dot_dimension_numbers<[0], [2], [2], [1], [0, 1, 0, 2, 1, 1], [1], [0]>} : vector<8x4x8xf32>, vector<4x8x8xf32>, vector<4x8x8xf32> -> vector<4x8x8xf32>
    %20 = tpu.transpose %19, [2, 0, 1] : vector<4x8x8xf32> -> vector<8x4x8xf32>
    "tpu.trace_stop"() : () -> ()
    %c0_15 = arith.constant 0 : index
    %c0_16 = arith.constant 0 : index
    %c0_17 = arith.constant 0 : index
    %c0_18 = arith.constant 0 : index
    %21 = vector.load %arg4[%c0_15, %c0_16, %c0_17, %c0_18] : memref<1x8x4x8xf32, #tpu.memory_space<vmem>>, vector<1x8x4x8xf32>
    %22 = vector.shape_cast %21 : vector<1x8x4x8xf32> to vector<8x4x8xf32>
    %23 = vector.shape_cast %20 : vector<8x4x8xf32> to vector<1x8x4x8xf32>
    tpu.vector_store %arg4[%c0_15, %c0_16, %c0_17, %c0_18], %23 {strides = array<i32>} : memref<1x8x4x8xf32, #tpu.memory_space<vmem>>, vector<1x8x4x8xf32>,
    return
  }
  func.func @transform_0(%arg0: i32) -> (i32, i32, i32, i32) {
    %c0_i32 = arith.constant 0 : i32
    %c0_i32_0 = arith.constant 0 : i32
    %c0_i32_1 = arith.constant 0 : i32
    %c0_i32_2 = arith.constant 0 : i32
    return %arg0, %c0_i32, %c0_i32_0, %c0_i32_1 : i32, i32, i32, i32
  }
  func.func @transform_1(%arg0: i32) -> (i32, i32, i32, i32) {
    %c0_i32 = arith.constant 0 : i32
    %c0_i32_0 = arith.constant 0 : i32
    %c0_i32_1 = arith.constant 0 : i32
    %c0_i32_2 = arith.constant 0 : i32
    return %arg0, %c0_i32, %c0_i32_0, %c0_i32_1 : i32, i32, i32, i32
  }
  func.func @transform_2(%arg0: i32) -> (i32, i32, i32, i32) {
    %c0_i32 = arith.constant 0 : i32
    %c0_i32_0 = arith.constant 0 : i32
    %c0_i32_1 = arith.constant 0 : i32
    %c0_i32_2 = arith.constant 0 : i32
    return %arg0, %c0_i32, %c0_i32_0, %c0_i32_1 : i32, i32, i32, i32
  }
  func.func @transform_3(%arg0: i32) -> (i32, i32, i32, i32) {
    %c0_i32 = arith.constant 0 : i32
    %c0_i32_0 = arith.constant 0 : i32
    %c0_i32_1 = arith.constant 0 : i32
    %c0_i32_2 = arith.constant 0 : i32
    return %arg0, %c0_i32, %c0_i32_0, %c0_i32_1 : i32, i32, i32, i32
  }
}

module attributes {stable_mosaic.version = 11 : i64} {
  func.func @_ffn_ln_kernel(%arg0: i32, %arg1: memref<16x32xf32, #tpu.memory_space<vmem>>, %arg2: memref<32x64xf32, #tpu.memory_space<vmem>>, %arg3: memref<1x64xf32, #tpu.memory_space<vmem>>, %arg4: memref<64x32xf32, #tpu.memory_space<vmem>>, %arg5: memref<1x32xf32, #tpu.memory_space<vmem>>, %arg6: memref<1x32xf32, #tpu.memory_space<vmem>>, %arg7: memref<1x32xf32, #tpu.memory_space<vmem>>, %arg8: memref<16x32xf32, #tpu.memory_space<vmem>>) attributes {dimension_semantics = [#tpu.dimension_semantics<parallel>], iteration_bounds = array<i64: 1>, scalar_prefetch = 0 : i64, scratch_operands = 0 : i64, tpu.core_type = #tpu.core_type<tc>, window_params = [{transform_indices = @transform_0, window_bounds = array<i64: 16, 32>}, {pipeline_mode = #tpu.pipeline_mode<synchronous>, transform_indices = @transform_1, window_bounds = array<i64: 32, 64>}, {pipeline_mode = #tpu.pipeline_mode<synchronous>, transform_indices = @transform_2, window_bounds = array<i64: 1, 64>}, {pipeline_mode = #tpu.pipeline_mode<synchronous>, transform_indices = @transform_3, window_bounds = array<i64: 64, 32>}, {pipeline_mode = #tpu.pipeline_mode<synchronous>, transform_indices = @transform_4, window_bounds = array<i64: 1, 32>}, {pipeline_mode = #tpu.pipeline_mode<synchronous>, transform_indices = @transform_5, window_bounds = array<i64: 1, 32>}, {pipeline_mode = #tpu.pipeline_mode<synchronous>, transform_indices = @transform_6, window_bounds = array<i64: 1, 32>}, {transform_indices = @transform_7, window_bounds = array<i64: 16, 32>}]} {
    %c0 = arith.constant 0 : index
    %c0_0 = arith.constant 0 : index
    %0 = vector.load %arg1[%c0, %c0_0] : memref<16x32xf32, #tpu.memory_space<vmem>>, vector<16x32xf32>
    %c0_1 = arith.constant 0 : index
    %c0_2 = arith.constant 0 : index
    %1 = vector.load %arg2[%c0_1, %c0_2] : memref<32x64xf32, #tpu.memory_space<vmem>>, vector<32x64xf32>
    %cst = arith.constant dense<0.000000e+00> : vector<16x64xf32>
    %2 = tpu.matmul %0, %1, %cst {dimension_numbers = #tpu.dot_dimension_numbers<[1], [0], [0], [1], [0, 0, 1, 1], [], []>} : vector<16x32xf32>, vector<32x64xf32>, vector<16x64xf32> -> vector<16x64xf32>
    %c0_3 = arith.constant 0 : index
    %c0_4 = arith.constant 0 : index
    %3 = vector.load %arg3[%c0_3, %c0_4] : memref<1x64xf32, #tpu.memory_space<vmem>>, vector<1x64xf32>
    %4 = vector.broadcast %3 : vector<1x64xf32> to vector<16x64xf32>
    %5 = arith.addf %2, %4 : vector<16x64xf32>
    %cst_5 = arith.constant 0.000000e+00 : f32
    %6 = vector.broadcast %cst_5 : f32 to vector<16x64xf32>
    %7 = arith.maximumf %5, %6 : vector<16x64xf32>
    %c0_6 = arith.constant 0 : index
    %c0_7 = arith.constant 0 : index
    %8 = vector.load %arg4[%c0_6, %c0_7] : memref<64x32xf32, #tpu.memory_space<vmem>>, vector<64x32xf32>
    %cst_8 = arith.constant dense<0.000000e+00> : vector<16x32xf32>
    %9 = tpu.matmul %7, %8, %cst_8 {dimension_numbers = #tpu.dot_dimension_numbers<[1], [0], [0], [1], [0, 0, 1, 1], [], []>} : vector<16x64xf32>, vector<64x32xf32>, vector<16x32xf32> -> vector<16x32xf32>
    %c0_9 = arith.constant 0 : index
    %c0_10 = arith.constant 0 : index
    %10 = vector.load %arg5[%c0_9, %c0_10] : memref<1x32xf32, #tpu.memory_space<vmem>>, vector<1x32xf32>
    %11 = vector.broadcast %10 : vector<1x32xf32> to vector<16x32xf32>
    %12 = arith.addf %9, %11 : vector<16x32xf32>
    %13 = arith.addf %12, %0 : vector<16x32xf32>
    %c0_11 = arith.constant 0 : index
    %c0_12 = arith.constant 0 : index
    %14 = vector.load %arg6[%c0_11, %c0_12] : memref<1x32xf32, #tpu.memory_space<vmem>>, vector<1x32xf32>
    %c0_13 = arith.constant 0 : index
    %c0_14 = arith.constant 0 : index
    %15 = vector.load %arg7[%c0_13, %c0_14] : memref<1x32xf32, #tpu.memory_space<vmem>>, vector<1x32xf32>
    %cst_15 = arith.constant dense<0.000000e+00> : vector<16xf32>
    %16 = vector.multi_reduction <add>, %13, %cst_15 [1] : vector<16x32xf32> to vector<16xf32>
    %17 = vector.shape_cast %16 : vector<16xf32> to vector<16x1xf32>
    %cst_16 = arith.constant 3.200000e+01 : f32
    %18 = vector.broadcast %cst_16 : f32 to vector<16x1xf32>
    %19 = arith.divf %17, %18 : vector<16x1xf32>
    %20 = vector.broadcast %19 : vector<16x1xf32> to vector<16x32xf32>
    %21 = arith.subf %13, %20 : vector<16x32xf32>
    %22 = arith.mulf %21, %21 : vector<16x32xf32>
    %cst_17 = arith.constant dense<0.000000e+00> : vector<16xf32>
    %23 = vector.multi_reduction <add>, %22, %cst_17 [1] : vector<16x32xf32> to vector<16xf32>
    %24 = vector.shape_cast %23 : vector<16xf32> to vector<16x1xf32>
    %cst_18 = arith.constant 3.200000e+01 : f32
    %25 = vector.broadcast %cst_18 : f32 to vector<16x1xf32>
    %26 = arith.divf %24, %25 : vector<16x1xf32>
    %cst_19 = arith.constant 9.99999974E-6 : f32
    %27 = vector.broadcast %cst_19 : f32 to vector<16x1xf32>
    %28 = arith.addf %26, %27 : vector<16x1xf32>
    %29 = math.rsqrt %28 : vector<16x1xf32>
    %30 = vector.broadcast %29 : vector<16x1xf32> to vector<16x32xf32>
    %31 = arith.mulf %21, %30 : vector<16x32xf32>
    %32 = vector.broadcast %14 : vector<1x32xf32> to vector<16x32xf32>
    %33 = arith.mulf %31, %32 : vector<16x32xf32>
    %34 = vector.broadcast %15 : vector<1x32xf32> to vector<16x32xf32>
    %35 = arith.addf %33, %34 : vector<16x32xf32>
    %c0_20 = arith.constant 0 : index
    %c0_21 = arith.constant 0 : index
    %36 = vector.load %arg8[%c0_20, %c0_21] : memref<16x32xf32, #tpu.memory_space<vmem>>, vector<16x32xf32>
    tpu.vector_store %arg8[%c0_20, %c0_21], %35 {strides = array<i32>} : memref<16x32xf32, #tpu.memory_space<vmem>>, vector<16x32xf32>,
    return
  }
  func.func @transform_0(%arg0: i32) -> (i32, i32) {
    %c0_i32 = arith.constant 0 : i32
    %c0_i32_0 = arith.constant 0 : i32
    return %arg0, %c0_i32 : i32, i32
  }
  func.func @transform_1(%arg0: i32) -> (i32, i32) {
    %c0_i32 = arith.constant 0 : i32
    %c0_i32_0 = arith.constant 0 : i32
    %c0_i32_1 = arith.constant 0 : i32
    return %c0_i32, %c0_i32_0 : i32, i32
  }
  func.func @transform_2(%arg0: i32) -> (i32, i32) {
    %c0_i32 = arith.constant 0 : i32
    %c0_i32_0 = arith.constant 0 : i32
    %c0_i32_1 = arith.constant 0 : i32
    return %c0_i32, %c0_i32_0 : i32, i32
  }
  func.func @transform_3(%arg0: i32) -> (i32, i32) {
    %c0_i32 = arith.constant 0 : i32
    %c0_i32_0 = arith.constant 0 : i32
    %c0_i32_1 = arith.constant 0 : i32
    return %c0_i32, %c0_i32_0 : i32, i32
  }
  func.func @transform_4(%arg0: i32) -> (i32, i32) {
    %c0_i32 = arith.constant 0 : i32
    %c0_i32_0 = arith.constant 0 : i32
    %c0_i32_1 = arith.constant 0 : i32
    return %c0_i32, %c0_i32_0 : i32, i32
  }
  func.func @transform_5(%arg0: i32) -> (i32, i32) {
    %c0_i32 = arith.constant 0 : i32
    %c0_i32_0 = arith.constant 0 : i32
    %c0_i32_1 = arith.constant 0 : i32
    return %c0_i32, %c0_i32_0 : i32, i32
  }
  func.func @transform_6(%arg0: i32) -> (i32, i32) {
    %c0_i32 = arith.constant 0 : i32
    %c0_i32_0 = arith.constant 0 : i32
    %c0_i32_1 = arith.constant 0 : i32
    return %c0_i32, %c0_i32_0 : i32, i32
  }
  func.func @transform_7(%arg0: i32) -> (i32, i32) {
    %c0_i32 = arith.constant 0 : i32
    %c0_i32_0 = arith.constant 0 : i32
    return %arg0, %c0_i32 : i32, i32
  }
}

module attributes {stable_mosaic.version = 11 : i64} {
  func.func @_matmul_bias_kernel(%arg0: i32, %arg1: i32, %arg2: memref<16x32xf32, #tpu.memory_space<vmem>>, %arg3: memref<32x128xf32, #tpu.memory_space<vmem>>, %arg4: memref<1x128xf32, #tpu.memory_space<vmem>>, %arg5: memref<16x128xf32, #tpu.memory_space<vmem>>) attributes {dimension_semantics = [#tpu.dimension_semantics<parallel>, #tpu.dimension_semantics<parallel>], iteration_bounds = array<i64: 1, 1>, scalar_prefetch = 0 : i64, scratch_operands = 0 : i64, tpu.core_type = #tpu.core_type<tc>, window_params = [{transform_indices = @transform_0, window_bounds = array<i64: 16, 32>}, {transform_indices = @transform_1, window_bounds = array<i64: 32, 128>}, {transform_indices = @transform_2, window_bounds = array<i64: 1, 128>}, {transform_indices = @transform_3, window_bounds = array<i64: 16, 128>}]} {
    %c0 = arith.constant 0 : index
    %c0_0 = arith.constant 0 : index
    %0 = vector.load %arg2[%c0, %c0_0] : memref<16x32xf32, #tpu.memory_space<vmem>>, vector<16x32xf32>
    %c0_1 = arith.constant 0 : index
    %c0_2 = arith.constant 0 : index
    %1 = vector.load %arg3[%c0_1, %c0_2] : memref<32x128xf32, #tpu.memory_space<vmem>>, vector<32x128xf32>
    %cst = arith.constant dense<0.000000e+00> : vector<16x128xf32>
    %2 = tpu.matmul %0, %1, %cst {dimension_numbers = #tpu.dot_dimension_numbers<[1], [0], [0], [1], [0, 0, 1, 1], [], []>} : vector<16x32xf32>, vector<32x128xf32>, vector<16x128xf32> -> vector<16x128xf32>
    %c0_3 = arith.constant 0 : index
    %c0_4 = arith.constant 0 : index
    %3 = vector.load %arg4[%c0_3, %c0_4] : memref<1x128xf32, #tpu.memory_space<vmem>>, vector<1x128xf32>
    %4 = vector.broadcast %3 : vector<1x128xf32> to vector<16x128xf32>
    %5 = arith.addf %2, %4 : vector<16x128xf32>
    %c0_5 = arith.constant 0 : index
    %c0_6 = arith.constant 0 : index
    %6 = vector.load %arg5[%c0_5, %c0_6] : memref<16x128xf32, #tpu.memory_space<vmem>>, vector<16x128xf32>
    tpu.vector_store %arg5[%c0_5, %c0_6], %5 {strides = array<i32>} : memref<16x128xf32, #tpu.memory_space<vmem>>, vector<16x128xf32>,
    return
  }
  func.func @transform_0(%arg0: i32, %arg1: i32) -> (i32, i32) {
    %c0_i32 = arith.constant 0 : i32
    %c0_i32_0 = arith.constant 0 : i32
    return %arg0, %c0_i32 : i32, i32
  }
  func.func @transform_1(%arg0: i32, %arg1: i32) -> (i32, i32) {
    %c0_i32 = arith.constant 0 : i32
    %c0_i32_0 = arith.constant 0 : i32
    return %c0_i32, %arg1 : i32, i32
  }
  func.func @transform_2(%arg0: i32, %arg1: i32) -> (i32, i32) {
    %c0_i32 = arith.constant 0 : i32
    %c0_i32_0 = arith.constant 0 : i32
    return %c0_i32, %arg1 : i32, i32
  }
  func.func @transform_3(%arg0: i32, %arg1: i32) -> (i32, i32) {
    %c0_i32 = arith.constant 0 : i32
    return %arg0, %arg1 : i32, i32
  }
}

</mosaic_0001>

<llo_original>
// kernel: music_transformer_forward.19
$region0: #{music_transformer_forward.19}
  #allocation0 [shape = 'u32[]', space=smem, size = 0x4, offset = 0x4, fixed_abs, tag = 'smem constant byte address 0x4 - core index']
  #allocation1 [shape = 'u32[144,128]{1,0:T(1,128)}', space=vmem, size = 0x12000, scoped, tag = 'internal scratch']
  %s0 = inlined_call_operand.vmem [shape: f32[16,32], index: 0, kind: input, shape index: {}]
  %s1 = inlined_call_operand.vmem [shape: f32[32,96], index: 1, kind: input, shape index: {}]
  %s2 = inlined_call_operand.vmem [shape: f32[1,96], index: 2, kind: input, shape index: {}]
  %s3 = inlined_call_operand.vmem [shape: f32[16,96], index: 3, kind: output, shape index: {}]
  %s4 = sld [smem:[#allocation0]]
  $region22: #{music_transformer_forward.19} parent=0
    _
  %s6 = ssub.s32 1, %s4
  %s7 = scalar_select 0, %s6, %s4
  // Predicated region
  $region2: #{music_transformer_forward.19} parent=0 // pred_check
    _
  $region3: #{music_transformer_forward.19} parent=0 // pred_check_branch
    %9 = sbr.rel (0) target = $region5
  $region4: #{music_transformer_forward.19} parent=0 // pred_region
    _
  $region5: #{music_transformer_forward.19} parent=0 // pred_fallthru
    _
  // Predicated region
  $region6: #{music_transformer_forward.19} parent=0 // pred_check
    _
  $region7: #{music_transformer_forward.19} parent=0 // pred_check_branch
    %11 = sbr.rel (0) target = $region9
  $region8: #{music_transformer_forward.19} parent=0 // pred_region
    _
  $region9: #{music_transformer_forward.19} parent=0 // pred_fallthru
    _
  // Predicated region
  $region10: #{music_transformer_forward.19} parent=0 // pred_check
    _
  $region11: #{music_transformer_forward.19} parent=0 // pred_check_branch
    %13 = sbr.rel (0) target = $region13
  $region12: #{music_transformer_forward.19} parent=0 // pred_region
    _
  $region13: #{music_transformer_forward.19} parent=0 // pred_fallthru
    _
  %v14 = vld [vmem:[%s0] sm:$0xff]
  %v15 = vld [vmem:[%s0 + $0x8] sm:$0xff]
  %v16 = vld [vmem:[%s1] sm:$0xff]
  %v17 = vld [vmem:[%s1 + $0x8] sm:$0xff]
  %v18 = vld [vmem:[%s1 + $0x10] sm:$0xff]
  %v19 = vld [vmem:[%s1 + $0x18] sm:$0xff]
  %v20 = vld [vmem:[%s2] sm:$0x1]
  %v22 = vlaneseq
  %v23 = vshrl.u32 %v22, 7
  %v24 = vsub.s32 0, %v23
  %v25 = vrot.slane %v20, %v24
  %vm27 = vcmask 261120
  %v29 = vsel %vm27, %v14, 0
  %v32 = vsel %vm27, %v15, 0
  %34 = vmatprep.subr.mxu0 0.0
  %35 = vmatpush1.msra.mxu0 %v16
  %36 = vmatprep.subr.mxu0 0.0
  %37 = vmatpush1.msra.mxu0 %v17
  %38 = vmatprep.subr.mxu0 0.0
  %39 = vmatpush1.msra.mxu0 %v18
  %40 = vmatprep.subr.mxu0 0.0
  %41 = vmatpush1.msra.mxu0 %v19
  %42 = vmatprep.subr.mxu0 0.0
  %43 = vmatpush1.msra.mxu0 0.0
  %44 = vmatprep.subr.mxu0 0.0
  %45 = vmatpush1.msra.mxu0 0.0
  %46 = vmatprep.subr.mxu0 0.0
  %47 = vmatpush1.msra.mxu0 0.0
  %48 = vmatprep.subr.mxu0 0.0
  %49 = vmatpush1.msra.mxu0 0.0
  %50 = vmatprep.subr.mxu0 0.0
  %51 = vmatpush1.msra.mxu0 0.0
  %52 = vmatprep.subr.mxu0 0.0
  %53 = vmatpush1.msra.mxu0 0.0
  %54 = vmatprep.subr.mxu0 0.0
  %55 = vmatpush1.msra.mxu0 0.0
  %56 = vmatprep.subr.mxu0 0.0
  %57 = vmatpush1.msra.mxu0 0.0
  %58 = vmatprep.subr.mxu0 0.0
  %59 = vmatpush1.msra.mxu0 0.0
  %60 = vmatprep.subr.mxu0 0.0
  %61 = vmatpush1.msra.mxu0 0.0
  %62 = vmatprep.subr.mxu0 0.0
  %63 = vmatpush1.msra.mxu0 0.0
  %64 = vmatprep.subr.mxu0 0.0
  %65 = vmatpush1.msra.mxu0 0.0
  %66 = vmatprep.subr.mxu0 0.0
  %67 = vmatpush1.msra.mxu0 0.0
  %68 = vmatprep.subr.mxu0 0.0
  %69 = vmatpush1.msra.mxu0 0.0
  %70 = vmatprep.subr.mxu0 0.0
  %71 = vmatpush1.msra.mxu0 0.0
  %72 = vmatprep.subr.mxu0 0.0
  %73 = vmatpush1.msra.mxu0 0.0
  %74 = vmatprep.subr.mxu0 0.0
  %75 = vmatpush1.msra.mxu0 0.0
  %76 = vmatprep.subr.mxu0 0.0
  %77 = vmatpush1.msra.mxu0 0.0
  %78 = vmatprep.subr.mxu0 0.0
  %79 = vmatpush1.msra.mxu0 0.0
  %80 = vmatprep.subr.mxu0 0.0
  %81 = vmatpush1.msra.mxu0 0.0
  %82 = vmatprep.subr.mxu0 0.0
  %83 = vmatpush1.msra.mxu0 0.0
  %84 = vmatprep.subr.mxu0 0.0
  %85 = vmatpush1.msra.mxu0 0.0
  %86 = vmatprep.subr.mxu0 0.0
  %87 = vmatpush1.msra.mxu0 0.0
  %88 = vmatprep.subr.mxu0 0.0
  %89 = vmatpush1.msra.mxu0 0.0
  %90 = vmatprep.subr.mxu0 0.0
  %91 = vmatpush1.msra.mxu0 0.0
  %92 = vmatprep.subr.mxu0 0.0
  %93 = vmatpush1.msra.mxu0 0.0
  %94 = vmatprep.subr.mxu0 0.0
  %95 = vmatpush1.msra.mxu0 0.0
  %96 = vmatprep.subr.mxu0 0.0
  %97 = vmatpush1.msra.mxu0 0.0
  %98 = vmatprep.mubr.f32.mxu0 0.0
  %99 = vmatmul.mubr.f32.gmra.mrb[0].mxu0 %v29
  %v100 = vpop.f32.mrb[0].mxu0
  %v101 = vadd.f32 %v25, %v100
  %v102 = vpop.f32.mrb[0].mxu0
  %103 = vmatprep.mubr.f32.mxu0 0.0
  %104 = vmatmul.mubr.f32.gmra.mrb[0].mxu0 %v32
  %v105 = vpop.f32.mrb[0].mxu0
  %v106 = vadd.f32 %v25, %v105
  %v107 = vpop.f32.mrb[0].mxu0
  %108 = vdwg.mxu0
  %vm109 = vcmask 785408
  %110 = vst.msk [vmem:[%s3] sm:$0xff] %vm109, %v101
  %111 = vst.msk [vmem:[%s3 + $0x8] sm:$0xff] %vm109, %v106
  // Predicated region
  $region14: #{music_transformer_forward.19} parent=0 // pred_check
    _
  $region15: #{music_transformer_forward.19} parent=0 // pred_check_branch
    %113 = sbr.rel (0) target = $region17
  $region16: #{music_transformer_forward.19} parent=0 // pred_region
    _
  $region17: #{music_transformer_forward.19} parent=0 // pred_fallthru
    _
  // Predicated region
  $region18: #{music_transformer_forward.19} parent=0 // pred_check
    _
  $region19: #{music_transformer_forward.19} parent=0 // pred_check_branch
    %115 = sbr.rel (0) target = $region21
  $region20: #{music_transformer_forward.19} parent=0 // pred_region
    _
  $region21: #{music_transformer_forward.19} parent=0 // pred_fallthru
    _

// kernel: music_transformer_forward.18
$region0: #{music_transformer_forward.18}
  #allocation0 [shape = 'u32[]', space=smem, size = 0x4, offset = 0x4, fixed_abs, tag = 'smem constant byte address 0x4 - core index']
  #allocation1 [shape = 'u32[144,128]{1,0:T(1,128)}', space=vmem, size = 0x12000, scoped, tag = 'internal scratch']
  %s0 = inlined_call_operand.vmem [shape: f32[2,8,32], index: 0, kind: input, shape index: {}, may-alias: {0,2}]
  %s1 = inlined_call_operand.vmem [shape: f32[8,32], index: 1, kind: input, shape index: {}]
  %s2 = inlined_call_operand.vmem [shape: f32[2,8,32], index: 2, kind: output, shape index: {}, may-alias: {0,2}]
  %s3 = sld [smem:[#allocation0]]
  $region41: #{music_transformer_forward.18} parent=0
    _
  %s5 = ssub.s32 1, %s3
  %s6 = scalar_select 0, %s5, %s3
  loop: start=0, step=1, limit=4
  $region2: #{music_transformer_forward.18} parent=0 // loop_pre_header
    _
  $region3: #{music_transformer_forward.18} parent=0 // loop_header
    %s8 = sphi 0, %s12
    %p9 = scmp.ge.s32.totalorder %s8, 4
    %s18 = sphi 0, %s20
    %s21 = sphi 0, %s18
    %s22 = sphi 0, %s21
    %s38 = sphi 0, %s22
    %s42 = sphi 0, %s42
    %s44 = sphi 0, %s42
    %s45 = sphi 0, %s44
    %s59 = sphi 0, %s45
    %s65 = sphi 0, %s67
    %s68 = sphi 0, %s65
    %s69 = sphi 0, %s68
    %s85 = sphi 0, %s69
  $region4: #{music_transformer_forward.18} parent=0 // loop_header_branch
    %11 = sbr.rel (%p9) target = $region8
  $region5: #{music_transformer_forward.18} parent=0 // loop_body
    %s13 = ssub.s32 %s8, 1
    %s14 = ssub.s32 %s8, 2
    %s15 = sadd.s32 %s8, 1
    %s16 = ssub.s32 %s8, %s15
    %p17 = scmp.eq.s32.totalorder %s16, 0
    %s19 = sadd.s32 %s18, 1
    %s20 = scalar_select %p17, %s18, %s19
    %p23 = pneg %p17
    %p24 = scmp.eq.s32.totalorder %s8, 1
    %p25 = por %p23, %p24
    %p26 = scmp.ne.s32.totalorder %s18, %s21
    %p27 = scmp.eq.s32.totalorder %s8, 0
    %p28 = por %p26, %p27
    %p29 = scmp.ne.s32.totalorder %s18, %s21
    %p30 = scmp.eq.s32.totalorder %s13, 1
    %p31 = por %p29, %p30
    %p32 = scmp.ne.s32.totalorder %s21, %s22
    %p33 = scmp.eq.s32.totalorder %s13, 0
    %p34 = por %p32, %p33
    %p35 = scmp.ne.s32.totalorder %s21, %s22
    %p36 = scmp.eq.s32.totalorder %s14, 1
    %p37 = por %p35, %p36
    %p39 = scmp.ne.s32.totalorder %s22, %s38
    %p40 = scmp.eq.s32.totalorder %s14, 0
    %p41 = por %p39, %p40
    %s43 = sadd.s32 %s42, 1
    %p46 = scmp.eq.s32.totalorder %s8, 1
    %p47 = scmp.ne.s32.totalorder %s42, %s44
    %p48 = scmp.eq.s32.totalorder %s8, 0
    %p49 = por %p47, %p48
    %p50 = scmp.ne.s32.totalorder %s42, %s44
    %p51 = scmp.eq.s32.totalorder %s13, 1
    %p52 = por %p50, %p51
    %p53 = scmp.ne.s32.totalorder %s44, %s45
    %p54 = scmp.eq.s32.totalorder %s13, 0
    %p55 = por %p53, %p54
    %p56 = scmp.ne.s32.totalorder %s44, %s45
    %p57 = scmp.eq.s32.totalorder %s14, 1
    %p58 = por %p56, %p57
    %p60 = scmp.ne.s32.totalorder %s45, %s59
    %p61 = scmp.eq.s32.totalorder %s14, 0
    %p62 = por %p60, %p61
    %s63 = ssub.s32 %s8, %s15
    %p64 = scmp.eq.s32.totalorder %s63, 0
    %s66 = sadd.s32 %s65, 1
    %s67 = scalar_select %p64, %s65, %s66
    %p70 = pneg %p64
    %p71 = scmp.eq.s32.totalorder %s8, 1
    %p72 = por %p70, %p71
    %p73 = scmp.ne.s32.totalorder %s65, %s68
    %p74 = scmp.eq.s32.totalorder %s8, 0
    %p75 = por %p73, %p74
    %p76 = scmp.ne.s32.totalorder %s65, %s68
    %p77 = scmp.eq.s32.totalorder %s13, 1
    %p78 = por %p76, %p77
    %p79 = scmp.ne.s32.totalorder %s68, %s69
    %p80 = scmp.eq.s32.totalorder %s13, 0
    %p81 = por %p79, %p80
    %p82 = scmp.ne.s32.totalorder %s68, %s69
    %p83 = scmp.eq.s32.totalorder %s14, 1
    %p84 = por %p82, %p83
    %p86 = scmp.ne.s32.totalorder %s69, %s85
    %p87 = scmp.eq.s32.totalorder %s14, 0
    %p88 = por %p86, %p87
    %p89 = scmp.le.s32.totalorder 1, %s8
    %p90 = scmp.lt.s32.totalorder %s8, 3
    %p91 = pnand %p89, %p90
    %p92 = pneg %p91
    // Predicated region
    $region9: #{music_transformer_forward.18} parent=5 // pred_check
      _
    $region10: #{music_transformer_forward.18} parent=5 // pred_check_branch
      %94 = sbr.rel (%p91) target = $region12
    $region11: #{music_transformer_forward.18} parent=5 // pred_region
      %s95 = ssub.s32 %s8, 1
      // Predicated region
      $region13: #{music_transformer_forward.18} parent=11 // pred_check
        %p96 = pneg %p55
      $region14: #{music_transformer_forward.18} parent=11 // pred_check_branch
        %98 = sbr.rel (%p96) target = $region16
      $region15: #{music_transformer_forward.18} parent=11 // pred_region
        _
      $region16: #{music_transformer_forward.18} parent=11 // pred_fallthru
        _
    $region12: #{music_transformer_forward.18} parent=5 // pred_fallthru
      _
    %p99 = scmp.lt.s32.totalorder %s8, 2
    // Predicated region
    $region17: #{music_transformer_forward.18} parent=5 // pred_check
      %p100 = pneg %p99
    $region18: #{music_transformer_forward.18} parent=5 // pred_check_branch
      %102 = sbr.rel (%p100) target = $region20
    $region19: #{music_transformer_forward.18} parent=5 // pred_region
      // Predicated region
      $region21: #{music_transformer_forward.18} parent=19 // pred_check
        %p103 = pneg %p28
      $region22: #{music_transformer_forward.18} parent=19 // pred_check_branch
        %105 = sbr.rel (%p103) target = $region24
      $region23: #{music_transformer_forward.18} parent=19 // pred_region
        %p106 = scmp.lt.s32.totalorder %s8, 1
        %s107 = scalar_select %p106, %s8, 1
        %s108 = smul.addr %s107, 8
        %s109 = scalar_lea.vmem %s0, %s108
      $region24: #{music_transformer_forward.18} parent=19 // pred_fallthru
        _
    $region20: #{music_transformer_forward.18} parent=5 // pred_fallthru
      _
    %p110 = scmp.le.s32.totalorder 1, %s8
    %p111 = scmp.lt.s32.totalorder %s8, 3
    %p112 = pnand %p110, %p111
    %p113 = pneg %p112
    // Predicated region
    $region25: #{music_transformer_forward.18} parent=5 // pred_check
      _
    $region26: #{music_transformer_forward.18} parent=5 // pred_check_branch
      %115 = sbr.rel (%p112) target = $region28
    $region27: #{music_transformer_forward.18} parent=5 // pred_region
      %s116 = ssub.s32 %s8, 1
      %p117 = scmp.lt.s32.totalorder %s13, 1
      %s118 = scalar_select %p117, %s13, 1
      %s119 = smul.addr %s118, 8
      %s120 = scalar_lea.vmem %s0, %s119
      %p121 = pneg %p34
      %p122 = pneg %p31
      %p123 = pneg %p55
      %p124 = pneg %p52
      %p125 = pneg %p81
      %p126 = pneg %p78
      %p127 = scmp.lt.s32.totalorder %s13, 1
      %s128 = scalar_select %p127, %s13, 1
      %s129 = smul.addr %s128, 8
      %s130 = scalar_lea.vmem %s2, %s129
      %p131 = scmp.lt.s32.totalorder %s13, 1
      %s132 = scalar_select %p131, %s13, 1
      %s133 = smul.addr %s132, 8
      %s134 = scalar_lea.vmem %s0, %s133
      %p135 = scmp.lt.s32.totalorder %s13, 1
      %s136 = scalar_select %p135, %s13, 1
      %s137 = smul.addr %s136, 8
      %s138 = scalar_lea.vmem %s2, %s137
      %v139 = vld [vmem:[%s134] sm:$0xff]
      %v140 = vld [vmem:[%s1] sm:$0xff]
      %v141 = vadd.f32 %v139, %v140
      %vm142 = vcmask 261120
      %143 = vst.msk [vmem:[%s138] sm:$0xff] %vm142, %v141
      %p144 = scmp.lt.s32.totalorder %s13, 1
      %s145 = scalar_select %p144, %s13, 1
      %s146 = smul.addr %s145, 8
      %s147 = scalar_lea.vmem %s2, %s146
      // Predicated region
      $region29: #{music_transformer_forward.18} parent=27 // pred_check
        %p148 = pneg %p78
      $region30: #{music_transformer_forward.18} parent=27 // pred_check_branch
        %150 = sbr.rel (%p148) target = $region32
      $region31: #{music_transformer_forward.18} parent=27 // pred_region
        _
      $region32: #{music_transformer_forward.18} parent=27 // pred_fallthru
        _
    $region28: #{music_transformer_forward.18} parent=5 // pred_fallthru
      _
    %p151 = scmp.le.s32.totalorder 2, %s8
    // Predicated region
    $region33: #{music_transformer_forward.18} parent=5 // pred_check
      %p152 = pneg %p151
    $region34: #{music_transformer_forward.18} parent=5 // pred_check_branch
      %154 = sbr.rel (%p152) target = $region36
    $region35: #{music_transformer_forward.18} parent=5 // pred_region
      %s155 = ssub.s32 %s8, 2
      // Predicated region
      $region37: #{music_transformer_forward.18} parent=35 // pred_check
        %p156 = pneg %p84
      $region38: #{music_transformer_forward.18} parent=35 // pred_check_branch
        %158 = sbr.rel (%p156) target = $region40
      $region39: #{music_transformer_forward.18} parent=35 // pred_region
        %p159 = scmp.lt.s32.totalorder %s14, 1
        %s160 = scalar_select %p159, %s14, 1
        %s161 = smul.addr %s160, 8
        %s162 = scalar_lea.vmem %s2, %s161
      $region40: #{music_transformer_forward.18} parent=35 // pred_fallthru
        _
    $region36: #{music_transformer_forward.18} parent=5 // pred_fallthru
      _
  $region6: #{music_transformer_forward.18} parent=0 // loop_footer
    %s12 = sadd.s32 1, %s8
  $region7: #{music_transformer_forward.18} parent=0 // loop_footer_branch
    %7 = sbr.rel target = $region3
  $region8: #{music_transformer_forward.18} parent=0 // loop_exit
    _

// kernel: music_transformer_forward.21
$region0: #{music_transformer_forward.21}
  #allocation0 [shape = 'u32[]', space=smem, size = 0x4, offset = 0x4, fixed_abs, tag = 'smem constant byte address 0x4 - core index']
  #allocation1 [shape = 'u32[144,128]{1,0:T(1,128)}', space=vmem, size = 0x12000, scoped, tag = 'internal scratch']
  %s0 = inlined_call_operand.vmem [shape: f32[16,32], index: 0, kind: input, shape index: {}]
  %s1 = inlined_call_operand.vmem [shape: f32[32,32], index: 1, kind: input, shape index: {}]
  %s2 = inlined_call_operand.vmem [shape: f32[1,32], index: 2, kind: input, shape index: {}]
  %s3 = inlined_call_operand.vmem [shape: f32[16,32], index: 3, kind: input, shape index: {}]
  %s4 = inlined_call_operand.vmem [shape: f32[1,32], index: 4, kind: input, shape index: {}]
  %s5 = inlined_call_operand.vmem [shape: f32[1,32], index: 5, kind: input, shape index: {}]
  %s6 = inlined_call_operand.vmem [shape: f32[16,32], index: 6, kind: output, shape index: {}]
  %s7 = sld [smem:[#allocation0]]
  $region34: #{music_transformer_forward.21} parent=0
    _
  %s9 = ssub.s32 1, %s7
  %s10 = scalar_select 0, %s9, %s7
  // Predicated region
  $region2: #{music_transformer_forward.21} parent=0 // pred_check
    _
  $region3: #{music_transformer_forward.21} parent=0 // pred_check_branch
    %12 = sbr.rel (0) target = $region5
  $region4: #{music_transformer_forward.21} parent=0 // pred_region
    _
  $region5: #{music_transformer_forward.21} parent=0 // pred_fallthru
    _
  // Predicated region
  $region6: #{music_transformer_forward.21} parent=0 // pred_check
    _
  $region7: #{music_transformer_forward.21} parent=0 // pred_check_branch
    %14 = sbr.rel (0) target = $region9
  $region8: #{music_transformer_forward.21} parent=0 // pred_region
    _
  $region9: #{music_transformer_forward.21} parent=0 // pred_fallthru
    _
  // Predicated region
  $region10: #{music_transformer_forward.21} parent=0 // pred_check
    _
  $region11: #{music_transformer_forward.21} parent=0 // pred_check_branch
    %16 = sbr.rel (0) target = $region13
  $region12: #{music_transformer_forward.21} parent=0 // pred_region
    _
  $region13: #{music_transformer_forward.21} parent=0 // pred_fallthru
    _
  // Predicated region
  $region14: #{music_transformer_forward.21} parent=0 // pred_check
    _
  $region15: #{music_transformer_forward.21} parent=0 // pred_check_branch
    %18 = sbr.rel (0) target = $region17
  $region16: #{music_transformer_forward.21} parent=0 // pred_region
    _
  $region17: #{music_transformer_forward.21} parent=0 // pred_fallthru
    _
  // Predicated region
  $region18: #{music_transformer_forward.21} parent=0 // pred_check
    _
  $region19: #{music_transformer_forward.21} parent=0 // pred_check_branch
    %20 = sbr.rel (0) target = $region21
  $region20: #{music_transformer_forward.21} parent=0 // pred_region
    _
  $region21: #{music_transformer_forward.21} parent=0 // pred_fallthru
    _
  // Predicated region
  $region22: #{music_transformer_forward.21} parent=0 // pred_check
    _
  $region23: #{music_transformer_forward.21} parent=0 // pred_check_branch
    %22 = sbr.rel (0) target = $region25
  $region24: #{music_transformer_forward.21} parent=0 // pred_region
    _
  $region25: #{music_transformer_forward.21} parent=0 // pred_fallthru
    _
  %v23 = vld [vmem:[%s0] sm:$0xff]
  %v24 = vld [vmem:[%s0 + $0x8] sm:$0xff]
  %v25 = vld [vmem:[%s1] sm:$0xff]
  %v26 = vld [vmem:[%s1 + $0x8] sm:$0xff]
  %v27 = vld [vmem:[%s1 + $0x10] sm:$0xff]
  %v28 = vld [vmem:[%s1 + $0x18] sm:$0xff]
  %v29 = vld [vmem:[%s2] sm:$0x1]
  %v31 = vlaneseq
  %v32 = vshrl.u32 %v31, 7
  %v33 = vsub.s32 0, %v32
  %v34 = vrot.slane %v29, %v33
  %vm36 = vcmask 261120
  %v38 = vsel %vm36, %v23, 0
  %v41 = vsel %vm36, %v24, 0
  %43 = vmatprep.subr.mxu0 0.0
  %44 = vmatpush1.msra.mxu0 %v25
  %45 = vmatprep.subr.mxu0 0.0
  %46 = vmatpush1.msra.mxu0 %v26
  %47 = vmatprep.subr.mxu0 0.0
  %48 = vmatpush1.msra.mxu0 %v27
  %49 = vmatprep.subr.mxu0 0.0
  %50 = vmatpush1.msra.mxu0 %v28
  %51 = vmatprep.subr.mxu0 0.0
  %52 = vmatpush1.msra.mxu0 0.0
  %53 = vmatprep.subr.mxu0 0.0
  %54 = vmatpush1.msra.mxu0 0.0
  %55 = vmatprep.subr.mxu0 0.0
  %56 = vmatpush1.msra.mxu0 0.0
  %57 = vmatprep.subr.mxu0 0.0
  %58 = vmatpush1.msra.mxu0 0.0
  %59 = vmatprep.subr.mxu0 0.0
  %60 = vmatpush1.msra.mxu0 0.0
  %61 = vmatprep.subr.mxu0 0.0
  %62 = vmatpush1.msra.mxu0 0.0
  %63 = vmatprep.subr.mxu0 0.0
  %64 = vmatpush1.msra.mxu0 0.0
  %65 = vmatprep.subr.mxu0 0.0
  %66 = vmatpush1.msra.mxu0 0.0
  %67 = vmatprep.subr.mxu0 0.0
  %68 = vmatpush1.msra.mxu0 0.0
  %69 = vmatprep.subr.mxu0 0.0
  %70 = vmatpush1.msra.mxu0 0.0
  %71 = vmatprep.subr.mxu0 0.0
  %72 = vmatpush1.msra.mxu0 0.0
  %73 = vmatprep.subr.mxu0 0.0
  %74 = vmatpush1.msra.mxu0 0.0
  %75 = vmatprep.subr.mxu0 0.0
  %76 = vmatpush1.msra.mxu0 0.0
  %77 = vmatprep.subr.mxu0 0.0
  %78 = vmatpush1.msra.mxu0 0.0
  %79 = vmatprep.subr.mxu0 0.0
  %80 = vmatpush1.msra.mxu0 0.0
  %81 = vmatprep.subr.mxu0 0.0
  %82 = vmatpush1.msra.mxu0 0.0
  %83 = vmatprep.subr.mxu0 0.0
  %84 = vmatpush1.msra.mxu0 0.0
  %85 = vmatprep.subr.mxu0 0.0
  %86 = vmatpush1.msra.mxu0 0.0
  %87 = vmatprep.subr.mxu0 0.0
  %88 = vmatpush1.msra.mxu0 0.0
  %89 = vmatprep.subr.mxu0 0.0
  %90 = vmatpush1.msra.mxu0 0.0
  %91 = vmatprep.subr.mxu0 0.0
  %92 = vmatpush1.msra.mxu0 0.0
  %93 = vmatprep.subr.mxu0 0.0
  %94 = vmatpush1.msra.mxu0 0.0
  %95 = vmatprep.subr.mxu0 0.0
  %96 = vmatpush1.msra.mxu0 0.0
  %97 = vmatprep.subr.mxu0 0.0
  %98 = vmatpush1.msra.mxu0 0.0
  %99 = vmatprep.subr.mxu0 0.0
  %100 = vmatpush1.msra.mxu0 0.0
  %101 = vmatprep.subr.mxu0 0.0
  %102 = vmatpush1.msra.mxu0 0.0
  %103 = vmatprep.subr.mxu0 0.0
  %104 = vmatpush1.msra.mxu0 0.0
  %105 = vmatprep.subr.mxu0 0.0
  %106 = vmatpush1.msra.mxu0 0.0
  %107 = vmatprep.mubr.f32.mxu0 0.0
  %108 = vmatmul.mubr.f32.gmra.mrb[0].mxu0 %v38
  %v109 = vpop.f32.mrb[0].mxu0
  %v110 = vadd.f32 %v34, %v109
  %v111 = vpop.f32.mrb[0].mxu0
  %112 = vmatprep.mubr.f32.mxu0 0.0
  %113 = vmatmul.mubr.f32.gmra.mrb[0].mxu0 %v41
  %v114 = vpop.f32.mrb[0].mxu0
  %v115 = vadd.f32 %v34, %v114
  %v116 = vpop.f32.mrb[0].mxu0
  %117 = vdwg.mxu0
  %v118 = vld [vmem:[%s3] sm:$0xff]
  %v119 = vld [vmem:[%s3 + $0x8] sm:$0xff]
  %v120 = vadd.f32 %v110, %v118
  %v121 = vadd.f32 %v115, %v119
  %v122 = vld [vmem:[%s4] sm:$0x1]
  %v123 = vld [vmem:[%s5] sm:$0x1]
  %v124 = vsel %vm36, %v120, 0.0
  %125 = vadd.xlane.f32.xlu0 %v124
  %v126 = vpop.xlane.xlu0 %125
  %v127 = vsel %vm36, %v121, 0.0
  %128 = vadd.xlane.f32.xlu0 %v127
  %v129 = vpop.xlane.xlu0 %128
  %v130 = vrcp.pop 32.0
  %v131 = vmul.f32 %v126, %v130
  %v132 = vmul.f32 %v129, %v130
  %v133 = vsub.f32 %v120, %v131
  %v134 = vsub.f32 %v121, %v132
  %v135 = vmul.f32 %v133, %v133
  %v136 = vmul.f32 %v134, %v134
  %v137 = vsel %vm36, %v135, 0.0
  %138 = vadd.xlane.f32.xlu0 %v137
  %v139 = vpop.xlane.xlu0 %138
  %v140 = vsel %vm36, %v136, 0.0
  %141 = vadd.xlane.f32.xlu0 %v140
  %v142 = vpop.xlane.xlu0 %141
  %v143 = vmul.f32 %v139, %v130
  %v144 = vmul.f32 %v142, %v130
  %v145 = vadd.f32 %v143, 1e-05
  %v146 = vadd.f32 %v144, 1e-05
  %v147 = vrsqrt.pop %v145
  %v148 = vrsqrt.pop %v146
  %v149 = vmul.f32 %v133, %v147
  %v150 = vmul.f32 %v134, %v148
  %v152 = vlaneseq
  %v153 = vshrl.u32 %v152, 7
  %v154 = vsub.s32 0, %v153
  %v155 = vrot.slane %v122, %v154
  %v157 = vmul.f32 %v149, %v155
  %v158 = vmul.f32 %v150, %v155
  %v160 = vlaneseq
  %v161 = vshrl.u32 %v160, 7
  %v162 = vsub.s32 0, %v161
  %v163 = vrot.slane %v123, %v162
  %v165 = vadd.f32 %v157, %v163
  %v166 = vadd.f32 %v158, %v163
  %167 = vst.msk [vmem:[%s6] sm:$0xff] %vm36, %v165
  %168 = vst.msk [vmem:[%s6 + $0x8] sm:$0xff] %vm36, %v166
  // Predicated region
  $region26: #{music_transformer_forward.21} parent=0 // pred_check
    _
  $region27: #{music_transformer_forward.21} parent=0 // pred_check_branch
    %170 = sbr.rel (0) target = $region29
  $region28: #{music_transformer_forward.21} parent=0 // pred_region
    _
  $region29: #{music_transformer_forward.21} parent=0 // pred_fallthru
    _
  // Predicated region
  $region30: #{music_transformer_forward.21} parent=0 // pred_check
    _
  $region31: #{music_transformer_forward.21} parent=0 // pred_check_branch
    %172 = sbr.rel (0) target = $region33
  $region32: #{music_transformer_forward.21} parent=0 // pred_region
    _
  $region33: #{music_transformer_forward.21} parent=0 // pred_fallthru
    _

// kernel: music_transformer_forward.22
$region0: #{music_transformer_forward.22}
  #allocation0 [shape = 'u32[]', space=smem, size = 0x4, offset = 0x4, fixed_abs, tag = 'smem constant byte address 0x4 - core index']
  #allocation1 [shape = 'u32[144,128]{1,0:T(1,128)}', space=vmem, size = 0x12000, scoped, tag = 'internal scratch']
  %s0 = inlined_call_operand.vmem [shape: f32[16,32], index: 0, kind: input, shape index: {}]
  %s1 = inlined_call_operand.vmem [shape: f32[32,32], index: 1, kind: input, shape index: {}]
  %s2 = inlined_call_operand.vmem [shape: f32[1,32], index: 2, kind: input, shape index: {}]
  %s3 = inlined_call_operand.vmem [shape: f32[16,32], index: 3, kind: output, shape index: {}]
  %s4 = sld [smem:[#allocation0]]
  $region22: #{music_transformer_forward.22} parent=0
    _
  %s6 = ssub.s32 1, %s4
  %s7 = scalar_select 0, %s6, %s4
  // Predicated region
  $region2: #{music_transformer_forward.22} parent=0 // pred_check
    _
  $region3: #{music_transformer_forward.22} parent=0 // pred_check_branch
    %9 = sbr.rel (0) target = $region5
  $region4: #{music_transformer_forward.22} parent=0 // pred_region
    _
  $region5: #{music_transformer_forward.22} parent=0 // pred_fallthru
    _
  // Predicated region
  $region6: #{music_transformer_forward.22} parent=0 // pred_check
    _
  $region7: #{music_transformer_forward.22} parent=0 // pred_check_branch
    %11 = sbr.rel (0) target = $region9
  $region8: #{music_transformer_forward.22} parent=0 // pred_region
    _
  $region9: #{music_transformer_forward.22} parent=0 // pred_fallthru
    _
  // Predicated region
  $region10: #{music_transformer_forward.22} parent=0 // pred_check
    _
  $region11: #{music_transformer_forward.22} parent=0 // pred_check_branch
    %13 = sbr.rel (0) target = $region13
  $region12: #{music_transformer_forward.22} parent=0 // pred_region
    _
  $region13: #{music_transformer_forward.22} parent=0 // pred_fallthru
    _
  %v14 = vld [vmem:[%s0] sm:$0xff]
  %v15 = vld [vmem:[%s0 + $0x8] sm:$0xff]
  %v16 = vld [vmem:[%s1] sm:$0xff]
  %v17 = vld [vmem:[%s1 + $0x8] sm:$0xff]
  %v18 = vld [vmem:[%s1 + $0x10] sm:$0xff]
  %v19 = vld [vmem:[%s1 + $0x18] sm:$0xff]
  %v20 = vld [vmem:[%s2] sm:$0x1]
  %v22 = vlaneseq
  %v23 = vshrl.u32 %v22, 7
  %v24 = vsub.s32 0, %v23
  %v25 = vrot.slane %v20, %v24
  %vm27 = vcmask 261120
  %v29 = vsel %vm27, %v14, 0
  %v32 = vsel %vm27, %v15, 0
  %34 = vmatprep.subr.mxu0 0.0
  %35 = vmatpush1.msra.mxu0 %v16
  %36 = vmatprep.subr.mxu0 0.0
  %37 = vmatpush1.msra.mxu0 %v17
  %38 = vmatprep.subr.mxu0 0.0
  %39 = vmatpush1.msra.mxu0 %v18
  %40 = vmatprep.subr.mxu0 0.0
  %41 = vmatpush1.msra.mxu0 %v19
  %42 = vmatprep.subr.mxu0 0.0
  %43 = vmatpush1.msra.mxu0 0.0
  %44 = vmatprep.subr.mxu0 0.0
  %45 = vmatpush1.msra.mxu0 0.0
  %46 = vmatprep.subr.mxu0 0.0
  %47 = vmatpush1.msra.mxu0 0.0
  %48 = vmatprep.subr.mxu0 0.0
  %49 = vmatpush1.msra.mxu0 0.0
  %50 = vmatprep.subr.mxu0 0.0
  %51 = vmatpush1.msra.mxu0 0.0
  %52 = vmatprep.subr.mxu0 0.0
  %53 = vmatpush1.msra.mxu0 0.0
  %54 = vmatprep.subr.mxu0 0.0
  %55 = vmatpush1.msra.mxu0 0.0
  %56 = vmatprep.subr.mxu0 0.0
  %57 = vmatpush1.msra.mxu0 0.0
  %58 = vmatprep.subr.mxu0 0.0
  %59 = vmatpush1.msra.mxu0 0.0
  %60 = vmatprep.subr.mxu0 0.0
  %61 = vmatpush1.msra.mxu0 0.0
  %62 = vmatprep.subr.mxu0 0.0
  %63 = vmatpush1.msra.mxu0 0.0
  %64 = vmatprep.subr.mxu0 0.0
  %65 = vmatpush1.msra.mxu0 0.0
  %66 = vmatprep.subr.mxu0 0.0
  %67 = vmatpush1.msra.mxu0 0.0
  %68 = vmatprep.subr.mxu0 0.0
  %69 = vmatpush1.msra.mxu0 0.0
  %70 = vmatprep.subr.mxu0 0.0
  %71 = vmatpush1.msra.mxu0 0.0
  %72 = vmatprep.subr.mxu0 0.0
  %73 = vmatpush1.msra.mxu0 0.0
  %74 = vmatprep.subr.mxu0 0.0
  %75 = vmatpush1.msra.mxu0 0.0
  %76 = vmatprep.subr.mxu0 0.0
  %77 = vmatpush1.msra.mxu0 0.0
  %78 = vmatprep.subr.mxu0 0.0
  %79 = vmatpush1.msra.mxu0 0.0
  %80 = vmatprep.subr.mxu0 0.0
  %81 = vmatpush1.msra.mxu0 0.0
  %82 = vmatprep.subr.mxu0 0.0
  %83 = vmatpush1.msra.mxu0 0.0
  %84 = vmatprep.subr.mxu0 0.0
  %85 = vmatpush1.msra.mxu0 0.0
  %86 = vmatprep.subr.mxu0 0.0
  %87 = vmatpush1.msra.mxu0 0.0
  %88 = vmatprep.subr.mxu0 0.0
  %89 = vmatpush1.msra.mxu0 0.0
  %90 = vmatprep.subr.mxu0 0.0
  %91 = vmatpush1.msra.mxu0 0.0
  %92 = vmatprep.subr.mxu0 0.0
  %93 = vmatpush1.msra.mxu0 0.0
  %94 = vmatprep.subr.mxu0 0.0
  %95 = vmatpush1.msra.mxu0 0.0
  %96 = vmatprep.subr.mxu0 0.0
  %97 = vmatpush1.msra.mxu0 0.0
  %98 = vmatprep.mubr.f32.mxu0 0.0
  %99 = vmatmul.mubr.f32.gmra.mrb[0].mxu0 %v29
  %v100 = vpop.f32.mrb[0].mxu0
  %v101 = vadd.f32 %v25, %v100
  %v102 = vpop.f32.mrb[0].mxu0
  %103 = vmatprep.mubr.f32.mxu0 0.0
  %104 = vmatmul.mubr.f32.gmra.mrb[0].mxu0 %v32
  %v105 = vpop.f32.mrb[0].mxu0
  %v106 = vadd.f32 %v25, %v105
  %v107 = vpop.f32.mrb[0].mxu0
  %108 = vdwg.mxu0
  %109 = vst.msk [vmem:[%s3] sm:$0xff] %vm27, %v101
  %110 = vst.msk [vmem:[%s3 + $0x8] sm:$0xff] %vm27, %v106
  // Predicated region
  $region14: #{music_transformer_forward.22} parent=0 // pred_check
    _
  $region15: #{music_transformer_forward.22} parent=0 // pred_check_branch
    %112 = sbr.rel (0) target = $region17
  $region16: #{music_transformer_forward.22} parent=0 // pred_region
    _
  $region17: #{music_transformer_forward.22} parent=0 // pred_fallthru
    _
  // Predicated region
  $region18: #{music_transformer_forward.22} parent=0 // pred_check
    _
  $region19: #{music_transformer_forward.22} parent=0 // pred_check_branch
    %114 = sbr.rel (0) target = $region21
  $region20: #{music_transformer_forward.22} parent=0 // pred_region
    _
  $region21: #{music_transformer_forward.22} parent=0 // pred_fallthru
    _

// kernel: music_transformer_forward.23
$region0: #{music_transformer_forward.23}
  #allocation0 [shape = 'u32[]', space=smem, size = 0x4, offset = 0x4, fixed_abs, tag = 'smem constant byte address 0x4 - core index']
  #allocation1 [shape = 'u32[144,128]{1,0:T(1,128)}', space=vmem, size = 0x12000, scoped, tag = 'internal scratch']
  %s0 = inlined_call_operand.vmem [shape: f32[16,32], index: 0, kind: input, shape index: {}]
  %s1 = inlined_call_operand.vmem [shape: f32[32,64], index: 1, kind: input, shape index: {}]
  %s2 = inlined_call_operand.vmem [shape: f32[1,64], index: 2, kind: input, shape index: {}]
  %s3 = inlined_call_operand.vmem [shape: f32[16,64], index: 3, kind: output, shape index: {}]
  %s4 = sld [smem:[#allocation0]]
  $region22: #{music_transformer_forward.23} parent=0
    _
  %s6 = ssub.s32 1, %s4
  %s7 = scalar_select 0, %s6, %s4
  // Predicated region
  $region2: #{music_transformer_forward.23} parent=0 // pred_check
    _
  $region3: #{music_transformer_forward.23} parent=0 // pred_check_branch
    %9 = sbr.rel (0) target = $region5
  $region4: #{music_transformer_forward.23} parent=0 // pred_region
    _
  $region5: #{music_transformer_forward.23} parent=0 // pred_fallthru
    _
  // Predicated region
  $region6: #{music_transformer_forward.23} parent=0 // pred_check
    _
  $region7: #{music_transformer_forward.23} parent=0 // pred_check_branch
    %11 = sbr.rel (0) target = $region9
  $region8: #{music_transformer_forward.23} parent=0 // pred_region
    _
  $region9: #{music_transformer_forward.23} parent=0 // pred_fallthru
    _
  // Predicated region
  $region10: #{music_transformer_forward.23} parent=0 // pred_check
    _
  $region11: #{music_transformer_forward.23} parent=0 // pred_check_branch
    %13 = sbr.rel (0) target = $region13
  $region12: #{music_transformer_forward.23} parent=0 // pred_region
    _
  $region13: #{music_transformer_forward.23} parent=0 // pred_fallthru
    _
  %v14 = vld [vmem:[%s0] sm:$0xff]
  %v15 = vld [vmem:[%s0 + $0x8] sm:$0xff]
  %v16 = vld [vmem:[%s1] sm:$0xff]
  %v17 = vld [vmem:[%s1 + $0x8] sm:$0xff]
  %v18 = vld [vmem:[%s1 + $0x10] sm:$0xff]
  %v19 = vld [vmem:[%s1 + $0x18] sm:$0xff]
  %v20 = vld [vmem:[%s2] sm:$0x1]
  %v22 = vlaneseq
  %v23 = vshrl.u32 %v22, 7
  %v24 = vsub.s32 0, %v23
  %v25 = vrot.slane %v20, %v24
  %vm27 = vcmask 261120
  %v29 = vsel %vm27, %v14, 0
  %v32 = vsel %vm27, %v15, 0
  %34 = vmatprep.subr.mxu0 0.0
  %35 = vmatpush1.msra.mxu0 %v16
  %36 = vmatprep.subr.mxu0 0.0
  %37 = vmatpush1.msra.mxu0 %v17
  %38 = vmatprep.subr.mxu0 0.0
  %39 = vmatpush1.msra.mxu0 %v18
  %40 = vmatprep.subr.mxu0 0.0
  %41 = vmatpush1.msra.mxu0 %v19
  %42 = vmatprep.subr.mxu0 0.0
  %43 = vmatpush1.msra.mxu0 0.0
  %44 = vmatprep.subr.mxu0 0.0
  %45 = vmatpush1.msra.mxu0 0.0
  %46 = vmatprep.subr.mxu0 0.0
  %47 = vmatpush1.msra.mxu0 0.0
  %48 = vmatprep.subr.mxu0 0.0
  %49 = vmatpush1.msra.mxu0 0.0
  %50 = vmatprep.subr.mxu0 0.0
  %51 = vmatpush1.msra.mxu0 0.0
  %52 = vmatprep.subr.mxu0 0.0
  %53 = vmatpush1.msra.mxu0 0.0
  %54 = vmatprep.subr.mxu0 0.0
  %55 = vmatpush1.msra.mxu0 0.0
  %56 = vmatprep.subr.mxu0 0.0
  %57 = vmatpush1.msra.mxu0 0.0
  %58 = vmatprep.subr.mxu0 0.0
  %59 = vmatpush1.msra.mxu0 0.0
  %60 = vmatprep.subr.mxu0 0.0
  %61 = vmatpush1.msra.mxu0 0.0
  %62 = vmatprep.subr.mxu0 0.0
  %63 = vmatpush1.msra.mxu0 0.0
  %64 = vmatprep.subr.mxu0 0.0
  %65 = vmatpush1.msra.mxu0 0.0
  %66 = vmatprep.subr.mxu0 0.0
  %67 = vmatpush1.msra.mxu0 0.0
  %68 = vmatprep.subr.mxu0 0.0
  %69 = vmatpush1.msra.mxu0 0.0
  %70 = vmatprep.subr.mxu0 0.0
  %71 = vmatpush1.msra.mxu0 0.0
  %72 = vmatprep.subr.mxu0 0.0
  %73 = vmatpush1.msra.mxu0 0.0
  %74 = vmatprep.subr.mxu0 0.0
  %75 = vmatpush1.msra.mxu0 0.0
  %76 = vmatprep.subr.mxu0 0.0
  %77 = vmatpush1.msra.mxu0 0.0
  %78 = vmatprep.subr.mxu0 0.0
  %79 = vmatpush1.msra.mxu0 0.0
  %80 = vmatprep.subr.mxu0 0.0
  %81 = vmatpush1.msra.mxu0 0.0
  %82 = vmatprep.subr.mxu0 0.0
  %83 = vmatpush1.msra.mxu0 0.0
  %84 = vmatprep.subr.mxu0 0.0
  %85 = vmatpush1.msra.mxu0 0.0
  %86 = vmatprep.subr.mxu0 0.0
  %87 = vmatpush1.msra.mxu0 0.0
  %88 = vmatprep.subr.mxu0 0.0
  %89 = vmatpush1.msra.mxu0 0.0
  %90 = vmatprep.subr.mxu0 0.0
  %91 = vmatpush1.msra.mxu0 0.0
  %92 = vmatprep.subr.mxu0 0.0
  %93 = vmatpush1.msra.mxu0 0.0
  %94 = vmatprep.subr.mxu0 0.0
  %95 = vmatpush1.msra.mxu0 0.0
  %96 = vmatprep.subr.mxu0 0.0
  %97 = vmatpush1.msra.mxu0 0.0
  %98 = vmatprep.mubr.f32.mxu0 0.0
  %99 = vmatmul.mubr.f32.gmra.mrb[0].mxu0 %v29
  %v100 = vpop.f32.mrb[0].mxu0
  %v101 = vadd.f32 %v25, %v100
  %v102 = vpop.f32.mrb[0].mxu0
  %103 = vmatprep.mubr.f32.mxu0 0.0
  %104 = vmatmul.mubr.f32.gmra.mrb[0].mxu0 %v32
  %v105 = vpop.f32.mrb[0].mxu0
  %v106 = vadd.f32 %v25, %v105
  %v107 = vpop.f32.mrb[0].mxu0
  %108 = vdwg.mxu0
  %vm109 = vcmask 523264
  %110 = vst.msk [vmem:[%s3] sm:$0xff] %vm109, %v101
  %111 = vst.msk [vmem:[%s3 + $0x8] sm:$0xff] %vm109, %v106
  // Predicated region
  $region14: #{music_transformer_forward.23} parent=0 // pred_check
    _
  $region15: #{music_transformer_forward.23} parent=0 // pred_check_branch
    %113 = sbr.rel (0) target = $region17
  $region16: #{music_transformer_forward.23} parent=0 // pred_region
    _
  $region17: #{music_transformer_forward.23} parent=0 // pred_fallthru
    _
  // Predicated region
  $region18: #{music_transformer_forward.23} parent=0 // pred_check
    _
  $region19: #{music_transformer_forward.23} parent=0 // pred_check_branch
    %115 = sbr.rel (0) target = $region21
  $region20: #{music_transformer_forward.23} parent=0 // pred_region
    _
  $region21: #{music_transformer_forward.23} parent=0 // pred_fallthru
    _

// kernel: music_transformer_forward.20
$region0: #{music_transformer_forward.20}
  #allocation0 [shape = 'u32[]', space=smem, size = 0x4, offset = 0x4, fixed_abs, tag = 'smem constant byte address 0x4 - core index']
  #allocation1 [shape = 'u32[144,128]{1,0:T(1,128)}', space=vmem, size = 0x12000, scoped, tag = 'internal scratch']
  %s0 = inlined_call_operand.vmem [shape: f32[2,8,4,8], index: 0, kind: input, shape index: {}]
  %s1 = inlined_call_operand.vmem [shape: f32[2,8,4,8], index: 1, kind: input, shape index: {}]
  %s2 = inlined_call_operand.vmem [shape: f32[2,8,4,8], index: 2, kind: input, shape index: {}]
  %s3 = inlined_call_operand.vmem [shape: f32[8,8], index: 3, kind: input, shape index: {}]
  %s4 = inlined_call_operand.vmem [shape: f32[2,8,4,8], index: 4, kind: output, shape index: {}]
  %s5 = sld [smem:[#allocation0]]
  $region49: #{music_transformer_forward.20} parent=0
    _
  %s7 = ssub.s32 1, %s5
  %s8 = scalar_select 0, %s7, %s5
  loop: start=0, step=1, limit=4
  $region2: #{music_transformer_forward.20} parent=0 // loop_pre_header
    _
  $region3: #{music_transformer_forward.20} parent=0 // loop_header
    %s10 = sphi 0, %s14
    %p11 = scmp.ge.s32.totalorder %s10, 4
    %s20 = sphi 0, %s22
    %s23 = sphi 0, %s20
    %s24 = sphi 0, %s23
    %s40 = sphi 0, %s24
    %s46 = sphi 0, %s48
    %s49 = sphi 0, %s46
    %s50 = sphi 0, %s49
    %s66 = sphi 0, %s50
    %s72 = sphi 0, %s74
    %s75 = sphi 0, %s72
    %s76 = sphi 0, %s75
    %s92 = sphi 0, %s76
    %s96 = sphi 0, %s96
    %s98 = sphi 0, %s96
    %s99 = sphi 0, %s98
    %s113 = sphi 0, %s99
    %s119 = sphi 0, %s121
    %s122 = sphi 0, %s119
    %s123 = sphi 0, %s122
    %s139 = sphi 0, %s123
  $region4: #{music_transformer_forward.20} parent=0 // loop_header_branch
    %13 = sbr.rel (%p11) target = $region8
  $region5: #{music_transformer_forward.20} parent=0 // loop_body
    %s15 = ssub.s32 %s10, 1
    %s16 = ssub.s32 %s10, 2
    %s17 = sadd.s32 %s10, 1
    %s18 = ssub.s32 %s10, %s17
    %p19 = scmp.eq.s32.totalorder %s18, 0
    %s21 = sadd.s32 %s20, 1
    %s22 = scalar_select %p19, %s20, %s21
    %p25 = pneg %p19
    %p26 = scmp.eq.s32.totalorder %s10, 1
    %p27 = por %p25, %p26
    %p28 = scmp.ne.s32.totalorder %s20, %s23
    %p29 = scmp.eq.s32.totalorder %s10, 0
    %p30 = por %p28, %p29
    %p31 = scmp.ne.s32.totalorder %s20, %s23
    %p32 = scmp.eq.s32.totalorder %s15, 1
    %p33 = por %p31, %p32
    %p34 = scmp.ne.s32.totalorder %s23, %s24
    %p35 = scmp.eq.s32.totalorder %s15, 0
    %p36 = por %p34, %p35
    %p37 = scmp.ne.s32.totalorder %s23, %s24
    %p38 = scmp.eq.s32.totalorder %s16, 1
    %p39 = por %p37, %p38
    %p41 = scmp.ne.s32.totalorder %s24, %s40
    %p42 = scmp.eq.s32.totalorder %s16, 0
    %p43 = por %p41, %p42
    %s44 = ssub.s32 %s10, %s17
    %p45 = scmp.eq.s32.totalorder %s44, 0
    %s47 = sadd.s32 %s46, 1
    %s48 = scalar_select %p45, %s46, %s47
    %p51 = pneg %p45
    %p52 = scmp.eq.s32.totalorder %s10, 1
    %p53 = por %p51, %p52
    %p54 = scmp.ne.s32.totalorder %s46, %s49
    %p55 = scmp.eq.s32.totalorder %s10, 0
    %p56 = por %p54, %p55
    %p57 = scmp.ne.s32.totalorder %s46, %s49
    %p58 = scmp.eq.s32.totalorder %s15, 1
    %p59 = por %p57, %p58
    %p60 = scmp.ne.s32.totalorder %s49, %s50
    %p61 = scmp.eq.s32.totalorder %s15, 0
    %p62 = por %p60, %p61
    %p63 = scmp.ne.s32.totalorder %s49, %s50
    %p64 = scmp.eq.s32.totalorder %s16, 1
    %p65 = por %p63, %p64
    %p67 = scmp.ne.s32.totalorder %s50, %s66
    %p68 = scmp.eq.s32.totalorder %s16, 0
    %p69 = por %p67, %p68
    %s70 = ssub.s32 %s10, %s17
    %p71 = scmp.eq.s32.totalorder %s70, 0
    %s73 = sadd.s32 %s72, 1
    %s74 = scalar_select %p71, %s72, %s73
    %p77 = pneg %p71
    %p78 = scmp.eq.s32.totalorder %s10, 1
    %p79 = por %p77, %p78
    %p80 = scmp.ne.s32.totalorder %s72, %s75
    %p81 = scmp.eq.s32.totalorder %s10, 0
    %p82 = por %p80, %p81
    %p83 = scmp.ne.s32.totalorder %s72, %s75
    %p84 = scmp.eq.s32.totalorder %s15, 1
    %p85 = por %p83, %p84
    %p86 = scmp.ne.s32.totalorder %s75, %s76
    %p87 = scmp.eq.s32.totalorder %s15, 0
    %p88 = por %p86, %p87
    %p89 = scmp.ne.s32.totalorder %s75, %s76
    %p90 = scmp.eq.s32.totalorder %s16, 1
    %p91 = por %p89, %p90
    %p93 = scmp.ne.s32.totalorder %s76, %s92
    %p94 = scmp.eq.s32.totalorder %s16, 0
    %p95 = por %p93, %p94
    %s97 = sadd.s32 %s96, 1
    %p100 = scmp.eq.s32.totalorder %s10, 1
    %p101 = scmp.ne.s32.totalorder %s96, %s98
    %p102 = scmp.eq.s32.totalorder %s10, 0
    %p103 = por %p101, %p102
    %p104 = scmp.ne.s32.totalorder %s96, %s98
    %p105 = scmp.eq.s32.totalorder %s15, 1
    %p106 = por %p104, %p105
    %p107 = scmp.ne.s32.totalorder %s98, %s99
    %p108 = scmp.eq.s32.totalorder %s15, 0
    %p109 = por %p107, %p108
    %p110 = scmp.ne.s32.totalorder %s98, %s99
    %p111 = scmp.eq.s32.totalorder %s16, 1
    %p112 = por %p110, %p111
    %p114 = scmp.ne.s32.totalorder %s99, %s113
    %p115 = scmp.eq.s32.totalorder %s16, 0
    %p116 = por %p114, %p115
    %s117 = ssub.s32 %s10, %s17
    %p118 = scmp.eq.s32.totalorder %s117, 0
    %s120 = sadd.s32 %s119, 1
    %s121 = scalar_select %p118, %s119, %s120
    %p124 = pneg %p118
    %p125 = scmp.eq.s32.totalorder %s10, 1
    %p126 = por %p124, %p125
    %p127 = scmp.ne.s32.totalorder %s119, %s122
    %p128 = scmp.eq.s32.totalorder %s10, 0
    %p129 = por %p127, %p128
    %p130 = scmp.ne.s32.totalorder %s119, %s122
    %p131 = scmp.eq.s32.totalorder %s15, 1
    %p132 = por %p130, %p131
    %p133 = scmp.ne.s32.totalorder %s122, %s123
    %p134 = scmp.eq.s32.totalorder %s15, 0
    %p135 = por %p133, %p134
    %p136 = scmp.ne.s32.totalorder %s122, %s123
    %p137 = scmp.eq.s32.totalorder %s16, 1
    %p138 = por %p136, %p137
    %p140 = scmp.ne.s32.totalorder %s123, %s139
    %p141 = scmp.eq.s32.totalorder %s16, 0
    %p142 = por %p140, %p141
    %p143 = scmp.le.s32.totalorder 1, %s10
    %p144 = scmp.lt.s32.totalorder %s10, 3
    %p145 = pnand %p143, %p144
    %p146 = pneg %p145
    // Predicated region
    $region9: #{music_transformer_forward.20} parent=5 // pred_check
      _
    $region10: #{music_transformer_forward.20} parent=5 // pred_check_branch
      %148 = sbr.rel (%p145) target = $region12
    $region11: #{music_transformer_forward.20} parent=5 // pred_region
      %s149 = ssub.s32 %s10, 1
      // Predicated region
      $region13: #{music_transformer_forward.20} parent=11 // pred_check
        %p150 = pneg %p109
      $region14: #{music_transformer_forward.20} parent=11 // pred_check_branch
        %152 = sbr.rel (%p150) target = $region16
      $region15: #{music_transformer_forward.20} parent=11 // pred_region
        _
      $region16: #{music_transformer_forward.20} parent=11 // pred_fallthru
        _
    $region12: #{music_transformer_forward.20} parent=5 // pred_fallthru
      _
    %p153 = scmp.lt.s32.totalorder %s10, 2
    // Predicated region
    $region17: #{music_transformer_forward.20} parent=5 // pred_check
      %p154 = pneg %p153
    $region18: #{music_transformer_forward.20} parent=5 // pred_check_branch
      %156 = sbr.rel (%p154) target = $region20
    $region19: #{music_transformer_forward.20} parent=5 // pred_region
      // Predicated region
      $region21: #{music_transformer_forward.20} parent=19 // pred_check
        %p157 = pneg %p30
      $region22: #{music_transformer_forward.20} parent=19 // pred_check_branch
        %159 = sbr.rel (%p157) target = $region24
      $region23: #{music_transformer_forward.20} parent=19 // pred_region
        %p160 = scmp.lt.s32.totalorder %s10, 1
        %s161 = scalar_select %p160, %s10, 1
        %s162 = smul.addr %s161, 8
        %s163 = smul.addr %s162, 4
        %s164 = scalar_lea.vmem %s0, %s163
      $region24: #{music_transformer_forward.20} parent=19 // pred_fallthru
        _
      // Predicated region
      $region25: #{music_transformer_forward.20} parent=19 // pred_check
        %p165 = pneg %p56
      $region26: #{music_transformer_forward.20} parent=19 // pred_check_branch
        %167 = sbr.rel (%p165) target = $region28
      $region27: #{music_transformer_forward.20} parent=19 // pred_region
        %p168 = scmp.lt.s32.totalorder %s10, 1
        %s169 = scalar_select %p168, %s10, 1
        %s170 = smul.addr %s169, 8
        %s171 = smul.addr %s170, 4
        %s172 = scalar_lea.vmem %s1, %s171
      $region28: #{music_transformer_forward.20} parent=19 // pred_fallthru
        _
      // Predicated region
      $region29: #{music_transformer_forward.20} parent=19 // pred_check
        %p173 = pneg %p82
      $region30: #{music_transformer_forward.20} parent=19 // pred_check_branch
        %175 = sbr.rel (%p173) target = $region32
      $region31: #{music_transformer_forward.20} parent=19 // pred_region
        %p176 = scmp.lt.s32.totalorder %s10, 1
        %s177 = scalar_select %p176, %s10, 1
        %s178 = smul.addr %s177, 8
        %s179 = smul.addr %s178, 4
        %s180 = scalar_lea.vmem %s2, %s179
      $region32: #{music_transformer_forward.20} parent=19 // pred_fallthru
        _
    $region20: #{music_transformer_forward.20} parent=5 // pred_fallthru
      _
    %p181 = scmp.le.s32.totalorder 1, %s10
    %p182 = scmp.lt.s32.totalorder %s10, 3
    %p183 = pnand %p181, %p182
    %p184 = pneg %p183
    // Predicated region
    $region33: #{music_transformer_forward.20} parent=5 // pred_check
      _
    $region34: #{music_transformer_forward.20} parent=5 // pred_check_branch
      %186 = sbr.rel (%p183) target = $region36
    $region35: #{music_transformer_forward.20} parent=5 // pred_region
      %s187 = ssub.s32 %s10, 1
      %p188 = scmp.lt.s32.totalorder %s15, 1
      %s189 = scalar_select %p188, %s15, 1
      %s190 = smul.addr %s189, 8
      %s191 = smul.addr %s190, 4
      %s192 = scalar_lea.vmem %s0, %s191
      %p193 = pneg %p36
      %p194 = pneg %p33
      %p195 = scmp.lt.s32.totalorder %s15, 1
      %s196 = scalar_select %p195, %s15, 1
      %s197 = smul.addr %s196, 8
      %s198 = smul.addr %s197, 4
      %s199 = scalar_lea.vmem %s1, %s198
      %p200 = pneg %p62
      %p201 = pneg %p59
      %p202 = scmp.lt.s32.totalorder %s15, 1
      %s203 = scalar_select %p202, %s15, 1
      %s204 = smul.addr %s203, 8
      %s205 = smul.addr %s204, 4
      %s206 = scalar_lea.vmem %s2, %s205
      %p207 = pneg %p88
      %p208 = pneg %p85
      %p209 = pneg %p109
      %p210 = pneg %p106
      %p211 = pneg %p135
      %p212 = pneg %p132
      %p213 = scmp.lt.s32.totalorder %s15, 1
      %s214 = scalar_select %p213, %s15, 1
      %s215 = smul.addr %s214, 8
      %s216 = smul.addr %s215, 4
      %s217 = scalar_lea.vmem %s4, %s216
      %p218 = scmp.lt.s32.totalorder %s15, 1
      %s219 = scalar_select %p218, %s15, 1
      %s220 = smul.addr %s219, 8
      %s221 = smul.addr %s220, 4
      %s222 = scalar_lea.vmem %s0, %s221
      %p223 = scmp.lt.s32.totalorder %s15, 1
      %s224 = scalar_select %p223, %s15, 1
      %s225 = smul.addr %s224, 8
      %s226 = smul.addr %s225, 4
      %s227 = scalar_lea.vmem %s1, %s226
      %p228 = scmp.lt.s32.totalorder %s15, 1
      %s229 = scalar_select %p228, %s15, 1
      %s230 = smul.addr %s229, 8
      %s231 = smul.addr %s230, 4
      %s232 = scalar_lea.vmem %s2, %s231
      %p233 = scmp.lt.s32.totalorder %s15, 1
      %s234 = scalar_select %p233, %s15, 1
      %s235 = smul.addr %s234, 8
      %s236 = smul.addr %s235, 4
      %s237 = scalar_lea.vmem %s4, %s236
      %v238 = vld [vmem:[%s222] sm:$0xf]
      %v239 = vld [vmem:[%s222 + $0x4] sm:$0xf]
      %v240 = vld [vmem:[%s222 + $0x8] sm:$0xf]
      %v241 = vld [vmem:[%s222 + $0xc] sm:$0xf]
      %v242 = vld [vmem:[%s222 + $0x10] sm:$0xf]
      %v243 = vld [vmem:[%s222 + $0x14] sm:$0xf]
      %v244 = vld [vmem:[%s222 + $0x18] sm:$0xf]
      %v245 = vld [vmem:[%s222 + $0x1c] sm:$0xf]
      %v246 = vld [vmem:[%s227] sm:$0xf]
      %v247 = vld [vmem:[%s227 + $0x4] sm:$0xf]
      %v248 = vld [vmem:[%s227 + $0x8] sm:$0xf]
      %v249 = vld [vmem:[%s227 + $0xc] sm:$0xf]
      %v250 = vld [vmem:[%s227 + $0x10] sm:$0xf]
      %v251 = vld [vmem:[%s227 + $0x14] sm:$0xf]
      %v252 = vld [vmem:[%s227 + $0x18] sm:$0xf]
      %v253 = vld [vmem:[%s227 + $0x1c] sm:$0xf]
      %v254 = vld [vmem:[%s232] sm:$0xf]
      %v255 = vld [vmem:[%s232 + $0x4] sm:$0xf]
      %v256 = vld [vmem:[%s232 + $0x8] sm:$0xf]
      %v257 = vld [vmem:[%s232 + $0xc] sm:$0xf]
      %v258 = vld [vmem:[%s232 + $0x10] sm:$0xf]
      %v259 = vld [vmem:[%s232 + $0x14] sm:$0xf]
      %v260 = vld [vmem:[%s232 + $0x18] sm:$0xf]
      %v261 = vld [vmem:[%s232 + $0x1c] sm:$0xf]
      %v262 = vcombine.low %v238, %v240
      %v264 = vunpack.c.l.s4 1983009808
      %v265 = vunpack.c.0.s8 %v264
      %v266 = vlaneseq
      %v267 = vshrl.u32 %v266, 7
      %v268 = vsub.s32 %v265, %v267
      %v269 = vrot.slane %v262, %v268
      %v270 = vcombine.low %v239, %v241
      %v272 = vunpack.c.l.s4 1983009808
      %v273 = vunpack.c.0.s8 %v272
      %v274 = vlaneseq
      %v275 = vshrl.u32 %v274, 7
      %v276 = vsub.s32 %v273, %v275
      %v277 = vrot.slane %v270, %v276
      %v278 = vcombine.low %v242, %v244
      %v280 = vunpack.c.l.s4 1983009808
      %v281 = vunpack.c.0.s8 %v280
      %v282 = vlaneseq
      %v283 = vshrl.u32 %v282, 7
      %v284 = vsub.s32 %v281, %v283
      %v285 = vrot.slane %v278, %v284
      %v286 = vcombine.low %v243, %v245
      %v288 = vunpack.c.l.s4 1983009808
      %v289 = vunpack.c.0.s8 %v288
      %v290 = vlaneseq
      %v291 = vshrl.u32 %v290, 7
      %v292 = vsub.s32 %v289, %v291
      %v293 = vrot.slane %v286, %v292
      %v294 = vcombine.low %v269, %v277
      %v295 = vcombine.high %v269, %v277
      %v297 = vunpack.c.l.s4 1934713408
      %v298 = vunpack.c.0.s8 %v297
      %v299 = vlaneseq
      %v300 = vshrl.u32 %v299, 7
      %v301 = vsub.s32 %v298, %v300
      %v302 = vrot.slane %v294, %v301
      %v304 = vunpack.c.l.s4 1934713408
      %v305 = vunpack.c.0.s8 %v304
      %v306 = vlaneseq
      %v307 = vshrl.u32 %v306, 7
      %v308 = vsub.s32 %v305, %v307
      %v309 = vrot.slane %v295, %v308
      %v310 = vcombine.low %v285, %v293
      %v311 = vcombine.high %v285, %v293
      %v313 = vunpack.c.l.s4 1934713408
      %v314 = vunpack.c.0.s8 %v313
      %v315 = vlaneseq
      %v316 = vshrl.u32 %v315, 7
      %v317 = vsub.s32 %v314, %v316
      %v318 = vrot.slane %v310, %v317
      %v320 = vunpack.c.l.s4 1934713408
      %v321 = vunpack.c.0.s8 %v320
      %v322 = vlaneseq
      %v323 = vshrl.u32 %v322, 7
      %v324 = vsub.s32 %v321, %v323
      %v325 = vrot.slane %v311, %v324
      %v326 = vcombine.low %v302, %v318
      %v327 = vcombine.high %v302, %v318
      %v328 = vcombine.low %v309, %v325
      %v329 = vcombine.high %v309, %v325
      %330 = vxpose.xlu0.b32.start [1/16] %v246, 128
      %331 = vxpose.xlu0.b32.cont [2/16] 0.0, 128
      %332 = vxpose.xlu0.b32.cont [3/16] 0.0, 128
      %333 = vxpose.xlu0.b32.cont [4/16] 0.0, 128
      %334 = vxpose.xlu0.b32.cont [5/16] 0.0, 128
      %335 = vxpose.xlu0.b32.cont [6/16] 0.0, 128
      %336 = vxpose.xlu0.b32.cont [7/16] 0.0, 128
      %337 = vxpose.xlu0.b32.cont [8/16] 0.0, 128
      %338 = vxpose.xlu0.b32.cont [9/16] 0.0, 128
      %339 = vxpose.xlu0.b32.cont [10/16] 0.0, 128
      %340 = vxpose.xlu0.b32.cont [11/16] 0.0, 128
      %341 = vxpose.xlu0.b32.cont [12/16] 0.0, 128
      %342 = vxpose.xlu0.b32.cont [13/16] 0.0, 128
      %343 = vxpose.xlu0.b32.cont [14/16] 0.0, 128
      %344 = vxpose.xlu0.b32.cont [15/16] 0.0, 128
      %345 = vxpose.xlu0.b32.end [16/16] 0.0, 128
      %v346 = vpop.trf.xlu0
      %v347 = vpop.trf.xlu0
      %v348 = vpop.trf.xlu0
      %v349 = vpop.trf.xlu0
      %v350 = vpop.trf.xlu0
      %v351 = vpop.trf.xlu0
      %v352 = vpop.trf.xlu0
      %v353 = vpop.trf.xlu0
      %v354 = vpop.trf.xlu0
      %v355 = vpop.trf.xlu0
      %v356 = vpop.trf.xlu0
      %v357 = vpop.trf.xlu0
      %v358 = vpop.trf.xlu0
      %v359 = vpop.trf.xlu0
      %v360 = vpop.trf.xlu0
      %v361 = vpop.trf.xlu0
      %362 = vxpose.xlu0.b32.start [1/16] %v247, 128
      %363 = vxpose.xlu0.b32.cont [2/16] 0.0, 128
      %364 = vxpose.xlu0.b32.cont [3/16] 0.0, 128
      %365 = vxpose.xlu0.b32.cont [4/16] 0.0, 128
      %366 = vxpose.xlu0.b32.cont [5/16] 0.0, 128
      %367 = vxpose.xlu0.b32.cont [6/16] 0.0, 128
      %368 = vxpose.xlu0.b32.cont [7/16] 0.0, 128
      %369 = vxpose.xlu0.b32.cont [8/16] 0.0, 128
      %370 = vxpose.xlu0.b32.cont [9/16] 0.0, 128
      %371 = vxpose.xlu0.b32.cont [10/16] 0.0, 128
      %372 = vxpose.xlu0.b32.cont [11/16] 0.0, 128
      %373 = vxpose.xlu0.b32.cont [12/16] 0.0, 128
      %374 = vxpose.xlu0.b32.cont [13/16] 0.0, 128
      %375 = vxpose.xlu0.b32.cont [14/16] 0.0, 128
      %376 = vxpose.xlu0.b32.cont [15/16] 0.0, 128
      %377 = vxpose.xlu0.b32.end [16/16] 0.0, 128
      %v378 = vpop.trf.xlu0
      %v379 = vpop.trf.xlu0
      %v380 = vpop.trf.xlu0
      %v381 = vpop.trf.xlu0
      %v382 = vpop.trf.xlu0
      %v383 = vpop.trf.xlu0
      %v384 = vpop.trf.xlu0
      %v385 = vpop.trf.xlu0
      %v386 = vpop.trf.xlu0
      %v387 = vpop.trf.xlu0
      %v388 = vpop.trf.xlu0
      %v389 = vpop.trf.xlu0
      %v390 = vpop.trf.xlu0
      %v391 = vpop.trf.xlu0
      %v392 = vpop.trf.xlu0
      %v393 = vpop.trf.xlu0
      %394 = vxpose.xlu0.b32.start [1/16] %v248, 128
      %395 = vxpose.xlu0.b32.cont [2/16] 0.0, 128
      %396 = vxpose.xlu0.b32.cont [3/16] 0.0, 128
      %397 = vxpose.xlu0.b32.cont [4/16] 0.0, 128
      %398 = vxpose.xlu0.b32.cont [5/16] 0.0, 128
      %399 = vxpose.xlu0.b32.cont [6/16] 0.0, 128
      %400 = vxpose.xlu0.b32.cont [7/16] 0.0, 128
      %401 = vxpose.xlu0.b32.cont [8/16] 0.0, 128
      %402 = vxpose.xlu0.b32.cont [9/16] 0.0, 128
      %403 = vxpose.xlu0.b32.cont [10/16] 0.0, 128
      %404 = vxpose.xlu0.b32.cont [11/16] 0.0, 128
      %405 = vxpose.xlu0.b32.cont [12/16] 0.0, 128
      %406 = vxpose.xlu0.b32.cont [13/16] 0.0, 128
      %407 = vxpose.xlu0.b32.cont [14/16] 0.0, 128
      %408 = vxpose.xlu0.b32.cont [15/16] 0.0, 128
      %409 = vxpose.xlu0.b32.end [16/16] 0.0, 128
      %v410 = vpop.trf.xlu0
      %v411 = vpop.trf.xlu0
      %v412 = vpop.trf.xlu0
      %v413 = vpop.trf.xlu0
      %v414 = vpop.trf.xlu0
      %v415 = vpop.trf.xlu0
      %v416 = vpop.trf.xlu0
      %v417 = vpop.trf.xlu0
      %v418 = vpop.trf.xlu0
      %v419 = vpop.trf.xlu0
      %v420 = vpop.trf.xlu0
      %v421 = vpop.trf.xlu0
      %v422 = vpop.trf.xlu0
      %v423 = vpop.trf.xlu0
      %v424 = vpop.trf.xlu0
      %v425 = vpop.trf.xlu0
      %426 = vxpose.xlu0.b32.start [1/16] %v249, 128
      %427 = vxpose.xlu0.b32.cont [2/16] 0.0, 128
      %428 = vxpose.xlu0.b32.cont [3/16] 0.0, 128
      %429 = vxpose.xlu0.b32.cont [4/16] 0.0, 128
      %430 = vxpose.xlu0.b32.cont [5/16] 0.0, 128
      %431 = vxpose.xlu0.b32.cont [6/16] 0.0, 128
      %432 = vxpose.xlu0.b32.cont [7/16] 0.0, 128
      %433 = vxpose.xlu0.b32.cont [8/16] 0.0, 128
      %434 = vxpose.xlu0.b32.cont [9/16] 0.0, 128
      %435 = vxpose.xlu0.b32.cont [10/16] 0.0, 128
      %436 = vxpose.xlu0.b32.cont [11/16] 0.0, 128
      %437 = vxpose.xlu0.b32.cont [12/16] 0.0, 128
      %438 = vxpose.xlu0.b32.cont [13/16] 0.0, 128
      %439 = vxpose.xlu0.b32.cont [14/16] 0.0, 128
      %440 = vxpose.xlu0.b32.cont [15/16] 0.0, 128
      %441 = vxpose.xlu0.b32.end [16/16] 0.0, 128
      %v442 = vpop.trf.xlu0
      %v443 = vpop.trf.xlu0
      %v444 = vpop.trf.xlu0
      %v445 = vpop.trf.xlu0
      %v446 = vpop.trf.xlu0
      %v447 = vpop.trf.xlu0
      %v448 = vpop.trf.xlu0
      %v449 = vpop.trf.xlu0
      %v450 = vpop.trf.xlu0
      %v451 = vpop.trf.xlu0
      %v452 = vpop.trf.xlu0
      %v453 = vpop.trf.xlu0
      %v454 = vpop.trf.xlu0
      %v455 = vpop.trf.xlu0
      %v456 = vpop.trf.xlu0
      %v457 = vpop.trf.xlu0
      %458 = vxpose.xlu0.b32.start [1/16] %v250, 128
      %459 = vxpose.xlu0.b32.cont [2/16] 0.0, 128
      %460 = vxpose.xlu0.b32.cont [3/16] 0.0, 128
      %461 = vxpose.xlu0.b32.cont [4/16] 0.0, 128
      %462 = vxpose.xlu0.b32.cont [5/16] 0.0, 128
      %463 = vxpose.xlu0.b32.cont [6/16] 0.0, 128
      %464 = vxpose.xlu0.b32.cont [7/16] 0.0, 128
      %465 = vxpose.xlu0.b32.cont [8/16] 0.0, 128
      %466 = vxpose.xlu0.b32.cont [9/16] 0.0, 128
      %467 = vxpose.xlu0.b32.cont [10/16] 0.0, 128
      %468 = vxpose.xlu0.b32.cont [11/16] 0.0, 128
      %469 = vxpose.xlu0.b32.cont [12/16] 0.0, 128
      %470 = vxpose.xlu0.b32.cont [13/16] 0.0, 128
      %471 = vxpose.xlu0.b32.cont [14/16] 0.0, 128
      %472 = vxpose.xlu0.b32.cont [15/16] 0.0, 128
      %473 = vxpose.xlu0.b32.end [16/16] 0.0, 128
      %v474 = vpop.trf.xlu0
      %v475 = vpop.trf.xlu0
      %v476 = vpop.trf.xlu0
      %v477 = vpop.trf.xlu0
      %v478 = vpop.trf.xlu0
      %v479 = vpop.trf.xlu0
      %v480 = vpop.trf.xlu0
      %v481 = vpop.trf.xlu0
      %v482 = vpop.trf.xlu0
      %v483 = vpop.trf.xlu0
      %v484 = vpop.trf.xlu0
      %v485 = vpop.trf.xlu0
      %v486 = vpop.trf.xlu0
      %v487 = vpop.trf.xlu0
      %v488 = vpop.trf.xlu0
      %v489 = vpop.trf.xlu0
      %490 = vxpose.xlu0.b32.start [1/16] %v251, 128
      %491 = vxpose.xlu0.b32.cont [2/16] 0.0, 128
      %492 = vxpose.xlu0.b32.cont [3/16] 0.0, 128
      %493 = vxpose.xlu0.b32.cont [4/16] 0.0, 128
      %494 = vxpose.xlu0.b32.cont [5/16] 0.0, 128
      %495 = vxpose.xlu0.b32.cont [6/16] 0.0, 128
      %496 = vxpose.xlu0.b32.cont [7/16] 0.0, 128
      %497 = vxpose.xlu0.b32.cont [8/16] 0.0, 128
      %498 = vxpose.xlu0.b32.cont [9/16] 0.0, 128
      %499 = vxpose.xlu0.b32.cont [10/16] 0.0, 128
      %500 = vxpose.xlu0.b32.cont [11/16] 0.0, 128
      %501 = vxpose.xlu0.b32.cont [12/16] 0.0, 128
      %502 = vxpose.xlu0.b32.cont [13/16] 0.0, 128
      %503 = vxpose.xlu0.b32.cont [14/16] 0.0, 128
      %504 = vxpose.xlu0.b32.cont [15/16] 0.0, 128
      %505 = vxpose.xlu0.b32.end [16/16] 0.0, 128
      %v506 = vpop.trf.xlu0
      %v507 = vpop.trf.xlu0
      %v508 = vpop.trf.xlu0
      %v509 = vpop.trf.xlu0
      %v510 = vpop.trf.xlu0
      %v511 = vpop.trf.xlu0
      %v512 = vpop.trf.xlu0
      %v513 = vpop.trf.xlu0
      %v514 = vpop.trf.xlu0
      %v515 = vpop.trf.xlu0
      %v516 = vpop.trf.xlu0
      %v517 = vpop.trf.xlu0
      %v518 = vpop.trf.xlu0
      %v519 = vpop.trf.xlu0
      %v520 = vpop.trf.xlu0
      %v521 = vpop.trf.xlu0
      %522 = vxpose.xlu0.b32.start [1/16] %v252, 128
      %523 = vxpose.xlu0.b32.cont [2/16] 0.0, 128
      %524 = vxpose.xlu0.b32.cont [3/16] 0.0, 128
      %525 = vxpose.xlu0.b32.cont [4/16] 0.0, 128
      %526 = vxpose.xlu0.b32.cont [5/16] 0.0, 128
      %527 = vxpose.xlu0.b32.cont [6/16] 0.0, 128
      %528 = vxpose.xlu0.b32.cont [7/16] 0.0, 128
      %529 = vxpose.xlu0.b32.cont [8/16] 0.0, 128
      %530 = vxpose.xlu0.b32.cont [9/16] 0.0, 128
      %531 = vxpose.xlu0.b32.cont [10/16] 0.0, 128
      %532 = vxpose.xlu0.b32.cont [11/16] 0.0, 128
      %533 = vxpose.xlu0.b32.cont [12/16] 0.0, 128
      %534 = vxpose.xlu0.b32.cont [13/16] 0.0, 128
      %535 = vxpose.xlu0.b32.cont [14/16] 0.0, 128
      %536 = vxpose.xlu0.b32.cont [15/16] 0.0, 128
      %537 = vxpose.xlu0.b32.end [16/16] 0.0, 128
      %v538 = vpop.trf.xlu0
      %v539 = vpop.trf.xlu0
      %v540 = vpop.trf.xlu0
      %v541 = vpop.trf.xlu0
      %v542 = vpop.trf.xlu0
      %v543 = vpop.trf.xlu0
      %v544 = vpop.trf.xlu0
      %v545 = vpop.trf.xlu0
      %v546 = vpop.trf.xlu0
      %v547 = vpop.trf.xlu0
      %v548 = vpop.trf.xlu0
      %v549 = vpop.trf.xlu0
      %v550 = vpop.trf.xlu0
      %v551 = vpop.trf.xlu0
      %v552 = vpop.trf.xlu0
      %v553 = vpop.trf.xlu0
      %554 = vxpose.xlu0.b32.start [1/16] %v253, 128
      %555 = vxpose.xlu0.b32.cont [2/16] 0.0, 128
      %556 = vxpose.xlu0.b32.cont [3/16] 0.0, 128
      %557 = vxpose.xlu0.b32.cont [4/16] 0.0, 128
      %558 = vxpose.xlu0.b32.cont [5/16] 0.0, 128
      %559 = vxpose.xlu0.b32.cont [6/16] 0.0, 128
      %560 = vxpose.xlu0.b32.cont [7/16] 0.0, 128
      %561 = vxpose.xlu0.b32.cont [8/16] 0.0, 128
      %562 = vxpose.xlu0.b32.cont [9/16] 0.0, 128
      %563 = vxpose.xlu0.b32.cont [10/16] 0.0, 128
      %564 = vxpose.xlu0.b32.cont [11/16] 0.0, 128
      %565 = vxpose.xlu0.b32.cont [12/16] 0.0, 128
      %566 = vxpose.xlu0.b32.cont [13/16] 0.0, 128
      %567 = vxpose.xlu0.b32.cont [14/16] 0.0, 128
      %568 = vxpose.xlu0.b32.cont [15/16] 0.0, 128
      %569 = vxpose.xlu0.b32.end [16/16] 0.0, 128
      %v570 = vpop.trf.xlu0
      %v571 = vpop.trf.xlu0
      %v572 = vpop.trf.xlu0
      %v573 = vpop.trf.xlu0
      %v574 = vpop.trf.xlu0
      %v575 = vpop.trf.xlu0
      %v576 = vpop.trf.xlu0
      %v577 = vpop.trf.xlu0
      %v578 = vpop.trf.xlu0
      %v579 = vpop.trf.xlu0
      %v580 = vpop.trf.xlu0
      %v581 = vpop.trf.xlu0
      %v582 = vpop.trf.xlu0
      %v583 = vpop.trf.xlu0
      %v584 = vpop.trf.xlu0
      %v585 = vpop.trf.xlu0
      %v586 = vcombine.low %v346, %v410
      %v587 = vcombine.high %v346, %v410
      %v589 = vunpack.c.l.s4 1983009808
      %v590 = vunpack.c.0.s8 %v589
      %v591 = vlaneseq
      %v592 = vshrl.u32 %v591, 7
      %v593 = vsub.s32 %v590, %v592
      %v594 = vrot.slane %v586, %v593
      %v596 = vunpack.c.l.s4 1983009808
      %v597 = vunpack.c.0.s8 %v596
      %v598 = vlaneseq
      %v599 = vshrl.u32 %v598, 7
      %v600 = vsub.s32 %v597, %v599
      %v601 = vrot.slane %v587, %v600
      %v602 = vcombine.low %v378, %v442
      %v603 = vcombine.high %v378, %v442
      %v605 = vunpack.c.l.s4 1983009808
      %v606 = vunpack.c.0.s8 %v605
      %v607 = vlaneseq
      %v608 = vshrl.u32 %v607, 7
      %v609 = vsub.s32 %v606, %v608
      %v610 = vrot.slane %v602, %v609
      %v612 = vunpack.c.l.s4 1983009808
      %v613 = vunpack.c.0.s8 %v612
      %v614 = vlaneseq
      %v615 = vshrl.u32 %v614, 7
      %v616 = vsub.s32 %v613, %v615
      %v617 = vrot.slane %v603, %v616
      %v618 = vcombine.low %v474, %v538
      %v619 = vcombine.high %v474, %v538
      %v621 = vunpack.c.l.s4 1983009808
      %v622 = vunpack.c.0.s8 %v621
      %v623 = vlaneseq
      %v624 = vshrl.u32 %v623, 7
      %v625 = vsub.s32 %v622, %v624
      %v626 = vrot.slane %v618, %v625
      %v628 = vunpack.c.l.s4 1983009808
      %v629 = vunpack.c.0.s8 %v628
      %v630 = vlaneseq
      %v631 = vshrl.u32 %v630, 7
      %v632 = vsub.s32 %v629, %v631
      %v633 = vrot.slane %v619, %v632
      %v634 = vcombine.low %v506, %v570
      %v635 = vcombine.high %v506, %v570
      %v637 = vunpack.c.l.s4 1983009808
      %v638 = vunpack.c.0.s8 %v637
      %v639 = vlaneseq
      %v640 = vshrl.u32 %v639, 7
      %v641 = vsub.s32 %v638, %v640
      %v642 = vrot.slane %v634, %v641
      %v644 = vunpack.c.l.s4 1983009808
      %v645 = vunpack.c.0.s8 %v644
      %v646 = vlaneseq
      %v647 = vshrl.u32 %v646, 7
      %v648 = vsub.s32 %v645, %v647
      %v649 = vrot.slane %v635, %v648
      %v650 = vcombine.low %v594, %v610
      %v651 = vcombine.high %v594, %v610
      %v653 = vunpack.c.l.s4 1934713408
      %v654 = vunpack.c.0.s8 %v653
      %v655 = vlaneseq
      %v656 = vshrl.u32 %v655, 7
      %v657 = vsub.s32 %v654, %v656
      %v658 = vrot.slane %v650, %v657
      %v660 = vunpack.c.l.s4 1934713408
      %v661 = vunpack.c.0.s8 %v660
      %v662 = vlaneseq
      %v663 = vshrl.u32 %v662, 7
      %v664 = vsub.s32 %v661, %v663
      %v665 = vrot.slane %v651, %v664
      %v666 = vcombine.low %v601, %v617
      %v667 = vcombine.high %v601, %v617
      %v669 = vunpack.c.l.s4 1934713408
      %v670 = vunpack.c.0.s8 %v669
      %v671 = vlaneseq
      %v672 = vshrl.u32 %v671, 7
      %v673 = vsub.s32 %v670, %v672
      %v674 = vrot.slane %v666, %v673
      %v676 = vunpack.c.l.s4 1934713408
      %v677 = vunpack.c.0.s8 %v676
      %v678 = vlaneseq
      %v679 = vshrl.u32 %v678, 7
      %v680 = vsub.s32 %v677, %v679
      %v681 = vrot.slane %v667, %v680
      %v682 = vcombine.low %v626, %v642
      %v683 = vcombine.high %v626, %v642
      %v685 = vunpack.c.l.s4 1934713408
      %v686 = vunpack.c.0.s8 %v685
      %v687 = vlaneseq
      %v688 = vshrl.u32 %v687, 7
      %v689 = vsub.s32 %v686, %v688
      %v690 = vrot.slane %v682, %v689
      %v692 = vunpack.c.l.s4 1934713408
      %v693 = vunpack.c.0.s8 %v692
      %v694 = vlaneseq
      %v695 = vshrl.u32 %v694, 7
      %v696 = vsub.s32 %v693, %v695
      %v697 = vrot.slane %v683, %v696
      %v698 = vcombine.low %v633, %v649
      %v699 = vcombine.high %v633, %v649
      %v701 = vunpack.c.l.s4 1934713408
      %v702 = vunpack.c.0.s8 %v701
      %v703 = vlaneseq
      %v704 = vshrl.u32 %v703, 7
      %v705 = vsub.s32 %v702, %v704
      %v706 = vrot.slane %v698, %v705
      %v708 = vunpack.c.l.s4 1934713408
      %v709 = vunpack.c.0.s8 %v708
      %v710 = vlaneseq
      %v711 = vshrl.u32 %v710, 7
      %v712 = vsub.s32 %v709, %v711
      %v713 = vrot.slane %v699, %v712
      %v714 = vcombine.low %v658, %v690
      %v715 = vcombine.high %v658, %v690
      %v716 = vcombine.low %v665, %v697
      %v717 = vcombine.high %v665, %v697
      %v718 = vcombine.low %v674, %v706
      %v719 = vcombine.high %v674, %v706
      %v720 = vcombine.low %v681, %v713
      %v721 = vcombine.high %v681, %v713
      %722 = vxpose.xlu0.b32.start [1/16] %v714, 128
      %723 = vxpose.xlu0.b32.cont [2/16] 0.0, 128
      %724 = vxpose.xlu0.b32.cont [3/16] 0.0, 128
      %725 = vxpose.xlu0.b32.cont [4/16] 0.0, 128
      %726 = vxpose.xlu0.b32.cont [5/16] 0.0, 128
      %727 = vxpose.xlu0.b32.cont [6/16] 0.0, 128
      %728 = vxpose.xlu0.b32.cont [7/16] 0.0, 128
      %729 = vxpose.xlu0.b32.cont [8/16] 0.0, 128
      %730 = vxpose.xlu0.b32.cont [9/16] 0.0, 128
      %731 = vxpose.xlu0.b32.cont [10/16] 0.0, 128
      %732 = vxpose.xlu0.b32.cont [11/16] 0.0, 128
      %733 = vxpose.xlu0.b32.cont [12/16] 0.0, 128
      %734 = vxpose.xlu0.b32.cont [13/16] 0.0, 128
      %735 = vxpose.xlu0.b32.cont [14/16] 0.0, 128
      %736 = vxpose.xlu0.b32.cont [15/16] 0.0, 128
      %737 = vxpose.xlu0.b32.end [16/16] 0.0, 128
      %v738 = vpop.trf.xlu0
      %v739 = vpop.trf.xlu0
      %v740 = vpop.trf.xlu0
      %v741 = vpop.trf.xlu0
      %v742 = vpop.trf.xlu0
      %v743 = vpop.trf.xlu0
      %v744 = vpop.trf.xlu0
      %v745 = vpop.trf.xlu0
      %v746 = vpop.trf.xlu0
      %v747 = vpop.trf.xlu0
      %v748 = vpop.trf.xlu0
      %v749 = vpop.trf.xlu0
      %v750 = vpop.trf.xlu0
      %v751 = vpop.trf.xlu0
      %v752 = vpop.trf.xlu0
      %v753 = vpop.trf.xlu0
      %754 = vxpose.xlu0.b32.start [1/16] %v715, 128
      %755 = vxpose.xlu0.b32.cont [2/16] 0.0, 128
      %756 = vxpose.xlu0.b32.cont [3/16] 0.0, 128
      %757 = vxpose.xlu0.b32.cont [4/16] 0.0, 128
      %758 = vxpose.xlu0.b32.cont [5/16] 0.0, 128
      %759 = vxpose.xlu0.b32.cont [6/16] 0.0, 128
      %760 = vxpose.xlu0.b32.cont [7/16] 0.0, 128
      %761 = vxpose.xlu0.b32.cont [8/16] 0.0, 128
      %762 = vxpose.xlu0.b32.cont [9/16] 0.0, 128
      %763 = vxpose.xlu0.b32.cont [10/16] 0.0, 128
      %764 = vxpose.xlu0.b32.cont [11/16] 0.0, 128
      %765 = vxpose.xlu0.b32.cont [12/16] 0.0, 128
      %766 = vxpose.xlu0.b32.cont [13/16] 0.0, 128
      %767 = vxpose.xlu0.b32.cont [14/16] 0.0, 128
      %768 = vxpose.xlu0.b32.cont [15/16] 0.0, 128
      %769 = vxpose.xlu0.b32.end [16/16] 0.0, 128
      %v770 = vpop.trf.xlu0
      %v771 = vpop.trf.xlu0
      %v772 = vpop.trf.xlu0
      %v773 = vpop.trf.xlu0
      %v774 = vpop.trf.xlu0
      %v775 = vpop.trf.xlu0
      %v776 = vpop.trf.xlu0
      %v777 = vpop.trf.xlu0
      %v778 = vpop.trf.xlu0
      %v779 = vpop.trf.xlu0
      %v780 = vpop.trf.xlu0
      %v781 = vpop.trf.xlu0
      %v782 = vpop.trf.xlu0
      %v783 = vpop.trf.xlu0
      %v784 = vpop.trf.xlu0
      %v785 = vpop.trf.xlu0
      %786 = vxpose.xlu0.b32.start [1/16] %v716, 128
      %787 = vxpose.xlu0.b32.cont [2/16] 0.0, 128
      %788 = vxpose.xlu0.b32.cont [3/16] 0.0, 128
      %789 = vxpose.xlu0.b32.cont [4/16] 0.0, 128
      %790 = vxpose.xlu0.b32.cont [5/16] 0.0, 128
      %791 = vxpose.xlu0.b32.cont [6/16] 0.0, 128
      %792 = vxpose.xlu0.b32.cont [7/16] 0.0, 128
      %793 = vxpose.xlu0.b32.cont [8/16] 0.0, 128
      %794 = vxpose.xlu0.b32.cont [9/16] 0.0, 128
      %795 = vxpose.xlu0.b32.cont [10/16] 0.0, 128
      %796 = vxpose.xlu0.b32.cont [11/16] 0.0, 128
      %797 = vxpose.xlu0.b32.cont [12/16] 0.0, 128
      %798 = vxpose.xlu0.b32.cont [13/16] 0.0, 128
      %799 = vxpose.xlu0.b32.cont [14/16] 0.0, 128
      %800 = vxpose.xlu0.b32.cont [15/16] 0.0, 128
      %801 = vxpose.xlu0.b32.end [16/16] 0.0, 128
      %v802 = vpop.trf.xlu0
      %v803 = vpop.trf.xlu0
      %v804 = vpop.trf.xlu0
      %v805 = vpop.trf.xlu0
      %v806 = vpop.trf.xlu0
      %v807 = vpop.trf.xlu0
      %v808 = vpop.trf.xlu0
      %v809 = vpop.trf.xlu0
      %v810 = vpop.trf.xlu0
      %v811 = vpop.trf.xlu0
      %v812 = vpop.trf.xlu0
      %v813 = vpop.trf.xlu0
      %v814 = vpop.trf.xlu0
      %v815 = vpop.trf.xlu0
      %v816 = vpop.trf.xlu0
      %v817 = vpop.trf.xlu0
      %818 = vxpose.xlu0.b32.start [1/16] %v717, 128
      %819 = vxpose.xlu0.b32.cont [2/16] 0.0, 128
      %820 = vxpose.xlu0.b32.cont [3/16] 0.0, 128
      %821 = vxpose.xlu0.b32.cont [4/16] 0.0, 128
      %822 = vxpose.xlu0.b32.cont [5/16] 0.0, 128
      %823 = vxpose.xlu0.b32.cont [6/16] 0.0, 128
      %824 = vxpose.xlu0.b32.cont [7/16] 0.0, 128
      %825 = vxpose.xlu0.b32.cont [8/16] 0.0, 128
      %826 = vxpose.xlu0.b32.cont [9/16] 0.0, 128
      %827 = vxpose.xlu0.b32.cont [10/16] 0.0, 128
      %828 = vxpose.xlu0.b32.cont [11/16] 0.0, 128
      %829 = vxpose.xlu0.b32.cont [12/16] 0.0, 128
      %830 = vxpose.xlu0.b32.cont [13/16] 0.0, 128
      %831 = vxpose.xlu0.b32.cont [14/16] 0.0, 128
      %832 = vxpose.xlu0.b32.cont [15/16] 0.0, 128
      %833 = vxpose.xlu0.b32.end [16/16] 0.0, 128
      %v834 = vpop.trf.xlu0
      %v835 = vpop.trf.xlu0
      %v836 = vpop.trf.xlu0
      %v837 = vpop.trf.xlu0
      %v838 = vpop.trf.xlu0
      %v839 = vpop.trf.xlu0
      %v840 = vpop.trf.xlu0
      %v841 = vpop.trf.xlu0
      %v842 = vpop.trf.xlu0
      %v843 = vpop.trf.xlu0
      %v844 = vpop.trf.xlu0
      %v845 = vpop.trf.xlu0
      %v846 = vpop.trf.xlu0
      %v847 = vpop.trf.xlu0
      %v848 = vpop.trf.xlu0
      %v849 = vpop.trf.xlu0
      %850 = vxpose.xlu0.b32.start [1/16] %v718, 128
      %851 = vxpose.xlu0.b32.cont [2/16] 0.0, 128
      %852 = vxpose.xlu0.b32.cont [3/16] 0.0, 128
      %853 = vxpose.xlu0.b32.cont [4/16] 0.0, 128
      %854 = vxpose.xlu0.b32.cont [5/16] 0.0, 128
      %855 = vxpose.xlu0.b32.cont [6/16] 0.0, 128
      %856 = vxpose.xlu0.b32.cont [7/16] 0.0, 128
      %857 = vxpose.xlu0.b32.cont [8/16] 0.0, 128
      %858 = vxpose.xlu0.b32.cont [9/16] 0.0, 128
      %859 = vxpose.xlu0.b32.cont [10/16] 0.0, 128
      %860 = vxpose.xlu0.b32.cont [11/16] 0.0, 128
      %861 = vxpose.xlu0.b32.cont [12/16] 0.0, 128
      %862 = vxpose.xlu0.b32.cont [13/16] 0.0, 128
      %863 = vxpose.xlu0.b32.cont [14/16] 0.0, 128
      %864 = vxpose.xlu0.b32.cont [15/16] 0.0, 128
      %865 = vxpose.xlu0.b32.end [16/16] 0.0, 128
      %v866 = vpop.trf.xlu0
      %v867 = vpop.trf.xlu0
      %v868 = vpop.trf.xlu0
      %v869 = vpop.trf.xlu0
      %v870 = vpop.trf.xlu0
      %v871 = vpop.trf.xlu0
      %v872 = vpop.trf.xlu0
      %v873 = vpop.trf.xlu0
      %v874 = vpop.trf.xlu0
      %v875 = vpop.trf.xlu0
      %v876 = vpop.trf.xlu0
      %v877 = vpop.trf.xlu0
      %v878 = vpop.trf.xlu0
      %v879 = vpop.trf.xlu0
      %v880 = vpop.trf.xlu0
      %v881 = vpop.trf.xlu0
      %882 = vxpose.xlu0.b32.start [1/16] %v719, 128
      %883 = vxpose.xlu0.b32.cont [2/16] 0.0, 128
      %884 = vxpose.xlu0.b32.cont [3/16] 0.0, 128
      %885 = vxpose.xlu0.b32.cont [4/16] 0.0, 128
      %886 = vxpose.xlu0.b32.cont [5/16] 0.0, 128
      %887 = vxpose.xlu0.b32.cont [6/16] 0.0, 128
      %888 = vxpose.xlu0.b32.cont [7/16] 0.0, 128
      %889 = vxpose.xlu0.b32.cont [8/16] 0.0, 128
      %890 = vxpose.xlu0.b32.cont [9/16] 0.0, 128
      %891 = vxpose.xlu0.b32.cont [10/16] 0.0, 128
      %892 = vxpose.xlu0.b32.cont [11/16] 0.0, 128
      %893 = vxpose.xlu0.b32.cont [12/16] 0.0, 128
      %894 = vxpose.xlu0.b32.cont [13/16] 0.0, 128
      %895 = vxpose.xlu0.b32.cont [14/16] 0.0, 128
      %896 = vxpose.xlu0.b32.cont [15/16] 0.0, 128
      %897 = vxpose.xlu0.b32.end [16/16] 0.0, 128
      %v898 = vpop.trf.xlu0
      %v899 = vpop.trf.xlu0
      %v900 = vpop.trf.xlu0
      %v901 = vpop.trf.xlu0
      %v902 = vpop.trf.xlu0
      %v903 = vpop.trf.xlu0
      %v904 = vpop.trf.xlu0
      %v905 = vpop.trf.xlu0
      %v906 = vpop.trf.xlu0
      %v907 = vpop.trf.xlu0
      %v908 = vpop.trf.xlu0
      %v909 = vpop.trf.xlu0
      %v910 = vpop.trf.xlu0
      %v911 = vpop.trf.xlu0
      %v912 = vpop.trf.xlu0
      %v913 = vpop.trf.xlu0
      %914 = vxpose.xlu0.b32.start [1/16] %v720, 128
      %915 = vxpose.xlu0.b32.cont [2/16] 0.0, 128
      %916 = vxpose.xlu0.b32.cont [3/16] 0.0, 128
      %917 = vxpose.xlu0.b32.cont [4/16] 0.0, 128
      %918 = vxpose.xlu0.b32.cont [5/16] 0.0, 128
      %919 = vxpose.xlu0.b32.cont [6/16] 0.0, 128
      %920 = vxpose.xlu0.b32.cont [7/16] 0.0, 128
      %921 = vxpose.xlu0.b32.cont [8/16] 0.0, 128
      %922 = vxpose.xlu0.b32.cont [9/16] 0.0, 128
      %923 = vxpose.xlu0.b32.cont [10/16] 0.0, 128
      %924 = vxpose.xlu0.b32.cont [11/16] 0.0, 128
      %925 = vxpose.xlu0.b32.cont [12/16] 0.0, 128
      %926 = vxpose.xlu0.b32.cont [13/16] 0.0, 128
      %927 = vxpose.xlu0.b32.cont [14/16] 0.0, 128
      %928 = vxpose.xlu0.b32.cont [15/16] 0.0, 128
      %929 = vxpose.xlu0.b32.end [16/16] 0.0, 128
      %v930 = vpop.trf.xlu0
      %v931 = vpop.trf.xlu0
      %v932 = vpop.trf.xlu0
      %v933 = vpop.trf.xlu0
      %v934 = vpop.trf.xlu0
      %v935 = vpop.trf.xlu0
      %v936 = vpop.trf.xlu0
      %v937 = vpop.trf.xlu0
      %v938 = vpop.trf.xlu0
      %v939 = vpop.trf.xlu0
      %v940 = vpop.trf.xlu0
      %v941 = vpop.trf.xlu0
      %v942 = vpop.trf.xlu0
      %v943 = vpop.trf.xlu0
      %v944 = vpop.trf.xlu0
      %v945 = vpop.trf.xlu0
      %946 = vxpose.xlu0.b32.start [1/16] %v721, 128
      %947 = vxpose.xlu0.b32.cont [2/16] 0.0, 128
      %948 = vxpose.xlu0.b32.cont [3/16] 0.0, 128
      %949 = vxpose.xlu0.b32.cont [4/16] 0.0, 128
      %950 = vxpose.xlu0.b32.cont [5/16] 0.0, 128
      %951 = vxpose.xlu0.b32.cont [6/16] 0.0, 128
      %952 = vxpose.xlu0.b32.cont [7/16] 0.0, 128
      %953 = vxpose.xlu0.b32.cont [8/16] 0.0, 128
      %954 = vxpose.xlu0.b32.cont [9/16] 0.0, 128
      %955 = vxpose.xlu0.b32.cont [10/16] 0.0, 128
      %956 = vxpose.xlu0.b32.cont [11/16] 0.0, 128
      %957 = vxpose.xlu0.b32.cont [12/16] 0.0, 128
      %958 = vxpose.xlu0.b32.cont [13/16] 0.0, 128
      %959 = vxpose.xlu0.b32.cont [14/16] 0.0, 128
      %960 = vxpose.xlu0.b32.cont [15/16] 0.0, 128
      %961 = vxpose.xlu0.b32.end [16/16] 0.0, 128
      %v962 = vpop.trf.xlu0
      %v963 = vpop.trf.xlu0
      %v964 = vpop.trf.xlu0
      %v965 = vpop.trf.xlu0
      %v966 = vpop.trf.xlu0
      %v967 = vpop.trf.xlu0
      %v968 = vpop.trf.xlu0
      %v969 = vpop.trf.xlu0
      %v970 = vpop.trf.xlu0
      %v971 = vpop.trf.xlu0
      %v972 = vpop.trf.xlu0
      %v973 = vpop.trf.xlu0
      %v974 = vpop.trf.xlu0
      %v975 = vpop.trf.xlu0
      %v976 = vpop.trf.xlu0
      %v977 = vpop.trf.xlu0
      %v978 = vcombine.low %v738, %v802
      %v980 = vunpack.c.l.s4 1983009808
      %v981 = vunpack.c.0.s8 %v980
      %v982 = vlaneseq
      %v983 = vshrl.u32 %v982, 7
      %v984 = vsub.s32 %v981, %v983
      %v985 = vrot.slane %v978, %v984
      %v986 = vcombine.low %v770, %v834
      %v988 = vunpack.c.l.s4 1983009808
      %v989 = vunpack.c.0.s8 %v988
      %v990 = vlaneseq
      %v991 = vshrl.u32 %v990, 7
      %v992 = vsub.s32 %v989, %v991
      %v993 = vrot.slane %v986, %v992
      %v994 = vcombine.low %v866, %v930
      %v996 = vunpack.c.l.s4 1983009808
      %v997 = vunpack.c.0.s8 %v996
      %v998 = vlaneseq
      %v999 = vshrl.u32 %v998, 7
      %v1000 = vsub.s32 %v997, %v999
      %v1001 = vrot.slane %v994, %v1000
      %v1002 = vcombine.low %v898, %v962
      %v1004 = vunpack.c.l.s4 1983009808
      %v1005 = vunpack.c.0.s8 %v1004
      %v1006 = vlaneseq
      %v1007 = vshrl.u32 %v1006, 7
      %v1008 = vsub.s32 %v1005, %v1007
      %v1009 = vrot.slane %v1002, %v1008
      %v1010 = vcombine.low %v985, %v993
      %v1011 = vcombine.high %v985, %v993
      %v1013 = vunpack.c.l.s4 1934713408
      %v1014 = vunpack.c.0.s8 %v1013
      %v1015 = vlaneseq
      %v1016 = vshrl.u32 %v1015, 7
      %v1017 = vsub.s32 %v1014, %v1016
      %v1018 = vrot.slane %v1010, %v1017
      %v1020 = vunpack.c.l.s4 1934713408
      %v1021 = vunpack.c.0.s8 %v1020
      %v1022 = vlaneseq
      %v1023 = vshrl.u32 %v1022, 7
      %v1024 = vsub.s32 %v1021, %v1023
      %v1025 = vrot.slane %v1011, %v1024
      %v1026 = vcombine.low %v1001, %v1009
      %v1027 = vcombine.high %v1001, %v1009
      %v1029 = vunpack.c.l.s4 1934713408
      %v1030 = vunpack.c.0.s8 %v1029
      %v1031 = vlaneseq
      %v1032 = vshrl.u32 %v1031, 7
      %v1033 = vsub.s32 %v1030, %v1032
      %v1034 = vrot.slane %v1026, %v1033
      %v1036 = vunpack.c.l.s4 1934713408
      %v1037 = vunpack.c.0.s8 %v1036
      %v1038 = vlaneseq
      %v1039 = vshrl.u32 %v1038, 7
      %v1040 = vsub.s32 %v1037, %v1039
      %v1041 = vrot.slane %v1027, %v1040
      %v1042 = vcombine.low %v1018, %v1034
      %v1043 = vcombine.high %v1018, %v1034
      %v1044 = vcombine.low %v1025, %v1041
      %v1045 = vcombine.high %v1025, %v1041
      %vm1046 = vcmask 64512
      %v1048 = vsel %vm1046, %v326, 0
      %1050 = vmatprep.subr.mxu0 0.0
      %1051 = vmatpush1.msra.mxu0 %v1042
      %1052 = vmatprep.subr.mxu0 0.0
      %1053 = vmatpush1.msra.mxu0 0.0
      %1054 = vmatprep.subr.mxu0 0.0
      %1055 = vmatpush1.msra.mxu0 0.0
      %1056 = vmatprep.subr.mxu0 0.0
      %1057 = vmatpush1.msra.mxu0 0.0
      %1058 = vmatprep.subr.mxu0 0.0
      %1059 = vmatpush1.msra.mxu0 0.0
      %1060 = vmatprep.subr.mxu0 0.0
      %1061 = vmatpush1.msra.mxu0 0.0
      %1062 = vmatprep.subr.mxu0 0.0
      %1063 = vmatpush1.msra.mxu0 0.0
      %1064 = vmatprep.subr.mxu0 0.0
      %1065 = vmatpush1.msra.mxu0 0.0
      %1066 = vmatprep.subr.mxu0 0.0
      %1067 = vmatpush1.msra.mxu0 0.0
      %1068 = vmatprep.subr.mxu0 0.0
      %1069 = vmatpush1.msra.mxu0 0.0
      %1070 = vmatprep.subr.mxu0 0.0
      %1071 = vmatpush1.msra.mxu0 0.0
      %1072 = vmatprep.subr.mxu0 0.0
      %1073 = vmatpush1.msra.mxu0 0.0
      %1074 = vmatprep.subr.mxu0 0.0
      %1075 = vmatpush1.msra.mxu0 0.0
      %1076 = vmatprep.subr.mxu0 0.0
      %1077 = vmatpush1.msra.mxu0 0.0
      %1078 = vmatprep.subr.mxu0 0.0
      %1079 = vmatpush1.msra.mxu0 0.0
      %1080 = vmatprep.subr.mxu0 0.0
      %1081 = vmatpush1.msra.mxu0 0.0
      %1082 = vmatprep.subr.mxu0 0.0
      %1083 = vmatpush1.msra.mxu0 0.0
      %1084 = vmatprep.subr.mxu0 0.0
      %1085 = vmatpush1.msra.mxu0 0.0
      %1086 = vmatprep.subr.mxu0 0.0
      %1087 = vmatpush1.msra.mxu0 0.0
      %1088 = vmatprep.subr.mxu0 0.0
      %1089 = vmatpush1.msra.mxu0 0.0
      %1090 = vmatprep.subr.mxu0 0.0
      %1091 = vmatpush1.msra.mxu0 0.0
      %1092 = vmatprep.subr.mxu0 0.0
      %1093 = vmatpush1.msra.mxu0 0.0
      %1094 = vmatprep.subr.mxu0 0.0
      %1095 = vmatpush1.msra.mxu0 0.0
      %1096 = vmatprep.subr.mxu0 0.0
      %1097 = vmatpush1.msra.mxu0 0.0
      %1098 = vmatprep.subr.mxu0 0.0
      %1099 = vmatpush1.msra.mxu0 0.0
      %1100 = vmatprep.subr.mxu0 0.0
      %1101 = vmatpush1.msra.mxu0 0.0
      %1102 = vmatprep.subr.mxu0 0.0
      %1103 = vmatpush1.msra.mxu0 0.0
      %1104 = vmatprep.subr.mxu0 0.0
      %1105 = vmatpush1.msra.mxu0 0.0
      %1106 = vmatprep.subr.mxu0 0.0
      %1107 = vmatpush1.msra.mxu0 0.0
      %1108 = vmatprep.subr.mxu0 0.0
      %1109 = vmatpush1.msra.mxu0 0.0
      %1110 = vmatprep.subr.mxu0 0.0
      %1111 = vmatpush1.msra.mxu0 0.0
      %1112 = vmatprep.subr.mxu0 0.0
      %1113 = vmatpush1.msra.mxu0 0.0
      %1114 = vmatprep.mubr.f32.mxu0 0.0
      %1115 = vmatmul.mubr.f32.gmra.mrb[0].mxu0 %v1048
      %v1116 = vpop.f32.mrb[0].mxu0
      %v1117 = vadd.f32 0.0, %v1116
      %v1118 = vpop.f32.mrb[0].mxu0
      %1119 = vdwg.mxu0
      %v1121 = vsel %vm1046, %v327, 0
      %1123 = vmatprep.subr.mxu0 0.0
      %1124 = vmatpush1.msra.mxu0 %v1043
      %1125 = vmatprep.subr.mxu0 0.0
      %1126 = vmatpush1.msra.mxu0 0.0
      %1127 = vmatprep.subr.mxu0 0.0
      %1128 = vmatpush1.msra.mxu0 0.0
      %1129 = vmatprep.subr.mxu0 0.0
      %1130 = vmatpush1.msra.mxu0 0.0
      %1131 = vmatprep.subr.mxu0 0.0
      %1132 = vmatpush1.msra.mxu0 0.0
      %1133 = vmatprep.subr.mxu0 0.0
      %1134 = vmatpush1.msra.mxu0 0.0
      %1135 = vmatprep.subr.mxu0 0.0
      %1136 = vmatpush1.msra.mxu0 0.0
      %1137 = vmatprep.subr.mxu0 0.0
      %1138 = vmatpush1.msra.mxu0 0.0
      %1139 = vmatprep.subr.mxu0 0.0
      %1140 = vmatpush1.msra.mxu0 0.0
      %1141 = vmatprep.subr.mxu0 0.0
      %1142 = vmatpush1.msra.mxu0 0.0
      %1143 = vmatprep.subr.mxu0 0.0
      %1144 = vmatpush1.msra.mxu0 0.0
      %1145 = vmatprep.subr.mxu0 0.0
      %1146 = vmatpush1.msra.mxu0 0.0
      %1147 = vmatprep.subr.mxu0 0.0
      %1148 = vmatpush1.msra.mxu0 0.0
      %1149 = vmatprep.subr.mxu0 0.0
      %1150 = vmatpush1.msra.mxu0 0.0
      %1151 = vmatprep.subr.mxu0 0.0
      %1152 = vmatpush1.msra.mxu0 0.0
      %1153 = vmatprep.subr.mxu0 0.0
      %1154 = vmatpush1.msra.mxu0 0.0
      %1155 = vmatprep.subr.mxu0 0.0
      %1156 = vmatpush1.msra.mxu0 0.0
      %1157 = vmatprep.subr.mxu0 0.0
      %1158 = vmatpush1.msra.mxu0 0.0
      %1159 = vmatprep.subr.mxu0 0.0
      %1160 = vmatpush1.msra.mxu0 0.0
      %1161 = vmatprep.subr.mxu0 0.0
      %1162 = vmatpush1.msra.mxu0 0.0
      %1163 = vmatprep.subr.mxu0 0.0
      %1164 = vmatpush1.msra.mxu0 0.0
      %1165 = vmatprep.subr.mxu0 0.0
      %1166 = vmatpush1.msra.mxu0 0.0
      %1167 = vmatprep.subr.mxu0 0.0
      %1168 = vmatpush1.msra.mxu0 0.0
      %1169 = vmatprep.subr.mxu0 0.0
      %1170 = vmatpush1.msra.mxu0 0.0
      %1171 = vmatprep.subr.mxu0 0.0
      %1172 = vmatpush1.msra.mxu0 0.0
      %1173 = vmatprep.subr.mxu0 0.0
      %1174 = vmatpush1.msra.mxu0 0.0
      %1175 = vmatprep.subr.mxu0 0.0
      %1176 = vmatpush1.msra.mxu0 0.0
      %1177 = vmatprep.subr.mxu0 0.0
      %1178 = vmatpush1.msra.mxu0 0.0
      %1179 = vmatprep.subr.mxu0 0.0
      %1180 = vmatpush1.msra.mxu0 0.0
      %1181 = vmatprep.subr.mxu0 0.0
      %1182 = vmatpush1.msra.mxu0 0.0
      %1183 = vmatprep.subr.mxu0 0.0
      %1184 = vmatpush1.msra.mxu0 0.0
      %1185 = vmatprep.subr.mxu0 0.0
      %1186 = vmatpush1.msra.mxu0 0.0
      %1187 = vmatprep.mubr.f32.mxu0 0.0
      %1188 = vmatmul.mubr.f32.gmra.mrb[0].mxu0 %v1121
      %v1189 = vpop.f32.mrb[0].mxu0
      %v1190 = vadd.f32 0.0, %v1189
      %v1191 = vpop.f32.mrb[0].mxu0
      %1192 = vdwg.mxu0
      %v1194 = vsel %vm1046, %v328, 0
      %1196 = vmatprep.subr.mxu0 0.0
      %1197 = vmatpush1.msra.mxu0 %v1044
      %1198 = vmatprep.subr.mxu0 0.0
      %1199 = vmatpush1.msra.mxu0 0.0
      %1200 = vmatprep.subr.mxu0 0.0
      %1201 = vmatpush1.msra.mxu0 0.0
      %1202 = vmatprep.subr.mxu0 0.0
      %1203 = vmatpush1.msra.mxu0 0.0
      %1204 = vmatprep.subr.mxu0 0.0
      %1205 = vmatpush1.msra.mxu0 0.0
      %1206 = vmatprep.subr.mxu0 0.0
      %1207 = vmatpush1.msra.mxu0 0.0
      %1208 = vmatprep.subr.mxu0 0.0
      %1209 = vmatpush1.msra.mxu0 0.0
      %1210 = vmatprep.subr.mxu0 0.0
      %1211 = vmatpush1.msra.mxu0 0.0
      %1212 = vmatprep.subr.mxu0 0.0
      %1213 = vmatpush1.msra.mxu0 0.0
      %1214 = vmatprep.subr.mxu0 0.0
      %1215 = vmatpush1.msra.mxu0 0.0
      %1216 = vmatprep.subr.mxu0 0.0
      %1217 = vmatpush1.msra.mxu0 0.0
      %1218 = vmatprep.subr.mxu0 0.0
      %1219 = vmatpush1.msra.mxu0 0.0
      %1220 = vmatprep.subr.mxu0 0.0
      %1221 = vmatpush1.msra.mxu0 0.0
      %1222 = vmatprep.subr.mxu0 0.0
      %1223 = vmatpush1.msra.mxu0 0.0
      %1224 = vmatprep.subr.mxu0 0.0
      %1225 = vmatpush1.msra.mxu0 0.0
      %1226 = vmatprep.subr.mxu0 0.0
      %1227 = vmatpush1.msra.mxu0 0.0
      %1228 = vmatprep.subr.mxu0 0.0
      %1229 = vmatpush1.msra.mxu0 0.0
      %1230 = vmatprep.subr.mxu0 0.0
      %1231 = vmatpush1.msra.mxu0 0.0
      %1232 = vmatprep.subr.mxu0 0.0
      %1233 = vmatpush1.msra.mxu0 0.0
      %1234 = vmatprep.subr.mxu0 0.0
      %1235 = vmatpush1.msra.mxu0 0.0
      %1236 = vmatprep.subr.mxu0 0.0
      %1237 = vmatpush1.msra.mxu0 0.0
      %1238 = vmatprep.subr.mxu0 0.0
      %1239 = vmatpush1.msra.mxu0 0.0
      %1240 = vmatprep.subr.mxu0 0.0
      %1241 = vmatpush1.msra.mxu0 0.0
      %1242 = vmatprep.subr.mxu0 0.0
      %1243 = vmatpush1.msra.mxu0 0.0
      %1244 = vmatprep.subr.mxu0 0.0
      %1245 = vmatpush1.msra.mxu0 0.0
      %1246 = vmatprep.subr.mxu0 0.0
      %1247 = vmatpush1.msra.mxu0 0.0
      %1248 = vmatprep.subr.mxu0 0.0
      %1249 = vmatpush1.msra.mxu0 0.0
      %1250 = vmatprep.subr.mxu0 0.0
      %1251 = vmatpush1.msra.mxu0 0.0
      %1252 = vmatprep.subr.mxu0 0.0
      %1253 = vmatpush1.msra.mxu0 0.0
      %1254 = vmatprep.subr.mxu0 0.0
      %1255 = vmatpush1.msra.mxu0 0.0
      %1256 = vmatprep.subr.mxu0 0.0
      %1257 = vmatpush1.msra.mxu0 0.0
      %1258 = vmatprep.subr.mxu0 0.0
      %1259 = vmatpush1.msra.mxu0 0.0
      %1260 = vmatprep.mubr.f32.mxu0 0.0
      %1261 = vmatmul.mubr.f32.gmra.mrb[0].mxu0 %v1194
      %v1262 = vpop.f32.mrb[0].mxu0
      %v1263 = vadd.f32 0.0, %v1262
      %v1264 = vpop.f32.mrb[0].mxu0
      %1265 = vdwg.mxu0
      %v1267 = vsel %vm1046, %v329, 0
      %1269 = vmatprep.subr.mxu0 0.0
      %1270 = vmatpush1.msra.mxu0 %v1045
      %1271 = vmatprep.subr.mxu0 0.0
      %1272 = vmatpush1.msra.mxu0 0.0
      %1273 = vmatprep.subr.mxu0 0.0
      %1274 = vmatpush1.msra.mxu0 0.0
      %1275 = vmatprep.subr.mxu0 0.0
      %1276 = vmatpush1.msra.mxu0 0.0
      %1277 = vmatprep.subr.mxu0 0.0
      %1278 = vmatpush1.msra.mxu0 0.0
      %1279 = vmatprep.subr.mxu0 0.0
      %1280 = vmatpush1.msra.mxu0 0.0
      %1281 = vmatprep.subr.mxu0 0.0
      %1282 = vmatpush1.msra.mxu0 0.0
      %1283 = vmatprep.subr.mxu0 0.0
      %1284 = vmatpush1.msra.mxu0 0.0
      %1285 = vmatprep.subr.mxu0 0.0
      %1286 = vmatpush1.msra.mxu0 0.0
      %1287 = vmatprep.subr.mxu0 0.0
      %1288 = vmatpush1.msra.mxu0 0.0
      %1289 = vmatprep.subr.mxu0 0.0
      %1290 = vmatpush1.msra.mxu0 0.0
      %1291 = vmatprep.subr.mxu0 0.0
      %1292 = vmatpush1.msra.mxu0 0.0
      %1293 = vmatprep.subr.mxu0 0.0
      %1294 = vmatpush1.msra.mxu0 0.0
      %1295 = vmatprep.subr.mxu0 0.0
      %1296 = vmatpush1.msra.mxu0 0.0
      %1297 = vmatprep.subr.mxu0 0.0
      %1298 = vmatpush1.msra.mxu0 0.0
      %1299 = vmatprep.subr.mxu0 0.0
      %1300 = vmatpush1.msra.mxu0 0.0
      %1301 = vmatprep.subr.mxu0 0.0
      %1302 = vmatpush1.msra.mxu0 0.0
      %1303 = vmatprep.subr.mxu0 0.0
      %1304 = vmatpush1.msra.mxu0 0.0
      %1305 = vmatprep.subr.mxu0 0.0
      %1306 = vmatpush1.msra.mxu0 0.0
      %1307 = vmatprep.subr.mxu0 0.0
      %1308 = vmatpush1.msra.mxu0 0.0
      %1309 = vmatprep.subr.mxu0 0.0
      %1310 = vmatpush1.msra.mxu0 0.0
      %1311 = vmatprep.subr.mxu0 0.0
      %1312 = vmatpush1.msra.mxu0 0.0
      %1313 = vmatprep.subr.mxu0 0.0
      %1314 = vmatpush1.msra.mxu0 0.0
      %1315 = vmatprep.subr.mxu0 0.0
      %1316 = vmatpush1.msra.mxu0 0.0
      %1317 = vmatprep.subr.mxu0 0.0
      %1318 = vmatpush1.msra.mxu0 0.0
      %1319 = vmatprep.subr.mxu0 0.0
      %1320 = vmatpush1.msra.mxu0 0.0
      %1321 = vmatprep.subr.mxu0 0.0
      %1322 = vmatpush1.msra.mxu0 0.0
      %1323 = vmatprep.subr.mxu0 0.0
      %1324 = vmatpush1.msra.mxu0 0.0
      %1325 = vmatprep.subr.mxu0 0.0
      %1326 = vmatpush1.msra.mxu0 0.0
      %1327 = vmatprep.subr.mxu0 0.0
      %1328 = vmatpush1.msra.mxu0 0.0
      %1329 = vmatprep.subr.mxu0 0.0
      %1330 = vmatpush1.msra.mxu0 0.0
      %1331 = vmatprep.subr.mxu0 0.0
      %1332 = vmatpush1.msra.mxu0 0.0
      %1333 = vmatprep.mubr.f32.mxu0 0.0
      %1334 = vmatmul.mubr.f32.gmra.mrb[0].mxu0 %v1267
      %v1335 = vpop.f32.mrb[0].mxu0
      %v1336 = vadd.f32 0.0, %v1335
      %v1337 = vpop.f32.mrb[0].mxu0
      %1338 = vdwg.mxu0
      %v1339 = vmul.f32 %v1117, 0.35355338
      %v1340 = vmul.f32 %v1190, 0.35355338
      %v1341 = vmul.f32 %v1263, 0.35355338
      %v1342 = vmul.f32 %v1336, 0.35355338
      %v1343 = vld [vmem:[%s3] sm:$0xff]
      %v1344 = vadd.f32 %v1339, %v1343
      %v1345 = vadd.f32 %v1340, %v1343
      %v1346 = vadd.f32 %v1341, %v1343
      %v1347 = vadd.f32 %v1342, %v1343
      %v1348 = vsel %vm1046, %v1344, -inf
      %1349 = vmax.xlane.f32.xlu0 %v1348
      %v1350 = vpop.xlane.xlu0 %1349
      %v1351 = vsel %vm1046, %v1345, -inf
      %1352 = vmax.xlane.f32.xlu0 %v1351
      %v1353 = vpop.xlane.xlu0 %1352
      %v1354 = vsel %vm1046, %v1346, -inf
      %1355 = vmax.xlane.f32.xlu0 %v1354
      %v1356 = vpop.xlane.xlu0 %1355
      %v1357 = vsel %vm1046, %v1347, -inf
      %1358 = vmax.xlane.f32.xlu0 %v1357
      %v1359 = vpop.xlane.xlu0 %1358
      %v1360 = vsub.f32 %v1344, %v1350
      %v1361 = vsub.f32 %v1345, %v1353
      %v1362 = vsub.f32 %v1346, %v1356
      %v1363 = vsub.f32 %v1347, %v1359
      %v1364 = vmul.f32 %v1360, 1.442695
      %v1365 = vpow.pop %v1364
      %v1366 = vmul.f32 %v1361, 1.442695
      %v1367 = vpow.pop %v1366
      %v1368 = vmul.f32 %v1362, 1.442695
      %v1369 = vpow.pop %v1368
      %v1370 = vmul.f32 %v1363, 1.442695
      %v1371 = vpow.pop %v1370
      %v1372 = vsel %vm1046, %v1365, 0.0
      %1373 = vadd.xlane.f32.xlu0 %v1372
      %v1374 = vpop.xlane.xlu0 %1373
      %v1375 = vsel %vm1046, %v1367, 0.0
      %1376 = vadd.xlane.f32.xlu0 %v1375
      %v1377 = vpop.xlane.xlu0 %1376
      %v1378 = vsel %vm1046, %v1369, 0.0
      %1379 = vadd.xlane.f32.xlu0 %v1378
      %v1380 = vpop.xlane.xlu0 %1379
      %v1381 = vsel %vm1046, %v1371, 0.0
      %1382 = vadd.xlane.f32.xlu0 %v1381
      %v1383 = vpop.xlane.xlu0 %1382
      %v1384 = vrcp.pop %v1374
      %v1385 = vrcp.pop %v1377
      %v1386 = vrcp.pop %v1380
      %v1387 = vrcp.pop %v1383
      %v1388 = vmul.f32 %v1365, %v1384
      %v1389 = vmul.f32 %v1367, %v1385
      %v1390 = vmul.f32 %v1369, %v1386
      %v1391 = vmul.f32 %v1371, %v1387
      %1392 = vxpose.xlu0.b32.start [1/16] %v254, 128
      %1393 = vxpose.xlu0.b32.cont [2/16] 0.0, 128
      %1394 = vxpose.xlu0.b32.cont [3/16] 0.0, 128
      %1395 = vxpose.xlu0.b32.cont [4/16] 0.0, 128
      %1396 = vxpose.xlu0.b32.cont [5/16] 0.0, 128
      %1397 = vxpose.xlu0.b32.cont [6/16] 0.0, 128
      %1398 = vxpose.xlu0.b32.cont [7/16] 0.0, 128
      %1399 = vxpose.xlu0.b32.cont [8/16] 0.0, 128
      %1400 = vxpose.xlu0.b32.cont [9/16] 0.0, 128
      %1401 = vxpose.xlu0.b32.cont [10/16] 0.0, 128
      %1402 = vxpose.xlu0.b32.cont [11/16] 0.0, 128
      %1403 = vxpose.xlu0.b32.cont [12/16] 0.0, 128
      %1404 = vxpose.xlu0.b32.cont [13/16] 0.0, 128
      %1405 = vxpose.xlu0.b32.cont [14/16] 0.0, 128
      %1406 = vxpose.xlu0.b32.cont [15/16] 0.0, 128
      %1407 = vxpose.xlu0.b32.end [16/16] 0.0, 128
      %v1408 = vpop.trf.xlu0
      %v1409 = vpop.trf.xlu0
      %v1410 = vpop.trf.xlu0
      %v1411 = vpop.trf.xlu0
      %v1412 = vpop.trf.xlu0
      %v1413 = vpop.trf.xlu0
      %v1414 = vpop.trf.xlu0
      %v1415 = vpop.trf.xlu0
      %v1416 = vpop.trf.xlu0
      %v1417 = vpop.trf.xlu0
      %v1418 = vpop.trf.xlu0
      %v1419 = vpop.trf.xlu0
      %v1420 = vpop.trf.xlu0
      %v1421 = vpop.trf.xlu0
      %v1422 = vpop.trf.xlu0
      %v1423 = vpop.trf.xlu0
      %1424 = vxpose.xlu0.b32.start [1/16] %v255, 128
      %1425 = vxpose.xlu0.b32.cont [2/16] 0.0, 128
      %1426 = vxpose.xlu0.b32.cont [3/16] 0.0, 128
      %1427 = vxpose.xlu0.b32.cont [4/16] 0.0, 128
      %1428 = vxpose.xlu0.b32.cont [5/16] 0.0, 128
      %1429 = vxpose.xlu0.b32.cont [6/16] 0.0, 128
      %1430 = vxpose.xlu0.b32.cont [7/16] 0.0, 128
      %1431 = vxpose.xlu0.b32.cont [8/16] 0.0, 128
      %1432 = vxpose.xlu0.b32.cont [9/16] 0.0, 128
      %1433 = vxpose.xlu0.b32.cont [10/16] 0.0, 128
      %1434 = vxpose.xlu0.b32.cont [11/16] 0.0, 128
      %1435 = vxpose.xlu0.b32.cont [12/16] 0.0, 128
      %1436 = vxpose.xlu0.b32.cont [13/16] 0.0, 128
      %1437 = vxpose.xlu0.b32.cont [14/16] 0.0, 128
      %1438 = vxpose.xlu0.b32.cont [15/16] 0.0, 128
      %1439 = vxpose.xlu0.b32.end [16/16] 0.0, 128
      %v1440 = vpop.trf.xlu0
      %v1441 = vpop.trf.xlu0
      %v1442 = vpop.trf.xlu0
      %v1443 = vpop.trf.xlu0
      %v1444 = vpop.trf.xlu0
      %v1445 = vpop.trf.xlu0
      %v1446 = vpop.trf.xlu0
      %v1447 = vpop.trf.xlu0
      %v1448 = vpop.trf.xlu0
      %v1449 = vpop.trf.xlu0
      %v1450 = vpop.trf.xlu0
      %v1451 = vpop.trf.xlu0
      %v1452 = vpop.trf.xlu0
      %v1453 = vpop.trf.xlu0
      %v1454 = vpop.trf.xlu0
      %v1455 = vpop.trf.xlu0
      %1456 = vxpose.xlu0.b32.start [1/16] %v256, 128
      %1457 = vxpose.xlu0.b32.cont [2/16] 0.0, 128
      %1458 = vxpose.xlu0.b32.cont [3/16] 0.0, 128
      %1459 = vxpose.xlu0.b32.cont [4/16] 0.0, 128
      %1460 = vxpose.xlu0.b32.cont [5/16] 0.0, 128
      %1461 = vxpose.xlu0.b32.cont [6/16] 0.0, 128
      %1462 = vxpose.xlu0.b32.cont [7/16] 0.0, 128
      %1463 = vxpose.xlu0.b32.cont [8/16] 0.0, 128
      %1464 = vxpose.xlu0.b32.cont [9/16] 0.0, 128
      %1465 = vxpose.xlu0.b32.cont [10/16] 0.0, 128
      %1466 = vxpose.xlu0.b32.cont [11/16] 0.0, 128
      %1467 = vxpose.xlu0.b32.cont [12/16] 0.0, 128
      %1468 = vxpose.xlu0.b32.cont [13/16] 0.0, 128
      %1469 = vxpose.xlu0.b32.cont [14/16] 0.0, 128
      %1470 = vxpose.xlu0.b32.cont [15/16] 0.0, 128
      %1471 = vxpose.xlu0.b32.end [16/16] 0.0, 128
      %v1472 = vpop.trf.xlu0
      %v1473 = vpop.trf.xlu0
      %v1474 = vpop.trf.xlu0
      %v1475 = vpop.trf.xlu0
      %v1476 = vpop.trf.xlu0
      %v1477 = vpop.trf.xlu0
      %v1478 = vpop.trf.xlu0
      %v1479 = vpop.trf.xlu0
      %v1480 = vpop.trf.xlu0
      %v1481 = vpop.trf.xlu0
      %v1482 = vpop.trf.xlu0
      %v1483 = vpop.trf.xlu0
      %v1484 = vpop.trf.xlu0
      %v1485 = vpop.trf.xlu0
      %v1486 = vpop.trf.xlu0
      %v1487 = vpop.trf.xlu0
      %1488 = vxpose.xlu0.b32.start [1/16] %v257, 128
      %1489 = vxpose.xlu0.b32.cont [2/16] 0.0, 128
      %1490 = vxpose.xlu0.b32.cont [3/16] 0.0, 128
      %1491 = vxpose.xlu0.b32.cont [4/16] 0.0, 128
      %1492 = vxpose.xlu0.b32.cont [5/16] 0.0, 128
      %1493 = vxpose.xlu0.b32.cont [6/16] 0.0, 128
      %1494 = vxpose.xlu0.b32.cont [7/16] 0.0, 128
      %1495 = vxpose.xlu0.b32.cont [8/16] 0.0, 128
      %1496 = vxpose.xlu0.b32.cont [9/16] 0.0, 128
      %1497 = vxpose.xlu0.b32.cont [10/16] 0.0, 128
      %1498 = vxpose.xlu0.b32.cont [11/16] 0.0, 128
      %1499 = vxpose.xlu0.b32.cont [12/16] 0.0, 128
      %1500 = vxpose.xlu0.b32.cont [13/16] 0.0, 128
      %1501 = vxpose.xlu0.b32.cont [14/16] 0.0, 128
      %1502 = vxpose.xlu0.b32.cont [15/16] 0.0, 128
      %1503 = vxpose.xlu0.b32.end [16/16] 0.0, 128
      %v1504 = vpop.trf.xlu0
      %v1505 = vpop.trf.xlu0
      %v1506 = vpop.trf.xlu0
      %v1507 = vpop.trf.xlu0
      %v1508 = vpop.trf.xlu0
      %v1509 = vpop.trf.xlu0
      %v1510 = vpop.trf.xlu0
      %v1511 = vpop.trf.xlu0
      %v1512 = vpop.trf.xlu0
      %v1513 = vpop.trf.xlu0
      %v1514 = vpop.trf.xlu0
      %v1515 = vpop.trf.xlu0
      %v1516 = vpop.trf.xlu0
      %v1517 = vpop.trf.xlu0
      %v1518 = vpop.trf.xlu0
      %v1519 = vpop.trf.xlu0
      %1520 = vxpose.xlu0.b32.start [1/16] %v258, 128
      %1521 = vxpose.xlu0.b32.cont [2/16] 0.0, 128
      %1522 = vxpose.xlu0.b32.cont [3/16] 0.0, 128
      %1523 = vxpose.xlu0.b32.cont [4/16] 0.0, 128
      %1524 = vxpose.xlu0.b32.cont [5/16] 0.0, 128
      %1525 = vxpose.xlu0.b32.cont [6/16] 0.0, 128
      %1526 = vxpose.xlu0.b32.cont [7/16] 0.0, 128
      %1527 = vxpose.xlu0.b32.cont [8/16] 0.0, 128
      %1528 = vxpose.xlu0.b32.cont [9/16] 0.0, 128
      %1529 = vxpose.xlu0.b32.cont [10/16] 0.0, 128
      %1530 = vxpose.xlu0.b32.cont [11/16] 0.0, 128
      %1531 = vxpose.xlu0.b32.cont [12/16] 0.0, 128
      %1532 = vxpose.xlu0.b32.cont [13/16] 0.0, 128
      %1533 = vxpose.xlu0.b32.cont [14/16] 0.0, 128
      %1534 = vxpose.xlu0.b32.cont [15/16] 0.0, 128
      %1535 = vxpose.xlu0.b32.end [16/16] 0.0, 128
      %v1536 = vpop.trf.xlu0
      %v1537 = vpop.trf.xlu0
      %v1538 = vpop.trf.xlu0
      %v1539 = vpop.trf.xlu0
      %v1540 = vpop.trf.xlu0
      %v1541 = vpop.trf.xlu0
      %v1542 = vpop.trf.xlu0
      %v1543 = vpop.trf.xlu0
      %v1544 = vpop.trf.xlu0
      %v1545 = vpop.trf.xlu0
      %v1546 = vpop.trf.xlu0
      %v1547 = vpop.trf.xlu0
      %v1548 = vpop.trf.xlu0
      %v1549 = vpop.trf.xlu0
      %v1550 = vpop.trf.xlu0
      %v1551 = vpop.trf.xlu0
      %1552 = vxpose.xlu0.b32.start [1/16] %v259, 128
      %1553 = vxpose.xlu0.b32.cont [2/16] 0.0, 128
      %1554 = vxpose.xlu0.b32.cont [3/16] 0.0, 128
      %1555 = vxpose.xlu0.b32.cont [4/16] 0.0, 128
      %1556 = vxpose.xlu0.b32.cont [5/16] 0.0, 128
      %1557 = vxpose.xlu0.b32.cont [6/16] 0.0, 128
      %1558 = vxpose.xlu0.b32.cont [7/16] 0.0, 128
      %1559 = vxpose.xlu0.b32.cont [8/16] 0.0, 128
      %1560 = vxpose.xlu0.b32.cont [9/16] 0.0, 128
      %1561 = vxpose.xlu0.b32.cont [10/16] 0.0, 128
      %1562 = vxpose.xlu0.b32.cont [11/16] 0.0, 128
      %1563 = vxpose.xlu0.b32.cont [12/16] 0.0, 128
      %1564 = vxpose.xlu0.b32.cont [13/16] 0.0, 128
      %1565 = vxpose.xlu0.b32.cont [14/16] 0.0, 128
      %1566 = vxpose.xlu0.b32.cont [15/16] 0.0, 128
      %1567 = vxpose.xlu0.b32.end [16/16] 0.0, 128
      %v1568 = vpop.trf.xlu0
      %v1569 = vpop.trf.xlu0
      %v1570 = vpop.trf.xlu0
      %v1571 = vpop.trf.xlu0
      %v1572 = vpop.trf.xlu0
      %v1573 = vpop.trf.xlu0
      %v1574 = vpop.trf.xlu0
      %v1575 = vpop.trf.xlu0
      %v1576 = vpop.trf.xlu0
      %v1577 = vpop.trf.xlu0
      %v1578 = vpop.trf.xlu0
      %v1579 = vpop.trf.xlu0
      %v1580 = vpop.trf.xlu0
      %v1581 = vpop.trf.xlu0
      %v1582 = vpop.trf.xlu0
      %v1583 = vpop.trf.xlu0
      %1584 = vxpose.xlu0.b32.start [1/16] %v260, 128
      %1585 = vxpose.xlu0.b32.cont [2/16] 0.0, 128
      %1586 = vxpose.xlu0.b32.cont [3/16] 0.0, 128
      %1587 = vxpose.xlu0.b32.cont [4/16] 0.0, 128
      %1588 = vxpose.xlu0.b32.cont [5/16] 0.0, 128
      %1589 = vxpose.xlu0.b32.cont [6/16] 0.0, 128
      %1590 = vxpose.xlu0.b32.cont [7/16] 0.0, 128
      %1591 = vxpose.xlu0.b32.cont [8/16] 0.0, 128
      %1592 = vxpose.xlu0.b32.cont [9/16] 0.0, 128
      %1593 = vxpose.xlu0.b32.cont [10/16] 0.0, 128
      %1594 = vxpose.xlu0.b32.cont [11/16] 0.0, 128
      %1595 = vxpose.xlu0.b32.cont [12/16] 0.0, 128
      %1596 = vxpose.xlu0.b32.cont [13/16] 0.0, 128
      %1597 = vxpose.xlu0.b32.cont [14/16] 0.0, 128
      %1598 = vxpose.xlu0.b32.cont [15/16] 0.0, 128
      %1599 = vxpose.xlu0.b32.end [16/16] 0.0, 128
      %v1600 = vpop.trf.xlu0
      %v1601 = vpop.trf.xlu0
      %v1602 = vpop.trf.xlu0
      %v1603 = vpop.trf.xlu0
      %v1604 = vpop.trf.xlu0
      %v1605 = vpop.trf.xlu0
      %v1606 = vpop.trf.xlu0
      %v1607 = vpop.trf.xlu0
      %v1608 = vpop.trf.xlu0
      %v1609 = vpop.trf.xlu0
      %v1610 = vpop.trf.xlu0
      %v1611 = vpop.trf.xlu0
      %v1612 = vpop.trf.xlu0
      %v1613 = vpop.trf.xlu0
      %v1614 = vpop.trf.xlu0
      %v1615 = vpop.trf.xlu0
      %1616 = vxpose.xlu0.b32.start [1/16] %v261, 128
      %1617 = vxpose.xlu0.b32.cont [2/16] 0.0, 128
      %1618 = vxpose.xlu0.b32.cont [3/16] 0.0, 128
      %1619 = vxpose.xlu0.b32.cont [4/16] 0.0, 128
      %1620 = vxpose.xlu0.b32.cont [5/16] 0.0, 128
      %1621 = vxpose.xlu0.b32.cont [6/16] 0.0, 128
      %1622 = vxpose.xlu0.b32.cont [7/16] 0.0, 128
      %1623 = vxpose.xlu0.b32.cont [8/16] 0.0, 128
      %1624 = vxpose.xlu0.b32.cont [9/16] 0.0, 128
      %1625 = vxpose.xlu0.b32.cont [10/16] 0.0, 128
      %1626 = vxpose.xlu0.b32.cont [11/16] 0.0, 128
      %1627 = vxpose.xlu0.b32.cont [12/16] 0.0, 128
      %1628 = vxpose.xlu0.b32.cont [13/16] 0.0, 128
      %1629 = vxpose.xlu0.b32.cont [14/16] 0.0, 128
      %1630 = vxpose.xlu0.b32.cont [15/16] 0.0, 128
      %1631 = vxpose.xlu0.b32.end [16/16] 0.0, 128
      %v1632 = vpop.trf.xlu0
      %v1633 = vpop.trf.xlu0
      %v1634 = vpop.trf.xlu0
      %v1635 = vpop.trf.xlu0
      %v1636 = vpop.trf.xlu0
      %v1637 = vpop.trf.xlu0
      %v1638 = vpop.trf.xlu0
      %v1639 = vpop.trf.xlu0
      %v1640 = vpop.trf.xlu0
      %v1641 = vpop.trf.xlu0
      %v1642 = vpop.trf.xlu0
      %v1643 = vpop.trf.xlu0
      %v1644 = vpop.trf.xlu0
      %v1645 = vpop.trf.xlu0
      %v1646 = vpop.trf.xlu0
      %v1647 = vpop.trf.xlu0
      %v1648 = vcombine.low %v1408, %v1472
      %v1649 = vcombine.high %v1408, %v1472
      %v1651 = vunpack.c.l.s4 1983009808
      %v1652 = vunpack.c.0.s8 %v1651
      %v1653 = vlaneseq
      %v1654 = vshrl.u32 %v1653, 7
      %v1655 = vsub.s32 %v1652, %v1654
      %v1656 = vrot.slane %v1648, %v1655
      %v1658 = vunpack.c.l.s4 1983009808
      %v1659 = vunpack.c.0.s8 %v1658
      %v1660 = vlaneseq
      %v1661 = vshrl.u32 %v1660, 7
      %v1662 = vsub.s32 %v1659, %v1661
      %v1663 = vrot.slane %v1649, %v1662
      %v1664 = vcombine.low %v1440, %v1504
      %v1665 = vcombine.high %v1440, %v1504
      %v1667 = vunpack.c.l.s4 1983009808
      %v1668 = vunpack.c.0.s8 %v1667
      %v1669 = vlaneseq
      %v1670 = vshrl.u32 %v1669, 7
      %v1671 = vsub.s32 %v1668, %v1670
      %v1672 = vrot.slane %v1664, %v1671
      %v1674 = vunpack.c.l.s4 1983009808
      %v1675 = vunpack.c.0.s8 %v1674
      %v1676 = vlaneseq
      %v1677 = vshrl.u32 %v1676, 7
      %v1678 = vsub.s32 %v1675, %v1677
      %v1679 = vrot.slane %v1665, %v1678
      %v1680 = vcombine.low %v1536, %v1600
      %v1681 = vcombine.high %v1536, %v1600
      %v1683 = vunpack.c.l.s4 1983009808
      %v1684 = vunpack.c.0.s8 %v1683
      %v1685 = vlaneseq
      %v1686 = vshrl.u32 %v1685, 7
      %v1687 = vsub.s32 %v1684, %v1686
      %v1688 = vrot.slane %v1680, %v1687
      %v1690 = vunpack.c.l.s4 1983009808
      %v1691 = vunpack.c.0.s8 %v1690
      %v1692 = vlaneseq
      %v1693 = vshrl.u32 %v1692, 7
      %v1694 = vsub.s32 %v1691, %v1693
      %v1695 = vrot.slane %v1681, %v1694
      %v1696 = vcombine.low %v1568, %v1632
      %v1697 = vcombine.high %v1568, %v1632
      %v1699 = vunpack.c.l.s4 1983009808
      %v1700 = vunpack.c.0.s8 %v1699
      %v1701 = vlaneseq
      %v1702 = vshrl.u32 %v1701, 7
      %v1703 = vsub.s32 %v1700, %v1702
      %v1704 = vrot.slane %v1696, %v1703
      %v1706 = vunpack.c.l.s4 1983009808
      %v1707 = vunpack.c.0.s8 %v1706
      %v1708 = vlaneseq
      %v1709 = vshrl.u32 %v1708, 7
      %v1710 = vsub.s32 %v1707, %v1709
      %v1711 = vrot.slane %v1697, %v1710
      %v1712 = vcombine.low %v1656, %v1672
      %v1713 = vcombine.high %v1656, %v1672
      %v1715 = vunpack.c.l.s4 1934713408
      %v1716 = vunpack.c.0.s8 %v1715
      %v1717 = vlaneseq
      %v1718 = vshrl.u32 %v1717, 7
      %v1719 = vsub.s32 %v1716, %v1718
      %v1720 = vrot.slane %v1712, %v1719
      %v1722 = vunpack.c.l.s4 1934713408
      %v1723 = vunpack.c.0.s8 %v1722
      %v1724 = vlaneseq
      %v1725 = vshrl.u32 %v1724, 7
      %v1726 = vsub.s32 %v1723, %v1725
      %v1727 = vrot.slane %v1713, %v1726
      %v1728 = vcombine.low %v1663, %v1679
      %v1729 = vcombine.high %v1663, %v1679
      %v1731 = vunpack.c.l.s4 1934713408
      %v1732 = vunpack.c.0.s8 %v1731
      %v1733 = vlaneseq
      %v1734 = vshrl.u32 %v1733, 7
      %v1735 = vsub.s32 %v1732, %v1734
      %v1736 = vrot.slane %v1728, %v1735
      %v1738 = vunpack.c.l.s4 1934713408
      %v1739 = vunpack.c.0.s8 %v1738
      %v1740 = vlaneseq
      %v1741 = vshrl.u32 %v1740, 7
      %v1742 = vsub.s32 %v1739, %v1741
      %v1743 = vrot.slane %v1729, %v1742
      %v1744 = vcombine.low %v1688, %v1704
      %v1745 = vcombine.high %v1688, %v1704
      %v1747 = vunpack.c.l.s4 1934713408
      %v1748 = vunpack.c.0.s8 %v1747
      %v1749 = vlaneseq
      %v1750 = vshrl.u32 %v1749, 7
      %v1751 = vsub.s32 %v1748, %v1750
      %v1752 = vrot.slane %v1744, %v1751
      %v1754 = vunpack.c.l.s4 1934713408
      %v1755 = vunpack.c.0.s8 %v1754
      %v1756 = vlaneseq
      %v1757 = vshrl.u32 %v1756, 7
      %v1758 = vsub.s32 %v1755, %v1757
      %v1759 = vrot.slane %v1745, %v1758
      %v1760 = vcombine.low %v1695, %v1711
      %v1761 = vcombine.high %v1695, %v1711
      %v1763 = vunpack.c.l.s4 1934713408
      %v1764 = vunpack.c.0.s8 %v1763
      %v1765 = vlaneseq
      %v1766 = vshrl.u32 %v1765, 7
      %v1767 = vsub.s32 %v1764, %v1766
      %v1768 = vrot.slane %v1760, %v1767
      %v1770 = vunpack.c.l.s4 1934713408
      %v1771 = vunpack.c.0.s8 %v1770
      %v1772 = vlaneseq
      %v1773 = vshrl.u32 %v1772, 7
      %v1774 = vsub.s32 %v1771, %v1773
      %v1775 = vrot.slane %v1761, %v1774
      %v1776 = vcombine.low %v1720, %v1752
      %v1777 = vcombine.high %v1720, %v1752
      %v1778 = vcombine.low %v1727, %v1759
      %v1779 = vcombine.high %v1727, %v1759
      %v1780 = vcombine.low %v1736, %v1768
      %v1781 = vcombine.high %v1736, %v1768
      %v1782 = vcombine.low %v1743, %v1775
      %v1783 = vcombine.high %v1743, %v1775
      %1784 = vxpose.xlu0.b32.start [1/16] %v1776, 128
      %1785 = vxpose.xlu0.b32.cont [2/16] 0.0, 128
      %1786 = vxpose.xlu0.b32.cont [3/16] 0.0, 128
      %1787 = vxpose.xlu0.b32.cont [4/16] 0.0, 128
      %1788 = vxpose.xlu0.b32.cont [5/16] 0.0, 128
      %1789 = vxpose.xlu0.b32.cont [6/16] 0.0, 128
      %1790 = vxpose.xlu0.b32.cont [7/16] 0.0, 128
      %1791 = vxpose.xlu0.b32.cont [8/16] 0.0, 128
      %1792 = vxpose.xlu0.b32.cont [9/16] 0.0, 128
      %1793 = vxpose.xlu0.b32.cont [10/16] 0.0, 128
      %1794 = vxpose.xlu0.b32.cont [11/16] 0.0, 128
      %1795 = vxpose.xlu0.b32.cont [12/16] 0.0, 128
      %1796 = vxpose.xlu0.b32.cont [13/16] 0.0, 128
      %1797 = vxpose.xlu0.b32.cont [14/16] 0.0, 128
      %1798 = vxpose.xlu0.b32.cont [15/16] 0.0, 128
      %1799 = vxpose.xlu0.b32.end [16/16] 0.0, 128
      %v1800 = vpop.trf.xlu0
      %v1801 = vpop.trf.xlu0
      %v1802 = vpop.trf.xlu0
      %v1803 = vpop.trf.xlu0
      %v1804 = vpop.trf.xlu0
      %v1805 = vpop.trf.xlu0
      %v1806 = vpop.trf.xlu0
      %v1807 = vpop.trf.xlu0
      %v1808 = vpop.trf.xlu0
      %v1809 = vpop.trf.xlu0
      %v1810 = vpop.trf.xlu0
      %v1811 = vpop.trf.xlu0
      %v1812 = vpop.trf.xlu0
      %v1813 = vpop.trf.xlu0
      %v1814 = vpop.trf.xlu0
      %v1815 = vpop.trf.xlu0
      %1816 = vxpose.xlu0.b32.start [1/16] %v1777, 128
      %1817 = vxpose.xlu0.b32.cont [2/16] 0.0, 128
      %1818 = vxpose.xlu0.b32.cont [3/16] 0.0, 128
      %1819 = vxpose.xlu0.b32.cont [4/16] 0.0, 128
      %1820 = vxpose.xlu0.b32.cont [5/16] 0.0, 128
      %1821 = vxpose.xlu0.b32.cont [6/16] 0.0, 128
      %1822 = vxpose.xlu0.b32.cont [7/16] 0.0, 128
      %1823 = vxpose.xlu0.b32.cont [8/16] 0.0, 128
      %1824 = vxpose.xlu0.b32.cont [9/16] 0.0, 128
      %1825 = vxpose.xlu0.b32.cont [10/16] 0.0, 128
      %1826 = vxpose.xlu0.b32.cont [11/16] 0.0, 128
      %1827 = vxpose.xlu0.b32.cont [12/16] 0.0, 128
      %1828 = vxpose.xlu0.b32.cont [13/16] 0.0, 128
      %1829 = vxpose.xlu0.b32.cont [14/16] 0.0, 128
      %1830 = vxpose.xlu0.b32.cont [15/16] 0.0, 128
      %1831 = vxpose.xlu0.b32.end [16/16] 0.0, 128
      %v1832 = vpop.trf.xlu0
      %v1833 = vpop.trf.xlu0
      %v1834 = vpop.trf.xlu0
      %v1835 = vpop.trf.xlu0
      %v1836 = vpop.trf.xlu0
      %v1837 = vpop.trf.xlu0
      %v1838 = vpop.trf.xlu0
      %v1839 = vpop.trf.xlu0
      %v1840 = vpop.trf.xlu0
      %v1841 = vpop.trf.xlu0
      %v1842 = vpop.trf.xlu0
      %v1843 = vpop.trf.xlu0
      %v1844 = vpop.trf.xlu0
      %v1845 = vpop.trf.xlu0
      %v1846 = vpop.trf.xlu0
      %v1847 = vpop.trf.xlu0
      %1848 = vxpose.xlu0.b32.start [1/16] %v1778, 128
      %1849 = vxpose.xlu0.b32.cont [2/16] 0.0, 128
      %1850 = vxpose.xlu0.b32.cont [3/16] 0.0, 128
      %1851 = vxpose.xlu0.b32.cont [4/16] 0.0, 128
      %1852 = vxpose.xlu0.b32.cont [5/16] 0.0, 128
      %1853 = vxpose.xlu0.b32.cont [6/16] 0.0, 128
      %1854 = vxpose.xlu0.b32.cont [7/16] 0.0, 128
      %1855 = vxpose.xlu0.b32.cont [8/16] 0.0, 128
      %1856 = vxpose.xlu0.b32.cont [9/16] 0.0, 128
      %1857 = vxpose.xlu0.b32.cont [10/16] 0.0, 128
      %1858 = vxpose.xlu0.b32.cont [11/16] 0.0, 128
      %1859 = vxpose.xlu0.b32.cont [12/16] 0.0, 128
      %1860 = vxpose.xlu0.b32.cont [13/16] 0.0, 128
      %1861 = vxpose.xlu0.b32.cont [14/16] 0.0, 128
      %1862 = vxpose.xlu0.b32.cont [15/16] 0.0, 128
      %1863 = vxpose.xlu0.b32.end [16/16] 0.0, 128
      %v1864 = vpop.trf.xlu0
      %v1865 = vpop.trf.xlu0
      %v1866 = vpop.trf.xlu0
      %v1867 = vpop.trf.xlu0
      %v1868 = vpop.trf.xlu0
      %v1869 = vpop.trf.xlu0
      %v1870 = vpop.trf.xlu0
      %v1871 = vpop.trf.xlu0
      %v1872 = vpop.trf.xlu0
      %v1873 = vpop.trf.xlu0
      %v1874 = vpop.trf.xlu0
      %v1875 = vpop.trf.xlu0
      %v1876 = vpop.trf.xlu0
      %v1877 = vpop.trf.xlu0
      %v1878 = vpop.trf.xlu0
      %v1879 = vpop.trf.xlu0
      %1880 = vxpose.xlu0.b32.start [1/16] %v1779, 128
      %1881 = vxpose.xlu0.b32.cont [2/16] 0.0, 128
      %1882 = vxpose.xlu0.b32.cont [3/16] 0.0, 128
      %1883 = vxpose.xlu0.b32.cont [4/16] 0.0, 128
      %1884 = vxpose.xlu0.b32.cont [5/16] 0.0, 128
      %1885 = vxpose.xlu0.b32.cont [6/16] 0.0, 128
      %1886 = vxpose.xlu0.b32.cont [7/16] 0.0, 128
      %1887 = vxpose.xlu0.b32.cont [8/16] 0.0, 128
      %1888 = vxpose.xlu0.b32.cont [9/16] 0.0, 128
      %1889 = vxpose.xlu0.b32.cont [10/16] 0.0, 128
      %1890 = vxpose.xlu0.b32.cont [11/16] 0.0, 128
      %1891 = vxpose.xlu0.b32.cont [12/16] 0.0, 128
      %1892 = vxpose.xlu0.b32.cont [13/16] 0.0, 128
      %1893 = vxpose.xlu0.b32.cont [14/16] 0.0, 128
      %1894 = vxpose.xlu0.b32.cont [15/16] 0.0, 128
      %1895 = vxpose.xlu0.b32.end [16/16] 0.0, 128
      %v1896 = vpop.trf.xlu0
      %v1897 = vpop.trf.xlu0
      %v1898 = vpop.trf.xlu0
      %v1899 = vpop.trf.xlu0
      %v1900 = vpop.trf.xlu0
      %v1901 = vpop.trf.xlu0
      %v1902 = vpop.trf.xlu0
      %v1903 = vpop.trf.xlu0
      %v1904 = vpop.trf.xlu0
      %v1905 = vpop.trf.xlu0
      %v1906 = vpop.trf.xlu0
      %v1907 = vpop.trf.xlu0
      %v1908 = vpop.trf.xlu0
      %v1909 = vpop.trf.xlu0
      %v1910 = vpop.trf.xlu0
      %v1911 = vpop.trf.xlu0
      %1912 = vxpose.xlu0.b32.start [1/16] %v1780, 128
      %1913 = vxpose.xlu0.b32.cont [2/16] 0.0, 128
      %1914 = vxpose.xlu0.b32.cont [3/16] 0.0, 128
      %1915 = vxpose.xlu0.b32.cont [4/16] 0.0, 128
      %1916 = vxpose.xlu0.b32.cont [5/16] 0.0, 128
      %1917 = vxpose.xlu0.b32.cont [6/16] 0.0, 128
      %1918 = vxpose.xlu0.b32.cont [7/16] 0.0, 128
      %1919 = vxpose.xlu0.b32.cont [8/16] 0.0, 128
      %1920 = vxpose.xlu0.b32.cont [9/16] 0.0, 128
      %1921 = vxpose.xlu0.b32.cont [10/16] 0.0, 128
      %1922 = vxpose.xlu0.b32.cont [11/16] 0.0, 128
      %1923 = vxpose.xlu0.b32.cont [12/16] 0.0, 128
      %1924 = vxpose.xlu0.b32.cont [13/16] 0.0, 128
      %1925 = vxpose.xlu0.b32.cont [14/16] 0.0, 128
      %1926 = vxpose.xlu0.b32.cont [15/16] 0.0, 128
      %1927 = vxpose.xlu0.b32.end [16/16] 0.0, 128
      %v1928 = vpop.trf.xlu0
      %v1929 = vpop.trf.xlu0
      %v1930 = vpop.trf.xlu0
      %v1931 = vpop.trf.xlu0
      %v1932 = vpop.trf.xlu0
      %v1933 = vpop.trf.xlu0
      %v1934 = vpop.trf.xlu0
      %v1935 = vpop.trf.xlu0
      %v1936 = vpop.trf.xlu0
      %v1937 = vpop.trf.xlu0
      %v1938 = vpop.trf.xlu0
      %v1939 = vpop.trf.xlu0
      %v1940 = vpop.trf.xlu0
      %v1941 = vpop.trf.xlu0
      %v1942 = vpop.trf.xlu0
      %v1943 = vpop.trf.xlu0
      %1944 = vxpose.xlu0.b32.start [1/16] %v1781, 128
      %1945 = vxpose.xlu0.b32.cont [2/16] 0.0, 128
      %1946 = vxpose.xlu0.b32.cont [3/16] 0.0, 128
      %1947 = vxpose.xlu0.b32.cont [4/16] 0.0, 128
      %1948 = vxpose.xlu0.b32.cont [5/16] 0.0, 128
      %1949 = vxpose.xlu0.b32.cont [6/16] 0.0, 128
      %1950 = vxpose.xlu0.b32.cont [7/16] 0.0, 128
      %1951 = vxpose.xlu0.b32.cont [8/16] 0.0, 128
      %1952 = vxpose.xlu0.b32.cont [9/16] 0.0, 128
      %1953 = vxpose.xlu0.b32.cont [10/16] 0.0, 128
      %1954 = vxpose.xlu0.b32.cont [11/16] 0.0, 128
      %1955 = vxpose.xlu0.b32.cont [12/16] 0.0, 128
      %1956 = vxpose.xlu0.b32.cont [13/16] 0.0, 128
      %1957 = vxpose.xlu0.b32.cont [14/16] 0.0, 128
      %1958 = vxpose.xlu0.b32.cont [15/16] 0.0, 128
      %1959 = vxpose.xlu0.b32.end [16/16] 0.0, 128
      %v1960 = vpop.trf.xlu0
      %v1961 = vpop.trf.xlu0
      %v1962 = vpop.trf.xlu0
      %v1963 = vpop.trf.xlu0
      %v1964 = vpop.trf.xlu0
      %v1965 = vpop.trf.xlu0
      %v1966 = vpop.trf.xlu0
      %v1967 = vpop.trf.xlu0
      %v1968 = vpop.trf.xlu0
      %v1969 = vpop.trf.xlu0
      %v1970 = vpop.trf.xlu0
      %v1971 = vpop.trf.xlu0
      %v1972 = vpop.trf.xlu0
      %v1973 = vpop.trf.xlu0
      %v1974 = vpop.trf.xlu0
      %v1975 = vpop.trf.xlu0
      %1976 = vxpose.xlu0.b32.start [1/16] %v1782, 128
      %1977 = vxpose.xlu0.b32.cont [2/16] 0.0, 128
      %1978 = vxpose.xlu0.b32.cont [3/16] 0.0, 128
      %1979 = vxpose.xlu0.b32.cont [4/16] 0.0, 128
      %1980 = vxpose.xlu0.b32.cont [5/16] 0.0, 128
      %1981 = vxpose.xlu0.b32.cont [6/16] 0.0, 128
      %1982 = vxpose.xlu0.b32.cont [7/16] 0.0, 128
      %1983 = vxpose.xlu0.b32.cont [8/16] 0.0, 128
      %1984 = vxpose.xlu0.b32.cont [9/16] 0.0, 128
      %1985 = vxpose.xlu0.b32.cont [10/16] 0.0, 128
      %1986 = vxpose.xlu0.b32.cont [11/16] 0.0, 128
      %1987 = vxpose.xlu0.b32.cont [12/16] 0.0, 128
      %1988 = vxpose.xlu0.b32.cont [13/16] 0.0, 128
      %1989 = vxpose.xlu0.b32.cont [14/16] 0.0, 128
      %1990 = vxpose.xlu0.b32.cont [15/16] 0.0, 128
      %1991 = vxpose.xlu0.b32.end [16/16] 0.0, 128
      %v1992 = vpop.trf.xlu0
      %v1993 = vpop.trf.xlu0
      %v1994 = vpop.trf.xlu0
      %v1995 = vpop.trf.xlu0
      %v1996 = vpop.trf.xlu0
      %v1997 = vpop.trf.xlu0
      %v1998 = vpop.trf.xlu0
      %v1999 = vpop.trf.xlu0
      %v2000 = vpop.trf.xlu0
      %v2001 = vpop.trf.xlu0
      %v2002 = vpop.trf.xlu0
      %v2003 = vpop.trf.xlu0
      %v2004 = vpop.trf.xlu0
      %v2005 = vpop.trf.xlu0
      %v2006 = vpop.trf.xlu0
      %v2007 = vpop.trf.xlu0
      %2008 = vxpose.xlu0.b32.start [1/16] %v1783, 128
      %2009 = vxpose.xlu0.b32.cont [2/16] 0.0, 128
      %2010 = vxpose.xlu0.b32.cont [3/16] 0.0, 128
      %2011 = vxpose.xlu0.b32.cont [4/16] 0.0, 128
      %2012 = vxpose.xlu0.b32.cont [5/16] 0.0, 128
      %2013 = vxpose.xlu0.b32.cont [6/16] 0.0, 128
      %2014 = vxpose.xlu0.b32.cont [7/16] 0.0, 128
      %2015 = vxpose.xlu0.b32.cont [8/16] 0.0, 128
      %2016 = vxpose.xlu0.b32.cont [9/16] 0.0, 128
      %2017 = vxpose.xlu0.b32.cont [10/16] 0.0, 128
      %2018 = vxpose.xlu0.b32.cont [11/16] 0.0, 128
      %2019 = vxpose.xlu0.b32.cont [12/16] 0.0, 128
      %2020 = vxpose.xlu0.b32.cont [13/16] 0.0, 128
      %2021 = vxpose.xlu0.b32.cont [14/16] 0.0, 128
      %2022 = vxpose.xlu0.b32.cont [15/16] 0.0, 128
      %2023 = vxpose.xlu0.b32.end [16/16] 0.0, 128
      %v2024 = vpop.trf.xlu0
      %v2025 = vpop.trf.xlu0
      %v2026 = vpop.trf.xlu0
      %v2027 = vpop.trf.xlu0
      %v2028 = vpop.trf.xlu0
      %v2029 = vpop.trf.xlu0
      %v2030 = vpop.trf.xlu0
      %v2031 = vpop.trf.xlu0
      %v2032 = vpop.trf.xlu0
      %v2033 = vpop.trf.xlu0
      %v2034 = vpop.trf.xlu0
      %v2035 = vpop.trf.xlu0
      %v2036 = vpop.trf.xlu0
      %v2037 = vpop.trf.xlu0
      %v2038 = vpop.trf.xlu0
      %v2039 = vpop.trf.xlu0
      %v2040 = vcombine.low %v1800, %v1864
      %v2042 = vunpack.c.l.s4 1983009808
      %v2043 = vunpack.c.0.s8 %v2042
      %v2044 = vlaneseq
      %v2045 = vshrl.u32 %v2044, 7
      %v2046 = vsub.s32 %v2043, %v2045
      %v2047 = vrot.slane %v2040, %v2046
      %v2048 = vcombine.low %v1832, %v1896
      %v2050 = vunpack.c.l.s4 1983009808
      %v2051 = vunpack.c.0.s8 %v2050
      %v2052 = vlaneseq
      %v2053 = vshrl.u32 %v2052, 7
      %v2054 = vsub.s32 %v2051, %v2053
      %v2055 = vrot.slane %v2048, %v2054
      %v2056 = vcombine.low %v1928, %v1992
      %v2058 = vunpack.c.l.s4 1983009808
      %v2059 = vunpack.c.0.s8 %v2058
      %v2060 = vlaneseq
      %v2061 = vshrl.u32 %v2060, 7
      %v2062 = vsub.s32 %v2059, %v2061
      %v2063 = vrot.slane %v2056, %v2062
      %v2064 = vcombine.low %v1960, %v2024
      %v2066 = vunpack.c.l.s4 1983009808
      %v2067 = vunpack.c.0.s8 %v2066
      %v2068 = vlaneseq
      %v2069 = vshrl.u32 %v2068, 7
      %v2070 = vsub.s32 %v2067, %v2069
      %v2071 = vrot.slane %v2064, %v2070
      %v2072 = vcombine.low %v2047, %v2055
      %v2073 = vcombine.high %v2047, %v2055
      %v2075 = vunpack.c.l.s4 1934713408
      %v2076 = vunpack.c.0.s8 %v2075
      %v2077 = vlaneseq
      %v2078 = vshrl.u32 %v2077, 7
      %v2079 = vsub.s32 %v2076, %v2078
      %v2080 = vrot.slane %v2072, %v2079
      %v2082 = vunpack.c.l.s4 1934713408
      %v2083 = vunpack.c.0.s8 %v2082
      %v2084 = vlaneseq
      %v2085 = vshrl.u32 %v2084, 7
      %v2086 = vsub.s32 %v2083, %v2085
      %v2087 = vrot.slane %v2073, %v2086
      %v2088 = vcombine.low %v2063, %v2071
      %v2089 = vcombine.high %v2063, %v2071
      %v2091 = vunpack.c.l.s4 1934713408
      %v2092 = vunpack.c.0.s8 %v2091
      %v2093 = vlaneseq
      %v2094 = vshrl.u32 %v2093, 7
      %v2095 = vsub.s32 %v2092, %v2094
      %v2096 = vrot.slane %v2088, %v2095
      %v2098 = vunpack.c.l.s4 1934713408
      %v2099 = vunpack.c.0.s8 %v2098
      %v2100 = vlaneseq
      %v2101 = vshrl.u32 %v2100, 7
      %v2102 = vsub.s32 %v2099, %v2101
      %v2103 = vrot.slane %v2089, %v2102
      %v2104 = vcombine.low %v2080, %v2096
      %v2105 = vcombine.high %v2080, %v2096
      %v2106 = vcombine.low %v2087, %v2103
      %v2107 = vcombine.high %v2087, %v2103
      %v2109 = vsel %vm1046, %v2104, 0
      %v2112 = vsel %vm1046, %v1388, 0
      %2114 = vmatprep.subr.mxu0 0.0
      %2115 = vmatpush1.xpose.msra.mxu0 %v2112
      %2116 = vmatprep.subr.mxu0 0.0
      %2117 = vmatpush1.xpose.msra.mxu0 0.0
      %2118 = vmatprep.subr.mxu0 0.0
      %2119 = vmatpush1.xpose.msra.mxu0 0.0
      %2120 = vmatprep.subr.mxu0 0.0
      %2121 = vmatpush1.xpose.msra.mxu0 0.0
      %2122 = vmatprep.subr.mxu0 0.0
      %2123 = vmatpush1.xpose.msra.mxu0 0.0
      %2124 = vmatprep.subr.mxu0 0.0
      %2125 = vmatpush1.xpose.msra.mxu0 0.0
      %2126 = vmatprep.subr.mxu0 0.0
      %2127 = vmatpush1.xpose.msra.mxu0 0.0
      %2128 = vmatprep.subr.mxu0 0.0
      %2129 = vmatpush1.xpose.msra.mxu0 0.0
      %2130 = vmatprep.subr.mxu0 0.0
      %2131 = vmatpush1.xpose.msra.mxu0 0.0
      %2132 = vmatprep.subr.mxu0 0.0
      %2133 = vmatpush1.xpose.msra.mxu0 0.0
      %2134 = vmatprep.subr.mxu0 0.0
      %2135 = vmatpush1.xpose.msra.mxu0 0.0
      %2136 = vmatprep.subr.mxu0 0.0
      %2137 = vmatpush1.xpose.msra.mxu0 0.0
      %2138 = vmatprep.subr.mxu0 0.0
      %2139 = vmatpush1.xpose.msra.mxu0 0.0
      %2140 = vmatprep.subr.mxu0 0.0
      %2141 = vmatpush1.xpose.msra.mxu0 0.0
      %2142 = vmatprep.subr.mxu0 0.0
      %2143 = vmatpush1.xpose.msra.mxu0 0.0
      %2144 = vmatprep.subr.mxu0 0.0
      %2145 = vmatpush1.xpose.msra.mxu0 0.0
      %2146 = vmatprep.subr.mxu0 0.0
      %2147 = vmatpush1.xpose.msra.mxu0 0.0
      %2148 = vmatprep.subr.mxu0 0.0
      %2149 = vmatpush1.xpose.msra.mxu0 0.0
      %2150 = vmatprep.subr.mxu0 0.0
      %2151 = vmatpush1.xpose.msra.mxu0 0.0
      %2152 = vmatprep.subr.mxu0 0.0
      %2153 = vmatpush1.xpose.msra.mxu0 0.0
      %2154 = vmatprep.subr.mxu0 0.0
      %2155 = vmatpush1.xpose.msra.mxu0 0.0
      %2156 = vmatprep.subr.mxu0 0.0
      %2157 = vmatpush1.xpose.msra.mxu0 0.0
      %2158 = vmatprep.subr.mxu0 0.0
      %2159 = vmatpush1.xpose.msra.mxu0 0.0
      %2160 = vmatprep.subr.mxu0 0.0
      %2161 = vmatpush1.xpose.msra.mxu0 0.0
      %2162 = vmatprep.subr.mxu0 0.0
      %2163 = vmatpush1.xpose.msra.mxu0 0.0
      %2164 = vmatprep.subr.mxu0 0.0
      %2165 = vmatpush1.xpose.msra.mxu0 0.0
      %2166 = vmatprep.subr.mxu0 0.0
      %2167 = vmatpush1.xpose.msra.mxu0 0.0
      %2168 = vmatprep.subr.mxu0 0.0
      %2169 = vmatpush1.xpose.msra.mxu0 0.0
      %2170 = vmatprep.subr.mxu0 0.0
      %2171 = vmatpush1.xpose.msra.mxu0 0.0
      %2172 = vmatprep.subr.mxu0 0.0
      %2173 = vmatpush1.xpose.msra.mxu0 0.0
      %2174 = vmatprep.subr.mxu0 0.0
      %2175 = vmatpush1.xpose.msra.mxu0 0.0
      %2176 = vmatprep.subr.mxu0 0.0
      %2177 = vmatpush1.xpose.msra.mxu0 0.0
      %2178 = vmatprep.mubr.f32.mxu0 0.0
      %2179 = vmatmul.mubr.f32.gmra.mrb[0].mxu0 %v2109
      %v2180 = vpop.f32.mrb[0].mxu0
      %v2181 = vadd.f32 0.0, %v2180
      %v2182 = vpop.f32.mrb[0].mxu0
      %2183 = vdwg.mxu0
      %v2185 = vsel %vm1046, %v2105, 0
      %v2188 = vsel %vm1046, %v1389, 0
      %2190 = vmatprep.subr.mxu0 0.0
      %2191 = vmatpush1.xpose.msra.mxu0 %v2188
      %2192 = vmatprep.subr.mxu0 0.0
      %2193 = vmatpush1.xpose.msra.mxu0 0.0
      %2194 = vmatprep.subr.mxu0 0.0
      %2195 = vmatpush1.xpose.msra.mxu0 0.0
      %2196 = vmatprep.subr.mxu0 0.0
      %2197 = vmatpush1.xpose.msra.mxu0 0.0
      %2198 = vmatprep.subr.mxu0 0.0
      %2199 = vmatpush1.xpose.msra.mxu0 0.0
      %2200 = vmatprep.subr.mxu0 0.0
      %2201 = vmatpush1.xpose.msra.mxu0 0.0
      %2202 = vmatprep.subr.mxu0 0.0
      %2203 = vmatpush1.xpose.msra.mxu0 0.0
      %2204 = vmatprep.subr.mxu0 0.0
      %2205 = vmatpush1.xpose.msra.mxu0 0.0
      %2206 = vmatprep.subr.mxu0 0.0
      %2207 = vmatpush1.xpose.msra.mxu0 0.0
      %2208 = vmatprep.subr.mxu0 0.0
      %2209 = vmatpush1.xpose.msra.mxu0 0.0
      %2210 = vmatprep.subr.mxu0 0.0
      %2211 = vmatpush1.xpose.msra.mxu0 0.0
      %2212 = vmatprep.subr.mxu0 0.0
      %2213 = vmatpush1.xpose.msra.mxu0 0.0
      %2214 = vmatprep.subr.mxu0 0.0
      %2215 = vmatpush1.xpose.msra.mxu0 0.0
      %2216 = vmatprep.subr.mxu0 0.0
      %2217 = vmatpush1.xpose.msra.mxu0 0.0
      %2218 = vmatprep.subr.mxu0 0.0
      %2219 = vmatpush1.xpose.msra.mxu0 0.0
      %2220 = vmatprep.subr.mxu0 0.0
      %2221 = vmatpush1.xpose.msra.mxu0 0.0
      %2222 = vmatprep.subr.mxu0 0.0
      %2223 = vmatpush1.xpose.msra.mxu0 0.0
      %2224 = vmatprep.subr.mxu0 0.0
      %2225 = vmatpush1.xpose.msra.mxu0 0.0
      %2226 = vmatprep.subr.mxu0 0.0
      %2227 = vmatpush1.xpose.msra.mxu0 0.0
      %2228 = vmatprep.subr.mxu0 0.0
      %2229 = vmatpush1.xpose.msra.mxu0 0.0
      %2230 = vmatprep.subr.mxu0 0.0
      %2231 = vmatpush1.xpose.msra.mxu0 0.0
      %2232 = vmatprep.subr.mxu0 0.0
      %2233 = vmatpush1.xpose.msra.mxu0 0.0
      %2234 = vmatprep.subr.mxu0 0.0
      %2235 = vmatpush1.xpose.msra.mxu0 0.0
      %2236 = vmatprep.subr.mxu0 0.0
      %2237 = vmatpush1.xpose.msra.mxu0 0.0
      %2238 = vmatprep.subr.mxu0 0.0
      %2239 = vmatpush1.xpose.msra.mxu0 0.0
      %2240 = vmatprep.subr.mxu0 0.0
      %2241 = vmatpush1.xpose.msra.mxu0 0.0
      %2242 = vmatprep.subr.mxu0 0.0
      %2243 = vmatpush1.xpose.msra.mxu0 0.0
      %2244 = vmatprep.subr.mxu0 0.0
      %2245 = vmatpush1.xpose.msra.mxu0 0.0
      %2246 = vmatprep.subr.mxu0 0.0
      %2247 = vmatpush1.xpose.msra.mxu0 0.0
      %2248 = vmatprep.subr.mxu0 0.0
      %2249 = vmatpush1.xpose.msra.mxu0 0.0
      %2250 = vmatprep.subr.mxu0 0.0
      %2251 = vmatpush1.xpose.msra.mxu0 0.0
      %2252 = vmatprep.subr.mxu0 0.0
      %2253 = vmatpush1.xpose.msra.mxu0 0.0
      %2254 = vmatprep.mubr.f32.mxu0 0.0
      %2255 = vmatmul.mubr.f32.gmra.mrb[0].mxu0 %v2185
      %v2256 = vpop.f32.mrb[0].mxu0
      %v2257 = vadd.f32 0.0, %v2256
      %v2258 = vpop.f32.mrb[0].mxu0
      %2259 = vdwg.mxu0
      %v2261 = vsel %vm1046, %v2106, 0
      %v2264 = vsel %vm1046, %v1390, 0
      %2266 = vmatprep.subr.mxu0 0.0
      %2267 = vmatpush1.xpose.msra.mxu0 %v2264
      %2268 = vmatprep.subr.mxu0 0.0
      %2269 = vmatpush1.xpose.msra.mxu0 0.0
      %2270 = vmatprep.subr.mxu0 0.0
      %2271 = vmatpush1.xpose.msra.mxu0 0.0
      %2272 = vmatprep.subr.mxu0 0.0
      %2273 = vmatpush1.xpose.msra.mxu0 0.0
      %2274 = vmatprep.subr.mxu0 0.0
      %2275 = vmatpush1.xpose.msra.mxu0 0.0
      %2276 = vmatprep.subr.mxu0 0.0
      %2277 = vmatpush1.xpose.msra.mxu0 0.0
      %2278 = vmatprep.subr.mxu0 0.0
      %2279 = vmatpush1.xpose.msra.mxu0 0.0
      %2280 = vmatprep.subr.mxu0 0.0
      %2281 = vmatpush1.xpose.msra.mxu0 0.0
      %2282 = vmatprep.subr.mxu0 0.0
      %2283 = vmatpush1.xpose.msra.mxu0 0.0
      %2284 = vmatprep.subr.mxu0 0.0
      %2285 = vmatpush1.xpose.msra.mxu0 0.0
      %2286 = vmatprep.subr.mxu0 0.0
      %2287 = vmatpush1.xpose.msra.mxu0 0.0
      %2288 = vmatprep.subr.mxu0 0.0
      %2289 = vmatpush1.xpose.msra.mxu0 0.0
      %2290 = vmatprep.subr.mxu0 0.0
      %2291 = vmatpush1.xpose.msra.mxu0 0.0
      %2292 = vmatprep.subr.mxu0 0.0
      %2293 = vmatpush1.xpose.msra.mxu0 0.0
      %2294 = vmatprep.subr.mxu0 0.0
      %2295 = vmatpush1.xpose.msra.mxu0 0.0
      %2296 = vmatprep.subr.mxu0 0.0
      %2297 = vmatpush1.xpose.msra.mxu0 0.0
      %2298 = vmatprep.subr.mxu0 0.0
      %2299 = vmatpush1.xpose.msra.mxu0 0.0
      %2300 = vmatprep.subr.mxu0 0.0
      %2301 = vmatpush1.xpose.msra.mxu0 0.0
      %2302 = vmatprep.subr.mxu0 0.0
      %2303 = vmatpush1.xpose.msra.mxu0 0.0
      %2304 = vmatprep.subr.mxu0 0.0
      %2305 = vmatpush1.xpose.msra.mxu0 0.0
      %2306 = vmatprep.subr.mxu0 0.0
      %2307 = vmatpush1.xpose.msra.mxu0 0.0
      %2308 = vmatprep.subr.mxu0 0.0
      %2309 = vmatpush1.xpose.msra.mxu0 0.0
      %2310 = vmatprep.subr.mxu0 0.0
      %2311 = vmatpush1.xpose.msra.mxu0 0.0
      %2312 = vmatprep.subr.mxu0 0.0
      %2313 = vmatpush1.xpose.msra.mxu0 0.0
      %2314 = vmatprep.subr.mxu0 0.0
      %2315 = vmatpush1.xpose.msra.mxu0 0.0
      %2316 = vmatprep.subr.mxu0 0.0
      %2317 = vmatpush1.xpose.msra.mxu0 0.0
      %2318 = vmatprep.subr.mxu0 0.0
      %2319 = vmatpush1.xpose.msra.mxu0 0.0
      %2320 = vmatprep.subr.mxu0 0.0
      %2321 = vmatpush1.xpose.msra.mxu0 0.0
      %2322 = vmatprep.subr.mxu0 0.0
      %2323 = vmatpush1.xpose.msra.mxu0 0.0
      %2324 = vmatprep.subr.mxu0 0.0
      %2325 = vmatpush1.xpose.msra.mxu0 0.0
      %2326 = vmatprep.subr.mxu0 0.0
      %2327 = vmatpush1.xpose.msra.mxu0 0.0
      %2328 = vmatprep.subr.mxu0 0.0
      %2329 = vmatpush1.xpose.msra.mxu0 0.0
      %2330 = vmatprep.mubr.f32.mxu0 0.0
      %2331 = vmatmul.mubr.f32.gmra.mrb[0].mxu0 %v2261
      %v2332 = vpop.f32.mrb[0].mxu0
      %v2333 = vadd.f32 0.0, %v2332
      %v2334 = vpop.f32.mrb[0].mxu0
      %2335 = vdwg.mxu0
      %v2337 = vsel %vm1046, %v2107, 0
      %v2340 = vsel %vm1046, %v1391, 0
      %2342 = vmatprep.subr.mxu0 0.0
      %2343 = vmatpush1.xpose.msra.mxu0 %v2340
      %2344 = vmatprep.subr.mxu0 0.0
      %2345 = vmatpush1.xpose.msra.mxu0 0.0
      %2346 = vmatprep.subr.mxu0 0.0
      %2347 = vmatpush1.xpose.msra.mxu0 0.0
      %2348 = vmatprep.subr.mxu0 0.0
      %2349 = vmatpush1.xpose.msra.mxu0 0.0
      %2350 = vmatprep.subr.mxu0 0.0
      %2351 = vmatpush1.xpose.msra.mxu0 0.0
      %2352 = vmatprep.subr.mxu0 0.0
      %2353 = vmatpush1.xpose.msra.mxu0 0.0
      %2354 = vmatprep.subr.mxu0 0.0
      %2355 = vmatpush1.xpose.msra.mxu0 0.0
      %2356 = vmatprep.subr.mxu0 0.0
      %2357 = vmatpush1.xpose.msra.mxu0 0.0
      %2358 = vmatprep.subr.mxu0 0.0
      %2359 = vmatpush1.xpose.msra.mxu0 0.0
      %2360 = vmatprep.subr.mxu0 0.0
      %2361 = vmatpush1.xpose.msra.mxu0 0.0
      %2362 = vmatprep.subr.mxu0 0.0
      %2363 = vmatpush1.xpose.msra.mxu0 0.0
      %2364 = vmatprep.subr.mxu0 0.0
      %2365 = vmatpush1.xpose.msra.mxu0 0.0
      %2366 = vmatprep.subr.mxu0 0.0
      %2367 = vmatpush1.xpose.msra.mxu0 0.0
      %2368 = vmatprep.subr.mxu0 0.0
      %2369 = vmatpush1.xpose.msra.mxu0 0.0
      %2370 = vmatprep.subr.mxu0 0.0
      %2371 = vmatpush1.xpose.msra.mxu0 0.0
      %2372 = vmatprep.subr.mxu0 0.0
      %2373 = vmatpush1.xpose.msra.mxu0 0.0
      %2374 = vmatprep.subr.mxu0 0.0
      %2375 = vmatpush1.xpose.msra.mxu0 0.0
      %2376 = vmatprep.subr.mxu0 0.0
      %2377 = vmatpush1.xpose.msra.mxu0 0.0
      %2378 = vmatprep.subr.mxu0 0.0
      %2379 = vmatpush1.xpose.msra.mxu0 0.0
      %2380 = vmatprep.subr.mxu0 0.0
      %2381 = vmatpush1.xpose.msra.mxu0 0.0
      %2382 = vmatprep.subr.mxu0 0.0
      %2383 = vmatpush1.xpose.msra.mxu0 0.0
      %2384 = vmatprep.subr.mxu0 0.0
      %2385 = vmatpush1.xpose.msra.mxu0 0.0
      %2386 = vmatprep.subr.mxu0 0.0
      %2387 = vmatpush1.xpose.msra.mxu0 0.0
      %2388 = vmatprep.subr.mxu0 0.0
      %2389 = vmatpush1.xpose.msra.mxu0 0.0
      %2390 = vmatprep.subr.mxu0 0.0
      %2391 = vmatpush1.xpose.msra.mxu0 0.0
      %2392 = vmatprep.subr.mxu0 0.0
      %2393 = vmatpush1.xpose.msra.mxu0 0.0
      %2394 = vmatprep.subr.mxu0 0.0
      %2395 = vmatpush1.xpose.msra.mxu0 0.0
      %2396 = vmatprep.subr.mxu0 0.0
      %2397 = vmatpush1.xpose.msra.mxu0 0.0
      %2398 = vmatprep.subr.mxu0 0.0
      %2399 = vmatpush1.xpose.msra.mxu0 0.0
      %2400 = vmatprep.subr.mxu0 0.0
      %2401 = vmatpush1.xpose.msra.mxu0 0.0
      %2402 = vmatprep.subr.mxu0 0.0
      %2403 = vmatpush1.xpose.msra.mxu0 0.0
      %2404 = vmatprep.subr.mxu0 0.0
      %2405 = vmatpush1.xpose.msra.mxu0 0.0
      %2406 = vmatprep.mubr.f32.mxu0 0.0
      %2407 = vmatmul.mubr.f32.gmra.mrb[0].mxu0 %v2337
      %v2408 = vpop.f32.mrb[0].mxu0
      %v2409 = vadd.f32 0.0, %v2408
      %v2410 = vpop.f32.mrb[0].mxu0
      %2411 = vdwg.mxu0
      %2412 = vxpose.xlu0.b32.start [1/16] %v2181, 128
      %2413 = vxpose.xlu0.b32.cont [2/16] 0.0, 128
      %2414 = vxpose.xlu0.b32.cont [3/16] 0.0, 128
      %2415 = vxpose.xlu0.b32.cont [4/16] 0.0, 128
      %2416 = vxpose.xlu0.b32.cont [5/16] 0.0, 128
      %2417 = vxpose.xlu0.b32.cont [6/16] 0.0, 128
      %2418 = vxpose.xlu0.b32.cont [7/16] 0.0, 128
      %2419 = vxpose.xlu0.b32.cont [8/16] 0.0, 128
      %2420 = vxpose.xlu0.b32.cont [9/16] 0.0, 128
      %2421 = vxpose.xlu0.b32.cont [10/16] 0.0, 128
      %2422 = vxpose.xlu0.b32.cont [11/16] 0.0, 128
      %2423 = vxpose.xlu0.b32.cont [12/16] 0.0, 128
      %2424 = vxpose.xlu0.b32.cont [13/16] 0.0, 128
      %2425 = vxpose.xlu0.b32.cont [14/16] 0.0, 128
      %2426 = vxpose.xlu0.b32.cont [15/16] 0.0, 128
      %2427 = vxpose.xlu0.b32.end [16/16] 0.0, 128
      %v2428 = vpop.trf.xlu0
      %v2429 = vpop.trf.xlu0
      %v2430 = vpop.trf.xlu0
      %v2431 = vpop.trf.xlu0
      %v2432 = vpop.trf.xlu0
      %v2433 = vpop.trf.xlu0
      %v2434 = vpop.trf.xlu0
      %v2435 = vpop.trf.xlu0
      %v2436 = vpop.trf.xlu0
      %v2437 = vpop.trf.xlu0
      %v2438 = vpop.trf.xlu0
      %v2439 = vpop.trf.xlu0
      %v2440 = vpop.trf.xlu0
      %v2441 = vpop.trf.xlu0
      %v2442 = vpop.trf.xlu0
      %v2443 = vpop.trf.xlu0
      %2444 = vxpose.xlu0.b32.start [1/16] %v2257, 128
      %2445 = vxpose.xlu0.b32.cont [2/16] 0.0, 128
      %2446 = vxpose.xlu0.b32.cont [3/16] 0.0, 128
      %2447 = vxpose.xlu0.b32.cont [4/16] 0.0, 128
      %2448 = vxpose.xlu0.b32.cont [5/16] 0.0, 128
      %2449 = vxpose.xlu0.b32.cont [6/16] 0.0, 128
      %2450 = vxpose.xlu0.b32.cont [7/16] 0.0, 128
      %2451 = vxpose.xlu0.b32.cont [8/16] 0.0, 128
      %2452 = vxpose.xlu0.b32.cont [9/16] 0.0, 128
      %2453 = vxpose.xlu0.b32.cont [10/16] 0.0, 128
      %2454 = vxpose.xlu0.b32.cont [11/16] 0.0, 128
      %2455 = vxpose.xlu0.b32.cont [12/16] 0.0, 128
      %2456 = vxpose.xlu0.b32.cont [13/16] 0.0, 128
      %2457 = vxpose.xlu0.b32.cont [14/16] 0.0, 128
      %2458 = vxpose.xlu0.b32.cont [15/16] 0.0, 128
      %2459 = vxpose.xlu0.b32.end [16/16] 0.0, 128
      %v2460 = vpop.trf.xlu0
      %v2461 = vpop.trf.xlu0
      %v2462 = vpop.trf.xlu0
      %v2463 = vpop.trf.xlu0
      %v2464 = vpop.trf.xlu0
      %v2465 = vpop.trf.xlu0
      %v2466 = vpop.trf.xlu0
      %v2467 = vpop.trf.xlu0
      %v2468 = vpop.trf.xlu0
      %v2469 = vpop.trf.xlu0
      %v2470 = vpop.trf.xlu0
      %v2471 = vpop.trf.xlu0
      %v2472 = vpop.trf.xlu0
      %v2473 = vpop.trf.xlu0
      %v2474 = vpop.trf.xlu0
      %v2475 = vpop.trf.xlu0
      %2476 = vxpose.xlu0.b32.start [1/16] %v2333, 128
      %2477 = vxpose.xlu0.b32.cont [2/16] 0.0, 128
      %2478 = vxpose.xlu0.b32.cont [3/16] 0.0, 128
      %2479 = vxpose.xlu0.b32.cont [4/16] 0.0, 128
      %2480 = vxpose.xlu0.b32.cont [5/16] 0.0, 128
      %2481 = vxpose.xlu0.b32.cont [6/16] 0.0, 128
      %2482 = vxpose.xlu0.b32.cont [7/16] 0.0, 128
      %2483 = vxpose.xlu0.b32.cont [8/16] 0.0, 128
      %2484 = vxpose.xlu0.b32.cont [9/16] 0.0, 128
      %2485 = vxpose.xlu0.b32.cont [10/16] 0.0, 128
      %2486 = vxpose.xlu0.b32.cont [11/16] 0.0, 128
      %2487 = vxpose.xlu0.b32.cont [12/16] 0.0, 128
      %2488 = vxpose.xlu0.b32.cont [13/16] 0.0, 128
      %2489 = vxpose.xlu0.b32.cont [14/16] 0.0, 128
      %2490 = vxpose.xlu0.b32.cont [15/16] 0.0, 128
      %2491 = vxpose.xlu0.b32.end [16/16] 0.0, 128
      %v2492 = vpop.trf.xlu0
      %v2493 = vpop.trf.xlu0
      %v2494 = vpop.trf.xlu0
      %v2495 = vpop.trf.xlu0
      %v2496 = vpop.trf.xlu0
      %v2497 = vpop.trf.xlu0
      %v2498 = vpop.trf.xlu0
      %v2499 = vpop.trf.xlu0
      %v2500 = vpop.trf.xlu0
      %v2501 = vpop.trf.xlu0
      %v2502 = vpop.trf.xlu0
      %v2503 = vpop.trf.xlu0
      %v2504 = vpop.trf.xlu0
      %v2505 = vpop.trf.xlu0
      %v2506 = vpop.trf.xlu0
      %v2507 = vpop.trf.xlu0
      %2508 = vxpose.xlu0.b32.start [1/16] %v2409, 128
      %2509 = vxpose.xlu0.b32.cont [2/16] 0.0, 128
      %2510 = vxpose.xlu0.b32.cont [3/16] 0.0, 128
      %2511 = vxpose.xlu0.b32.cont [4/16] 0.0, 128
      %2512 = vxpose.xlu0.b32.cont [5/16] 0.0, 128
      %2513 = vxpose.xlu0.b32.cont [6/16] 0.0, 128
      %2514 = vxpose.xlu0.b32.cont [7/16] 0.0, 128
      %2515 = vxpose.xlu0.b32.cont [8/16] 0.0, 128
      %2516 = vxpose.xlu0.b32.cont [9/16] 0.0, 128
      %2517 = vxpose.xlu0.b32.cont [10/16] 0.0, 128
      %2518 = vxpose.xlu0.b32.cont [11/16] 0.0, 128
      %2519 = vxpose.xlu0.b32.cont [12/16] 0.0, 128
      %2520 = vxpose.xlu0.b32.cont [13/16] 0.0, 128
      %2521 = vxpose.xlu0.b32.cont [14/16] 0.0, 128
      %2522 = vxpose.xlu0.b32.cont [15/16] 0.0, 128
      %2523 = vxpose.xlu0.b32.end [16/16] 0.0, 128
      %v2524 = vpop.trf.xlu0
      %v2525 = vpop.trf.xlu0
      %v2526 = vpop.trf.xlu0
      %v2527 = vpop.trf.xlu0
      %v2528 = vpop.trf.xlu0
      %v2529 = vpop.trf.xlu0
      %v2530 = vpop.trf.xlu0
      %v2531 = vpop.trf.xlu0
      %v2532 = vpop.trf.xlu0
      %v2533 = vpop.trf.xlu0
      %v2534 = vpop.trf.xlu0
      %v2535 = vpop.trf.xlu0
      %v2536 = vpop.trf.xlu0
      %v2537 = vpop.trf.xlu0
      %v2538 = vpop.trf.xlu0
      %v2539 = vpop.trf.xlu0
      %v2540 = vcombine.low %v2428, %v2492
      %v2541 = vcombine.high %v2428, %v2492
      %v2543 = vunpack.c.l.s4 1983009808
      %v2544 = vunpack.c.0.s8 %v2543
      %v2545 = vlaneseq
      %v2546 = vshrl.u32 %v2545, 7
      %v2547 = vsub.s32 %v2544, %v2546
      %v2548 = vrot.slane %v2540, %v2547
      %v2550 = vunpack.c.l.s4 1983009808
      %v2551 = vunpack.c.0.s8 %v2550
      %v2552 = vlaneseq
      %v2553 = vshrl.u32 %v2552, 7
      %v2554 = vsub.s32 %v2551, %v2553
      %v2555 = vrot.slane %v2541, %v2554
      %v2556 = vcombine.low %v2460, %v2524
      %v2557 = vcombine.high %v2460, %v2524
      %v2559 = vunpack.c.l.s4 1983009808
      %v2560 = vunpack.c.0.s8 %v2559
      %v2561 = vlaneseq
      %v2562 = vshrl.u32 %v2561, 7
      %v2563 = vsub.s32 %v2560, %v2562
      %v2564 = vrot.slane %v2556, %v2563
      %v2566 = vunpack.c.l.s4 1983009808
      %v2567 = vunpack.c.0.s8 %v2566
      %v2568 = vlaneseq
      %v2569 = vshrl.u32 %v2568, 7
      %v2570 = vsub.s32 %v2567, %v2569
      %v2571 = vrot.slane %v2557, %v2570
      %v2572 = vcombine.low %v2548, %v2564
      %v2573 = vcombine.high %v2548, %v2564
      %v2575 = vunpack.c.l.s4 1934713408
      %v2576 = vunpack.c.0.s8 %v2575
      %v2577 = vlaneseq
      %v2578 = vshrl.u32 %v2577, 7
      %v2579 = vsub.s32 %v2576, %v2578
      %v2580 = vrot.slane %v2572, %v2579
      %v2582 = vunpack.c.l.s4 1934713408
      %v2583 = vunpack.c.0.s8 %v2582
      %v2584 = vlaneseq
      %v2585 = vshrl.u32 %v2584, 7
      %v2586 = vsub.s32 %v2583, %v2585
      %v2587 = vrot.slane %v2573, %v2586
      %v2588 = vcombine.low %v2555, %v2571
      %v2589 = vcombine.high %v2555, %v2571
      %v2591 = vunpack.c.l.s4 1934713408
      %v2592 = vunpack.c.0.s8 %v2591
      %v2593 = vlaneseq
      %v2594 = vshrl.u32 %v2593, 7
      %v2595 = vsub.s32 %v2592, %v2594
      %v2596 = vrot.slane %v2588, %v2595
      %v2598 = vunpack.c.l.s4 1934713408
      %v2599 = vunpack.c.0.s8 %v2598
      %v2600 = vlaneseq
      %v2601 = vshrl.u32 %v2600, 7
      %v2602 = vsub.s32 %v2599, %v2601
      %v2603 = vrot.slane %v2589, %v2602
      %v2604 = vcombine.high %v2580, 0.0
      %v2605 = vcombine.high %v2587, 0.0
      %v2606 = vcombine.high %v2596, 0.0
      %v2607 = vcombine.high %v2603, 0.0
      %vm2608 = vcmask 60416
      %2609 = vst.msk [vmem:[%s237] sm:$0xf] %vm2608, %v2580
      %2610 = vst.msk [vmem:[%s237 + $0x4] sm:$0xf] %vm2608, %v2604
      %2611 = vst.msk [vmem:[%s237 + $0x8] sm:$0xf] %vm2608, %v2587
      %2612 = vst.msk [vmem:[%s237 + $0xc] sm:$0xf] %vm2608, %v2605
      %2613 = vst.msk [vmem:[%s237 + $0x10] sm:$0xf] %vm2608, %v2596
      %2614 = vst.msk [vmem:[%s237 + $0x14] sm:$0xf] %vm2608, %v2606
      %2615 = vst.msk [vmem:[%s237 + $0x18] sm:$0xf] %vm2608, %v2603
      %2616 = vst.msk [vmem:[%s237 + $0x1c] sm:$0xf] %vm2608, %v2607
      %p2617 = scmp.lt.s32.totalorder %s15, 1
      %s2618 = scalar_select %p2617, %s15, 1
      %s2619 = smul.addr %s2618, 8
      %s2620 = smul.addr %s2619, 4
      %s2621 = scalar_lea.vmem %s4, %s2620
      // Predicated region
      $region37: #{music_transformer_forward.20} parent=35 // pred_check
        %p2622 = pneg %p132
      $region38: #{music_transformer_forward.20} parent=35 // pred_check_branch
        %2624 = sbr.rel (%p2622) target = $region40
      $region39: #{music_transformer_forward.20} parent=35 // pred_region
        _
      $region40: #{music_transformer_forward.20} parent=35 // pred_fallthru
        _
    $region36: #{music_transformer_forward.20} parent=5 // pred_fallthru
      _
    %p2625 = scmp.le.s32.totalorder 2, %s10
    // Predicated region
    $region41: #{music_transformer_forward.20} parent=5 // pred_check
      %p2626 = pneg %p2625
    $region42: #{music_transformer_forward.20} parent=5 // pred_check_branch
      %2628 = sbr.rel (%p2626) target = $region44
    $region43: #{music_transformer_forward.20} parent=5 // pred_region
      %s2629 = ssub.s32 %s10, 2
      // Predicated region
      $region45: #{music_transformer_forward.20} parent=43 // pred_check
        %p2630 = pneg %p138
      $region46: #{music_transformer_forward.20} parent=43 // pred_check_branch
        %2632 = sbr.rel (%p2630) target = $region48
      $region47: #{music_transformer_forward.20} parent=43 // pred_region
        %p2633 = scmp.lt.s32.totalorder %s16, 1
        %s2634 = scalar_select %p2633, %s16, 1
        %s2635 = smul.addr %s2634, 8
        %s2636 = smul.addr %s2635, 4
        %s2637 = scalar_lea.vmem %s4, %s2636
      $region48: #{music_transformer_forward.20} parent=43 // pred_fallthru
        _
    $region44: #{music_transformer_forward.20} parent=5 // pred_fallthru
      _
  $region6: #{music_transformer_forward.20} parent=0 // loop_footer
    %s14 = sadd.s32 1, %s10
  $region7: #{music_transformer_forward.20} parent=0 // loop_footer_branch
    %9 = sbr.rel target = $region3
  $region8: #{music_transformer_forward.20} parent=0 // loop_exit
    _

// kernel: music_transformer_forward.35
$region0: #{music_transformer_forward.35}
  #allocation0 [shape = 'u32[]', space=smem, size = 0x4, offset = 0x4, fixed_abs, tag = 'smem constant byte address 0x4 - core index']
  #allocation1 [shape = 'u32[144,128]{1,0:T(1,128)}', space=vmem, size = 0x12000, scoped, tag = 'internal scratch']
  %s0 = inlined_call_operand.vmem [shape: f32[16,32], index: 0, kind: input, shape index: {}]
  %s1 = inlined_call_operand.vmem [shape: f32[32,128], index: 1, kind: input, shape index: {}]
  %s2 = inlined_call_operand.vmem [shape: f32[1,128], index: 2, kind: input, shape index: {}]
  %s3 = inlined_call_operand.hbm [shape: f32[16,128], index: 3, kind: output, shape index: {}]
  %s4 = sld [smem:[#allocation0]]
  $region22: #{music_transformer_forward.35} parent=0
    _
  %s6 = ssub.s32 1, %s4
  %s7 = scalar_select 0, %s6, %s4
  $region1: #{music_transformer_forward.35} parent=0
    #allocation2 [shape = 'u8[8192]{0}', space=vmem, size = 0x2000, scoped, tag = 'output window, operand 0, single buffered']
    #allocation3 [shape = 's32[1]{0}', space=sflag, size = 0x4, scoped, tag = 'scoped memory for music_transformer_forward.35']
    %8 = vsyncpa [#allocation3], 0
    // Predicated region
    $region2: #{music_transformer_forward.35} parent=1 // pred_check
      _
    $region3: #{music_transformer_forward.35} parent=1 // pred_check_branch
      %10 = sbr.rel (0) target = $region5
    $region4: #{music_transformer_forward.35} parent=1 // pred_region
      _
    $region5: #{music_transformer_forward.35} parent=1 // pred_fallthru
      _
    // Predicated region
    $region6: #{music_transformer_forward.35} parent=1 // pred_check
      _
    $region7: #{music_transformer_forward.35} parent=1 // pred_check_branch
      %12 = sbr.rel (0) target = $region9
    $region8: #{music_transformer_forward.35} parent=1 // pred_region
      _
    $region9: #{music_transformer_forward.35} parent=1 // pred_fallthru
      _
    // Predicated region
    $region10: #{music_transformer_forward.35} parent=1 // pred_check
      _
    $region11: #{music_transformer_forward.35} parent=1 // pred_check_branch
      %14 = sbr.rel (0) target = $region13
    $region12: #{music_transformer_forward.35} parent=1 // pred_region
      _
    $region13: #{music_transformer_forward.35} parent=1 // pred_fallthru
      _
    %v15 = vld [vmem:[%s0] sm:$0xff]
    %v16 = vld [vmem:[%s0 + $0x8] sm:$0xff]
    %v17 = vld [vmem:[%s1] sm:$0xff]
    %v18 = vld [vmem:[%s1 + $0x8] sm:$0xff]
    %v19 = vld [vmem:[%s1 + $0x10] sm:$0xff]
    %v20 = vld [vmem:[%s1 + $0x18] sm:$0xff]
    %v21 = vld [vmem:[%s2] sm:$0x1]
    %v23 = vlaneseq
    %v24 = vshrl.u32 %v23, 7
    %v25 = vsub.s32 0, %v24
    %v26 = vrot.slane %v21, %v25
    %vm28 = vcmask 261120
    %v30 = vsel %vm28, %v15, 0
    %v33 = vsel %vm28, %v16, 0
    %35 = vmatprep.subr.mxu0 0.0
    %36 = vmatpush1.msra.mxu0 %v17
    %37 = vmatprep.subr.mxu0 0.0
    %38 = vmatpush1.msra.mxu0 %v18
    %39 = vmatprep.subr.mxu0 0.0
    %40 = vmatpush1.msra.mxu0 %v19
    %41 = vmatprep.subr.mxu0 0.0
    %42 = vmatpush1.msra.mxu0 %v20
    %43 = vmatprep.subr.mxu0 0.0
    %44 = vmatpush1.msra.mxu0 0.0
    %45 = vmatprep.subr.mxu0 0.0
    %46 = vmatpush1.msra.mxu0 0.0
    %47 = vmatprep.subr.mxu0 0.0
    %48 = vmatpush1.msra.mxu0 0.0
    %49 = vmatprep.subr.mxu0 0.0
    %50 = vmatpush1.msra.mxu0 0.0
    %51 = vmatprep.subr.mxu0 0.0
    %52 = vmatpush1.msra.mxu0 0.0
    %53 = vmatprep.subr.mxu0 0.0
    %54 = vmatpush1.msra.mxu0 0.0
    %55 = vmatprep.subr.mxu0 0.0
    %56 = vmatpush1.msra.mxu0 0.0
    %57 = vmatprep.subr.mxu0 0.0
    %58 = vmatpush1.msra.mxu0 0.0
    %59 = vmatprep.subr.mxu0 0.0
    %60 = vmatpush1.msra.mxu0 0.0
    %61 = vmatprep.subr.mxu0 0.0
    %62 = vmatpush1.msra.mxu0 0.0
    %63 = vmatprep.subr.mxu0 0.0
    %64 = vmatpush1.msra.mxu0 0.0
    %65 = vmatprep.subr.mxu0 0.0
    %66 = vmatpush1.msra.mxu0 0.0
    %67 = vmatprep.subr.mxu0 0.0
    %68 = vmatpush1.msra.mxu0 0.0
    %69 = vmatprep.subr.mxu0 0.0
    %70 = vmatpush1.msra.mxu0 0.0
    %71 = vmatprep.subr.mxu0 0.0
    %72 = vmatpush1.msra.mxu0 0.0
    %73 = vmatprep.subr.mxu0 0.0
    %74 = vmatpush1.msra.mxu0 0.0
    %75 = vmatprep.subr.mxu0 0.0
    %76 = vmatpush1.msra.mxu0 0.0
    %77 = vmatprep.subr.mxu0 0.0
    %78 = vmatpush1.msra.mxu0 0.0
    %79 = vmatprep.subr.mxu0 0.0
    %80 = vmatpush1.msra.mxu0 0.0
    %81 = vmatprep.subr.mxu0 0.0
    %82 = vmatpush1.msra.mxu0 0.0
    %83 = vmatprep.subr.mxu0 0.0
    %84 = vmatpush1.msra.mxu0 0.0
    %85 = vmatprep.subr.mxu0 0.0
    %86 = vmatpush1.msra.mxu0 0.0
    %87 = vmatprep.subr.mxu0 0.0
    %88 = vmatpush1.msra.mxu0 0.0
    %89 = vmatprep.subr.mxu0 0.0
    %90 = vmatpush1.msra.mxu0 0.0
    %91 = vmatprep.subr.mxu0 0.0
    %92 = vmatpush1.msra.mxu0 0.0
    %93 = vmatprep.subr.mxu0 0.0
    %94 = vmatpush1.msra.mxu0 0.0
    %95 = vmatprep.subr.mxu0 0.0
    %96 = vmatpush1.msra.mxu0 0.0
    %97 = vmatprep.subr.mxu0 0.0
    %98 = vmatpush1.msra.mxu0 0.0
    %99 = vmatprep.mubr.f32.mxu0 0.0
    %100 = vmatmul.mubr.f32.gmra.mrb[0].mxu0 %v30
    %v101 = vpop.f32.mrb[0].mxu0
    %v102 = vadd.f32 %v26, %v101
    %v103 = vpop.f32.mrb[0].mxu0
    %104 = vmatprep.mubr.f32.mxu0 0.0
    %105 = vmatmul.mubr.f32.gmra.mrb[0].mxu0 %v33
    %v106 = vpop.f32.mrb[0].mxu0
    %v107 = vadd.f32 %v26, %v106
    %v108 = vpop.f32.mrb[0].mxu0
    %109 = vdwg.mxu0
    %110 = vst [vmem:[#allocation2] sm:$0xff] %v102
    %111 = vst [vmem:[#allocation2 + $0x8] sm:$0xff] %v107
    // Predicated region
    $region14: #{music_transformer_forward.35} parent=1 // pred_check
      _
    $region15: #{music_transformer_forward.35} parent=1 // pred_check_branch
      %113 = sbr.rel (0) target = $region17
    $region16: #{music_transformer_forward.35} parent=1 // pred_region
      %s115 = ssub.s32 256, 256
      %116 = vsyncadd [#allocation3], %s115
      %s117 = sshll.u32 [#allocation2], 4
      %s118 = int_to_ptr.vmem [resolvable:$true] %s117
      %123 = dma.vmem_to_hbm [thread:$0]  %s118, 256, %s3, [#allocation3], 128, 128, 8
    $region17: #{music_transformer_forward.35} parent=1 // pred_fallthru
      _
    // Predicated region
    $region18: #{music_transformer_forward.35} parent=1 // pred_check
      _
    $region19: #{music_transformer_forward.35} parent=1 // pred_check_branch
      %125 = sbr.rel (0) target = $region21
    $region20: #{music_transformer_forward.35} parent=1 // pred_region
      %126 = dma.done [#allocation3], 256
    $region21: #{music_transformer_forward.35} parent=1 // pred_fallthru
      _
    %127 = vsyncpa [#allocation3], 1

// kernel: music_transformer_forward.26
$region0: #{music_transformer_forward.26}
  #allocation0 [shape = 'u32[]', space=smem, size = 0x4, offset = 0x4, fixed_abs, tag = 'smem constant byte address 0x4 - core index']
  #allocation1 [shape = 'u32[144,128]{1,0:T(1,128)}', space=vmem, size = 0x12000, scoped, tag = 'internal scratch']
  %s0 = inlined_call_operand.vmem [shape: f32[16,32], index: 0, kind: input, shape index: {}]
  %s1 = inlined_call_operand.vmem [shape: f32[32,64], index: 1, kind: input, shape index: {}]
  %s2 = inlined_call_operand.vmem [shape: f32[1,64], index: 2, kind: input, shape index: {}]
  %s3 = inlined_call_operand.vmem [shape: f32[64,32], index: 3, kind: input, shape index: {}]
  %s4 = inlined_call_operand.vmem [shape: f32[1,32], index: 4, kind: input, shape index: {}]
  %s5 = inlined_call_operand.vmem [shape: f32[1,32], index: 5, kind: input, shape index: {}]
  %s6 = inlined_call_operand.vmem [shape: f32[1,32], index: 6, kind: input, shape index: {}]
  %s7 = inlined_call_operand.vmem [shape: f32[16,32], index: 7, kind: output, shape index: {}]
  %s8 = sld [smem:[#allocation0]]
  $region38: #{music_transformer_forward.26} parent=0
    _
  %s10 = ssub.s32 1, %s8
  %s11 = scalar_select 0, %s10, %s8
  // Predicated region
  $region2: #{music_transformer_forward.26} parent=0 // pred_check
    _
  $region3: #{music_transformer_forward.26} parent=0 // pred_check_branch
    %13 = sbr.rel (0) target = $region5
  $region4: #{music_transformer_forward.26} parent=0 // pred_region
    _
  $region5: #{music_transformer_forward.26} parent=0 // pred_fallthru
    _
  // Predicated region
  $region6: #{music_transformer_forward.26} parent=0 // pred_check
    _
  $region7: #{music_transformer_forward.26} parent=0 // pred_check_branch
    %15 = sbr.rel (0) target = $region9
  $region8: #{music_transformer_forward.26} parent=0 // pred_region
    _
  $region9: #{music_transformer_forward.26} parent=0 // pred_fallthru
    _
  // Predicated region
  $region10: #{music_transformer_forward.26} parent=0 // pred_check
    _
  $region11: #{music_transformer_forward.26} parent=0 // pred_check_branch
    %17 = sbr.rel (0) target = $region13
  $region12: #{music_transformer_forward.26} parent=0 // pred_region
    _
  $region13: #{music_transformer_forward.26} parent=0 // pred_fallthru
    _
  // Predicated region
  $region14: #{music_transformer_forward.26} parent=0 // pred_check
    _
  $region15: #{music_transformer_forward.26} parent=0 // pred_check_branch
    %19 = sbr.rel (0) target = $region17
  $region16: #{music_transformer_forward.26} parent=0 // pred_region
    _
  $region17: #{music_transformer_forward.26} parent=0 // pred_fallthru
    _
  // Predicated region
  $region18: #{music_transformer_forward.26} parent=0 // pred_check
    _
  $region19: #{music_transformer_forward.26} parent=0 // pred_check_branch
    %21 = sbr.rel (0) target = $region21
  $region20: #{music_transformer_forward.26} parent=0 // pred_region
    _
  $region21: #{music_transformer_forward.26} parent=0 // pred_fallthru
    _
  // Predicated region
  $region22: #{music_transformer_forward.26} parent=0 // pred_check
    _
  $region23: #{music_transformer_forward.26} parent=0 // pred_check_branch
    %23 = sbr.rel (0) target = $region25
  $region24: #{music_transformer_forward.26} parent=0 // pred_region
    _
  $region25: #{music_transformer_forward.26} parent=0 // pred_fallthru
    _
  // Predicated region
  $region26: #{music_transformer_forward.26} parent=0 // pred_check
    _
  $region27: #{music_transformer_forward.26} parent=0 // pred_check_branch
    %25 = sbr.rel (0) target = $region29
  $region28: #{music_transformer_forward.26} parent=0 // pred_region
    _
  $region29: #{music_transformer_forward.26} parent=0 // pred_fallthru
    _
  %v26 = vld [vmem:[%s0] sm:$0xff]
  %v27 = vld [vmem:[%s0 + $0x8] sm:$0xff]
  %v28 = vld [vmem:[%s1] sm:$0xff]
  %v29 = vld [vmem:[%s1 + $0x8] sm:$0xff]
  %v30 = vld [vmem:[%s1 + $0x10] sm:$0xff]
  %v31 = vld [vmem:[%s1 + $0x18] sm:$0xff]
  %v32 = vld [vmem:[%s2] sm:$0x1]
  %v34 = vlaneseq
  %v35 = vshrl.u32 %v34, 7
  %v36 = vsub.s32 0, %v35
  %v37 = vrot.slane %v32, %v36
  %vm39 = vcmask 261120
  %v41 = vsel %vm39, %v26, 0
  %v44 = vsel %vm39, %v27, 0
  %46 = vmatprep.subr.mxu0 0.0
  %47 = vmatpush1.msra.mxu0 %v28
  %48 = vmatprep.subr.mxu0 0.0
  %49 = vmatpush1.msra.mxu0 %v29
  %50 = vmatprep.subr.mxu0 0.0
  %51 = vmatpush1.msra.mxu0 %v30
  %52 = vmatprep.subr.mxu0 0.0
  %53 = vmatpush1.msra.mxu0 %v31
  %54 = vmatprep.subr.mxu0 0.0
  %55 = vmatpush1.msra.mxu0 0.0
  %56 = vmatprep.subr.mxu0 0.0
  %57 = vmatpush1.msra.mxu0 0.0
  %58 = vmatprep.subr.mxu0 0.0
  %59 = vmatpush1.msra.mxu0 0.0
  %60 = vmatprep.subr.mxu0 0.0
  %61 = vmatpush1.msra.mxu0 0.0
  %62 = vmatprep.subr.mxu0 0.0
  %63 = vmatpush1.msra.mxu0 0.0
  %64 = vmatprep.subr.mxu0 0.0
  %65 = vmatpush1.msra.mxu0 0.0
  %66 = vmatprep.subr.mxu0 0.0
  %67 = vmatpush1.msra.mxu0 0.0
  %68 = vmatprep.subr.mxu0 0.0
  %69 = vmatpush1.msra.mxu0 0.0
  %70 = vmatprep.subr.mxu0 0.0
  %71 = vmatpush1.msra.mxu0 0.0
  %72 = vmatprep.subr.mxu0 0.0
  %73 = vmatpush1.msra.mxu0 0.0
  %74 = vmatprep.subr.mxu0 0.0
  %75 = vmatpush1.msra.mxu0 0.0
  %76 = vmatprep.subr.mxu0 0.0
  %77 = vmatpush1.msra.mxu0 0.0
  %78 = vmatprep.subr.mxu0 0.0
  %79 = vmatpush1.msra.mxu0 0.0
  %80 = vmatprep.subr.mxu0 0.0
  %81 = vmatpush1.msra.mxu0 0.0
  %82 = vmatprep.subr.mxu0 0.0
  %83 = vmatpush1.msra.mxu0 0.0
  %84 = vmatprep.subr.mxu0 0.0
  %85 = vmatpush1.msra.mxu0 0.0
  %86 = vmatprep.subr.mxu0 0.0
  %87 = vmatpush1.msra.mxu0 0.0
  %88 = vmatprep.subr.mxu0 0.0
  %89 = vmatpush1.msra.mxu0 0.0
  %90 = vmatprep.subr.mxu0 0.0
  %91 = vmatpush1.msra.mxu0 0.0
  %92 = vmatprep.subr.mxu0 0.0
  %93 = vmatpush1.msra.mxu0 0.0
  %94 = vmatprep.subr.mxu0 0.0
  %95 = vmatpush1.msra.mxu0 0.0
  %96 = vmatprep.subr.mxu0 0.0
  %97 = vmatpush1.msra.mxu0 0.0
  %98 = vmatprep.subr.mxu0 0.0
  %99 = vmatpush1.msra.mxu0 0.0
  %100 = vmatprep.subr.mxu0 0.0
  %101 = vmatpush1.msra.mxu0 0.0
  %102 = vmatprep.subr.mxu0 0.0
  %103 = vmatpush1.msra.mxu0 0.0
  %104 = vmatprep.subr.mxu0 0.0
  %105 = vmatpush1.msra.mxu0 0.0
  %106 = vmatprep.subr.mxu0 0.0
  %107 = vmatpush1.msra.mxu0 0.0
  %108 = vmatprep.subr.mxu0 0.0
  %109 = vmatpush1.msra.mxu0 0.0
  %110 = vmatprep.mubr.f32.mxu0 0.0
  %111 = vmatmul.mubr.f32.gmra.mrb[0].mxu0 %v41
  %v112 = vpop.f32.mrb[0].mxu0
  %v113 = vadd.f32 %v37, %v112
  %v114 = vpop.f32.mrb[0].mxu0
  %115 = vmatprep.mubr.f32.mxu0 0.0
  %116 = vmatmul.mubr.f32.gmra.mrb[0].mxu0 %v44
  %v117 = vpop.f32.mrb[0].mxu0
  %v118 = vadd.f32 %v37, %v117
  %v119 = vpop.f32.mrb[0].mxu0
  %120 = vdwg.mxu0
  %v121 = vmax.f32 %v113, 0.0
  %v122 = vmax.f32 %v118, 0.0
  %v123 = vld [vmem:[%s3] sm:$0xff]
  %v124 = vld [vmem:[%s3 + $0x8] sm:$0xff]
  %v125 = vld [vmem:[%s3 + $0x10] sm:$0xff]
  %v126 = vld [vmem:[%s3 + $0x18] sm:$0xff]
  %v127 = vld [vmem:[%s3 + $0x20] sm:$0xff]
  %v128 = vld [vmem:[%s3 + $0x28] sm:$0xff]
  %v129 = vld [vmem:[%s3 + $0x30] sm:$0xff]
  %v130 = vld [vmem:[%s3 + $0x38] sm:$0xff]
  %v131 = vld [vmem:[%s4] sm:$0x1]
  %v133 = vlaneseq
  %v134 = vshrl.u32 %v133, 7
  %v135 = vsub.s32 0, %v134
  %v136 = vrot.slane %v131, %v135
  %vm138 = vcmask 523264
  %v140 = vsel %vm138, %v121, 0
  %v143 = vsel %vm138, %v122, 0
  %145 = vmatprep.subr.mxu0 0.0
  %146 = vmatpush1.msra.mxu0 %v123
  %147 = vmatprep.subr.mxu0 0.0
  %148 = vmatpush1.msra.mxu0 %v124
  %149 = vmatprep.subr.mxu0 0.0
  %150 = vmatpush1.msra.mxu0 %v125
  %151 = vmatprep.subr.mxu0 0.0
  %152 = vmatpush1.msra.mxu0 %v126
  %153 = vmatprep.subr.mxu0 0.0
  %154 = vmatpush1.msra.mxu0 %v127
  %155 = vmatprep.subr.mxu0 0.0
  %156 = vmatpush1.msra.mxu0 %v128
  %157 = vmatprep.subr.mxu0 0.0
  %158 = vmatpush1.msra.mxu0 %v129
  %159 = vmatprep.subr.mxu0 0.0
  %160 = vmatpush1.msra.mxu0 %v130
  %161 = vmatprep.subr.mxu0 0.0
  %162 = vmatpush1.msra.mxu0 0.0
  %163 = vmatprep.subr.mxu0 0.0
  %164 = vmatpush1.msra.mxu0 0.0
  %165 = vmatprep.subr.mxu0 0.0
  %166 = vmatpush1.msra.mxu0 0.0
  %167 = vmatprep.subr.mxu0 0.0
  %168 = vmatpush1.msra.mxu0 0.0
  %169 = vmatprep.subr.mxu0 0.0
  %170 = vmatpush1.msra.mxu0 0.0
  %171 = vmatprep.subr.mxu0 0.0
  %172 = vmatpush1.msra.mxu0 0.0
  %173 = vmatprep.subr.mxu0 0.0
  %174 = vmatpush1.msra.mxu0 0.0
  %175 = vmatprep.subr.mxu0 0.0
  %176 = vmatpush1.msra.mxu0 0.0
  %177 = vmatprep.subr.mxu0 0.0
  %178 = vmatpush1.msra.mxu0 0.0
  %179 = vmatprep.subr.mxu0 0.0
  %180 = vmatpush1.msra.mxu0 0.0
  %181 = vmatprep.subr.mxu0 0.0
  %182 = vmatpush1.msra.mxu0 0.0
  %183 = vmatprep.subr.mxu0 0.0
  %184 = vmatpush1.msra.mxu0 0.0
  %185 = vmatprep.subr.mxu0 0.0
  %186 = vmatpush1.msra.mxu0 0.0
  %187 = vmatprep.subr.mxu0 0.0
  %188 = vmatpush1.msra.mxu0 0.0
  %189 = vmatprep.subr.mxu0 0.0
  %190 = vmatpush1.msra.mxu0 0.0
  %191 = vmatprep.subr.mxu0 0.0
  %192 = vmatpush1.msra.mxu0 0.0
  %193 = vmatprep.subr.mxu0 0.0
  %194 = vmatpush1.msra.mxu0 0.0
  %195 = vmatprep.subr.mxu0 0.0
  %196 = vmatpush1.msra.mxu0 0.0
  %197 = vmatprep.subr.mxu0 0.0
  %198 = vmatpush1.msra.mxu0 0.0
  %199 = vmatprep.subr.mxu0 0.0
  %200 = vmatpush1.msra.mxu0 0.0
  %201 = vmatprep.subr.mxu0 0.0
  %202 = vmatpush1.msra.mxu0 0.0
  %203 = vmatprep.subr.mxu0 0.0
  %204 = vmatpush1.msra.mxu0 0.0
  %205 = vmatprep.subr.mxu0 0.0
  %206 = vmatpush1.msra.mxu0 0.0
  %207 = vmatprep.subr.mxu0 0.0
  %208 = vmatpush1.msra.mxu0 0.0
  %209 = vmatprep.mubr.f32.mxu0 0.0
  %210 = vmatmul.mubr.f32.gmra.mrb[0].mxu0 %v140
  %v211 = vpop.f32.mrb[0].mxu0
  %v212 = vadd.f32 %v136, %v211
  %v213 = vpop.f32.mrb[0].mxu0
  %214 = vmatprep.mubr.f32.mxu0 0.0
  %215 = vmatmul.mubr.f32.gmra.mrb[0].mxu0 %v143
  %v216 = vpop.f32.mrb[0].mxu0
  %v217 = vadd.f32 %v136, %v216
  %v218 = vpop.f32.mrb[0].mxu0
  %219 = vdwg.mxu0
  %v220 = vadd.f32 %v212, %v26
  %v221 = vadd.f32 %v217, %v27
  %v222 = vld [vmem:[%s5] sm:$0x1]
  %v223 = vld [vmem:[%s6] sm:$0x1]
  %v224 = vsel %vm39, %v220, 0.0
  %225 = vadd.xlane.f32.xlu0 %v224
  %v226 = vpop.xlane.xlu0 %225
  %v227 = vsel %vm39, %v221, 0.0
  %228 = vadd.xlane.f32.xlu0 %v227
  %v229 = vpop.xlane.xlu0 %228
  %v230 = vrcp.pop 32.0
  %v231 = vmul.f32 %v226, %v230
  %v232 = vmul.f32 %v229, %v230
  %v233 = vsub.f32 %v220, %v231
  %v234 = vsub.f32 %v221, %v232
  %v235 = vmul.f32 %v233, %v233
  %v236 = vmul.f32 %v234, %v234
  %v237 = vsel %vm39, %v235, 0.0
  %238 = vadd.xlane.f32.xlu0 %v237
  %v239 = vpop.xlane.xlu0 %238
  %v240 = vsel %vm39, %v236, 0.0
  %241 = vadd.xlane.f32.xlu0 %v240
  %v242 = vpop.xlane.xlu0 %241
  %v243 = vmul.f32 %v239, %v230
  %v244 = vmul.f32 %v242, %v230
  %v245 = vadd.f32 %v243, 1e-05
  %v246 = vadd.f32 %v244, 1e-05
  %v247 = vrsqrt.pop %v245
  %v248 = vrsqrt.pop %v246
  %v249 = vmul.f32 %v233, %v247
  %v250 = vmul.f32 %v234, %v248
  %v252 = vlaneseq
  %v253 = vshrl.u32 %v252, 7
  %v254 = vsub.s32 0, %v253
  %v255 = vrot.slane %v222, %v254
  %v257 = vmul.f32 %v249, %v255
  %v258 = vmul.f32 %v250, %v255
  %v260 = vlaneseq
  %v261 = vshrl.u32 %v260, 7
  %v262 = vsub.s32 0, %v261
  %v263 = vrot.slane %v223, %v262
  %v265 = vadd.f32 %v257, %v263
  %v266 = vadd.f32 %v258, %v263
  %267 = vst.msk [vmem:[%s7] sm:$0xff] %vm39, %v265
  %268 = vst.msk [vmem:[%s7 + $0x8] sm:$0xff] %vm39, %v266
  // Predicated region
  $region30: #{music_transformer_forward.26} parent=0 // pred_check
    _
  $region31: #{music_transformer_forward.26} parent=0 // pred_check_branch
    %270 = sbr.rel (0) target = $region33
  $region32: #{music_transformer_forward.26} parent=0 // pred_region
    _
  $region33: #{music_transformer_forward.26} parent=0 // pred_fallthru
    _
  // Predicated region
  $region34: #{music_transformer_forward.26} parent=0 // pred_check
    _
  $region35: #{music_transformer_forward.26} parent=0 // pred_check_branch
    %272 = sbr.rel (0) target = $region37
  $region36: #{music_transformer_forward.26} parent=0 // pred_region
    _
  $region37: #{music_transformer_forward.26} parent=0 // pred_fallthru
    _

// kernel: music_transformer_forward.24
$region0: #{music_transformer_forward.24}
  #allocation0 [shape = 'u32[]', space=smem, size = 0x4, offset = 0x4, fixed_abs, tag = 'smem constant byte address 0x4 - core index']
  #allocation1 [shape = 'u32[144,128]{1,0:T(1,128)}', space=vmem, size = 0x12000, scoped, tag = 'internal scratch']
  %s0 = inlined_call_operand.vmem [shape: f32[2,8,4,8], index: 0, kind: input, shape index: {}]
  %s1 = inlined_call_operand.vmem [shape: f32[2,8,4,8], index: 1, kind: input, shape index: {}]
  %s2 = inlined_call_operand.vmem [shape: f32[2,8,4,8], index: 2, kind: input, shape index: {}]
  %s3 = inlined_call_operand.vmem [shape: f32[2,8,4,8], index: 3, kind: output, shape index: {}]
  %s4 = sld [smem:[#allocation0]]
  $region45: #{music_transformer_forward.24} parent=0
    _
  %s6 = ssub.s32 1, %s4
  %s7 = scalar_select 0, %s6, %s4
  loop: start=0, step=1, limit=4
  $region2: #{music_transformer_forward.24} parent=0 // loop_pre_header
    _
  $region3: #{music_transformer_forward.24} parent=0 // loop_header
    %s9 = sphi 0, %s13
    %p10 = scmp.ge.s32.totalorder %s9, 4
    %s19 = sphi 0, %s21
    %s22 = sphi 0, %s19
    %s23 = sphi 0, %s22
    %s39 = sphi 0, %s23
    %s45 = sphi 0, %s47
    %s48 = sphi 0, %s45
    %s49 = sphi 0, %s48
    %s65 = sphi 0, %s49
    %s71 = sphi 0, %s73
    %s74 = sphi 0, %s71
    %s75 = sphi 0, %s74
    %s91 = sphi 0, %s75
    %s97 = sphi 0, %s99
    %s100 = sphi 0, %s97
    %s101 = sphi 0, %s100
    %s117 = sphi 0, %s101
  $region4: #{music_transformer_forward.24} parent=0 // loop_header_branch
    %12 = sbr.rel (%p10) target = $region8
  $region5: #{music_transformer_forward.24} parent=0 // loop_body
    %s14 = ssub.s32 %s9, 1
    %s15 = ssub.s32 %s9, 2
    %s16 = sadd.s32 %s9, 1
    %s17 = ssub.s32 %s9, %s16
    %p18 = scmp.eq.s32.totalorder %s17, 0
    %s20 = sadd.s32 %s19, 1
    %s21 = scalar_select %p18, %s19, %s20
    %p24 = pneg %p18
    %p25 = scmp.eq.s32.totalorder %s9, 1
    %p26 = por %p24, %p25
    %p27 = scmp.ne.s32.totalorder %s19, %s22
    %p28 = scmp.eq.s32.totalorder %s9, 0
    %p29 = por %p27, %p28
    %p30 = scmp.ne.s32.totalorder %s19, %s22
    %p31 = scmp.eq.s32.totalorder %s14, 1
    %p32 = por %p30, %p31
    %p33 = scmp.ne.s32.totalorder %s22, %s23
    %p34 = scmp.eq.s32.totalorder %s14, 0
    %p35 = por %p33, %p34
    %p36 = scmp.ne.s32.totalorder %s22, %s23
    %p37 = scmp.eq.s32.totalorder %s15, 1
    %p38 = por %p36, %p37
    %p40 = scmp.ne.s32.totalorder %s23, %s39
    %p41 = scmp.eq.s32.totalorder %s15, 0
    %p42 = por %p40, %p41
    %s43 = ssub.s32 %s9, %s16
    %p44 = scmp.eq.s32.totalorder %s43, 0
    %s46 = sadd.s32 %s45, 1
    %s47 = scalar_select %p44, %s45, %s46
    %p50 = pneg %p44
    %p51 = scmp.eq.s32.totalorder %s9, 1
    %p52 = por %p50, %p51
    %p53 = scmp.ne.s32.totalorder %s45, %s48
    %p54 = scmp.eq.s32.totalorder %s9, 0
    %p55 = por %p53, %p54
    %p56 = scmp.ne.s32.totalorder %s45, %s48
    %p57 = scmp.eq.s32.totalorder %s14, 1
    %p58 = por %p56, %p57
    %p59 = scmp.ne.s32.totalorder %s48, %s49
    %p60 = scmp.eq.s32.totalorder %s14, 0
    %p61 = por %p59, %p60
    %p62 = scmp.ne.s32.totalorder %s48, %s49
    %p63 = scmp.eq.s32.totalorder %s15, 1
    %p64 = por %p62, %p63
    %p66 = scmp.ne.s32.totalorder %s49, %s65
    %p67 = scmp.eq.s32.totalorder %s15, 0
    %p68 = por %p66, %p67
    %s69 = ssub.s32 %s9, %s16
    %p70 = scmp.eq.s32.totalorder %s69, 0
    %s72 = sadd.s32 %s71, 1
    %s73 = scalar_select %p70, %s71, %s72
    %p76 = pneg %p70
    %p77 = scmp.eq.s32.totalorder %s9, 1
    %p78 = por %p76, %p77
    %p79 = scmp.ne.s32.totalorder %s71, %s74
    %p80 = scmp.eq.s32.totalorder %s9, 0
    %p81 = por %p79, %p80
    %p82 = scmp.ne.s32.totalorder %s71, %s74
    %p83 = scmp.eq.s32.totalorder %s14, 1
    %p84 = por %p82, %p83
    %p85 = scmp.ne.s32.totalorder %s74, %s75
    %p86 = scmp.eq.s32.totalorder %s14, 0
    %p87 = por %p85, %p86
    %p88 = scmp.ne.s32.totalorder %s74, %s75
    %p89 = scmp.eq.s32.totalorder %s15, 1
    %p90 = por %p88, %p89
    %p92 = scmp.ne.s32.totalorder %s75, %s91
    %p93 = scmp.eq.s32.totalorder %s15, 0
    %p94 = por %p92, %p93
    %s95 = ssub.s32 %s9, %s16
    %p96 = scmp.eq.s32.totalorder %s95, 0
    %s98 = sadd.s32 %s97, 1
    %s99 = scalar_select %p96, %s97, %s98
    %p102 = pneg %p96
    %p103 = scmp.eq.s32.totalorder %s9, 1
    %p104 = por %p102, %p103
    %p105 = scmp.ne.s32.totalorder %s97, %s100
    %p106 = scmp.eq.s32.totalorder %s9, 0
    %p107 = por %p105, %p106
    %p108 = scmp.ne.s32.totalorder %s97, %s100
    %p109 = scmp.eq.s32.totalorder %s14, 1
    %p110 = por %p108, %p109
    %p111 = scmp.ne.s32.totalorder %s100, %s101
    %p112 = scmp.eq.s32.totalorder %s14, 0
    %p113 = por %p111, %p112
    %p114 = scmp.ne.s32.totalorder %s100, %s101
    %p115 = scmp.eq.s32.totalorder %s15, 1
    %p116 = por %p114, %p115
    %p118 = scmp.ne.s32.totalorder %s101, %s117
    %p119 = scmp.eq.s32.totalorder %s15, 0
    %p120 = por %p118, %p119
    %p121 = scmp.le.s32.totalorder 1, %s9
    %p122 = scmp.lt.s32.totalorder %s9, 3
    %p123 = pnand %p121, %p122
    %p124 = pneg %p123
    // Predicated region
    $region9: #{music_transformer_forward.24} parent=5 // pred_check
      _
    $region10: #{music_transformer_forward.24} parent=5 // pred_check_branch
      %126 = sbr.rel (%p123) target = $region12
    $region11: #{music_transformer_forward.24} parent=5 // pred_region
      %s127 = ssub.s32 %s9, 1
    $region12: #{music_transformer_forward.24} parent=5 // pred_fallthru
      _
    %p128 = scmp.lt.s32.totalorder %s9, 2
    // Predicated region
    $region13: #{music_transformer_forward.24} parent=5 // pred_check
      %p129 = pneg %p128
    $region14: #{music_transformer_forward.24} parent=5 // pred_check_branch
      %131 = sbr.rel (%p129) target = $region16
    $region15: #{music_transformer_forward.24} parent=5 // pred_region
      // Predicated region
      $region17: #{music_transformer_forward.24} parent=15 // pred_check
        %p132 = pneg %p29
      $region18: #{music_transformer_forward.24} parent=15 // pred_check_branch
        %134 = sbr.rel (%p132) target = $region20
      $region19: #{music_transformer_forward.24} parent=15 // pred_region
        %p135 = scmp.lt.s32.totalorder %s9, 1
        %s136 = scalar_select %p135, %s9, 1
        %s137 = smul.addr %s136, 8
        %s138 = smul.addr %s137, 4
        %s139 = scalar_lea.vmem %s0, %s138
      $region20: #{music_transformer_forward.24} parent=15 // pred_fallthru
        _
      // Predicated region
      $region21: #{music_transformer_forward.24} parent=15 // pred_check
        %p140 = pneg %p55
      $region22: #{music_transformer_forward.24} parent=15 // pred_check_branch
        %142 = sbr.rel (%p140) target = $region24
      $region23: #{music_transformer_forward.24} parent=15 // pred_region
        %p143 = scmp.lt.s32.totalorder %s9, 1
        %s144 = scalar_select %p143, %s9, 1
        %s145 = smul.addr %s144, 8
        %s146 = smul.addr %s145, 4
        %s147 = scalar_lea.vmem %s1, %s146
      $region24: #{music_transformer_forward.24} parent=15 // pred_fallthru
        _
      // Predicated region
      $region25: #{music_transformer_forward.24} parent=15 // pred_check
        %p148 = pneg %p81
      $region26: #{music_transformer_forward.24} parent=15 // pred_check_branch
        %150 = sbr.rel (%p148) target = $region28
      $region27: #{music_transformer_forward.24} parent=15 // pred_region
        %p151 = scmp.lt.s32.totalorder %s9, 1
        %s152 = scalar_select %p151, %s9, 1
        %s153 = smul.addr %s152, 8
        %s154 = smul.addr %s153, 4
        %s155 = scalar_lea.vmem %s2, %s154
      $region28: #{music_transformer_forward.24} parent=15 // pred_fallthru
        _
    $region16: #{music_transformer_forward.24} parent=5 // pred_fallthru
      _
    %p156 = scmp.le.s32.totalorder 1, %s9
    %p157 = scmp.lt.s32.totalorder %s9, 3
    %p158 = pnand %p156, %p157
    %p159 = pneg %p158
    // Predicated region
    $region29: #{music_transformer_forward.24} parent=5 // pred_check
      _
    $region30: #{music_transformer_forward.24} parent=5 // pred_check_branch
      %161 = sbr.rel (%p158) target = $region32
    $region31: #{music_transformer_forward.24} parent=5 // pred_region
      %s162 = ssub.s32 %s9, 1
      %p163 = scmp.lt.s32.totalorder %s14, 1
      %s164 = scalar_select %p163, %s14, 1
      %s165 = smul.addr %s164, 8
      %s166 = smul.addr %s165, 4
      %s167 = scalar_lea.vmem %s0, %s166
      %p168 = pneg %p35
      %p169 = pneg %p32
      %p170 = scmp.lt.s32.totalorder %s14, 1
      %s171 = scalar_select %p170, %s14, 1
      %s172 = smul.addr %s171, 8
      %s173 = smul.addr %s172, 4
      %s174 = scalar_lea.vmem %s1, %s173
      %p175 = pneg %p61
      %p176 = pneg %p58
      %p177 = scmp.lt.s32.totalorder %s14, 1
      %s178 = scalar_select %p177, %s14, 1
      %s179 = smul.addr %s178, 8
      %s180 = smul.addr %s179, 4
      %s181 = scalar_lea.vmem %s2, %s180
      %p182 = pneg %p87
      %p183 = pneg %p84
      %p184 = pneg %p113
      %p185 = pneg %p110
      %p186 = scmp.lt.s32.totalorder %s14, 1
      %s187 = scalar_select %p186, %s14, 1
      %s188 = smul.addr %s187, 8
      %s189 = smul.addr %s188, 4
      %s190 = scalar_lea.vmem %s3, %s189
      %p191 = scmp.lt.s32.totalorder %s14, 1
      %s192 = scalar_select %p191, %s14, 1
      %s193 = smul.addr %s192, 8
      %s194 = smul.addr %s193, 4
      %s195 = scalar_lea.vmem %s0, %s194
      %p196 = scmp.lt.s32.totalorder %s14, 1
      %s197 = scalar_select %p196, %s14, 1
      %s198 = smul.addr %s197, 8
      %s199 = smul.addr %s198, 4
      %s200 = scalar_lea.vmem %s1, %s199
      %p201 = scmp.lt.s32.totalorder %s14, 1
      %s202 = scalar_select %p201, %s14, 1
      %s203 = smul.addr %s202, 8
      %s204 = smul.addr %s203, 4
      %s205 = scalar_lea.vmem %s2, %s204
      %p206 = scmp.lt.s32.totalorder %s14, 1
      %s207 = scalar_select %p206, %s14, 1
      %s208 = smul.addr %s207, 8
      %s209 = smul.addr %s208, 4
      %s210 = scalar_lea.vmem %s3, %s209
      %v211 = vld [vmem:[%s195] sm:$0xf]
      %v212 = vld [vmem:[%s195 + $0x4] sm:$0xf]
      %v213 = vld [vmem:[%s195 + $0x8] sm:$0xf]
      %v214 = vld [vmem:[%s195 + $0xc] sm:$0xf]
      %v215 = vld [vmem:[%s195 + $0x10] sm:$0xf]
      %v216 = vld [vmem:[%s195 + $0x14] sm:$0xf]
      %v217 = vld [vmem:[%s195 + $0x18] sm:$0xf]
      %v218 = vld [vmem:[%s195 + $0x1c] sm:$0xf]
      %v219 = vld [vmem:[%s200] sm:$0xf]
      %v220 = vld [vmem:[%s200 + $0x4] sm:$0xf]
      %v221 = vld [vmem:[%s200 + $0x8] sm:$0xf]
      %v222 = vld [vmem:[%s200 + $0xc] sm:$0xf]
      %v223 = vld [vmem:[%s200 + $0x10] sm:$0xf]
      %v224 = vld [vmem:[%s200 + $0x14] sm:$0xf]
      %v225 = vld [vmem:[%s200 + $0x18] sm:$0xf]
      %v226 = vld [vmem:[%s200 + $0x1c] sm:$0xf]
      %v227 = vld [vmem:[%s205] sm:$0xf]
      %v228 = vld [vmem:[%s205 + $0x4] sm:$0xf]
      %v229 = vld [vmem:[%s205 + $0x8] sm:$0xf]
      %v230 = vld [vmem:[%s205 + $0xc] sm:$0xf]
      %v231 = vld [vmem:[%s205 + $0x10] sm:$0xf]
      %v232 = vld [vmem:[%s205 + $0x14] sm:$0xf]
      %v233 = vld [vmem:[%s205 + $0x18] sm:$0xf]
      %v234 = vld [vmem:[%s205 + $0x1c] sm:$0xf]
      %v235 = vcombine.low %v211, %v213
      %v237 = vunpack.c.l.s4 1983009808
      %v238 = vunpack.c.0.s8 %v237
      %v239 = vlaneseq
      %v240 = vshrl.u32 %v239, 7
      %v241 = vsub.s32 %v238, %v240
      %v242 = vrot.slane %v235, %v241
      %v243 = vcombine.low %v212, %v214
      %v245 = vunpack.c.l.s4 1983009808
      %v246 = vunpack.c.0.s8 %v245
      %v247 = vlaneseq
      %v248 = vshrl.u32 %v247, 7
      %v249 = vsub.s32 %v246, %v248
      %v250 = vrot.slane %v243, %v249
      %v251 = vcombine.low %v215, %v217
      %v253 = vunpack.c.l.s4 1983009808
      %v254 = vunpack.c.0.s8 %v253
      %v255 = vlaneseq
      %v256 = vshrl.u32 %v255, 7
      %v257 = vsub.s32 %v254, %v256
      %v258 = vrot.slane %v251, %v257
      %v259 = vcombine.low %v216, %v218
      %v261 = vunpack.c.l.s4 1983009808
      %v262 = vunpack.c.0.s8 %v261
      %v263 = vlaneseq
      %v264 = vshrl.u32 %v263, 7
      %v265 = vsub.s32 %v262, %v264
      %v266 = vrot.slane %v259, %v265
      %v267 = vcombine.low %v242, %v250
      %v268 = vcombine.high %v242, %v250
      %v270 = vunpack.c.l.s4 1934713408
      %v271 = vunpack.c.0.s8 %v270
      %v272 = vlaneseq
      %v273 = vshrl.u32 %v272, 7
      %v274 = vsub.s32 %v271, %v273
      %v275 = vrot.slane %v267, %v274
      %v277 = vunpack.c.l.s4 1934713408
      %v278 = vunpack.c.0.s8 %v277
      %v279 = vlaneseq
      %v280 = vshrl.u32 %v279, 7
      %v281 = vsub.s32 %v278, %v280
      %v282 = vrot.slane %v268, %v281
      %v283 = vcombine.low %v258, %v266
      %v284 = vcombine.high %v258, %v266
      %v286 = vunpack.c.l.s4 1934713408
      %v287 = vunpack.c.0.s8 %v286
      %v288 = vlaneseq
      %v289 = vshrl.u32 %v288, 7
      %v290 = vsub.s32 %v287, %v289
      %v291 = vrot.slane %v283, %v290
      %v293 = vunpack.c.l.s4 1934713408
      %v294 = vunpack.c.0.s8 %v293
      %v295 = vlaneseq
      %v296 = vshrl.u32 %v295, 7
      %v297 = vsub.s32 %v294, %v296
      %v298 = vrot.slane %v284, %v297
      %v299 = vcombine.low %v275, %v291
      %v300 = vcombine.high %v275, %v291
      %v301 = vcombine.low %v282, %v298
      %v302 = vcombine.high %v282, %v298
      %303 = vxpose.xlu0.b32.start [1/16] %v219, 128
      %304 = vxpose.xlu0.b32.cont [2/16] 0.0, 128
      %305 = vxpose.xlu0.b32.cont [3/16] 0.0, 128
      %306 = vxpose.xlu0.b32.cont [4/16] 0.0, 128
      %307 = vxpose.xlu0.b32.cont [5/16] 0.0, 128
      %308 = vxpose.xlu0.b32.cont [6/16] 0.0, 128
      %309 = vxpose.xlu0.b32.cont [7/16] 0.0, 128
      %310 = vxpose.xlu0.b32.cont [8/16] 0.0, 128
      %311 = vxpose.xlu0.b32.cont [9/16] 0.0, 128
      %312 = vxpose.xlu0.b32.cont [10/16] 0.0, 128
      %313 = vxpose.xlu0.b32.cont [11/16] 0.0, 128
      %314 = vxpose.xlu0.b32.cont [12/16] 0.0, 128
      %315 = vxpose.xlu0.b32.cont [13/16] 0.0, 128
      %316 = vxpose.xlu0.b32.cont [14/16] 0.0, 128
      %317 = vxpose.xlu0.b32.cont [15/16] 0.0, 128
      %318 = vxpose.xlu0.b32.end [16/16] 0.0, 128
      %v319 = vpop.trf.xlu0
      %v320 = vpop.trf.xlu0
      %v321 = vpop.trf.xlu0
      %v322 = vpop.trf.xlu0
      %v323 = vpop.trf.xlu0
      %v324 = vpop.trf.xlu0
      %v325 = vpop.trf.xlu0
      %v326 = vpop.trf.xlu0
      %v327 = vpop.trf.xlu0
      %v328 = vpop.trf.xlu0
      %v329 = vpop.trf.xlu0
      %v330 = vpop.trf.xlu0
      %v331 = vpop.trf.xlu0
      %v332 = vpop.trf.xlu0
      %v333 = vpop.trf.xlu0
      %v334 = vpop.trf.xlu0
      %335 = vxpose.xlu0.b32.start [1/16] %v220, 128
      %336 = vxpose.xlu0.b32.cont [2/16] 0.0, 128
      %337 = vxpose.xlu0.b32.cont [3/16] 0.0, 128
      %338 = vxpose.xlu0.b32.cont [4/16] 0.0, 128
      %339 = vxpose.xlu0.b32.cont [5/16] 0.0, 128
      %340 = vxpose.xlu0.b32.cont [6/16] 0.0, 128
      %341 = vxpose.xlu0.b32.cont [7/16] 0.0, 128
      %342 = vxpose.xlu0.b32.cont [8/16] 0.0, 128
      %343 = vxpose.xlu0.b32.cont [9/16] 0.0, 128
      %344 = vxpose.xlu0.b32.cont [10/16] 0.0, 128
      %345 = vxpose.xlu0.b32.cont [11/16] 0.0, 128
      %346 = vxpose.xlu0.b32.cont [12/16] 0.0, 128
      %347 = vxpose.xlu0.b32.cont [13/16] 0.0, 128
      %348 = vxpose.xlu0.b32.cont [14/16] 0.0, 128
      %349 = vxpose.xlu0.b32.cont [15/16] 0.0, 128
      %350 = vxpose.xlu0.b32.end [16/16] 0.0, 128
      %v351 = vpop.trf.xlu0
      %v352 = vpop.trf.xlu0
      %v353 = vpop.trf.xlu0
      %v354 = vpop.trf.xlu0
      %v355 = vpop.trf.xlu0
      %v356 = vpop.trf.xlu0
      %v357 = vpop.trf.xlu0
      %v358 = vpop.trf.xlu0
      %v359 = vpop.trf.xlu0
      %v360 = vpop.trf.xlu0
      %v361 = vpop.trf.xlu0
      %v362 = vpop.trf.xlu0
      %v363 = vpop.trf.xlu0
      %v364 = vpop.trf.xlu0
      %v365 = vpop.trf.xlu0
      %v366 = vpop.trf.xlu0
      %367 = vxpose.xlu0.b32.start [1/16] %v221, 128
      %368 = vxpose.xlu0.b32.cont [2/16] 0.0, 128
      %369 = vxpose.xlu0.b32.cont [3/16] 0.0, 128
      %370 = vxpose.xlu0.b32.cont [4/16] 0.0, 128
      %371 = vxpose.xlu0.b32.cont [5/16] 0.0, 128
      %372 = vxpose.xlu0.b32.cont [6/16] 0.0, 128
      %373 = vxpose.xlu0.b32.cont [7/16] 0.0, 128
      %374 = vxpose.xlu0.b32.cont [8/16] 0.0, 128
      %375 = vxpose.xlu0.b32.cont [9/16] 0.0, 128
      %376 = vxpose.xlu0.b32.cont [10/16] 0.0, 128
      %377 = vxpose.xlu0.b32.cont [11/16] 0.0, 128
      %378 = vxpose.xlu0.b32.cont [12/16] 0.0, 128
      %379 = vxpose.xlu0.b32.cont [13/16] 0.0, 128
      %380 = vxpose.xlu0.b32.cont [14/16] 0.0, 128
      %381 = vxpose.xlu0.b32.cont [15/16] 0.0, 128
      %382 = vxpose.xlu0.b32.end [16/16] 0.0, 128
      %v383 = vpop.trf.xlu0
      %v384 = vpop.trf.xlu0
      %v385 = vpop.trf.xlu0
      %v386 = vpop.trf.xlu0
      %v387 = vpop.trf.xlu0
      %v388 = vpop.trf.xlu0
      %v389 = vpop.trf.xlu0
      %v390 = vpop.trf.xlu0
      %v391 = vpop.trf.xlu0
      %v392 = vpop.trf.xlu0
      %v393 = vpop.trf.xlu0
      %v394 = vpop.trf.xlu0
      %v395 = vpop.trf.xlu0
      %v396 = vpop.trf.xlu0
      %v397 = vpop.trf.xlu0
      %v398 = vpop.trf.xlu0
      %399 = vxpose.xlu0.b32.start [1/16] %v222, 128
      %400 = vxpose.xlu0.b32.cont [2/16] 0.0, 128
      %401 = vxpose.xlu0.b32.cont [3/16] 0.0, 128
      %402 = vxpose.xlu0.b32.cont [4/16] 0.0, 128
      %403 = vxpose.xlu0.b32.cont [5/16] 0.0, 128
      %404 = vxpose.xlu0.b32.cont [6/16] 0.0, 128
      %405 = vxpose.xlu0.b32.cont [7/16] 0.0, 128
      %406 = vxpose.xlu0.b32.cont [8/16] 0.0, 128
      %407 = vxpose.xlu0.b32.cont [9/16] 0.0, 128
      %408 = vxpose.xlu0.b32.cont [10/16] 0.0, 128
      %409 = vxpose.xlu0.b32.cont [11/16] 0.0, 128
      %410 = vxpose.xlu0.b32.cont [12/16] 0.0, 128
      %411 = vxpose.xlu0.b32.cont [13/16] 0.0, 128
      %412 = vxpose.xlu0.b32.cont [14/16] 0.0, 128
      %413 = vxpose.xlu0.b32.cont [15/16] 0.0, 128
      %414 = vxpose.xlu0.b32.end [16/16] 0.0, 128
      %v415 = vpop.trf.xlu0
      %v416 = vpop.trf.xlu0
      %v417 = vpop.trf.xlu0
      %v418 = vpop.trf.xlu0
      %v419 = vpop.trf.xlu0
      %v420 = vpop.trf.xlu0
      %v421 = vpop.trf.xlu0
      %v422 = vpop.trf.xlu0
      %v423 = vpop.trf.xlu0
      %v424 = vpop.trf.xlu0
      %v425 = vpop.trf.xlu0
      %v426 = vpop.trf.xlu0
      %v427 = vpop.trf.xlu0
      %v428 = vpop.trf.xlu0
      %v429 = vpop.trf.xlu0
      %v430 = vpop.trf.xlu0
      %431 = vxpose.xlu0.b32.start [1/16] %v223, 128
      %432 = vxpose.xlu0.b32.cont [2/16] 0.0, 128
      %433 = vxpose.xlu0.b32.cont [3/16] 0.0, 128
      %434 = vxpose.xlu0.b32.cont [4/16] 0.0, 128
      %435 = vxpose.xlu0.b32.cont [5/16] 0.0, 128
      %436 = vxpose.xlu0.b32.cont [6/16] 0.0, 128
      %437 = vxpose.xlu0.b32.cont [7/16] 0.0, 128
      %438 = vxpose.xlu0.b32.cont [8/16] 0.0, 128
      %439 = vxpose.xlu0.b32.cont [9/16] 0.0, 128
      %440 = vxpose.xlu0.b32.cont [10/16] 0.0, 128
      %441 = vxpose.xlu0.b32.cont [11/16] 0.0, 128
      %442 = vxpose.xlu0.b32.cont [12/16] 0.0, 128
      %443 = vxpose.xlu0.b32.cont [13/16] 0.0, 128
      %444 = vxpose.xlu0.b32.cont [14/16] 0.0, 128
      %445 = vxpose.xlu0.b32.cont [15/16] 0.0, 128
      %446 = vxpose.xlu0.b32.end [16/16] 0.0, 128
      %v447 = vpop.trf.xlu0
      %v448 = vpop.trf.xlu0
      %v449 = vpop.trf.xlu0
      %v450 = vpop.trf.xlu0
      %v451 = vpop.trf.xlu0
      %v452 = vpop.trf.xlu0
      %v453 = vpop.trf.xlu0
      %v454 = vpop.trf.xlu0
      %v455 = vpop.trf.xlu0
      %v456 = vpop.trf.xlu0
      %v457 = vpop.trf.xlu0
      %v458 = vpop.trf.xlu0
      %v459 = vpop.trf.xlu0
      %v460 = vpop.trf.xlu0
      %v461 = vpop.trf.xlu0
      %v462 = vpop.trf.xlu0
      %463 = vxpose.xlu0.b32.start [1/16] %v224, 128
      %464 = vxpose.xlu0.b32.cont [2/16] 0.0, 128
      %465 = vxpose.xlu0.b32.cont [3/16] 0.0, 128
      %466 = vxpose.xlu0.b32.cont [4/16] 0.0, 128
      %467 = vxpose.xlu0.b32.cont [5/16] 0.0, 128
      %468 = vxpose.xlu0.b32.cont [6/16] 0.0, 128
      %469 = vxpose.xlu0.b32.cont [7/16] 0.0, 128
      %470 = vxpose.xlu0.b32.cont [8/16] 0.0, 128
      %471 = vxpose.xlu0.b32.cont [9/16] 0.0, 128
      %472 = vxpose.xlu0.b32.cont [10/16] 0.0, 128
      %473 = vxpose.xlu0.b32.cont [11/16] 0.0, 128
      %474 = vxpose.xlu0.b32.cont [12/16] 0.0, 128
      %475 = vxpose.xlu0.b32.cont [13/16] 0.0, 128
      %476 = vxpose.xlu0.b32.cont [14/16] 0.0, 128
      %477 = vxpose.xlu0.b32.cont [15/16] 0.0, 128
      %478 = vxpose.xlu0.b32.end [16/16] 0.0, 128
      %v479 = vpop.trf.xlu0
      %v480 = vpop.trf.xlu0
      %v481 = vpop.trf.xlu0
      %v482 = vpop.trf.xlu0
      %v483 = vpop.trf.xlu0
      %v484 = vpop.trf.xlu0
      %v485 = vpop.trf.xlu0
      %v486 = vpop.trf.xlu0
      %v487 = vpop.trf.xlu0
      %v488 = vpop.trf.xlu0
      %v489 = vpop.trf.xlu0
      %v490 = vpop.trf.xlu0
      %v491 = vpop.trf.xlu0
      %v492 = vpop.trf.xlu0
      %v493 = vpop.trf.xlu0
      %v494 = vpop.trf.xlu0
      %495 = vxpose.xlu0.b32.start [1/16] %v225, 128
      %496 = vxpose.xlu0.b32.cont [2/16] 0.0, 128
      %497 = vxpose.xlu0.b32.cont [3/16] 0.0, 128
      %498 = vxpose.xlu0.b32.cont [4/16] 0.0, 128
      %499 = vxpose.xlu0.b32.cont [5/16] 0.0, 128
      %500 = vxpose.xlu0.b32.cont [6/16] 0.0, 128
      %501 = vxpose.xlu0.b32.cont [7/16] 0.0, 128
      %502 = vxpose.xlu0.b32.cont [8/16] 0.0, 128
      %503 = vxpose.xlu0.b32.cont [9/16] 0.0, 128
      %504 = vxpose.xlu0.b32.cont [10/16] 0.0, 128
      %505 = vxpose.xlu0.b32.cont [11/16] 0.0, 128
      %506 = vxpose.xlu0.b32.cont [12/16] 0.0, 128
      %507 = vxpose.xlu0.b32.cont [13/16] 0.0, 128
      %508 = vxpose.xlu0.b32.cont [14/16] 0.0, 128
      %509 = vxpose.xlu0.b32.cont [15/16] 0.0, 128
      %510 = vxpose.xlu0.b32.end [16/16] 0.0, 128
      %v511 = vpop.trf.xlu0
      %v512 = vpop.trf.xlu0
      %v513 = vpop.trf.xlu0
      %v514 = vpop.trf.xlu0
      %v515 = vpop.trf.xlu0
      %v516 = vpop.trf.xlu0
      %v517 = vpop.trf.xlu0
      %v518 = vpop.trf.xlu0
      %v519 = vpop.trf.xlu0
      %v520 = vpop.trf.xlu0
      %v521 = vpop.trf.xlu0
      %v522 = vpop.trf.xlu0
      %v523 = vpop.trf.xlu0
      %v524 = vpop.trf.xlu0
      %v525 = vpop.trf.xlu0
      %v526 = vpop.trf.xlu0
      %527 = vxpose.xlu0.b32.start [1/16] %v226, 128
      %528 = vxpose.xlu0.b32.cont [2/16] 0.0, 128
      %529 = vxpose.xlu0.b32.cont [3/16] 0.0, 128
      %530 = vxpose.xlu0.b32.cont [4/16] 0.0, 128
      %531 = vxpose.xlu0.b32.cont [5/16] 0.0, 128
      %532 = vxpose.xlu0.b32.cont [6/16] 0.0, 128
      %533 = vxpose.xlu0.b32.cont [7/16] 0.0, 128
      %534 = vxpose.xlu0.b32.cont [8/16] 0.0, 128
      %535 = vxpose.xlu0.b32.cont [9/16] 0.0, 128
      %536 = vxpose.xlu0.b32.cont [10/16] 0.0, 128
      %537 = vxpose.xlu0.b32.cont [11/16] 0.0, 128
      %538 = vxpose.xlu0.b32.cont [12/16] 0.0, 128
      %539 = vxpose.xlu0.b32.cont [13/16] 0.0, 128
      %540 = vxpose.xlu0.b32.cont [14/16] 0.0, 128
      %541 = vxpose.xlu0.b32.cont [15/16] 0.0, 128
      %542 = vxpose.xlu0.b32.end [16/16] 0.0, 128
      %v543 = vpop.trf.xlu0
      %v544 = vpop.trf.xlu0
      %v545 = vpop.trf.xlu0
      %v546 = vpop.trf.xlu0
      %v547 = vpop.trf.xlu0
      %v548 = vpop.trf.xlu0
      %v549 = vpop.trf.xlu0
      %v550 = vpop.trf.xlu0
      %v551 = vpop.trf.xlu0
      %v552 = vpop.trf.xlu0
      %v553 = vpop.trf.xlu0
      %v554 = vpop.trf.xlu0
      %v555 = vpop.trf.xlu0
      %v556 = vpop.trf.xlu0
      %v557 = vpop.trf.xlu0
      %v558 = vpop.trf.xlu0
      %v559 = vcombine.low %v319, %v383
      %v560 = vcombine.high %v319, %v383
      %v562 = vunpack.c.l.s4 1983009808
      %v563 = vunpack.c.0.s8 %v562
      %v564 = vlaneseq
      %v565 = vshrl.u32 %v564, 7
      %v566 = vsub.s32 %v563, %v565
      %v567 = vrot.slane %v559, %v566
      %v569 = vunpack.c.l.s4 1983009808
      %v570 = vunpack.c.0.s8 %v569
      %v571 = vlaneseq
      %v572 = vshrl.u32 %v571, 7
      %v573 = vsub.s32 %v570, %v572
      %v574 = vrot.slane %v560, %v573
      %v575 = vcombine.low %v351, %v415
      %v576 = vcombine.high %v351, %v415
      %v578 = vunpack.c.l.s4 1983009808
      %v579 = vunpack.c.0.s8 %v578
      %v580 = vlaneseq
      %v581 = vshrl.u32 %v580, 7
      %v582 = vsub.s32 %v579, %v581
      %v583 = vrot.slane %v575, %v582
      %v585 = vunpack.c.l.s4 1983009808
      %v586 = vunpack.c.0.s8 %v585
      %v587 = vlaneseq
      %v588 = vshrl.u32 %v587, 7
      %v589 = vsub.s32 %v586, %v588
      %v590 = vrot.slane %v576, %v589
      %v591 = vcombine.low %v447, %v511
      %v592 = vcombine.high %v447, %v511
      %v594 = vunpack.c.l.s4 1983009808
      %v595 = vunpack.c.0.s8 %v594
      %v596 = vlaneseq
      %v597 = vshrl.u32 %v596, 7
      %v598 = vsub.s32 %v595, %v597
      %v599 = vrot.slane %v591, %v598
      %v601 = vunpack.c.l.s4 1983009808
      %v602 = vunpack.c.0.s8 %v601
      %v603 = vlaneseq
      %v604 = vshrl.u32 %v603, 7
      %v605 = vsub.s32 %v602, %v604
      %v606 = vrot.slane %v592, %v605
      %v607 = vcombine.low %v479, %v543
      %v608 = vcombine.high %v479, %v543
      %v610 = vunpack.c.l.s4 1983009808
      %v611 = vunpack.c.0.s8 %v610
      %v612 = vlaneseq
      %v613 = vshrl.u32 %v612, 7
      %v614 = vsub.s32 %v611, %v613
      %v615 = vrot.slane %v607, %v614
      %v617 = vunpack.c.l.s4 1983009808
      %v618 = vunpack.c.0.s8 %v617
      %v619 = vlaneseq
      %v620 = vshrl.u32 %v619, 7
      %v621 = vsub.s32 %v618, %v620
      %v622 = vrot.slane %v608, %v621
      %v623 = vcombine.low %v567, %v583
      %v624 = vcombine.high %v567, %v583
      %v626 = vunpack.c.l.s4 1934713408
      %v627 = vunpack.c.0.s8 %v626
      %v628 = vlaneseq
      %v629 = vshrl.u32 %v628, 7
      %v630 = vsub.s32 %v627, %v629
      %v631 = vrot.slane %v623, %v630
      %v633 = vunpack.c.l.s4 1934713408
      %v634 = vunpack.c.0.s8 %v633
      %v635 = vlaneseq
      %v636 = vshrl.u32 %v635, 7
      %v637 = vsub.s32 %v634, %v636
      %v638 = vrot.slane %v624, %v637
      %v639 = vcombine.low %v574, %v590
      %v640 = vcombine.high %v574, %v590
      %v642 = vunpack.c.l.s4 1934713408
      %v643 = vunpack.c.0.s8 %v642
      %v644 = vlaneseq
      %v645 = vshrl.u32 %v644, 7
      %v646 = vsub.s32 %v643, %v645
      %v647 = vrot.slane %v639, %v646
      %v649 = vunpack.c.l.s4 1934713408
      %v650 = vunpack.c.0.s8 %v649
      %v651 = vlaneseq
      %v652 = vshrl.u32 %v651, 7
      %v653 = vsub.s32 %v650, %v652
      %v654 = vrot.slane %v640, %v653
      %v655 = vcombine.low %v599, %v615
      %v656 = vcombine.high %v599, %v615
      %v658 = vunpack.c.l.s4 1934713408
      %v659 = vunpack.c.0.s8 %v658
      %v660 = vlaneseq
      %v661 = vshrl.u32 %v660, 7
      %v662 = vsub.s32 %v659, %v661
      %v663 = vrot.slane %v655, %v662
      %v665 = vunpack.c.l.s4 1934713408
      %v666 = vunpack.c.0.s8 %v665
      %v667 = vlaneseq
      %v668 = vshrl.u32 %v667, 7
      %v669 = vsub.s32 %v666, %v668
      %v670 = vrot.slane %v656, %v669
      %v671 = vcombine.low %v606, %v622
      %v672 = vcombine.high %v606, %v622
      %v674 = vunpack.c.l.s4 1934713408
      %v675 = vunpack.c.0.s8 %v674
      %v676 = vlaneseq
      %v677 = vshrl.u32 %v676, 7
      %v678 = vsub.s32 %v675, %v677
      %v679 = vrot.slane %v671, %v678
      %v681 = vunpack.c.l.s4 1934713408
      %v682 = vunpack.c.0.s8 %v681
      %v683 = vlaneseq
      %v684 = vshrl.u32 %v683, 7
      %v685 = vsub.s32 %v682, %v684
      %v686 = vrot.slane %v672, %v685
      %v687 = vcombine.low %v631, %v663
      %v688 = vcombine.high %v631, %v663
      %v689 = vcombine.low %v638, %v670
      %v690 = vcombine.high %v638, %v670
      %v691 = vcombine.low %v647, %v679
      %v692 = vcombine.high %v647, %v679
      %v693 = vcombine.low %v654, %v686
      %v694 = vcombine.high %v654, %v686
      %695 = vxpose.xlu0.b32.start [1/16] %v687, 128
      %696 = vxpose.xlu0.b32.cont [2/16] 0.0, 128
      %697 = vxpose.xlu0.b32.cont [3/16] 0.0, 128
      %698 = vxpose.xlu0.b32.cont [4/16] 0.0, 128
      %699 = vxpose.xlu0.b32.cont [5/16] 0.0, 128
      %700 = vxpose.xlu0.b32.cont [6/16] 0.0, 128
      %701 = vxpose.xlu0.b32.cont [7/16] 0.0, 128
      %702 = vxpose.xlu0.b32.cont [8/16] 0.0, 128
      %703 = vxpose.xlu0.b32.cont [9/16] 0.0, 128
      %704 = vxpose.xlu0.b32.cont [10/16] 0.0, 128
      %705 = vxpose.xlu0.b32.cont [11/16] 0.0, 128
      %706 = vxpose.xlu0.b32.cont [12/16] 0.0, 128
      %707 = vxpose.xlu0.b32.cont [13/16] 0.0, 128
      %708 = vxpose.xlu0.b32.cont [14/16] 0.0, 128
      %709 = vxpose.xlu0.b32.cont [15/16] 0.0, 128
      %710 = vxpose.xlu0.b32.end [16/16] 0.0, 128
      %v711 = vpop.trf.xlu0
      %v712 = vpop.trf.xlu0
      %v713 = vpop.trf.xlu0
      %v714 = vpop.trf.xlu0
      %v715 = vpop.trf.xlu0
      %v716 = vpop.trf.xlu0
      %v717 = vpop.trf.xlu0
      %v718 = vpop.trf.xlu0
      %v719 = vpop.trf.xlu0
      %v720 = vpop.trf.xlu0
      %v721 = vpop.trf.xlu0
      %v722 = vpop.trf.xlu0
      %v723 = vpop.trf.xlu0
      %v724 = vpop.trf.xlu0
      %v725 = vpop.trf.xlu0
      %v726 = vpop.trf.xlu0
      %727 = vxpose.xlu0.b32.start [1/16] %v688, 128
      %728 = vxpose.xlu0.b32.cont [2/16] 0.0, 128
      %729 = vxpose.xlu0.b32.cont [3/16] 0.0, 128
      %730 = vxpose.xlu0.b32.cont [4/16] 0.0, 128
      %731 = vxpose.xlu0.b32.cont [5/16] 0.0, 128
      %732 = vxpose.xlu0.b32.cont [6/16] 0.0, 128
      %733 = vxpose.xlu0.b32.cont [7/16] 0.0, 128
      %734 = vxpose.xlu0.b32.cont [8/16] 0.0, 128
      %735 = vxpose.xlu0.b32.cont [9/16] 0.0, 128
      %736 = vxpose.xlu0.b32.cont [10/16] 0.0, 128
      %737 = vxpose.xlu0.b32.cont [11/16] 0.0, 128
      %738 = vxpose.xlu0.b32.cont [12/16] 0.0, 128
      %739 = vxpose.xlu0.b32.cont [13/16] 0.0, 128
      %740 = vxpose.xlu0.b32.cont [14/16] 0.0, 128
      %741 = vxpose.xlu0.b32.cont [15/16] 0.0, 128
      %742 = vxpose.xlu0.b32.end [16/16] 0.0, 128
      %v743 = vpop.trf.xlu0
      %v744 = vpop.trf.xlu0
      %v745 = vpop.trf.xlu0
      %v746 = vpop.trf.xlu0
      %v747 = vpop.trf.xlu0
      %v748 = vpop.trf.xlu0
      %v749 = vpop.trf.xlu0
      %v750 = vpop.trf.xlu0
      %v751 = vpop.trf.xlu0
      %v752 = vpop.trf.xlu0
      %v753 = vpop.trf.xlu0
      %v754 = vpop.trf.xlu0
      %v755 = vpop.trf.xlu0
      %v756 = vpop.trf.xlu0
      %v757 = vpop.trf.xlu0
      %v758 = vpop.trf.xlu0
      %759 = vxpose.xlu0.b32.start [1/16] %v689, 128
      %760 = vxpose.xlu0.b32.cont [2/16] 0.0, 128
      %761 = vxpose.xlu0.b32.cont [3/16] 0.0, 128
      %762 = vxpose.xlu0.b32.cont [4/16] 0.0, 128
      %763 = vxpose.xlu0.b32.cont [5/16] 0.0, 128
      %764 = vxpose.xlu0.b32.cont [6/16] 0.0, 128
      %765 = vxpose.xlu0.b32.cont [7/16] 0.0, 128
      %766 = vxpose.xlu0.b32.cont [8/16] 0.0, 128
      %767 = vxpose.xlu0.b32.cont [9/16] 0.0, 128
      %768 = vxpose.xlu0.b32.cont [10/16] 0.0, 128
      %769 = vxpose.xlu0.b32.cont [11/16] 0.0, 128
      %770 = vxpose.xlu0.b32.cont [12/16] 0.0, 128
      %771 = vxpose.xlu0.b32.cont [13/16] 0.0, 128
      %772 = vxpose.xlu0.b32.cont [14/16] 0.0, 128
      %773 = vxpose.xlu0.b32.cont [15/16] 0.0, 128
      %774 = vxpose.xlu0.b32.end [16/16] 0.0, 128
      %v775 = vpop.trf.xlu0
      %v776 = vpop.trf.xlu0
      %v777 = vpop.trf.xlu0
      %v778 = vpop.trf.xlu0
      %v779 = vpop.trf.xlu0
      %v780 = vpop.trf.xlu0
      %v781 = vpop.trf.xlu0
      %v782 = vpop.trf.xlu0
      %v783 = vpop.trf.xlu0
      %v784 = vpop.trf.xlu0
      %v785 = vpop.trf.xlu0
      %v786 = vpop.trf.xlu0
      %v787 = vpop.trf.xlu0
      %v788 = vpop.trf.xlu0
      %v789 = vpop.trf.xlu0
      %v790 = vpop.trf.xlu0
      %791 = vxpose.xlu0.b32.start [1/16] %v690, 128
      %792 = vxpose.xlu0.b32.cont [2/16] 0.0, 128
      %793 = vxpose.xlu0.b32.cont [3/16] 0.0, 128
      %794 = vxpose.xlu0.b32.cont [4/16] 0.0, 128
      %795 = vxpose.xlu0.b32.cont [5/16] 0.0, 128
      %796 = vxpose.xlu0.b32.cont [6/16] 0.0, 128
      %797 = vxpose.xlu0.b32.cont [7/16] 0.0, 128
      %798 = vxpose.xlu0.b32.cont [8/16] 0.0, 128
      %799 = vxpose.xlu0.b32.cont [9/16] 0.0, 128
      %800 = vxpose.xlu0.b32.cont [10/16] 0.0, 128
      %801 = vxpose.xlu0.b32.cont [11/16] 0.0, 128
      %802 = vxpose.xlu0.b32.cont [12/16] 0.0, 128
      %803 = vxpose.xlu0.b32.cont [13/16] 0.0, 128
      %804 = vxpose.xlu0.b32.cont [14/16] 0.0, 128
      %805 = vxpose.xlu0.b32.cont [15/16] 0.0, 128
      %806 = vxpose.xlu0.b32.end [16/16] 0.0, 128
      %v807 = vpop.trf.xlu0
      %v808 = vpop.trf.xlu0
      %v809 = vpop.trf.xlu0
      %v810 = vpop.trf.xlu0
      %v811 = vpop.trf.xlu0
      %v812 = vpop.trf.xlu0
      %v813 = vpop.trf.xlu0
      %v814 = vpop.trf.xlu0
      %v815 = vpop.trf.xlu0
      %v816 = vpop.trf.xlu0
      %v817 = vpop.trf.xlu0
      %v818 = vpop.trf.xlu0
      %v819 = vpop.trf.xlu0
      %v820 = vpop.trf.xlu0
      %v821 = vpop.trf.xlu0
      %v822 = vpop.trf.xlu0
      %823 = vxpose.xlu0.b32.start [1/16] %v691, 128
      %824 = vxpose.xlu0.b32.cont [2/16] 0.0, 128
      %825 = vxpose.xlu0.b32.cont [3/16] 0.0, 128
      %826 = vxpose.xlu0.b32.cont [4/16] 0.0, 128
      %827 = vxpose.xlu0.b32.cont [5/16] 0.0, 128
      %828 = vxpose.xlu0.b32.cont [6/16] 0.0, 128
      %829 = vxpose.xlu0.b32.cont [7/16] 0.0, 128
      %830 = vxpose.xlu0.b32.cont [8/16] 0.0, 128
      %831 = vxpose.xlu0.b32.cont [9/16] 0.0, 128
      %832 = vxpose.xlu0.b32.cont [10/16] 0.0, 128
      %833 = vxpose.xlu0.b32.cont [11/16] 0.0, 128
      %834 = vxpose.xlu0.b32.cont [12/16] 0.0, 128
      %835 = vxpose.xlu0.b32.cont [13/16] 0.0, 128
      %836 = vxpose.xlu0.b32.cont [14/16] 0.0, 128
      %837 = vxpose.xlu0.b32.cont [15/16] 0.0, 128
      %838 = vxpose.xlu0.b32.end [16/16] 0.0, 128
      %v839 = vpop.trf.xlu0
      %v840 = vpop.trf.xlu0
      %v841 = vpop.trf.xlu0
      %v842 = vpop.trf.xlu0
      %v843 = vpop.trf.xlu0
      %v844 = vpop.trf.xlu0
      %v845 = vpop.trf.xlu0
      %v846 = vpop.trf.xlu0
      %v847 = vpop.trf.xlu0
      %v848 = vpop.trf.xlu0
      %v849 = vpop.trf.xlu0
      %v850 = vpop.trf.xlu0
      %v851 = vpop.trf.xlu0
      %v852 = vpop.trf.xlu0
      %v853 = vpop.trf.xlu0
      %v854 = vpop.trf.xlu0
      %855 = vxpose.xlu0.b32.start [1/16] %v692, 128
      %856 = vxpose.xlu0.b32.cont [2/16] 0.0, 128
      %857 = vxpose.xlu0.b32.cont [3/16] 0.0, 128
      %858 = vxpose.xlu0.b32.cont [4/16] 0.0, 128
      %859 = vxpose.xlu0.b32.cont [5/16] 0.0, 128
      %860 = vxpose.xlu0.b32.cont [6/16] 0.0, 128
      %861 = vxpose.xlu0.b32.cont [7/16] 0.0, 128
      %862 = vxpose.xlu0.b32.cont [8/16] 0.0, 128
      %863 = vxpose.xlu0.b32.cont [9/16] 0.0, 128
      %864 = vxpose.xlu0.b32.cont [10/16] 0.0, 128
      %865 = vxpose.xlu0.b32.cont [11/16] 0.0, 128
      %866 = vxpose.xlu0.b32.cont [12/16] 0.0, 128
      %867 = vxpose.xlu0.b32.cont [13/16] 0.0, 128
      %868 = vxpose.xlu0.b32.cont [14/16] 0.0, 128
      %869 = vxpose.xlu0.b32.cont [15/16] 0.0, 128
      %870 = vxpose.xlu0.b32.end [16/16] 0.0, 128
      %v871 = vpop.trf.xlu0
      %v872 = vpop.trf.xlu0
      %v873 = vpop.trf.xlu0
      %v874 = vpop.trf.xlu0
      %v875 = vpop.trf.xlu0
      %v876 = vpop.trf.xlu0
      %v877 = vpop.trf.xlu0
      %v878 = vpop.trf.xlu0
      %v879 = vpop.trf.xlu0
      %v880 = vpop.trf.xlu0
      %v881 = vpop.trf.xlu0
      %v882 = vpop.trf.xlu0
      %v883 = vpop.trf.xlu0
      %v884 = vpop.trf.xlu0
      %v885 = vpop.trf.xlu0
      %v886 = vpop.trf.xlu0
      %887 = vxpose.xlu0.b32.start [1/16] %v693, 128
      %888 = vxpose.xlu0.b32.cont [2/16] 0.0, 128
      %889 = vxpose.xlu0.b32.cont [3/16] 0.0, 128
      %890 = vxpose.xlu0.b32.cont [4/16] 0.0, 128
      %891 = vxpose.xlu0.b32.cont [5/16] 0.0, 128
      %892 = vxpose.xlu0.b32.cont [6/16] 0.0, 128
      %893 = vxpose.xlu0.b32.cont [7/16] 0.0, 128
      %894 = vxpose.xlu0.b32.cont [8/16] 0.0, 128
      %895 = vxpose.xlu0.b32.cont [9/16] 0.0, 128
      %896 = vxpose.xlu0.b32.cont [10/16] 0.0, 128
      %897 = vxpose.xlu0.b32.cont [11/16] 0.0, 128
      %898 = vxpose.xlu0.b32.cont [12/16] 0.0, 128
      %899 = vxpose.xlu0.b32.cont [13/16] 0.0, 128
      %900 = vxpose.xlu0.b32.cont [14/16] 0.0, 128
      %901 = vxpose.xlu0.b32.cont [15/16] 0.0, 128
      %902 = vxpose.xlu0.b32.end [16/16] 0.0, 128
      %v903 = vpop.trf.xlu0
      %v904 = vpop.trf.xlu0
      %v905 = vpop.trf.xlu0
      %v906 = vpop.trf.xlu0
      %v907 = vpop.trf.xlu0
      %v908 = vpop.trf.xlu0
      %v909 = vpop.trf.xlu0
      %v910 = vpop.trf.xlu0
      %v911 = vpop.trf.xlu0
      %v912 = vpop.trf.xlu0
      %v913 = vpop.trf.xlu0
      %v914 = vpop.trf.xlu0
      %v915 = vpop.trf.xlu0
      %v916 = vpop.trf.xlu0
      %v917 = vpop.trf.xlu0
      %v918 = vpop.trf.xlu0
      %919 = vxpose.xlu0.b32.start [1/16] %v694, 128
      %920 = vxpose.xlu0.b32.cont [2/16] 0.0, 128
      %921 = vxpose.xlu0.b32.cont [3/16] 0.0, 128
      %922 = vxpose.xlu0.b32.cont [4/16] 0.0, 128
      %923 = vxpose.xlu0.b32.cont [5/16] 0.0, 128
      %924 = vxpose.xlu0.b32.cont [6/16] 0.0, 128
      %925 = vxpose.xlu0.b32.cont [7/16] 0.0, 128
      %926 = vxpose.xlu0.b32.cont [8/16] 0.0, 128
      %927 = vxpose.xlu0.b32.cont [9/16] 0.0, 128
      %928 = vxpose.xlu0.b32.cont [10/16] 0.0, 128
      %929 = vxpose.xlu0.b32.cont [11/16] 0.0, 128
      %930 = vxpose.xlu0.b32.cont [12/16] 0.0, 128
      %931 = vxpose.xlu0.b32.cont [13/16] 0.0, 128
      %932 = vxpose.xlu0.b32.cont [14/16] 0.0, 128
      %933 = vxpose.xlu0.b32.cont [15/16] 0.0, 128
      %934 = vxpose.xlu0.b32.end [16/16] 0.0, 128
      %v935 = vpop.trf.xlu0
      %v936 = vpop.trf.xlu0
      %v937 = vpop.trf.xlu0
      %v938 = vpop.trf.xlu0
      %v939 = vpop.trf.xlu0
      %v940 = vpop.trf.xlu0
      %v941 = vpop.trf.xlu0
      %v942 = vpop.trf.xlu0
      %v943 = vpop.trf.xlu0
      %v944 = vpop.trf.xlu0
      %v945 = vpop.trf.xlu0
      %v946 = vpop.trf.xlu0
      %v947 = vpop.trf.xlu0
      %v948 = vpop.trf.xlu0
      %v949 = vpop.trf.xlu0
      %v950 = vpop.trf.xlu0
      %v951 = vcombine.low %v711, %v775
      %v953 = vunpack.c.l.s4 1983009808
      %v954 = vunpack.c.0.s8 %v953
      %v955 = vlaneseq
      %v956 = vshrl.u32 %v955, 7
      %v957 = vsub.s32 %v954, %v956
      %v958 = vrot.slane %v951, %v957
      %v959 = vcombine.low %v743, %v807
      %v961 = vunpack.c.l.s4 1983009808
      %v962 = vunpack.c.0.s8 %v961
      %v963 = vlaneseq
      %v964 = vshrl.u32 %v963, 7
      %v965 = vsub.s32 %v962, %v964
      %v966 = vrot.slane %v959, %v965
      %v967 = vcombine.low %v839, %v903
      %v969 = vunpack.c.l.s4 1983009808
      %v970 = vunpack.c.0.s8 %v969
      %v971 = vlaneseq
      %v972 = vshrl.u32 %v971, 7
      %v973 = vsub.s32 %v970, %v972
      %v974 = vrot.slane %v967, %v973
      %v975 = vcombine.low %v871, %v935
      %v977 = vunpack.c.l.s4 1983009808
      %v978 = vunpack.c.0.s8 %v977
      %v979 = vlaneseq
      %v980 = vshrl.u32 %v979, 7
      %v981 = vsub.s32 %v978, %v980
      %v982 = vrot.slane %v975, %v981
      %v983 = vcombine.low %v958, %v966
      %v984 = vcombine.high %v958, %v966
      %v986 = vunpack.c.l.s4 1934713408
      %v987 = vunpack.c.0.s8 %v986
      %v988 = vlaneseq
      %v989 = vshrl.u32 %v988, 7
      %v990 = vsub.s32 %v987, %v989
      %v991 = vrot.slane %v983, %v990
      %v993 = vunpack.c.l.s4 1934713408
      %v994 = vunpack.c.0.s8 %v993
      %v995 = vlaneseq
      %v996 = vshrl.u32 %v995, 7
      %v997 = vsub.s32 %v994, %v996
      %v998 = vrot.slane %v984, %v997
      %v999 = vcombine.low %v974, %v982
      %v1000 = vcombine.high %v974, %v982
      %v1002 = vunpack.c.l.s4 1934713408
      %v1003 = vunpack.c.0.s8 %v1002
      %v1004 = vlaneseq
      %v1005 = vshrl.u32 %v1004, 7
      %v1006 = vsub.s32 %v1003, %v1005
      %v1007 = vrot.slane %v999, %v1006
      %v1009 = vunpack.c.l.s4 1934713408
      %v1010 = vunpack.c.0.s8 %v1009
      %v1011 = vlaneseq
      %v1012 = vshrl.u32 %v1011, 7
      %v1013 = vsub.s32 %v1010, %v1012
      %v1014 = vrot.slane %v1000, %v1013
      %v1015 = vcombine.low %v991, %v1007
      %v1016 = vcombine.high %v991, %v1007
      %v1017 = vcombine.low %v998, %v1014
      %v1018 = vcombine.high %v998, %v1014
      %vm1019 = vcmask 64512
      %v1021 = vsel %vm1019, %v299, 0
      %1023 = vmatprep.subr.mxu0 0.0
      %1024 = vmatpush1.msra.mxu0 %v1015
      %1025 = vmatprep.subr.mxu0 0.0
      %1026 = vmatpush1.msra.mxu0 0.0
      %1027 = vmatprep.subr.mxu0 0.0
      %1028 = vmatpush1.msra.mxu0 0.0
      %1029 = vmatprep.subr.mxu0 0.0
      %1030 = vmatpush1.msra.mxu0 0.0
      %1031 = vmatprep.subr.mxu0 0.0
      %1032 = vmatpush1.msra.mxu0 0.0
      %1033 = vmatprep.subr.mxu0 0.0
      %1034 = vmatpush1.msra.mxu0 0.0
      %1035 = vmatprep.subr.mxu0 0.0
      %1036 = vmatpush1.msra.mxu0 0.0
      %1037 = vmatprep.subr.mxu0 0.0
      %1038 = vmatpush1.msra.mxu0 0.0
      %1039 = vmatprep.subr.mxu0 0.0
      %1040 = vmatpush1.msra.mxu0 0.0
      %1041 = vmatprep.subr.mxu0 0.0
      %1042 = vmatpush1.msra.mxu0 0.0
      %1043 = vmatprep.subr.mxu0 0.0
      %1044 = vmatpush1.msra.mxu0 0.0
      %1045 = vmatprep.subr.mxu0 0.0
      %1046 = vmatpush1.msra.mxu0 0.0
      %1047 = vmatprep.subr.mxu0 0.0
      %1048 = vmatpush1.msra.mxu0 0.0
      %1049 = vmatprep.subr.mxu0 0.0
      %1050 = vmatpush1.msra.mxu0 0.0
      %1051 = vmatprep.subr.mxu0 0.0
      %1052 = vmatpush1.msra.mxu0 0.0
      %1053 = vmatprep.subr.mxu0 0.0
      %1054 = vmatpush1.msra.mxu0 0.0
      %1055 = vmatprep.subr.mxu0 0.0
      %1056 = vmatpush1.msra.mxu0 0.0
      %1057 = vmatprep.subr.mxu0 0.0
      %1058 = vmatpush1.msra.mxu0 0.0
      %1059 = vmatprep.subr.mxu0 0.0
      %1060 = vmatpush1.msra.mxu0 0.0
      %1061 = vmatprep.subr.mxu0 0.0
      %1062 = vmatpush1.msra.mxu0 0.0
      %1063 = vmatprep.subr.mxu0 0.0
      %1064 = vmatpush1.msra.mxu0 0.0
      %1065 = vmatprep.subr.mxu0 0.0
      %1066 = vmatpush1.msra.mxu0 0.0
      %1067 = vmatprep.subr.mxu0 0.0
      %1068 = vmatpush1.msra.mxu0 0.0
      %1069 = vmatprep.subr.mxu0 0.0
      %1070 = vmatpush1.msra.mxu0 0.0
      %1071 = vmatprep.subr.mxu0 0.0
      %1072 = vmatpush1.msra.mxu0 0.0
      %1073 = vmatprep.subr.mxu0 0.0
      %1074 = vmatpush1.msra.mxu0 0.0
      %1075 = vmatprep.subr.mxu0 0.0
      %1076 = vmatpush1.msra.mxu0 0.0
      %1077 = vmatprep.subr.mxu0 0.0
      %1078 = vmatpush1.msra.mxu0 0.0
      %1079 = vmatprep.subr.mxu0 0.0
      %1080 = vmatpush1.msra.mxu0 0.0
      %1081 = vmatprep.subr.mxu0 0.0
      %1082 = vmatpush1.msra.mxu0 0.0
      %1083 = vmatprep.subr.mxu0 0.0
      %1084 = vmatpush1.msra.mxu0 0.0
      %1085 = vmatprep.subr.mxu0 0.0
      %1086 = vmatpush1.msra.mxu0 0.0
      %1087 = vmatprep.mubr.f32.mxu0 0.0
      %1088 = vmatmul.mubr.f32.gmra.mrb[0].mxu0 %v1021
      %v1089 = vpop.f32.mrb[0].mxu0
      %v1090 = vadd.f32 0.0, %v1089
      %v1091 = vpop.f32.mrb[0].mxu0
      %1092 = vdwg.mxu0
      %v1094 = vsel %vm1019, %v300, 0
      %1096 = vmatprep.subr.mxu0 0.0
      %1097 = vmatpush1.msra.mxu0 %v1016
      %1098 = vmatprep.subr.mxu0 0.0
      %1099 = vmatpush1.msra.mxu0 0.0
      %1100 = vmatprep.subr.mxu0 0.0
      %1101 = vmatpush1.msra.mxu0 0.0
      %1102 = vmatprep.subr.mxu0 0.0
      %1103 = vmatpush1.msra.mxu0 0.0
      %1104 = vmatprep.subr.mxu0 0.0
      %1105 = vmatpush1.msra.mxu0 0.0
      %1106 = vmatprep.subr.mxu0 0.0
      %1107 = vmatpush1.msra.mxu0 0.0
      %1108 = vmatprep.subr.mxu0 0.0
      %1109 = vmatpush1.msra.mxu0 0.0
      %1110 = vmatprep.subr.mxu0 0.0
      %1111 = vmatpush1.msra.mxu0 0.0
      %1112 = vmatprep.subr.mxu0 0.0
      %1113 = vmatpush1.msra.mxu0 0.0
      %1114 = vmatprep.subr.mxu0 0.0
      %1115 = vmatpush1.msra.mxu0 0.0
      %1116 = vmatprep.subr.mxu0 0.0
      %1117 = vmatpush1.msra.mxu0 0.0
      %1118 = vmatprep.subr.mxu0 0.0
      %1119 = vmatpush1.msra.mxu0 0.0
      %1120 = vmatprep.subr.mxu0 0.0
      %1121 = vmatpush1.msra.mxu0 0.0
      %1122 = vmatprep.subr.mxu0 0.0
      %1123 = vmatpush1.msra.mxu0 0.0
      %1124 = vmatprep.subr.mxu0 0.0
      %1125 = vmatpush1.msra.mxu0 0.0
      %1126 = vmatprep.subr.mxu0 0.0
      %1127 = vmatpush1.msra.mxu0 0.0
      %1128 = vmatprep.subr.mxu0 0.0
      %1129 = vmatpush1.msra.mxu0 0.0
      %1130 = vmatprep.subr.mxu0 0.0
      %1131 = vmatpush1.msra.mxu0 0.0
      %1132 = vmatprep.subr.mxu0 0.0
      %1133 = vmatpush1.msra.mxu0 0.0
      %1134 = vmatprep.subr.mxu0 0.0
      %1135 = vmatpush1.msra.mxu0 0.0
      %1136 = vmatprep.subr.mxu0 0.0
      %1137 = vmatpush1.msra.mxu0 0.0
      %1138 = vmatprep.subr.mxu0 0.0
      %1139 = vmatpush1.msra.mxu0 0.0
      %1140 = vmatprep.subr.mxu0 0.0
      %1141 = vmatpush1.msra.mxu0 0.0
      %1142 = vmatprep.subr.mxu0 0.0
      %1143 = vmatpush1.msra.mxu0 0.0
      %1144 = vmatprep.subr.mxu0 0.0
      %1145 = vmatpush1.msra.mxu0 0.0
      %1146 = vmatprep.subr.mxu0 0.0
      %1147 = vmatpush1.msra.mxu0 0.0
      %1148 = vmatprep.subr.mxu0 0.0
      %1149 = vmatpush1.msra.mxu0 0.0
      %1150 = vmatprep.subr.mxu0 0.0
      %1151 = vmatpush1.msra.mxu0 0.0
      %1152 = vmatprep.subr.mxu0 0.0
      %1153 = vmatpush1.msra.mxu0 0.0
      %1154 = vmatprep.subr.mxu0 0.0
      %1155 = vmatpush1.msra.mxu0 0.0
      %1156 = vmatprep.subr.mxu0 0.0
      %1157 = vmatpush1.msra.mxu0 0.0
      %1158 = vmatprep.subr.mxu0 0.0
      %1159 = vmatpush1.msra.mxu0 0.0
      %1160 = vmatprep.mubr.f32.mxu0 0.0
      %1161 = vmatmul.mubr.f32.gmra.mrb[0].mxu0 %v1094
      %v1162 = vpop.f32.mrb[0].mxu0
      %v1163 = vadd.f32 0.0, %v1162
      %v1164 = vpop.f32.mrb[0].mxu0
      %1165 = vdwg.mxu0
      %v1167 = vsel %vm1019, %v301, 0
      %1169 = vmatprep.subr.mxu0 0.0
      %1170 = vmatpush1.msra.mxu0 %v1017
      %1171 = vmatprep.subr.mxu0 0.0
      %1172 = vmatpush1.msra.mxu0 0.0
      %1173 = vmatprep.subr.mxu0 0.0
      %1174 = vmatpush1.msra.mxu0 0.0
      %1175 = vmatprep.subr.mxu0 0.0
      %1176 = vmatpush1.msra.mxu0 0.0
      %1177 = vmatprep.subr.mxu0 0.0
      %1178 = vmatpush1.msra.mxu0 0.0
      %1179 = vmatprep.subr.mxu0 0.0
      %1180 = vmatpush1.msra.mxu0 0.0
      %1181 = vmatprep.subr.mxu0 0.0
      %1182 = vmatpush1.msra.mxu0 0.0
      %1183 = vmatprep.subr.mxu0 0.0
      %1184 = vmatpush1.msra.mxu0 0.0
      %1185 = vmatprep.subr.mxu0 0.0
      %1186 = vmatpush1.msra.mxu0 0.0
      %1187 = vmatprep.subr.mxu0 0.0
      %1188 = vmatpush1.msra.mxu0 0.0
      %1189 = vmatprep.subr.mxu0 0.0
      %1190 = vmatpush1.msra.mxu0 0.0
      %1191 = vmatprep.subr.mxu0 0.0
      %1192 = vmatpush1.msra.mxu0 0.0
      %1193 = vmatprep.subr.mxu0 0.0
      %1194 = vmatpush1.msra.mxu0 0.0
      %1195 = vmatprep.subr.mxu0 0.0
      %1196 = vmatpush1.msra.mxu0 0.0
      %1197 = vmatprep.subr.mxu0 0.0
      %1198 = vmatpush1.msra.mxu0 0.0
      %1199 = vmatprep.subr.mxu0 0.0
      %1200 = vmatpush1.msra.mxu0 0.0
      %1201 = vmatprep.subr.mxu0 0.0
      %1202 = vmatpush1.msra.mxu0 0.0
      %1203 = vmatprep.subr.mxu0 0.0
      %1204 = vmatpush1.msra.mxu0 0.0
      %1205 = vmatprep.subr.mxu0 0.0
      %1206 = vmatpush1.msra.mxu0 0.0
      %1207 = vmatprep.subr.mxu0 0.0
      %1208 = vmatpush1.msra.mxu0 0.0
      %1209 = vmatprep.subr.mxu0 0.0
      %1210 = vmatpush1.msra.mxu0 0.0
      %1211 = vmatprep.subr.mxu0 0.0
      %1212 = vmatpush1.msra.mxu0 0.0
      %1213 = vmatprep.subr.mxu0 0.0
      %1214 = vmatpush1.msra.mxu0 0.0
      %1215 = vmatprep.subr.mxu0 0.0
      %1216 = vmatpush1.msra.mxu0 0.0
      %1217 = vmatprep.subr.mxu0 0.0
      %1218 = vmatpush1.msra.mxu0 0.0
      %1219 = vmatprep.subr.mxu0 0.0
      %1220 = vmatpush1.msra.mxu0 0.0
      %1221 = vmatprep.subr.mxu0 0.0
      %1222 = vmatpush1.msra.mxu0 0.0
      %1223 = vmatprep.subr.mxu0 0.0
      %1224 = vmatpush1.msra.mxu0 0.0
      %1225 = vmatprep.subr.mxu0 0.0
      %1226 = vmatpush1.msra.mxu0 0.0
      %1227 = vmatprep.subr.mxu0 0.0
      %1228 = vmatpush1.msra.mxu0 0.0
      %1229 = vmatprep.subr.mxu0 0.0
      %1230 = vmatpush1.msra.mxu0 0.0
      %1231 = vmatprep.subr.mxu0 0.0
      %1232 = vmatpush1.msra.mxu0 0.0
      %1233 = vmatprep.mubr.f32.mxu0 0.0
      %1234 = vmatmul.mubr.f32.gmra.mrb[0].mxu0 %v1167
      %v1235 = vpop.f32.mrb[0].mxu0
      %v1236 = vadd.f32 0.0, %v1235
      %v1237 = vpop.f32.mrb[0].mxu0
      %1238 = vdwg.mxu0
      %v1240 = vsel %vm1019, %v302, 0
      %1242 = vmatprep.subr.mxu0 0.0
      %1243 = vmatpush1.msra.mxu0 %v1018
      %1244 = vmatprep.subr.mxu0 0.0
      %1245 = vmatpush1.msra.mxu0 0.0
      %1246 = vmatprep.subr.mxu0 0.0
      %1247 = vmatpush1.msra.mxu0 0.0
      %1248 = vmatprep.subr.mxu0 0.0
      %1249 = vmatpush1.msra.mxu0 0.0
      %1250 = vmatprep.subr.mxu0 0.0
      %1251 = vmatpush1.msra.mxu0 0.0
      %1252 = vmatprep.subr.mxu0 0.0
      %1253 = vmatpush1.msra.mxu0 0.0
      %1254 = vmatprep.subr.mxu0 0.0
      %1255 = vmatpush1.msra.mxu0 0.0
      %1256 = vmatprep.subr.mxu0 0.0
      %1257 = vmatpush1.msra.mxu0 0.0
      %1258 = vmatprep.subr.mxu0 0.0
      %1259 = vmatpush1.msra.mxu0 0.0
      %1260 = vmatprep.subr.mxu0 0.0
      %1261 = vmatpush1.msra.mxu0 0.0
      %1262 = vmatprep.subr.mxu0 0.0
      %1263 = vmatpush1.msra.mxu0 0.0
      %1264 = vmatprep.subr.mxu0 0.0
      %1265 = vmatpush1.msra.mxu0 0.0
      %1266 = vmatprep.subr.mxu0 0.0
      %1267 = vmatpush1.msra.mxu0 0.0
      %1268 = vmatprep.subr.mxu0 0.0
      %1269 = vmatpush1.msra.mxu0 0.0
      %1270 = vmatprep.subr.mxu0 0.0
      %1271 = vmatpush1.msra.mxu0 0.0
      %1272 = vmatprep.subr.mxu0 0.0
      %1273 = vmatpush1.msra.mxu0 0.0
      %1274 = vmatprep.subr.mxu0 0.0
      %1275 = vmatpush1.msra.mxu0 0.0
      %1276 = vmatprep.subr.mxu0 0.0
      %1277 = vmatpush1.msra.mxu0 0.0
      %1278 = vmatprep.subr.mxu0 0.0
      %1279 = vmatpush1.msra.mxu0 0.0
      %1280 = vmatprep.subr.mxu0 0.0
      %1281 = vmatpush1.msra.mxu0 0.0
      %1282 = vmatprep.subr.mxu0 0.0
      %1283 = vmatpush1.msra.mxu0 0.0
      %1284 = vmatprep.subr.mxu0 0.0
      %1285 = vmatpush1.msra.mxu0 0.0
      %1286 = vmatprep.subr.mxu0 0.0
      %1287 = vmatpush1.msra.mxu0 0.0
      %1288 = vmatprep.subr.mxu0 0.0
      %1289 = vmatpush1.msra.mxu0 0.0
      %1290 = vmatprep.subr.mxu0 0.0
      %1291 = vmatpush1.msra.mxu0 0.0
      %1292 = vmatprep.subr.mxu0 0.0
      %1293 = vmatpush1.msra.mxu0 0.0
      %1294 = vmatprep.subr.mxu0 0.0
      %1295 = vmatpush1.msra.mxu0 0.0
      %1296 = vmatprep.subr.mxu0 0.0
      %1297 = vmatpush1.msra.mxu0 0.0
      %1298 = vmatprep.subr.mxu0 0.0
      %1299 = vmatpush1.msra.mxu0 0.0
      %1300 = vmatprep.subr.mxu0 0.0
      %1301 = vmatpush1.msra.mxu0 0.0
      %1302 = vmatprep.subr.mxu0 0.0
      %1303 = vmatpush1.msra.mxu0 0.0
      %1304 = vmatprep.subr.mxu0 0.0
      %1305 = vmatpush1.msra.mxu0 0.0
      %1306 = vmatprep.mubr.f32.mxu0 0.0
      %1307 = vmatmul.mubr.f32.gmra.mrb[0].mxu0 %v1240
      %v1308 = vpop.f32.mrb[0].mxu0
      %v1309 = vadd.f32 0.0, %v1308
      %v1310 = vpop.f32.mrb[0].mxu0
      %1311 = vdwg.mxu0
      %v1312 = vmul.f32 %v1090, 0.35355338
      %v1313 = vmul.f32 %v1163, 0.35355338
      %v1314 = vmul.f32 %v1236, 0.35355338
      %v1315 = vmul.f32 %v1309, 0.35355338
      %v1316 = vsel %vm1019, %v1312, -inf
      %1317 = vmax.xlane.f32.xlu0 %v1316
      %v1318 = vpop.xlane.xlu0 %1317
      %v1319 = vsel %vm1019, %v1313, -inf
      %1320 = vmax.xlane.f32.xlu0 %v1319
      %v1321 = vpop.xlane.xlu0 %1320
      %v1322 = vsel %vm1019, %v1314, -inf
      %1323 = vmax.xlane.f32.xlu0 %v1322
      %v1324 = vpop.xlane.xlu0 %1323
      %v1325 = vsel %vm1019, %v1315, -inf
      %1326 = vmax.xlane.f32.xlu0 %v1325
      %v1327 = vpop.xlane.xlu0 %1326
      %v1328 = vsub.f32 %v1312, %v1318
      %v1329 = vsub.f32 %v1313, %v1321
      %v1330 = vsub.f32 %v1314, %v1324
      %v1331 = vsub.f32 %v1315, %v1327
      %v1332 = vmul.f32 %v1328, 1.442695
      %v1333 = vpow.pop %v1332
      %v1334 = vmul.f32 %v1329, 1.442695
      %v1335 = vpow.pop %v1334
      %v1336 = vmul.f32 %v1330, 1.442695
      %v1337 = vpow.pop %v1336
      %v1338 = vmul.f32 %v1331, 1.442695
      %v1339 = vpow.pop %v1338
      %v1340 = vsel %vm1019, %v1333, 0.0
      %1341 = vadd.xlane.f32.xlu0 %v1340
      %v1342 = vpop.xlane.xlu0 %1341
      %v1343 = vsel %vm1019, %v1335, 0.0
      %1344 = vadd.xlane.f32.xlu0 %v1343
      %v1345 = vpop.xlane.xlu0 %1344
      %v1346 = vsel %vm1019, %v1337, 0.0
      %1347 = vadd.xlane.f32.xlu0 %v1346
      %v1348 = vpop.xlane.xlu0 %1347
      %v1349 = vsel %vm1019, %v1339, 0.0
      %1350 = vadd.xlane.f32.xlu0 %v1349
      %v1351 = vpop.xlane.xlu0 %1350
      %v1352 = vrcp.pop %v1342
      %v1353 = vrcp.pop %v1345
      %v1354 = vrcp.pop %v1348
      %v1355 = vrcp.pop %v1351
      %v1356 = vmul.f32 %v1333, %v1352
      %v1357 = vmul.f32 %v1335, %v1353
      %v1358 = vmul.f32 %v1337, %v1354
      %v1359 = vmul.f32 %v1339, %v1355
      %1360 = vxpose.xlu0.b32.start [1/16] %v227, 128
      %1361 = vxpose.xlu0.b32.cont [2/16] 0.0, 128
      %1362 = vxpose.xlu0.b32.cont [3/16] 0.0, 128
      %1363 = vxpose.xlu0.b32.cont [4/16] 0.0, 128
      %1364 = vxpose.xlu0.b32.cont [5/16] 0.0, 128
      %1365 = vxpose.xlu0.b32.cont [6/16] 0.0, 128
      %1366 = vxpose.xlu0.b32.cont [7/16] 0.0, 128
      %1367 = vxpose.xlu0.b32.cont [8/16] 0.0, 128
      %1368 = vxpose.xlu0.b32.cont [9/16] 0.0, 128
      %1369 = vxpose.xlu0.b32.cont [10/16] 0.0, 128
      %1370 = vxpose.xlu0.b32.cont [11/16] 0.0, 128
      %1371 = vxpose.xlu0.b32.cont [12/16] 0.0, 128
      %1372 = vxpose.xlu0.b32.cont [13/16] 0.0, 128
      %1373 = vxpose.xlu0.b32.cont [14/16] 0.0, 128
      %1374 = vxpose.xlu0.b32.cont [15/16] 0.0, 128
      %1375 = vxpose.xlu0.b32.end [16/16] 0.0, 128
      %v1376 = vpop.trf.xlu0
      %v1377 = vpop.trf.xlu0
      %v1378 = vpop.trf.xlu0
      %v1379 = vpop.trf.xlu0
      %v1380 = vpop.trf.xlu0
      %v1381 = vpop.trf.xlu0
      %v1382 = vpop.trf.xlu0
      %v1383 = vpop.trf.xlu0
      %v1384 = vpop.trf.xlu0
      %v1385 = vpop.trf.xlu0
      %v1386 = vpop.trf.xlu0
      %v1387 = vpop.trf.xlu0
      %v1388 = vpop.trf.xlu0
      %v1389 = vpop.trf.xlu0
      %v1390 = vpop.trf.xlu0
      %v1391 = vpop.trf.xlu0
      %1392 = vxpose.xlu0.b32.start [1/16] %v228, 128
      %1393 = vxpose.xlu0.b32.cont [2/16] 0.0, 128
      %1394 = vxpose.xlu0.b32.cont [3/16] 0.0, 128
      %1395 = vxpose.xlu0.b32.cont [4/16] 0.0, 128
      %1396 = vxpose.xlu0.b32.cont [5/16] 0.0, 128
      %1397 = vxpose.xlu0.b32.cont [6/16] 0.0, 128
      %1398 = vxpose.xlu0.b32.cont [7/16] 0.0, 128
      %1399 = vxpose.xlu0.b32.cont [8/16] 0.0, 128
      %1400 = vxpose.xlu0.b32.cont [9/16] 0.0, 128
      %1401 = vxpose.xlu0.b32.cont [10/16] 0.0, 128
      %1402 = vxpose.xlu0.b32.cont [11/16] 0.0, 128
      %1403 = vxpose.xlu0.b32.cont [12/16] 0.0, 128
      %1404 = vxpose.xlu0.b32.cont [13/16] 0.0, 128
      %1405 = vxpose.xlu0.b32.cont [14/16] 0.0, 128
      %1406 = vxpose.xlu0.b32.cont [15/16] 0.0, 128
      %1407 = vxpose.xlu0.b32.end [16/16] 0.0, 128
      %v1408 = vpop.trf.xlu0
      %v1409 = vpop.trf.xlu0
      %v1410 = vpop.trf.xlu0
      %v1411 = vpop.trf.xlu0
      %v1412 = vpop.trf.xlu0
      %v1413 = vpop.trf.xlu0
      %v1414 = vpop.trf.xlu0
      %v1415 = vpop.trf.xlu0
      %v1416 = vpop.trf.xlu0
      %v1417 = vpop.trf.xlu0
      %v1418 = vpop.trf.xlu0
      %v1419 = vpop.trf.xlu0
      %v1420 = vpop.trf.xlu0
      %v1421 = vpop.trf.xlu0
      %v1422 = vpop.trf.xlu0
      %v1423 = vpop.trf.xlu0
      %1424 = vxpose.xlu0.b32.start [1/16] %v229, 128
      %1425 = vxpose.xlu0.b32.cont [2/16] 0.0, 128
      %1426 = vxpose.xlu0.b32.cont [3/16] 0.0, 128
      %1427 = vxpose.xlu0.b32.cont [4/16] 0.0, 128
      %1428 = vxpose.xlu0.b32.cont [5/16] 0.0, 128
      %1429 = vxpose.xlu0.b32.cont [6/16] 0.0, 128
      %1430 = vxpose.xlu0.b32.cont [7/16] 0.0, 128
      %1431 = vxpose.xlu0.b32.cont [8/16] 0.0, 128
      %1432 = vxpose.xlu0.b32.cont [9/16] 0.0, 128
      %1433 = vxpose.xlu0.b32.cont [10/16] 0.0, 128
      %1434 = vxpose.xlu0.b32.cont [11/16] 0.0, 128
      %1435 = vxpose.xlu0.b32.cont [12/16] 0.0, 128
      %1436 = vxpose.xlu0.b32.cont [13/16] 0.0, 128
      %1437 = vxpose.xlu0.b32.cont [14/16] 0.0, 128
      %1438 = vxpose.xlu0.b32.cont [15/16] 0.0, 128
      %1439 = vxpose.xlu0.b32.end [16/16] 0.0, 128
      %v1440 = vpop.trf.xlu0
      %v1441 = vpop.trf.xlu0
      %v1442 = vpop.trf.xlu0
      %v1443 = vpop.trf.xlu0
      %v1444 = vpop.trf.xlu0
      %v1445 = vpop.trf.xlu0
      %v1446 = vpop.trf.xlu0
      %v1447 = vpop.trf.xlu0
      %v1448 = vpop.trf.xlu0
      %v1449 = vpop.trf.xlu0
      %v1450 = vpop.trf.xlu0
      %v1451 = vpop.trf.xlu0
      %v1452 = vpop.trf.xlu0
      %v1453 = vpop.trf.xlu0
      %v1454 = vpop.trf.xlu0
      %v1455 = vpop.trf.xlu0
      %1456 = vxpose.xlu0.b32.start [1/16] %v230, 128
      %1457 = vxpose.xlu0.b32.cont [2/16] 0.0, 128
      %1458 = vxpose.xlu0.b32.cont [3/16] 0.0, 128
      %1459 = vxpose.xlu0.b32.cont [4/16] 0.0, 128
      %1460 = vxpose.xlu0.b32.cont [5/16] 0.0, 128
      %1461 = vxpose.xlu0.b32.cont [6/16] 0.0, 128
      %1462 = vxpose.xlu0.b32.cont [7/16] 0.0, 128
      %1463 = vxpose.xlu0.b32.cont [8/16] 0.0, 128
      %1464 = vxpose.xlu0.b32.cont [9/16] 0.0, 128
      %1465 = vxpose.xlu0.b32.cont [10/16] 0.0, 128
      %1466 = vxpose.xlu0.b32.cont [11/16] 0.0, 128
      %1467 = vxpose.xlu0.b32.cont [12/16] 0.0, 128
      %1468 = vxpose.xlu0.b32.cont [13/16] 0.0, 128
      %1469 = vxpose.xlu0.b32.cont [14/16] 0.0, 128
      %1470 = vxpose.xlu0.b32.cont [15/16] 0.0, 128
      %1471 = vxpose.xlu0.b32.end [16/16] 0.0, 128
      %v1472 = vpop.trf.xlu0
      %v1473 = vpop.trf.xlu0
      %v1474 = vpop.trf.xlu0
      %v1475 = vpop.trf.xlu0
      %v1476 = vpop.trf.xlu0
      %v1477 = vpop.trf.xlu0
      %v1478 = vpop.trf.xlu0
      %v1479 = vpop.trf.xlu0
      %v1480 = vpop.trf.xlu0
      %v1481 = vpop.trf.xlu0
      %v1482 = vpop.trf.xlu0
      %v1483 = vpop.trf.xlu0
      %v1484 = vpop.trf.xlu0
      %v1485 = vpop.trf.xlu0
      %v1486 = vpop.trf.xlu0
      %v1487 = vpop.trf.xlu0
      %1488 = vxpose.xlu0.b32.start [1/16] %v231, 128
      %1489 = vxpose.xlu0.b32.cont [2/16] 0.0, 128
      %1490 = vxpose.xlu0.b32.cont [3/16] 0.0, 128
      %1491 = vxpose.xlu0.b32.cont [4/16] 0.0, 128
      %1492 = vxpose.xlu0.b32.cont [5/16] 0.0, 128
      %1493 = vxpose.xlu0.b32.cont [6/16] 0.0, 128
      %1494 = vxpose.xlu0.b32.cont [7/16] 0.0, 128
      %1495 = vxpose.xlu0.b32.cont [8/16] 0.0, 128
      %1496 = vxpose.xlu0.b32.cont [9/16] 0.0, 128
      %1497 = vxpose.xlu0.b32.cont [10/16] 0.0, 128
      %1498 = vxpose.xlu0.b32.cont [11/16] 0.0, 128
      %1499 = vxpose.xlu0.b32.cont [12/16] 0.0, 128
      %1500 = vxpose.xlu0.b32.cont [13/16] 0.0, 128
      %1501 = vxpose.xlu0.b32.cont [14/16] 0.0, 128
      %1502 = vxpose.xlu0.b32.cont [15/16] 0.0, 128
      %1503 = vxpose.xlu0.b32.end [16/16] 0.0, 128
      %v1504 = vpop.trf.xlu0
      %v1505 = vpop.trf.xlu0
      %v1506 = vpop.trf.xlu0
      %v1507 = vpop.trf.xlu0
      %v1508 = vpop.trf.xlu0
      %v1509 = vpop.trf.xlu0
      %v1510 = vpop.trf.xlu0
      %v1511 = vpop.trf.xlu0
      %v1512 = vpop.trf.xlu0
      %v1513 = vpop.trf.xlu0
      %v1514 = vpop.trf.xlu0
      %v1515 = vpop.trf.xlu0
      %v1516 = vpop.trf.xlu0
      %v1517 = vpop.trf.xlu0
      %v1518 = vpop.trf.xlu0
      %v1519 = vpop.trf.xlu0
      %1520 = vxpose.xlu0.b32.start [1/16] %v232, 128
      %1521 = vxpose.xlu0.b32.cont [2/16] 0.0, 128
      %1522 = vxpose.xlu0.b32.cont [3/16] 0.0, 128
      %1523 = vxpose.xlu0.b32.cont [4/16] 0.0, 128
      %1524 = vxpose.xlu0.b32.cont [5/16] 0.0, 128
      %1525 = vxpose.xlu0.b32.cont [6/16] 0.0, 128
      %1526 = vxpose.xlu0.b32.cont [7/16] 0.0, 128
      %1527 = vxpose.xlu0.b32.cont [8/16] 0.0, 128
      %1528 = vxpose.xlu0.b32.cont [9/16] 0.0, 128
      %1529 = vxpose.xlu0.b32.cont [10/16] 0.0, 128
      %1530 = vxpose.xlu0.b32.cont [11/16] 0.0, 128
      %1531 = vxpose.xlu0.b32.cont [12/16] 0.0, 128
      %1532 = vxpose.xlu0.b32.cont [13/16] 0.0, 128
      %1533 = vxpose.xlu0.b32.cont [14/16] 0.0, 128
      %1534 = vxpose.xlu0.b32.cont [15/16] 0.0, 128
      %1535 = vxpose.xlu0.b32.end [16/16] 0.0, 128
      %v1536 = vpop.trf.xlu0
      %v1537 = vpop.trf.xlu0
      %v1538 = vpop.trf.xlu0
      %v1539 = vpop.trf.xlu0
      %v1540 = vpop.trf.xlu0
      %v1541 = vpop.trf.xlu0
      %v1542 = vpop.trf.xlu0
      %v1543 = vpop.trf.xlu0
      %v1544 = vpop.trf.xlu0
      %v1545 = vpop.trf.xlu0
      %v1546 = vpop.trf.xlu0
      %v1547 = vpop.trf.xlu0
      %v1548 = vpop.trf.xlu0
      %v1549 = vpop.trf.xlu0
      %v1550 = vpop.trf.xlu0
      %v1551 = vpop.trf.xlu0
      %1552 = vxpose.xlu0.b32.start [1/16] %v233, 128
      %1553 = vxpose.xlu0.b32.cont [2/16] 0.0, 128
      %1554 = vxpose.xlu0.b32.cont [3/16] 0.0, 128
      %1555 = vxpose.xlu0.b32.cont [4/16] 0.0, 128
      %1556 = vxpose.xlu0.b32.cont [5/16] 0.0, 128
      %1557 = vxpose.xlu0.b32.cont [6/16] 0.0, 128
      %1558 = vxpose.xlu0.b32.cont [7/16] 0.0, 128
      %1559 = vxpose.xlu0.b32.cont [8/16] 0.0, 128
      %1560 = vxpose.xlu0.b32.cont [9/16] 0.0, 128
      %1561 = vxpose.xlu0.b32.cont [10/16] 0.0, 128
      %1562 = vxpose.xlu0.b32.cont [11/16] 0.0, 128
      %1563 = vxpose.xlu0.b32.cont [12/16] 0.0, 128
      %1564 = vxpose.xlu0.b32.cont [13/16] 0.0, 128
      %1565 = vxpose.xlu0.b32.cont [14/16] 0.0, 128
      %1566 = vxpose.xlu0.b32.cont [15/16] 0.0, 128
      %1567 = vxpose.xlu0.b32.end [16/16] 0.0, 128
      %v1568 = vpop.trf.xlu0
      %v1569 = vpop.trf.xlu0
      %v1570 = vpop.trf.xlu0
      %v1571 = vpop.trf.xlu0
      %v1572 = vpop.trf.xlu0
      %v1573 = vpop.trf.xlu0
      %v1574 = vpop.trf.xlu0
      %v1575 = vpop.trf.xlu0
      %v1576 = vpop.trf.xlu0
      %v1577 = vpop.trf.xlu0
      %v1578 = vpop.trf.xlu0
      %v1579 = vpop.trf.xlu0
      %v1580 = vpop.trf.xlu0
      %v1581 = vpop.trf.xlu0
      %v1582 = vpop.trf.xlu0
      %v1583 = vpop.trf.xlu0
      %1584 = vxpose.xlu0.b32.start [1/16] %v234, 128
      %1585 = vxpose.xlu0.b32.cont [2/16] 0.0, 128
      %1586 = vxpose.xlu0.b32.cont [3/16] 0.0, 128
      %1587 = vxpose.xlu0.b32.cont [4/16] 0.0, 128
      %1588 = vxpose.xlu0.b32.cont [5/16] 0.0, 128
      %1589 = vxpose.xlu0.b32.cont [6/16] 0.0, 128
      %1590 = vxpose.xlu0.b32.cont [7/16] 0.0, 128
      %1591 = vxpose.xlu0.b32.cont [8/16] 0.0, 128
      %1592 = vxpose.xlu0.b32.cont [9/16] 0.0, 128
      %1593 = vxpose.xlu0.b32.cont [10/16] 0.0, 128
      %1594 = vxpose.xlu0.b32.cont [11/16] 0.0, 128
      %1595 = vxpose.xlu0.b32.cont [12/16] 0.0, 128
      %1596 = vxpose.xlu0.b32.cont [13/16] 0.0, 128
      %1597 = vxpose.xlu0.b32.cont [14/16] 0.0, 128
      %1598 = vxpose.xlu0.b32.cont [15/16] 0.0, 128
      %1599 = vxpose.xlu0.b32.end [16/16] 0.0, 128
      %v1600 = vpop.trf.xlu0
      %v1601 = vpop.trf.xlu0
      %v1602 = vpop.trf.xlu0
      %v1603 = vpop.trf.xlu0
      %v1604 = vpop.trf.xlu0
      %v1605 = vpop.trf.xlu0
      %v1606 = vpop.trf.xlu0
      %v1607 = vpop.trf.xlu0
      %v1608 = vpop.trf.xlu0
      %v1609 = vpop.trf.xlu0
      %v1610 = vpop.trf.xlu0
      %v1611 = vpop.trf.xlu0
      %v1612 = vpop.trf.xlu0
      %v1613 = vpop.trf.xlu0
      %v1614 = vpop.trf.xlu0
      %v1615 = vpop.trf.xlu0
      %v1616 = vcombine.low %v1376, %v1440
      %v1617 = vcombine.high %v1376, %v1440
      %v1619 = vunpack.c.l.s4 1983009808
      %v1620 = vunpack.c.0.s8 %v1619
      %v1621 = vlaneseq
      %v1622 = vshrl.u32 %v1621, 7
      %v1623 = vsub.s32 %v1620, %v1622
      %v1624 = vrot.slane %v1616, %v1623
      %v1626 = vunpack.c.l.s4 1983009808
      %v1627 = vunpack.c.0.s8 %v1626
      %v1628 = vlaneseq
      %v1629 = vshrl.u32 %v1628, 7
      %v1630 = vsub.s32 %v1627, %v1629
      %v1631 = vrot.slane %v1617, %v1630
      %v1632 = vcombine.low %v1408, %v1472
      %v1633 = vcombine.high %v1408, %v1472
      %v1635 = vunpack.c.l.s4 1983009808
      %v1636 = vunpack.c.0.s8 %v1635
      %v1637 = vlaneseq
      %v1638 = vshrl.u32 %v1637, 7
      %v1639 = vsub.s32 %v1636, %v1638
      %v1640 = vrot.slane %v1632, %v1639
      %v1642 = vunpack.c.l.s4 1983009808
      %v1643 = vunpack.c.0.s8 %v1642
      %v1644 = vlaneseq
      %v1645 = vshrl.u32 %v1644, 7
      %v1646 = vsub.s32 %v1643, %v1645
      %v1647 = vrot.slane %v1633, %v1646
      %v1648 = vcombine.low %v1504, %v1568
      %v1649 = vcombine.high %v1504, %v1568
      %v1651 = vunpack.c.l.s4 1983009808
      %v1652 = vunpack.c.0.s8 %v1651
      %v1653 = vlaneseq
      %v1654 = vshrl.u32 %v1653, 7
      %v1655 = vsub.s32 %v1652, %v1654
      %v1656 = vrot.slane %v1648, %v1655
      %v1658 = vunpack.c.l.s4 1983009808
      %v1659 = vunpack.c.0.s8 %v1658
      %v1660 = vlaneseq
      %v1661 = vshrl.u32 %v1660, 7
      %v1662 = vsub.s32 %v1659, %v1661
      %v1663 = vrot.slane %v1649, %v1662
      %v1664 = vcombine.low %v1536, %v1600
      %v1665 = vcombine.high %v1536, %v1600
      %v1667 = vunpack.c.l.s4 1983009808
      %v1668 = vunpack.c.0.s8 %v1667
      %v1669 = vlaneseq
      %v1670 = vshrl.u32 %v1669, 7
      %v1671 = vsub.s32 %v1668, %v1670
      %v1672 = vrot.slane %v1664, %v1671
      %v1674 = vunpack.c.l.s4 1983009808
      %v1675 = vunpack.c.0.s8 %v1674
      %v1676 = vlaneseq
      %v1677 = vshrl.u32 %v1676, 7
      %v1678 = vsub.s32 %v1675, %v1677
      %v1679 = vrot.slane %v1665, %v1678
      %v1680 = vcombine.low %v1624, %v1640
      %v1681 = vcombine.high %v1624, %v1640
      %v1683 = vunpack.c.l.s4 1934713408
      %v1684 = vunpack.c.0.s8 %v1683
      %v1685 = vlaneseq
      %v1686 = vshrl.u32 %v1685, 7
      %v1687 = vsub.s32 %v1684, %v1686
      %v1688 = vrot.slane %v1680, %v1687
      %v1690 = vunpack.c.l.s4 1934713408
      %v1691 = vunpack.c.0.s8 %v1690
      %v1692 = vlaneseq
      %v1693 = vshrl.u32 %v1692, 7
      %v1694 = vsub.s32 %v1691, %v1693
      %v1695 = vrot.slane %v1681, %v1694
      %v1696 = vcombine.low %v1631, %v1647
      %v1697 = vcombine.high %v1631, %v1647
      %v1699 = vunpack.c.l.s4 1934713408
      %v1700 = vunpack.c.0.s8 %v1699
      %v1701 = vlaneseq
      %v1702 = vshrl.u32 %v1701, 7
      %v1703 = vsub.s32 %v1700, %v1702
      %v1704 = vrot.slane %v1696, %v1703
      %v1706 = vunpack.c.l.s4 1934713408
      %v1707 = vunpack.c.0.s8 %v1706
      %v1708 = vlaneseq
      %v1709 = vshrl.u32 %v1708, 7
      %v1710 = vsub.s32 %v1707, %v1709
      %v1711 = vrot.slane %v1697, %v1710
      %v1712 = vcombine.low %v1656, %v1672
      %v1713 = vcombine.high %v1656, %v1672
      %v1715 = vunpack.c.l.s4 1934713408
      %v1716 = vunpack.c.0.s8 %v1715
      %v1717 = vlaneseq
      %v1718 = vshrl.u32 %v1717, 7
      %v1719 = vsub.s32 %v1716, %v1718
      %v1720 = vrot.slane %v1712, %v1719
      %v1722 = vunpack.c.l.s4 1934713408
      %v1723 = vunpack.c.0.s8 %v1722
      %v1724 = vlaneseq
      %v1725 = vshrl.u32 %v1724, 7
      %v1726 = vsub.s32 %v1723, %v1725
      %v1727 = vrot.slane %v1713, %v1726
      %v1728 = vcombine.low %v1663, %v1679
      %v1729 = vcombine.high %v1663, %v1679
      %v1731 = vunpack.c.l.s4 1934713408
      %v1732 = vunpack.c.0.s8 %v1731
      %v1733 = vlaneseq
      %v1734 = vshrl.u32 %v1733, 7
      %v1735 = vsub.s32 %v1732, %v1734
      %v1736 = vrot.slane %v1728, %v1735
      %v1738 = vunpack.c.l.s4 1934713408
      %v1739 = vunpack.c.0.s8 %v1738
      %v1740 = vlaneseq
      %v1741 = vshrl.u32 %v1740, 7
      %v1742 = vsub.s32 %v1739, %v1741
      %v1743 = vrot.slane %v1729, %v1742
      %v1744 = vcombine.low %v1688, %v1720
      %v1745 = vcombine.high %v1688, %v1720
      %v1746 = vcombine.low %v1695, %v1727
      %v1747 = vcombine.high %v1695, %v1727
      %v1748 = vcombine.low %v1704, %v1736
      %v1749 = vcombine.high %v1704, %v1736
      %v1750 = vcombine.low %v1711, %v1743
      %v1751 = vcombine.high %v1711, %v1743
      %1752 = vxpose.xlu0.b32.start [1/16] %v1744, 128
      %1753 = vxpose.xlu0.b32.cont [2/16] 0.0, 128
      %1754 = vxpose.xlu0.b32.cont [3/16] 0.0, 128
      %1755 = vxpose.xlu0.b32.cont [4/16] 0.0, 128
      %1756 = vxpose.xlu0.b32.cont [5/16] 0.0, 128
      %1757 = vxpose.xlu0.b32.cont [6/16] 0.0, 128
      %1758 = vxpose.xlu0.b32.cont [7/16] 0.0, 128
      %1759 = vxpose.xlu0.b32.cont [8/16] 0.0, 128
      %1760 = vxpose.xlu0.b32.cont [9/16] 0.0, 128
      %1761 = vxpose.xlu0.b32.cont [10/16] 0.0, 128
      %1762 = vxpose.xlu0.b32.cont [11/16] 0.0, 128
      %1763 = vxpose.xlu0.b32.cont [12/16] 0.0, 128
      %1764 = vxpose.xlu0.b32.cont [13/16] 0.0, 128
      %1765 = vxpose.xlu0.b32.cont [14/16] 0.0, 128
      %1766 = vxpose.xlu0.b32.cont [15/16] 0.0, 128
      %1767 = vxpose.xlu0.b32.end [16/16] 0.0, 128
      %v1768 = vpop.trf.xlu0
      %v1769 = vpop.trf.xlu0
      %v1770 = vpop.trf.xlu0
      %v1771 = vpop.trf.xlu0
      %v1772 = vpop.trf.xlu0
      %v1773 = vpop.trf.xlu0
      %v1774 = vpop.trf.xlu0
      %v1775 = vpop.trf.xlu0
      %v1776 = vpop.trf.xlu0
      %v1777 = vpop.trf.xlu0
      %v1778 = vpop.trf.xlu0
      %v1779 = vpop.trf.xlu0
      %v1780 = vpop.trf.xlu0
      %v1781 = vpop.trf.xlu0
      %v1782 = vpop.trf.xlu0
      %v1783 = vpop.trf.xlu0
      %1784 = vxpose.xlu0.b32.start [1/16] %v1745, 128
      %1785 = vxpose.xlu0.b32.cont [2/16] 0.0, 128
      %1786 = vxpose.xlu0.b32.cont [3/16] 0.0, 128
      %1787 = vxpose.xlu0.b32.cont [4/16] 0.0, 128
      %1788 = vxpose.xlu0.b32.cont [5/16] 0.0, 128
      %1789 = vxpose.xlu0.b32.cont [6/16] 0.0, 128
      %1790 = vxpose.xlu0.b32.cont [7/16] 0.0, 128
      %1791 = vxpose.xlu0.b32.cont [8/16] 0.0, 128
      %1792 = vxpose.xlu0.b32.cont [9/16] 0.0, 128
      %1793 = vxpose.xlu0.b32.cont [10/16] 0.0, 128
      %1794 = vxpose.xlu0.b32.cont [11/16] 0.0, 128
      %1795 = vxpose.xlu0.b32.cont [12/16] 0.0, 128
      %1796 = vxpose.xlu0.b32.cont [13/16] 0.0, 128
      %1797 = vxpose.xlu0.b32.cont [14/16] 0.0, 128
      %1798 = vxpose.xlu0.b32.cont [15/16] 0.0, 128
      %1799 = vxpose.xlu0.b32.end [16/16] 0.0, 128
      %v1800 = vpop.trf.xlu0
      %v1801 = vpop.trf.xlu0
      %v1802 = vpop.trf.xlu0
      %v1803 = vpop.trf.xlu0
      %v1804 = vpop.trf.xlu0
      %v1805 = vpop.trf.xlu0
      %v1806 = vpop.trf.xlu0
      %v1807 = vpop.trf.xlu0
      %v1808 = vpop.trf.xlu0
      %v1809 = vpop.trf.xlu0
      %v1810 = vpop.trf.xlu0
      %v1811 = vpop.trf.xlu0
      %v1812 = vpop.trf.xlu0
      %v1813 = vpop.trf.xlu0
      %v1814 = vpop.trf.xlu0
      %v1815 = vpop.trf.xlu0
      %1816 = vxpose.xlu0.b32.start [1/16] %v1746, 128
      %1817 = vxpose.xlu0.b32.cont [2/16] 0.0, 128
      %1818 = vxpose.xlu0.b32.cont [3/16] 0.0, 128
      %1819 = vxpose.xlu0.b32.cont [4/16] 0.0, 128
      %1820 = vxpose.xlu0.b32.cont [5/16] 0.0, 128
      %1821 = vxpose.xlu0.b32.cont [6/16] 0.0, 128
      %1822 = vxpose.xlu0.b32.cont [7/16] 0.0, 128
      %1823 = vxpose.xlu0.b32.cont [8/16] 0.0, 128
      %1824 = vxpose.xlu0.b32.cont [9/16] 0.0, 128
      %1825 = vxpose.xlu0.b32.cont [10/16] 0.0, 128
      %1826 = vxpose.xlu0.b32.cont [11/16] 0.0, 128
      %1827 = vxpose.xlu0.b32.cont [12/16] 0.0, 128
      %1828 = vxpose.xlu0.b32.cont [13/16] 0.0, 128
      %1829 = vxpose.xlu0.b32.cont [14/16] 0.0, 128
      %1830 = vxpose.xlu0.b32.cont [15/16] 0.0, 128
      %1831 = vxpose.xlu0.b32.end [16/16] 0.0, 128
      %v1832 = vpop.trf.xlu0
      %v1833 = vpop.trf.xlu0
      %v1834 = vpop.trf.xlu0
      %v1835 = vpop.trf.xlu0
      %v1836 = vpop.trf.xlu0
      %v1837 = vpop.trf.xlu0
      %v1838 = vpop.trf.xlu0
      %v1839 = vpop.trf.xlu0
      %v1840 = vpop.trf.xlu0
      %v1841 = vpop.trf.xlu0
      %v1842 = vpop.trf.xlu0
      %v1843 = vpop.trf.xlu0
      %v1844 = vpop.trf.xlu0
      %v1845 = vpop.trf.xlu0
      %v1846 = vpop.trf.xlu0
      %v1847 = vpop.trf.xlu0
      %1848 = vxpose.xlu0.b32.start [1/16] %v1747, 128
      %1849 = vxpose.xlu0.b32.cont [2/16] 0.0, 128
      %1850 = vxpose.xlu0.b32.cont [3/16] 0.0, 128
      %1851 = vxpose.xlu0.b32.cont [4/16] 0.0, 128
      %1852 = vxpose.xlu0.b32.cont [5/16] 0.0, 128
      %1853 = vxpose.xlu0.b32.cont [6/16] 0.0, 128
      %1854 = vxpose.xlu0.b32.cont [7/16] 0.0, 128
      %1855 = vxpose.xlu0.b32.cont [8/16] 0.0, 128
      %1856 = vxpose.xlu0.b32.cont [9/16] 0.0, 128
      %1857 = vxpose.xlu0.b32.cont [10/16] 0.0, 128
      %1858 = vxpose.xlu0.b32.cont [11/16] 0.0, 128
      %1859 = vxpose.xlu0.b32.cont [12/16] 0.0, 128
      %1860 = vxpose.xlu0.b32.cont [13/16] 0.0, 128
      %1861 = vxpose.xlu0.b32.cont [14/16] 0.0, 128
      %1862 = vxpose.xlu0.b32.cont [15/16] 0.0, 128
      %1863 = vxpose.xlu0.b32.end [16/16] 0.0, 128
      %v1864 = vpop.trf.xlu0
      %v1865 = vpop.trf.xlu0
      %v1866 = vpop.trf.xlu0
      %v1867 = vpop.trf.xlu0
      %v1868 = vpop.trf.xlu0
      %v1869 = vpop.trf.xlu0
      %v1870 = vpop.trf.xlu0
      %v1871 = vpop.trf.xlu0
      %v1872 = vpop.trf.xlu0
      %v1873 = vpop.trf.xlu0
      %v1874 = vpop.trf.xlu0
      %v1875 = vpop.trf.xlu0
      %v1876 = vpop.trf.xlu0
      %v1877 = vpop.trf.xlu0
      %v1878 = vpop.trf.xlu0
      %v1879 = vpop.trf.xlu0
      %1880 = vxpose.xlu0.b32.start [1/16] %v1748, 128
      %1881 = vxpose.xlu0.b32.cont [2/16] 0.0, 128
      %1882 = vxpose.xlu0.b32.cont [3/16] 0.0, 128
      %1883 = vxpose.xlu0.b32.cont [4/16] 0.0, 128
      %1884 = vxpose.xlu0.b32.cont [5/16] 0.0, 128
      %1885 = vxpose.xlu0.b32.cont [6/16] 0.0, 128
      %1886 = vxpose.xlu0.b32.cont [7/16] 0.0, 128
      %1887 = vxpose.xlu0.b32.cont [8/16] 0.0, 128
      %1888 = vxpose.xlu0.b32.cont [9/16] 0.0, 128
      %1889 = vxpose.xlu0.b32.cont [10/16] 0.0, 128
      %1890 = vxpose.xlu0.b32.cont [11/16] 0.0, 128
      %1891 = vxpose.xlu0.b32.cont [12/16] 0.0, 128
      %1892 = vxpose.xlu0.b32.cont [13/16] 0.0, 128
      %1893 = vxpose.xlu0.b32.cont [14/16] 0.0, 128
      %1894 = vxpose.xlu0.b32.cont [15/16] 0.0, 128
      %1895 = vxpose.xlu0.b32.end [16/16] 0.0, 128
      %v1896 = vpop.trf.xlu0
      %v1897 = vpop.trf.xlu0
      %v1898 = vpop.trf.xlu0
      %v1899 = vpop.trf.xlu0
      %v1900 = vpop.trf.xlu0
      %v1901 = vpop.trf.xlu0
      %v1902 = vpop.trf.xlu0
      %v1903 = vpop.trf.xlu0
      %v1904 = vpop.trf.xlu0
      %v1905 = vpop.trf.xlu0
      %v1906 = vpop.trf.xlu0
      %v1907 = vpop.trf.xlu0
      %v1908 = vpop.trf.xlu0
      %v1909 = vpop.trf.xlu0
      %v1910 = vpop.trf.xlu0
      %v1911 = vpop.trf.xlu0
      %1912 = vxpose.xlu0.b32.start [1/16] %v1749, 128
      %1913 = vxpose.xlu0.b32.cont [2/16] 0.0, 128
      %1914 = vxpose.xlu0.b32.cont [3/16] 0.0, 128
      %1915 = vxpose.xlu0.b32.cont [4/16] 0.0, 128
      %1916 = vxpose.xlu0.b32.cont [5/16] 0.0, 128
      %1917 = vxpose.xlu0.b32.cont [6/16] 0.0, 128
      %1918 = vxpose.xlu0.b32.cont [7/16] 0.0, 128
      %1919 = vxpose.xlu0.b32.cont [8/16] 0.0, 128
      %1920 = vxpose.xlu0.b32.cont [9/16] 0.0, 128
      %1921 = vxpose.xlu0.b32.cont [10/16] 0.0, 128
      %1922 = vxpose.xlu0.b32.cont [11/16] 0.0, 128
      %1923 = vxpose.xlu0.b32.cont [12/16] 0.0, 128
      %1924 = vxpose.xlu0.b32.cont [13/16] 0.0, 128
      %1925 = vxpose.xlu0.b32.cont [14/16] 0.0, 128
      %1926 = vxpose.xlu0.b32.cont [15/16] 0.0, 128
      %1927 = vxpose.xlu0.b32.end [16/16] 0.0, 128
      %v1928 = vpop.trf.xlu0
      %v1929 = vpop.trf.xlu0
      %v1930 = vpop.trf.xlu0
      %v1931 = vpop.trf.xlu0
      %v1932 = vpop.trf.xlu0
      %v1933 = vpop.trf.xlu0
      %v1934 = vpop.trf.xlu0
      %v1935 = vpop.trf.xlu0
      %v1936 = vpop.trf.xlu0
      %v1937 = vpop.trf.xlu0
      %v1938 = vpop.trf.xlu0
      %v1939 = vpop.trf.xlu0
      %v1940 = vpop.trf.xlu0
      %v1941 = vpop.trf.xlu0
      %v1942 = vpop.trf.xlu0
      %v1943 = vpop.trf.xlu0
      %1944 = vxpose.xlu0.b32.start [1/16] %v1750, 128
      %1945 = vxpose.xlu0.b32.cont [2/16] 0.0, 128
      %1946 = vxpose.xlu0.b32.cont [3/16] 0.0, 128
      %1947 = vxpose.xlu0.b32.cont [4/16] 0.0, 128
      %1948 = vxpose.xlu0.b32.cont [5/16] 0.0, 128
      %1949 = vxpose.xlu0.b32.cont [6/16] 0.0, 128
      %1950 = vxpose.xlu0.b32.cont [7/16] 0.0, 128
      %1951 = vxpose.xlu0.b32.cont [8/16] 0.0, 128
      %1952 = vxpose.xlu0.b32.cont [9/16] 0.0, 128
      %1953 = vxpose.xlu0.b32.cont [10/16] 0.0, 128
      %1954 = vxpose.xlu0.b32.cont [11/16] 0.0, 128
      %1955 = vxpose.xlu0.b32.cont [12/16] 0.0, 128
      %1956 = vxpose.xlu0.b32.cont [13/16] 0.0, 128
      %1957 = vxpose.xlu0.b32.cont [14/16] 0.0, 128
      %1958 = vxpose.xlu0.b32.cont [15/16] 0.0, 128
      %1959 = vxpose.xlu0.b32.end [16/16] 0.0, 128
      %v1960 = vpop.trf.xlu0
      %v1961 = vpop.trf.xlu0
      %v1962 = vpop.trf.xlu0
      %v1963 = vpop.trf.xlu0
      %v1964 = vpop.trf.xlu0
      %v1965 = vpop.trf.xlu0
      %v1966 = vpop.trf.xlu0
      %v1967 = vpop.trf.xlu0
      %v1968 = vpop.trf.xlu0
      %v1969 = vpop.trf.xlu0
      %v1970 = vpop.trf.xlu0
      %v1971 = vpop.trf.xlu0
      %v1972 = vpop.trf.xlu0
      %v1973 = vpop.trf.xlu0
      %v1974 = vpop.trf.xlu0
      %v1975 = vpop.trf.xlu0
      %1976 = vxpose.xlu0.b32.start [1/16] %v1751, 128
      %1977 = vxpose.xlu0.b32.cont [2/16] 0.0, 128
      %1978 = vxpose.xlu0.b32.cont [3/16] 0.0, 128
      %1979 = vxpose.xlu0.b32.cont [4/16] 0.0, 128
      %1980 = vxpose.xlu0.b32.cont [5/16] 0.0, 128
      %1981 = vxpose.xlu0.b32.cont [6/16] 0.0, 128
      %1982 = vxpose.xlu0.b32.cont [7/16] 0.0, 128
      %1983 = vxpose.xlu0.b32.cont [8/16] 0.0, 128
      %1984 = vxpose.xlu0.b32.cont [9/16] 0.0, 128
      %1985 = vxpose.xlu0.b32.cont [10/16] 0.0, 128
      %1986 = vxpose.xlu0.b32.cont [11/16] 0.0, 128
      %1987 = vxpose.xlu0.b32.cont [12/16] 0.0, 128
      %1988 = vxpose.xlu0.b32.cont [13/16] 0.0, 128
      %1989 = vxpose.xlu0.b32.cont [14/16] 0.0, 128
      %1990 = vxpose.xlu0.b32.cont [15/16] 0.0, 128
      %1991 = vxpose.xlu0.b32.end [16/16] 0.0, 128
      %v1992 = vpop.trf.xlu0
      %v1993 = vpop.trf.xlu0
      %v1994 = vpop.trf.xlu0
      %v1995 = vpop.trf.xlu0
      %v1996 = vpop.trf.xlu0
      %v1997 = vpop.trf.xlu0
      %v1998 = vpop.trf.xlu0
      %v1999 = vpop.trf.xlu0
      %v2000 = vpop.trf.xlu0
      %v2001 = vpop.trf.xlu0
      %v2002 = vpop.trf.xlu0
      %v2003 = vpop.trf.xlu0
      %v2004 = vpop.trf.xlu0
      %v2005 = vpop.trf.xlu0
      %v2006 = vpop.trf.xlu0
      %v2007 = vpop.trf.xlu0
      %v2008 = vcombine.low %v1768, %v1832
      %v2010 = vunpack.c.l.s4 1983009808
      %v2011 = vunpack.c.0.s8 %v2010
      %v2012 = vlaneseq
      %v2013 = vshrl.u32 %v2012, 7
      %v2014 = vsub.s32 %v2011, %v2013
      %v2015 = vrot.slane %v2008, %v2014
      %v2016 = vcombine.low %v1800, %v1864
      %v2018 = vunpack.c.l.s4 1983009808
      %v2019 = vunpack.c.0.s8 %v2018
      %v2020 = vlaneseq
      %v2021 = vshrl.u32 %v2020, 7
      %v2022 = vsub.s32 %v2019, %v2021
      %v2023 = vrot.slane %v2016, %v2022
      %v2024 = vcombine.low %v1896, %v1960
      %v2026 = vunpack.c.l.s4 1983009808
      %v2027 = vunpack.c.0.s8 %v2026
      %v2028 = vlaneseq
      %v2029 = vshrl.u32 %v2028, 7
      %v2030 = vsub.s32 %v2027, %v2029
      %v2031 = vrot.slane %v2024, %v2030
      %v2032 = vcombine.low %v1928, %v1992
      %v2034 = vunpack.c.l.s4 1983009808
      %v2035 = vunpack.c.0.s8 %v2034
      %v2036 = vlaneseq
      %v2037 = vshrl.u32 %v2036, 7
      %v2038 = vsub.s32 %v2035, %v2037
      %v2039 = vrot.slane %v2032, %v2038
      %v2040 = vcombine.low %v2015, %v2023
      %v2041 = vcombine.high %v2015, %v2023
      %v2043 = vunpack.c.l.s4 1934713408
      %v2044 = vunpack.c.0.s8 %v2043
      %v2045 = vlaneseq
      %v2046 = vshrl.u32 %v2045, 7
      %v2047 = vsub.s32 %v2044, %v2046
      %v2048 = vrot.slane %v2040, %v2047
      %v2050 = vunpack.c.l.s4 1934713408
      %v2051 = vunpack.c.0.s8 %v2050
      %v2052 = vlaneseq
      %v2053 = vshrl.u32 %v2052, 7
      %v2054 = vsub.s32 %v2051, %v2053
      %v2055 = vrot.slane %v2041, %v2054
      %v2056 = vcombine.low %v2031, %v2039
      %v2057 = vcombine.high %v2031, %v2039
      %v2059 = vunpack.c.l.s4 1934713408
      %v2060 = vunpack.c.0.s8 %v2059
      %v2061 = vlaneseq
      %v2062 = vshrl.u32 %v2061, 7
      %v2063 = vsub.s32 %v2060, %v2062
      %v2064 = vrot.slane %v2056, %v2063
      %v2066 = vunpack.c.l.s4 1934713408
      %v2067 = vunpack.c.0.s8 %v2066
      %v2068 = vlaneseq
      %v2069 = vshrl.u32 %v2068, 7
      %v2070 = vsub.s32 %v2067, %v2069
      %v2071 = vrot.slane %v2057, %v2070
      %v2072 = vcombine.low %v2048, %v2064
      %v2073 = vcombine.high %v2048, %v2064
      %v2074 = vcombine.low %v2055, %v2071
      %v2075 = vcombine.high %v2055, %v2071
      %v2077 = vsel %vm1019, %v2072, 0
      %v2080 = vsel %vm1019, %v1356, 0
      %2082 = vmatprep.subr.mxu0 0.0
      %2083 = vmatpush1.xpose.msra.mxu0 %v2080
      %2084 = vmatprep.subr.mxu0 0.0
      %2085 = vmatpush1.xpose.msra.mxu0 0.0
      %2086 = vmatprep.subr.mxu0 0.0
      %2087 = vmatpush1.xpose.msra.mxu0 0.0
      %2088 = vmatprep.subr.mxu0 0.0
      %2089 = vmatpush1.xpose.msra.mxu0 0.0
      %2090 = vmatprep.subr.mxu0 0.0
      %2091 = vmatpush1.xpose.msra.mxu0 0.0
      %2092 = vmatprep.subr.mxu0 0.0
      %2093 = vmatpush1.xpose.msra.mxu0 0.0
      %2094 = vmatprep.subr.mxu0 0.0
      %2095 = vmatpush1.xpose.msra.mxu0 0.0
      %2096 = vmatprep.subr.mxu0 0.0
      %2097 = vmatpush1.xpose.msra.mxu0 0.0
      %2098 = vmatprep.subr.mxu0 0.0
      %2099 = vmatpush1.xpose.msra.mxu0 0.0
      %2100 = vmatprep.subr.mxu0 0.0
      %2101 = vmatpush1.xpose.msra.mxu0 0.0
      %2102 = vmatprep.subr.mxu0 0.0
      %2103 = vmatpush1.xpose.msra.mxu0 0.0
      %2104 = vmatprep.subr.mxu0 0.0
      %2105 = vmatpush1.xpose.msra.mxu0 0.0
      %2106 = vmatprep.subr.mxu0 0.0
      %2107 = vmatpush1.xpose.msra.mxu0 0.0
      %2108 = vmatprep.subr.mxu0 0.0
      %2109 = vmatpush1.xpose.msra.mxu0 0.0
      %2110 = vmatprep.subr.mxu0 0.0
      %2111 = vmatpush1.xpose.msra.mxu0 0.0
      %2112 = vmatprep.subr.mxu0 0.0
      %2113 = vmatpush1.xpose.msra.mxu0 0.0
      %2114 = vmatprep.subr.mxu0 0.0
      %2115 = vmatpush1.xpose.msra.mxu0 0.0
      %2116 = vmatprep.subr.mxu0 0.0
      %2117 = vmatpush1.xpose.msra.mxu0 0.0
      %2118 = vmatprep.subr.mxu0 0.0
      %2119 = vmatpush1.xpose.msra.mxu0 0.0
      %2120 = vmatprep.subr.mxu0 0.0
      %2121 = vmatpush1.xpose.msra.mxu0 0.0
      %2122 = vmatprep.subr.mxu0 0.0
      %2123 = vmatpush1.xpose.msra.mxu0 0.0
      %2124 = vmatprep.subr.mxu0 0.0
      %2125 = vmatpush1.xpose.msra.mxu0 0.0
      %2126 = vmatprep.subr.mxu0 0.0
      %2127 = vmatpush1.xpose.msra.mxu0 0.0
      %2128 = vmatprep.subr.mxu0 0.0
      %2129 = vmatpush1.xpose.msra.mxu0 0.0
      %2130 = vmatprep.subr.mxu0 0.0
      %2131 = vmatpush1.xpose.msra.mxu0 0.0
      %2132 = vmatprep.subr.mxu0 0.0
      %2133 = vmatpush1.xpose.msra.mxu0 0.0
      %2134 = vmatprep.subr.mxu0 0.0
      %2135 = vmatpush1.xpose.msra.mxu0 0.0
      %2136 = vmatprep.subr.mxu0 0.0
      %2137 = vmatpush1.xpose.msra.mxu0 0.0
      %2138 = vmatprep.subr.mxu0 0.0
      %2139 = vmatpush1.xpose.msra.mxu0 0.0
      %2140 = vmatprep.subr.mxu0 0.0
      %2141 = vmatpush1.xpose.msra.mxu0 0.0
      %2142 = vmatprep.subr.mxu0 0.0
      %2143 = vmatpush1.xpose.msra.mxu0 0.0
      %2144 = vmatprep.subr.mxu0 0.0
      %2145 = vmatpush1.xpose.msra.mxu0 0.0
      %2146 = vmatprep.mubr.f32.mxu0 0.0
      %2147 = vmatmul.mubr.f32.gmra.mrb[0].mxu0 %v2077
      %v2148 = vpop.f32.mrb[0].mxu0
      %v2149 = vadd.f32 0.0, %v2148
      %v2150 = vpop.f32.mrb[0].mxu0
      %2151 = vdwg.mxu0
      %v2153 = vsel %vm1019, %v2073, 0
      %v2156 = vsel %vm1019, %v1357, 0
      %2158 = vmatprep.subr.mxu0 0.0
      %2159 = vmatpush1.xpose.msra.mxu0 %v2156
      %2160 = vmatprep.subr.mxu0 0.0
      %2161 = vmatpush1.xpose.msra.mxu0 0.0
      %2162 = vmatprep.subr.mxu0 0.0
      %2163 = vmatpush1.xpose.msra.mxu0 0.0
      %2164 = vmatprep.subr.mxu0 0.0
      %2165 = vmatpush1.xpose.msra.mxu0 0.0
      %2166 = vmatprep.subr.mxu0 0.0
      %2167 = vmatpush1.xpose.msra.mxu0 0.0
      %2168 = vmatprep.subr.mxu0 0.0
      %2169 = vmatpush1.xpose.msra.mxu0 0.0
      %2170 = vmatprep.subr.mxu0 0.0
      %2171 = vmatpush1.xpose.msra.mxu0 0.0
      %2172 = vmatprep.subr.mxu0 0.0
      %2173 = vmatpush1.xpose.msra.mxu0 0.0
      %2174 = vmatprep.subr.mxu0 0.0
      %2175 = vmatpush1.xpose.msra.mxu0 0.0
      %2176 = vmatprep.subr.mxu0 0.0
      %2177 = vmatpush1.xpose.msra.mxu0 0.0
      %2178 = vmatprep.subr.mxu0 0.0
      %2179 = vmatpush1.xpose.msra.mxu0 0.0
      %2180 = vmatprep.subr.mxu0 0.0
      %2181 = vmatpush1.xpose.msra.mxu0 0.0
      %2182 = vmatprep.subr.mxu0 0.0
      %2183 = vmatpush1.xpose.msra.mxu0 0.0
      %2184 = vmatprep.subr.mxu0 0.0
      %2185 = vmatpush1.xpose.msra.mxu0 0.0
      %2186 = vmatprep.subr.mxu0 0.0
      %2187 = vmatpush1.xpose.msra.mxu0 0.0
      %2188 = vmatprep.subr.mxu0 0.0
      %2189 = vmatpush1.xpose.msra.mxu0 0.0
      %2190 = vmatprep.subr.mxu0 0.0
      %2191 = vmatpush1.xpose.msra.mxu0 0.0
      %2192 = vmatprep.subr.mxu0 0.0
      %2193 = vmatpush1.xpose.msra.mxu0 0.0
      %2194 = vmatprep.subr.mxu0 0.0
      %2195 = vmatpush1.xpose.msra.mxu0 0.0
      %2196 = vmatprep.subr.mxu0 0.0
      %2197 = vmatpush1.xpose.msra.mxu0 0.0
      %2198 = vmatprep.subr.mxu0 0.0
      %2199 = vmatpush1.xpose.msra.mxu0 0.0
      %2200 = vmatprep.subr.mxu0 0.0
      %2201 = vmatpush1.xpose.msra.mxu0 0.0
      %2202 = vmatprep.subr.mxu0 0.0
      %2203 = vmatpush1.xpose.msra.mxu0 0.0
      %2204 = vmatprep.subr.mxu0 0.0
      %2205 = vmatpush1.xpose.msra.mxu0 0.0
      %2206 = vmatprep.subr.mxu0 0.0
      %2207 = vmatpush1.xpose.msra.mxu0 0.0
      %2208 = vmatprep.subr.mxu0 0.0
      %2209 = vmatpush1.xpose.msra.mxu0 0.0
      %2210 = vmatprep.subr.mxu0 0.0
      %2211 = vmatpush1.xpose.msra.mxu0 0.0
      %2212 = vmatprep.subr.mxu0 0.0
      %2213 = vmatpush1.xpose.msra.mxu0 0.0
      %2214 = vmatprep.subr.mxu0 0.0
      %2215 = vmatpush1.xpose.msra.mxu0 0.0
      %2216 = vmatprep.subr.mxu0 0.0
      %2217 = vmatpush1.xpose.msra.mxu0 0.0
      %2218 = vmatprep.subr.mxu0 0.0
      %2219 = vmatpush1.xpose.msra.mxu0 0.0
      %2220 = vmatprep.subr.mxu0 0.0
      %2221 = vmatpush1.xpose.msra.mxu0 0.0
      %2222 = vmatprep.mubr.f32.mxu0 0.0
      %2223 = vmatmul.mubr.f32.gmra.mrb[0].mxu0 %v2153
      %v2224 = vpop.f32.mrb[0].mxu0
      %v2225 = vadd.f32 0.0, %v2224
      %v2226 = vpop.f32.mrb[0].mxu0
      %2227 = vdwg.mxu0
      %v2229 = vsel %vm1019, %v2074, 0
      %v2232 = vsel %vm1019, %v1358, 0
      %2234 = vmatprep.subr.mxu0 0.0
      %2235 = vmatpush1.xpose.msra.mxu0 %v2232
      %2236 = vmatprep.subr.mxu0 0.0
      %2237 = vmatpush1.xpose.msra.mxu0 0.0
      %2238 = vmatprep.subr.mxu0 0.0
      %2239 = vmatpush1.xpose.msra.mxu0 0.0
      %2240 = vmatprep.subr.mxu0 0.0
      %2241 = vmatpush1.xpose.msra.mxu0 0.0
      %2242 = vmatprep.subr.mxu0 0.0
      %2243 = vmatpush1.xpose.msra.mxu0 0.0
      %2244 = vmatprep.subr.mxu0 0.0
      %2245 = vmatpush1.xpose.msra.mxu0 0.0
      %2246 = vmatprep.subr.mxu0 0.0
      %2247 = vmatpush1.xpose.msra.mxu0 0.0
      %2248 = vmatprep.subr.mxu0 0.0
      %2249 = vmatpush1.xpose.msra.mxu0 0.0
      %2250 = vmatprep.subr.mxu0 0.0
      %2251 = vmatpush1.xpose.msra.mxu0 0.0
      %2252 = vmatprep.subr.mxu0 0.0
      %2253 = vmatpush1.xpose.msra.mxu0 0.0
      %2254 = vmatprep.subr.mxu0 0.0
      %2255 = vmatpush1.xpose.msra.mxu0 0.0
      %2256 = vmatprep.subr.mxu0 0.0
      %2257 = vmatpush1.xpose.msra.mxu0 0.0
      %2258 = vmatprep.subr.mxu0 0.0
      %2259 = vmatpush1.xpose.msra.mxu0 0.0
      %2260 = vmatprep.subr.mxu0 0.0
      %2261 = vmatpush1.xpose.msra.mxu0 0.0
      %2262 = vmatprep.subr.mxu0 0.0
      %2263 = vmatpush1.xpose.msra.mxu0 0.0
      %2264 = vmatprep.subr.mxu0 0.0
      %2265 = vmatpush1.xpose.msra.mxu0 0.0
      %2266 = vmatprep.subr.mxu0 0.0
      %2267 = vmatpush1.xpose.msra.mxu0 0.0
      %2268 = vmatprep.subr.mxu0 0.0
      %2269 = vmatpush1.xpose.msra.mxu0 0.0
      %2270 = vmatprep.subr.mxu0 0.0
      %2271 = vmatpush1.xpose.msra.mxu0 0.0
      %2272 = vmatprep.subr.mxu0 0.0
      %2273 = vmatpush1.xpose.msra.mxu0 0.0
      %2274 = vmatprep.subr.mxu0 0.0
      %2275 = vmatpush1.xpose.msra.mxu0 0.0
      %2276 = vmatprep.subr.mxu0 0.0
      %2277 = vmatpush1.xpose.msra.mxu0 0.0
      %2278 = vmatprep.subr.mxu0 0.0
      %2279 = vmatpush1.xpose.msra.mxu0 0.0
      %2280 = vmatprep.subr.mxu0 0.0
      %2281 = vmatpush1.xpose.msra.mxu0 0.0
      %2282 = vmatprep.subr.mxu0 0.0
      %2283 = vmatpush1.xpose.msra.mxu0 0.0
      %2284 = vmatprep.subr.mxu0 0.0
      %2285 = vmatpush1.xpose.msra.mxu0 0.0
      %2286 = vmatprep.subr.mxu0 0.0
      %2287 = vmatpush1.xpose.msra.mxu0 0.0
      %2288 = vmatprep.subr.mxu0 0.0
      %2289 = vmatpush1.xpose.msra.mxu0 0.0
      %2290 = vmatprep.subr.mxu0 0.0
      %2291 = vmatpush1.xpose.msra.mxu0 0.0
      %2292 = vmatprep.subr.mxu0 0.0
      %2293 = vmatpush1.xpose.msra.mxu0 0.0
      %2294 = vmatprep.subr.mxu0 0.0
      %2295 = vmatpush1.xpose.msra.mxu0 0.0
      %2296 = vmatprep.subr.mxu0 0.0
      %2297 = vmatpush1.xpose.msra.mxu0 0.0
      %2298 = vmatprep.mubr.f32.mxu0 0.0
      %2299 = vmatmul.mubr.f32.gmra.mrb[0].mxu0 %v2229
      %v2300 = vpop.f32.mrb[0].mxu0
      %v2301 = vadd.f32 0.0, %v2300
      %v2302 = vpop.f32.mrb[0].mxu0
      %2303 = vdwg.mxu0
      %v2305 = vsel %vm1019, %v2075, 0
      %v2308 = vsel %vm1019, %v1359, 0
      %2310 = vmatprep.subr.mxu0 0.0
      %2311 = vmatpush1.xpose.msra.mxu0 %v2308
      %2312 = vmatprep.subr.mxu0 0.0
      %2313 = vmatpush1.xpose.msra.mxu0 0.0
      %2314 = vmatprep.subr.mxu0 0.0
      %2315 = vmatpush1.xpose.msra.mxu0 0.0
      %2316 = vmatprep.subr.mxu0 0.0
      %2317 = vmatpush1.xpose.msra.mxu0 0.0
      %2318 = vmatprep.subr.mxu0 0.0
      %2319 = vmatpush1.xpose.msra.mxu0 0.0
      %2320 = vmatprep.subr.mxu0 0.0
      %2321 = vmatpush1.xpose.msra.mxu0 0.0
      %2322 = vmatprep.subr.mxu0 0.0
      %2323 = vmatpush1.xpose.msra.mxu0 0.0
      %2324 = vmatprep.subr.mxu0 0.0
      %2325 = vmatpush1.xpose.msra.mxu0 0.0
      %2326 = vmatprep.subr.mxu0 0.0
      %2327 = vmatpush1.xpose.msra.mxu0 0.0
      %2328 = vmatprep.subr.mxu0 0.0
      %2329 = vmatpush1.xpose.msra.mxu0 0.0
      %2330 = vmatprep.subr.mxu0 0.0
      %2331 = vmatpush1.xpose.msra.mxu0 0.0
      %2332 = vmatprep.subr.mxu0 0.0
      %2333 = vmatpush1.xpose.msra.mxu0 0.0
      %2334 = vmatprep.subr.mxu0 0.0
      %2335 = vmatpush1.xpose.msra.mxu0 0.0
      %2336 = vmatprep.subr.mxu0 0.0
      %2337 = vmatpush1.xpose.msra.mxu0 0.0
      %2338 = vmatprep.subr.mxu0 0.0
      %2339 = vmatpush1.xpose.msra.mxu0 0.0
      %2340 = vmatprep.subr.mxu0 0.0
      %2341 = vmatpush1.xpose.msra.mxu0 0.0
      %2342 = vmatprep.subr.mxu0 0.0
      %2343 = vmatpush1.xpose.msra.mxu0 0.0
      %2344 = vmatprep.subr.mxu0 0.0
      %2345 = vmatpush1.xpose.msra.mxu0 0.0
      %2346 = vmatprep.subr.mxu0 0.0
      %2347 = vmatpush1.xpose.msra.mxu0 0.0
      %2348 = vmatprep.subr.mxu0 0.0
      %2349 = vmatpush1.xpose.msra.mxu0 0.0
      %2350 = vmatprep.subr.mxu0 0.0
      %2351 = vmatpush1.xpose.msra.mxu0 0.0
      %2352 = vmatprep.subr.mxu0 0.0
      %2353 = vmatpush1.xpose.msra.mxu0 0.0
      %2354 = vmatprep.subr.mxu0 0.0
      %2355 = vmatpush1.xpose.msra.mxu0 0.0
      %2356 = vmatprep.subr.mxu0 0.0
      %2357 = vmatpush1.xpose.msra.mxu0 0.0
      %2358 = vmatprep.subr.mxu0 0.0
      %2359 = vmatpush1.xpose.msra.mxu0 0.0
      %2360 = vmatprep.subr.mxu0 0.0
      %2361 = vmatpush1.xpose.msra.mxu0 0.0
      %2362 = vmatprep.subr.mxu0 0.0
      %2363 = vmatpush1.xpose.msra.mxu0 0.0
      %2364 = vmatprep.subr.mxu0 0.0
      %2365 = vmatpush1.xpose.msra.mxu0 0.0
      %2366 = vmatprep.subr.mxu0 0.0
      %2367 = vmatpush1.xpose.msra.mxu0 0.0
      %2368 = vmatprep.subr.mxu0 0.0
      %2369 = vmatpush1.xpose.msra.mxu0 0.0
      %2370 = vmatprep.subr.mxu0 0.0
      %2371 = vmatpush1.xpose.msra.mxu0 0.0
      %2372 = vmatprep.subr.mxu0 0.0
      %2373 = vmatpush1.xpose.msra.mxu0 0.0
      %2374 = vmatprep.mubr.f32.mxu0 0.0
      %2375 = vmatmul.mubr.f32.gmra.mrb[0].mxu0 %v2305
      %v2376 = vpop.f32.mrb[0].mxu0
      %v2377 = vadd.f32 0.0, %v2376
      %v2378 = vpop.f32.mrb[0].mxu0
      %2379 = vdwg.mxu0
      %2380 = vxpose.xlu0.b32.start [1/16] %v2149, 128
      %2381 = vxpose.xlu0.b32.cont [2/16] 0.0, 128
      %2382 = vxpose.xlu0.b32.cont [3/16] 0.0, 128
      %2383 = vxpose.xlu0.b32.cont [4/16] 0.0, 128
      %2384 = vxpose.xlu0.b32.cont [5/16] 0.0, 128
      %2385 = vxpose.xlu0.b32.cont [6/16] 0.0, 128
      %2386 = vxpose.xlu0.b32.cont [7/16] 0.0, 128
      %2387 = vxpose.xlu0.b32.cont [8/16] 0.0, 128
      %2388 = vxpose.xlu0.b32.cont [9/16] 0.0, 128
      %2389 = vxpose.xlu0.b32.cont [10/16] 0.0, 128
      %2390 = vxpose.xlu0.b32.cont [11/16] 0.0, 128
      %2391 = vxpose.xlu0.b32.cont [12/16] 0.0, 128
      %2392 = vxpose.xlu0.b32.cont [13/16] 0.0, 128
      %2393 = vxpose.xlu0.b32.cont [14/16] 0.0, 128
      %2394 = vxpose.xlu0.b32.cont [15/16] 0.0, 128
      %2395 = vxpose.xlu0.b32.end [16/16] 0.0, 128
      %v2396 = vpop.trf.xlu0
      %v2397 = vpop.trf.xlu0
      %v2398 = vpop.trf.xlu0
      %v2399 = vpop.trf.xlu0
      %v2400 = vpop.trf.xlu0
      %v2401 = vpop.trf.xlu0
      %v2402 = vpop.trf.xlu0
      %v2403 = vpop.trf.xlu0
      %v2404 = vpop.trf.xlu0
      %v2405 = vpop.trf.xlu0
      %v2406 = vpop.trf.xlu0
      %v2407 = vpop.trf.xlu0
      %v2408 = vpop.trf.xlu0
      %v2409 = vpop.trf.xlu0
      %v2410 = vpop.trf.xlu0
      %v2411 = vpop.trf.xlu0
      %2412 = vxpose.xlu0.b32.start [1/16] %v2225, 128
      %2413 = vxpose.xlu0.b32.cont [2/16] 0.0, 128
      %2414 = vxpose.xlu0.b32.cont [3/16] 0.0, 128
      %2415 = vxpose.xlu0.b32.cont [4/16] 0.0, 128
      %2416 = vxpose.xlu0.b32.cont [5/16] 0.0, 128
      %2417 = vxpose.xlu0.b32.cont [6/16] 0.0, 128
      %2418 = vxpose.xlu0.b32.cont [7/16] 0.0, 128
      %2419 = vxpose.xlu0.b32.cont [8/16] 0.0, 128
      %2420 = vxpose.xlu0.b32.cont [9/16] 0.0, 128
      %2421 = vxpose.xlu0.b32.cont [10/16] 0.0, 128
      %2422 = vxpose.xlu0.b32.cont [11/16] 0.0, 128
      %2423 = vxpose.xlu0.b32.cont [12/16] 0.0, 128
      %2424 = vxpose.xlu0.b32.cont [13/16] 0.0, 128
      %2425 = vxpose.xlu0.b32.cont [14/16] 0.0, 128
      %2426 = vxpose.xlu0.b32.cont [15/16] 0.0, 128
      %2427 = vxpose.xlu0.b32.end [16/16] 0.0, 128
      %v2428 = vpop.trf.xlu0
      %v2429 = vpop.trf.xlu0
      %v2430 = vpop.trf.xlu0
      %v2431 = vpop.trf.xlu0
      %v2432 = vpop.trf.xlu0
      %v2433 = vpop.trf.xlu0
      %v2434 = vpop.trf.xlu0
      %v2435 = vpop.trf.xlu0
      %v2436 = vpop.trf.xlu0
      %v2437 = vpop.trf.xlu0
      %v2438 = vpop.trf.xlu0
      %v2439 = vpop.trf.xlu0
      %v2440 = vpop.trf.xlu0
      %v2441 = vpop.trf.xlu0
      %v2442 = vpop.trf.xlu0
      %v2443 = vpop.trf.xlu0
      %2444 = vxpose.xlu0.b32.start [1/16] %v2301, 128
      %2445 = vxpose.xlu0.b32.cont [2/16] 0.0, 128
      %2446 = vxpose.xlu0.b32.cont [3/16] 0.0, 128
      %2447 = vxpose.xlu0.b32.cont [4/16] 0.0, 128
      %2448 = vxpose.xlu0.b32.cont [5/16] 0.0, 128
      %2449 = vxpose.xlu0.b32.cont [6/16] 0.0, 128
      %2450 = vxpose.xlu0.b32.cont [7/16] 0.0, 128
      %2451 = vxpose.xlu0.b32.cont [8/16] 0.0, 128
      %2452 = vxpose.xlu0.b32.cont [9/16] 0.0, 128
      %2453 = vxpose.xlu0.b32.cont [10/16] 0.0, 128
      %2454 = vxpose.xlu0.b32.cont [11/16] 0.0, 128
      %2455 = vxpose.xlu0.b32.cont [12/16] 0.0, 128
      %2456 = vxpose.xlu0.b32.cont [13/16] 0.0, 128
      %2457 = vxpose.xlu0.b32.cont [14/16] 0.0, 128
      %2458 = vxpose.xlu0.b32.cont [15/16] 0.0, 128
      %2459 = vxpose.xlu0.b32.end [16/16] 0.0, 128
      %v2460 = vpop.trf.xlu0
      %v2461 = vpop.trf.xlu0
      %v2462 = vpop.trf.xlu0
      %v2463 = vpop.trf.xlu0
      %v2464 = vpop.trf.xlu0
      %v2465 = vpop.trf.xlu0
      %v2466 = vpop.trf.xlu0
      %v2467 = vpop.trf.xlu0
      %v2468 = vpop.trf.xlu0
      %v2469 = vpop.trf.xlu0
      %v2470 = vpop.trf.xlu0
      %v2471 = vpop.trf.xlu0
      %v2472 = vpop.trf.xlu0
      %v2473 = vpop.trf.xlu0
      %v2474 = vpop.trf.xlu0
      %v2475 = vpop.trf.xlu0
      %2476 = vxpose.xlu0.b32.start [1/16] %v2377, 128
      %2477 = vxpose.xlu0.b32.cont [2/16] 0.0, 128
      %2478 = vxpose.xlu0.b32.cont [3/16] 0.0, 128
      %2479 = vxpose.xlu0.b32.cont [4/16] 0.0, 128
      %2480 = vxpose.xlu0.b32.cont [5/16] 0.0, 128
      %2481 = vxpose.xlu0.b32.cont [6/16] 0.0, 128
      %2482 = vxpose.xlu0.b32.cont [7/16] 0.0, 128
      %2483 = vxpose.xlu0.b32.cont [8/16] 0.0, 128
      %2484 = vxpose.xlu0.b32.cont [9/16] 0.0, 128
      %2485 = vxpose.xlu0.b32.cont [10/16] 0.0, 128
      %2486 = vxpose.xlu0.b32.cont [11/16] 0.0, 128
      %2487 = vxpose.xlu0.b32.cont [12/16] 0.0, 128
      %2488 = vxpose.xlu0.b32.cont [13/16] 0.0, 128
      %2489 = vxpose.xlu0.b32.cont [14/16] 0.0, 128
      %2490 = vxpose.xlu0.b32.cont [15/16] 0.0, 128
      %2491 = vxpose.xlu0.b32.end [16/16] 0.0, 128
      %v2492 = vpop.trf.xlu0
      %v2493 = vpop.trf.xlu0
      %v2494 = vpop.trf.xlu0
      %v2495 = vpop.trf.xlu0
      %v2496 = vpop.trf.xlu0
      %v2497 = vpop.trf.xlu0
      %v2498 = vpop.trf.xlu0
      %v2499 = vpop.trf.xlu0
      %v2500 = vpop.trf.xlu0
      %v2501 = vpop.trf.xlu0
      %v2502 = vpop.trf.xlu0
      %v2503 = vpop.trf.xlu0
      %v2504 = vpop.trf.xlu0
      %v2505 = vpop.trf.xlu0
      %v2506 = vpop.trf.xlu0
      %v2507 = vpop.trf.xlu0
      %v2508 = vcombine.low %v2396, %v2460
      %v2509 = vcombine.high %v2396, %v2460
      %v2511 = vunpack.c.l.s4 1983009808
      %v2512 = vunpack.c.0.s8 %v2511
      %v2513 = vlaneseq
      %v2514 = vshrl.u32 %v2513, 7
      %v2515 = vsub.s32 %v2512, %v2514
      %v2516 = vrot.slane %v2508, %v2515
      %v2518 = vunpack.c.l.s4 1983009808
      %v2519 = vunpack.c.0.s8 %v2518
      %v2520 = vlaneseq
      %v2521 = vshrl.u32 %v2520, 7
      %v2522 = vsub.s32 %v2519, %v2521
      %v2523 = vrot.slane %v2509, %v2522
      %v2524 = vcombine.low %v2428, %v2492
      %v2525 = vcombine.high %v2428, %v2492
      %v2527 = vunpack.c.l.s4 1983009808
      %v2528 = vunpack.c.0.s8 %v2527
      %v2529 = vlaneseq
      %v2530 = vshrl.u32 %v2529, 7
      %v2531 = vsub.s32 %v2528, %v2530
      %v2532 = vrot.slane %v2524, %v2531
      %v2534 = vunpack.c.l.s4 1983009808
      %v2535 = vunpack.c.0.s8 %v2534
      %v2536 = vlaneseq
      %v2537 = vshrl.u32 %v2536, 7
      %v2538 = vsub.s32 %v2535, %v2537
      %v2539 = vrot.slane %v2525, %v2538
      %v2540 = vcombine.low %v2516, %v2532
      %v2541 = vcombine.high %v2516, %v2532
      %v2543 = vunpack.c.l.s4 1934713408
      %v2544 = vunpack.c.0.s8 %v2543
      %v2545 = vlaneseq
      %v2546 = vshrl.u32 %v2545, 7
      %v2547 = vsub.s32 %v2544, %v2546
      %v2548 = vrot.slane %v2540, %v2547
      %v2550 = vunpack.c.l.s4 1934713408
      %v2551 = vunpack.c.0.s8 %v2550
      %v2552 = vlaneseq
      %v2553 = vshrl.u32 %v2552, 7
      %v2554 = vsub.s32 %v2551, %v2553
      %v2555 = vrot.slane %v2541, %v2554
      %v2556 = vcombine.low %v2523, %v2539
      %v2557 = vcombine.high %v2523, %v2539
      %v2559 = vunpack.c.l.s4 1934713408
      %v2560 = vunpack.c.0.s8 %v2559
      %v2561 = vlaneseq
      %v2562 = vshrl.u32 %v2561, 7
      %v2563 = vsub.s32 %v2560, %v2562
      %v2564 = vrot.slane %v2556, %v2563
      %v2566 = vunpack.c.l.s4 1934713408
      %v2567 = vunpack.c.0.s8 %v2566
      %v2568 = vlaneseq
      %v2569 = vshrl.u32 %v2568, 7
      %v2570 = vsub.s32 %v2567, %v2569
      %v2571 = vrot.slane %v2557, %v2570
      %v2572 = vcombine.high %v2548, 0.0
      %v2573 = vcombine.high %v2555, 0.0
      %v2574 = vcombine.high %v2564, 0.0
      %v2575 = vcombine.high %v2571, 0.0
      %vm2576 = vcmask 60416
      %2577 = vst.msk [vmem:[%s210] sm:$0xf] %vm2576, %v2548
      %2578 = vst.msk [vmem:[%s210 + $0x4] sm:$0xf] %vm2576, %v2572
      %2579 = vst.msk [vmem:[%s210 + $0x8] sm:$0xf] %vm2576, %v2555
      %2580 = vst.msk [vmem:[%s210 + $0xc] sm:$0xf] %vm2576, %v2573
      %2581 = vst.msk [vmem:[%s210 + $0x10] sm:$0xf] %vm2576, %v2564
      %2582 = vst.msk [vmem:[%s210 + $0x14] sm:$0xf] %vm2576, %v2574
      %2583 = vst.msk [vmem:[%s210 + $0x18] sm:$0xf] %vm2576, %v2571
      %2584 = vst.msk [vmem:[%s210 + $0x1c] sm:$0xf] %vm2576, %v2575
      %p2585 = scmp.lt.s32.totalorder %s14, 1
      %s2586 = scalar_select %p2585, %s14, 1
      %s2587 = smul.addr %s2586, 8
      %s2588 = smul.addr %s2587, 4
      %s2589 = scalar_lea.vmem %s3, %s2588
      // Predicated region
      $region33: #{music_transformer_forward.24} parent=31 // pred_check
        %p2590 = pneg %p110
      $region34: #{music_transformer_forward.24} parent=31 // pred_check_branch
        %2592 = sbr.rel (%p2590) target = $region36
      $region35: #{music_transformer_forward.24} parent=31 // pred_region
        _
      $region36: #{music_transformer_forward.24} parent=31 // pred_fallthru
        _
    $region32: #{music_transformer_forward.24} parent=5 // pred_fallthru
      _
    %p2593 = scmp.le.s32.totalorder 2, %s9
    // Predicated region
    $region37: #{music_transformer_forward.24} parent=5 // pred_check
      %p2594 = pneg %p2593
    $region38: #{music_transformer_forward.24} parent=5 // pred_check_branch
      %2596 = sbr.rel (%p2594) target = $region40
    $region39: #{music_transformer_forward.24} parent=5 // pred_region
      %s2597 = ssub.s32 %s9, 2
      // Predicated region
      $region41: #{music_transformer_forward.24} parent=39 // pred_check
        %p2598 = pneg %p116
      $region42: #{music_transformer_forward.24} parent=39 // pred_check_branch
        %2600 = sbr.rel (%p2598) target = $region44
      $region43: #{music_transformer_forward.24} parent=39 // pred_region
        %p2601 = scmp.lt.s32.totalorder %s15, 1
        %s2602 = scalar_select %p2601, %s15, 1
        %s2603 = smul.addr %s2602, 8
        %s2604 = smul.addr %s2603, 4
        %s2605 = scalar_lea.vmem %s3, %s2604
      $region44: #{music_transformer_forward.24} parent=39 // pred_fallthru
        _
    $region40: #{music_transformer_forward.24} parent=5 // pred_fallthru
      _
  $region6: #{music_transformer_forward.24} parent=0 // loop_footer
    %s13 = sadd.s32 1, %s9
  $region7: #{music_transformer_forward.24} parent=0 // loop_footer_branch
    %8 = sbr.rel target = $region3
  $region8: #{music_transformer_forward.24} parent=0 // loop_exit
    _

</llo_original>
